<compile_context>
chip_gen: v7x
topology: tpu7x:2x2x1
jax: 0.10.0
libtpu: 0.0.40
codegen_flags: <defaults>
</compile_context>

<pallas_src>
import math

import jax
import jax.numpy as jnp
from jax.experimental import pallas as pl
from jax.experimental.pallas import tpu as pltpu

_MAX_BLOCK_ROWS = 1024  # target rows (tile_b * tile_nt) per block


def _pick_tile(dim, max_tile):
    """Largest divisor of `dim` that is a multiple of 8 and <= max_tile.

    Falls back to the full dim (always a legal block) if no such divisor
    exists or the dim already fits."""
    if dim <= max_tile:
        return dim
    t = (max_tile // 8) * 8
    while t >= 8:
        if dim % t == 0:
            return t
        t -= 8
    # TODO(synk): pad the batch/num_target dims for pathological sizes instead
    # of falling back to a full-dim block.
    return dim


# ----------------------------- kernel -------------------------------------- #

def make_decoder_kernel(num_layers, matmul_dtype=None):
    """Fused decoder MLP kernel.

    Ref order: xt (tb, tnt, Dx), one_hot (tb, C), z (tb, Lz),
               w1x, w1oh, w1z, b1, [w_i, b_i]*  , out (tb, tnt, out_dim).
    """

    def kernel(xt_ref, oh_ref, z_ref, *refs):
        out_ref = refs[-1]
        wr = refs[:-1]          # w1x, w1oh, w1z, b1, w2, b2, ...
        f32 = jnp.float32

        def mm(a, w):
            if matmul_dtype is not None:
                a = a.astype(matmul_dtype)
                w = w.astype(matmul_dtype)
            return jnp.dot(a, w, preferred_element_type=f32)

        tb, tnt, dx = xt_ref.shape

        # ---- layer 1 via split weights: latent term once per batch row ----
        lat_h = (mm(oh_ref[...], wr[1][...])
                 + mm(z_ref[...], wr[2][...])
                 + wr[3][...])                                   # (tb, H1)
        xh = mm(xt_ref[...].reshape(tb * tnt, dx), wr[0][...])    # (tb*tnt, H1)
        h3 = xh.reshape(tb, tnt, -1) + lat_h[:, None, :]          # broadcast over Nt
        if num_layers > 1:
            h3 = jnp.maximum(h3, 0.0)
        h = h3.reshape(tb * tnt, -1)

        # ---- layers 2..L ----
        for li in range(1, num_layers):
            w = wr[2 + 2 * li][...]
            b = wr[3 + 2 * li][...]
            h = mm(h, w) + b
            if li != num_layers - 1:
                h = jnp.maximum(h, 0.0)

        # ---- combined lane-dense output: [mean | 0.01 + 0.99*softplus(raw)] ----
        out_dim = h.shape[-1]
        half = out_dim // 2
        col = jax.lax.broadcasted_iota(jnp.int32, h.shape, dimension=1)
        softplus = jnp.maximum(h, 0.0) + jnp.log1p(jnp.exp(-jnp.abs(h)))
        res = jnp.where(col < half, h, 0.01 + 0.99 * softplus)
        out_ref[...] = res.reshape(tb, tnt, out_dim)

    return kernel


# ----------------------------- parameters ---------------------------------- #

def init_decoder_params(key, decoder_layer_widths, latent_dim):
    """PyTorch-default Linear init; weights stored (fan_in, fan_out), bias (1, fan_out)."""
    widths = list(decoder_layer_widths)
    n_layers = len(widths) - 1
    keys = jax.random.split(key, n_layers)
    ws, bs = [], []
    for i in range(n_layers):
        fan_in = widths[i] + (latent_dim if i == 0 else 0)
        fan_out = widths[i + 1]
        kw, kb = jax.random.split(keys[i])
        bound = 1.0 / math.sqrt(fan_in)
        ws.append(jax.random.uniform(kw, (fan_in, fan_out), jnp.float32, -bound, bound))
        bs.append(jax.random.uniform(kb, (1, fan_out), jnp.float32, -bound, bound))
    return {'ws': ws, 'bs': bs}


# ----------------------------- forward ------------------------------------- #

def decoder_forward(params, x_target, one_hot, z, matmul_dtype=None):
    """Decoder forward. x_target (..., Nt, Dx); one_hot (..., C); z (..., Lz).

    Returns mean, std each of shape (..., Nt, output_dim // 2)."""
    ws, bs = params['ws'], params['bs']
    num_layers = len(ws)
    out_dim = ws[-1].shape[1]

    lead = x_target.shape[:-2]
    nt, dx = x_target.shape[-2:]
    c = one_hot.shape[-1]
    lz = z.shape[-1]
    bfull = int(math.prod(lead)) if lead else 1

    xt = x_target.reshape(bfull, nt, dx)
    oh = one_hot.reshape(bfull, c)
    zz = z.reshape(bfull, lz)

    # split first-layer weight by rows: [x | one_hot | z] column blocks of the concat
    w1 = ws[0]
    weight_args = [w1[:dx], w1[dx:dx + c], w1[dx + c:], bs[0]]
    for w, b in zip(ws[1:], bs[1:]):
        weight_args += [w, b]

    tile_nt = _pick_tile(nt, 512)
    tile_b = _pick_tile(bfull, max(8, _MAX_BLOCK_ROWS // tile_nt))
    grid = (bfull // tile_b, nt // tile_nt)

    in_specs = [
        pl.BlockSpec((tile_b, tile_nt, dx), lambda i, j: (i, j, 0)),
        pl.BlockSpec((tile_b, c), lambda i, j: (i, 0)),
        pl.BlockSpec((tile_b, lz), lambda i, j: (i, 0)),
    ] + [pl.BlockSpec(a.shape, lambda i, j: (0, 0)) for a in weight_args]

    combined = pl.pallas_call(
        make_decoder_kernel(num_layers, matmul_dtype),
        out_shape=jax.ShapeDtypeStruct((bfull, nt, out_dim), jnp.float32),
        grid=grid,
        in_specs=in_specs,
        out_specs=pl.BlockSpec((tile_b, tile_nt, out_dim), lambda i, j: (i, j, 0)),
        compiler_params=pltpu.CompilerParams(
            dimension_semantics=("parallel", "parallel"),
            vmem_limit_bytes=32 * 1024 * 1024),
    )(xt, oh, zz, *weight_args)

    half = out_dim // 2
    combined = combined.reshape(*lead, nt, out_dim)
    return combined[..., :half], combined[..., half:]


# ----------------------------- pure-JAX reference --------------------------- #

def decoder_reference(params, x_target, one_hot, z):
    latent = jnp.concatenate([one_hot, z], axis=-1)
    nt = x_target.shape[-2]
    latent = jnp.repeat(latent[..., None, :], nt, axis=-2)
    h = jnp.concatenate([x_target, latent], axis=-1)
    ws, bs = params['ws'], params['bs']
    n = len(ws)
    for i, (w, b) in enumerate(zip(ws, bs)):
        h = jnp.dot(h, w, precision=jax.lax.Precision.HIGHEST) + b
        if i != n - 1:
            h = jnp.maximum(h, 0.0)
    out_dim = ws[-1].shape[1]
    half = out_dim // 2
    mean = h[..., :half]
    raw = h[..., half:2 * half]
    std = 0.01 + 0.99 * (jnp.maximum(raw, 0.0) + jnp.log1p(jnp.exp(-jnp.abs(raw))))
    return mean, std


# ----------------------------- main ----------------------------------------- #

if __name__ == "__main__":
    # Small configuration consistent with the NP Decoder.
    Dx = 2
    num_classes, z_dim = 4, 8
    latent_dim = num_classes + z_dim            # Decoder latent = dim(one_hot) + dim(z)
    decoder_layer_widths = [Dx, 32, 32, 2]      # output_dim = 2 -> mean/std each dim 1
    batch, num_samples, num_target = 8, 2, 128
    Bfull = batch * num_samples

    root = jax.random.PRNGKey(0)
    kp, kx, ko, kz = jax.random.split(root, 4)
    params = init_decoder_params(kp, decoder_layer_widths, latent_dim)

    x_target = jax.random.normal(kx, (Bfull, num_target, Dx), jnp.float32)
    cls = jax.random.randint(ko, (Bfull,), 0, num_classes)
    one_hot = jax.nn.one_hot(cls, num_classes, dtype=jnp.float32)
    z = jax.random.normal(kz, (Bfull, z_dim), jnp.float32)

    fwd = jax.jit(decoder_forward)
    mean, std = fwd(params, x_target, one_hot, z)
    jax.block_until_ready((mean, std))

    out_dim = decoder_layer_widths[-1]
    assert mean.shape == (Bfull, num_target, out_dim // 2)
    assert std.shape == (Bfull, num_target, out_dim // 2)
    assert bool(jnp.all(std > 0.0))

    ref_mean, ref_std = decoder_reference(params, x_target, one_hot, z)
    assert bool(jnp.allclose(mean, ref_mean, atol=1e-4, rtol=1e-4)), \
        float(jnp.max(jnp.abs(mean - ref_mean)))
    assert bool(jnp.allclose(std, ref_std, atol=1e-4, rtol=1e-4)), \
        float(jnp.max(jnp.abs(std - ref_std)))

    # 3-D leading-dims path (num_samples, batch, num_target, Dx): wrapper flattens
    # the leading dims, matching the torch repeat-over-num_target semantics.
    xt3 = x_target.reshape(num_samples, batch, num_target, Dx)
    oh3 = one_hot.reshape(num_samples, batch, num_classes)
    z3 = z.reshape(num_samples, batch, z_dim)
    mean3, std3 = fwd(params, xt3, oh3, z3)
    jax.block_until_ready((mean3, std3))
    assert mean3.shape == (num_samples, batch, num_target, out_dim // 2)
    assert bool(jnp.allclose(mean3.reshape(mean.shape), mean, atol=1e-6))
    assert bool(jnp.allclose(std3.reshape(std.shape), std, atol=1e-6))

    print("KERNEL_OK")
</pallas_src>

<mosaic_0001>
module attributes {stable_mosaic.version = 11 : i64} {
  func.func @kernel(%arg0: i32, %arg1: i32, %arg2: memref<8x128x2xf32, #tpu.memory_space<vmem>>, %arg3: memref<8x4xf32, #tpu.memory_space<vmem>>, %arg4: memref<8x8xf32, #tpu.memory_space<vmem>>, %arg5: memref<2x32xf32, #tpu.memory_space<vmem>>, %arg6: memref<4x32xf32, #tpu.memory_space<vmem>>, %arg7: memref<8x32xf32, #tpu.memory_space<vmem>>, %arg8: memref<1x32xf32, #tpu.memory_space<vmem>>, %arg9: memref<32x32xf32, #tpu.memory_space<vmem>>, %arg10: memref<1x32xf32, #tpu.memory_space<vmem>>, %arg11: memref<32x2xf32, #tpu.memory_space<vmem>>, %arg12: memref<1x2xf32, #tpu.memory_space<vmem>>, %arg13: memref<8x128x2xf32, #tpu.memory_space<vmem>>) attributes {dimension_semantics = [#tpu.dimension_semantics<parallel>, #tpu.dimension_semantics<parallel>], iteration_bounds = array<i64: 2, 1>, scalar_prefetch = 0 : i64, scratch_operands = 0 : i64, tpu.core_type = #tpu.core_type<tc>, window_params = [{transform_indices = @transform_0, window_bounds = array<i64: 8, 128, 2>}, {transform_indices = @transform_1, window_bounds = array<i64: 8, 4>}, {transform_indices = @transform_2, window_bounds = array<i64: 8, 8>}, {pipeline_mode = #tpu.pipeline_mode<synchronous>, transform_indices = @transform_3, window_bounds = array<i64: 2, 32>}, {pipeline_mode = #tpu.pipeline_mode<synchronous>, transform_indices = @transform_4, window_bounds = array<i64: 4, 32>}, {pipeline_mode = #tpu.pipeline_mode<synchronous>, transform_indices = @transform_5, window_bounds = array<i64: 8, 32>}, {pipeline_mode = #tpu.pipeline_mode<synchronous>, transform_indices = @transform_6, window_bounds = array<i64: 1, 32>}, {pipeline_mode = #tpu.pipeline_mode<synchronous>, transform_indices = @transform_7, window_bounds = array<i64: 32, 32>}, {pipeline_mode = #tpu.pipeline_mode<synchronous>, transform_indices = @transform_8, window_bounds = array<i64: 1, 32>}, {pipeline_mode = #tpu.pipeline_mode<synchronous>, transform_indices = @transform_9, window_bounds = array<i64: 32, 2>}, {pipeline_mode = #tpu.pipeline_mode<synchronous>, transform_indices = @transform_10, window_bounds = array<i64: 1, 2>}, {transform_indices = @transform_11, window_bounds = array<i64: 8, 128, 2>}]} {
    %c0 = arith.constant 0 : index
    %c0_0 = arith.constant 0 : index
    %0 = vector.load %arg3[%c0, %c0_0] : memref<8x4xf32, #tpu.memory_space<vmem>>, vector<8x4xf32>
    %c0_1 = arith.constant 0 : index
    %c0_2 = arith.constant 0 : index
    %1 = vector.load %arg6[%c0_1, %c0_2] : memref<4x32xf32, #tpu.memory_space<vmem>>, vector<4x32xf32>
    %cst = arith.constant dense<0.000000e+00> : vector<8x32xf32>
    %2 = tpu.matmul %0, %1, %cst {dimension_numbers = #tpu.dot_dimension_numbers<[1], [0], [0], [1], [0, 0, 1, 1], [], []>} : vector<8x4xf32>, vector<4x32xf32>, vector<8x32xf32> -> vector<8x32xf32>
    %c0_3 = arith.constant 0 : index
    %c0_4 = arith.constant 0 : index
    %3 = vector.load %arg4[%c0_3, %c0_4] : memref<8x8xf32, #tpu.memory_space<vmem>>, vector<8x8xf32>
    %c0_5 = arith.constant 0 : index
    %c0_6 = arith.constant 0 : index
    %4 = vector.load %arg7[%c0_5, %c0_6] : memref<8x32xf32, #tpu.memory_space<vmem>>, vector<8x32xf32>
    %cst_7 = arith.constant dense<0.000000e+00> : vector<8x32xf32>
    %5 = tpu.matmul %3, %4, %cst_7 {dimension_numbers = #tpu.dot_dimension_numbers<[1], [0], [0], [1], [0, 0, 1, 1], [], []>} : vector<8x8xf32>, vector<8x32xf32>, vector<8x32xf32> -> vector<8x32xf32>
    %6 = arith.addf %2, %5 : vector<8x32xf32>
    %c0_8 = arith.constant 0 : index
    %c0_9 = arith.constant 0 : index
    %7 = vector.load %arg8[%c0_8, %c0_9] : memref<1x32xf32, #tpu.memory_space<vmem>>, vector<1x32xf32>
    %8 = vector.broadcast %7 : vector<1x32xf32> to vector<8x32xf32>
    %9 = arith.addf %6, %8 : vector<8x32xf32>
    %c0_10 = arith.constant 0 : index
    %c0_11 = arith.constant 0 : index
    %c0_12 = arith.constant 0 : index
    %10 = vector.load %arg2[%c0_10, %c0_11, %c0_12] : memref<8x128x2xf32, #tpu.memory_space<vmem>>, vector<8x128x2xf32>
    %11 = vector.shape_cast %10 : vector<8x128x2xf32> to vector<1024x2xf32>
    %c0_13 = arith.constant 0 : index
    %c0_14 = arith.constant 0 : index
    %12 = vector.load %arg5[%c0_13, %c0_14] : memref<2x32xf32, #tpu.memory_space<vmem>>, vector<2x32xf32>
    %cst_15 = arith.constant dense<0.000000e+00> : vector<1024x32xf32>
    %13 = tpu.matmul %11, %12, %cst_15 {dimension_numbers = #tpu.dot_dimension_numbers<[1], [0], [0], [1], [0, 0, 1, 1], [], []>} : vector<1024x2xf32>, vector<2x32xf32>, vector<1024x32xf32> -> vector<1024x32xf32>
    %14 = vector.shape_cast %13 : vector<1024x32xf32> to vector<8x128x32xf32>
    %15 = vector.shape_cast %9 : vector<8x32xf32> to vector<8x1x32xf32>
    %16 = vector.broadcast %15 : vector<8x1x32xf32> to vector<8x128x32xf32>
    %17 = arith.addf %14, %16 : vector<8x128x32xf32>
    %cst_16 = arith.constant 0.000000e+00 : f32
    %18 = vector.broadcast %cst_16 : f32 to vector<8x128x32xf32>
    %19 = arith.maximumf %17, %18 : vector<8x128x32xf32>
    %20 = vector.shape_cast %19 : vector<8x128x32xf32> to vector<1024x32xf32>
    %c0_17 = arith.constant 0 : index
    %c0_18 = arith.constant 0 : index
    %21 = vector.load %arg9[%c0_17, %c0_18] : memref<32x32xf32, #tpu.memory_space<vmem>>, vector<32x32xf32>
    %c0_19 = arith.constant 0 : index
    %c0_20 = arith.constant 0 : index
    %22 = vector.load %arg10[%c0_19, %c0_20] : memref<1x32xf32, #tpu.memory_space<vmem>>, vector<1x32xf32>
    %cst_21 = arith.constant dense<0.000000e+00> : vector<1024x32xf32>
    %23 = tpu.matmul %20, %21, %cst_21 {dimension_numbers = #tpu.dot_dimension_numbers<[1], [0], [0], [1], [0, 0, 1, 1], [], []>} : vector<1024x32xf32>, vector<32x32xf32>, vector<1024x32xf32> -> vector<1024x32xf32>
    %24 = vector.broadcast %22 : vector<1x32xf32> to vector<1024x32xf32>
    %25 = arith.addf %23, %24 : vector<1024x32xf32>
    %cst_22 = arith.constant 0.000000e+00 : f32
    %26 = vector.broadcast %cst_22 : f32 to vector<1024x32xf32>
    %27 = arith.maximumf %25, %26 : vector<1024x32xf32>
    %c0_23 = arith.constant 0 : index
    %c0_24 = arith.constant 0 : index
    %28 = vector.load %arg11[%c0_23, %c0_24] : memref<32x2xf32, #tpu.memory_space<vmem>>, vector<32x2xf32>
    %c0_25 = arith.constant 0 : index
    %c0_26 = arith.constant 0 : index
    %29 = vector.load %arg12[%c0_25, %c0_26] : memref<1x2xf32, #tpu.memory_space<vmem>>, vector<1x2xf32>
    %cst_27 = arith.constant dense<0.000000e+00> : vector<1024x2xf32>
    %30 = tpu.matmul %27, %28, %cst_27 {dimension_numbers = #tpu.dot_dimension_numbers<[1], [0], [0], [1], [0, 0, 1, 1], [], []>} : vector<1024x32xf32>, vector<32x2xf32>, vector<1024x2xf32> -> vector<1024x2xf32>
    %31 = vector.broadcast %29 : vector<1x2xf32> to vector<1024x2xf32>
    %32 = arith.addf %30, %31 : vector<1024x2xf32>
    %33 = tpu.iota {dimensions = array<i32: 1>} : vector<1024x2xi32>
    %cst_28 = arith.constant 0.000000e+00 : f32
    %34 = vector.broadcast %cst_28 : f32 to vector<1024x2xf32>
    %35 = arith.maximumf %32, %34 : vector<1024x2xf32>
    %36 = math.absf %32 : vector<1024x2xf32>
    %cst_29 = arith.constant 0.000000e+00 : f32
    %37 = vector.broadcast %cst_29 : f32 to vector<1024x2xf32>
    %38 = arith.subf %37, %36 : vector<1024x2xf32>
    %39 = math.exp %38 : vector<1024x2xf32>
    %40 = math.log1p %39 : vector<1024x2xf32>
    %41 = arith.addf %35, %40 : vector<1024x2xf32>
    %c1_i32 = arith.constant 1 : i32
    %42 = vector.broadcast %c1_i32 : i32 to vector<1024x2xi32>
    %43 = arith.cmpi slt, %33, %42 : vector<1024x2xi32>
    %cst_30 = arith.constant 9.900000e-01 : f32
    %44 = vector.broadcast %cst_30 : f32 to vector<1024x2xf32>
    %45 = arith.mulf %44, %41 : vector<1024x2xf32>
    %cst_31 = arith.constant 0.00999999977 : f32
    %46 = vector.broadcast %cst_31 : f32 to vector<1024x2xf32>
    %47 = arith.addf %46, %45 : vector<1024x2xf32>
    %48 = arith.select %43, %32, %47 : vector<1024x2xi1>, vector<1024x2xf32>
    %49 = vector.shape_cast %48 : vector<1024x2xf32> to vector<8x128x2xf32>
    %c0_32 = arith.constant 0 : index
    %c0_33 = arith.constant 0 : index
    %c0_34 = arith.constant 0 : index
    %50 = vector.load %arg13[%c0_32, %c0_33, %c0_34] : memref<8x128x2xf32, #tpu.memory_space<vmem>>, vector<8x128x2xf32>
    tpu.vector_store %arg13[%c0_32, %c0_33, %c0_34], %49 {strides = array<i32>} : memref<8x128x2xf32, #tpu.memory_space<vmem>>, vector<8x128x2xf32>,
    return
  }
  func.func @transform_0(%arg0: i32, %arg1: i32) -> (i32, i32, i32) {
    %c0_i32 = arith.constant 0 : i32
    %c0_i32_0 = arith.constant 0 : i32
    return %arg0, %arg1, %c0_i32 : i32, i32, i32
  }
  func.func @transform_1(%arg0: i32, %arg1: i32) -> (i32, i32) {
    %c0_i32 = arith.constant 0 : i32
    %c0_i32_0 = arith.constant 0 : i32
    return %arg0, %c0_i32 : i32, i32
  }
  func.func @transform_2(%arg0: i32, %arg1: i32) -> (i32, i32) {
    %c0_i32 = arith.constant 0 : i32
    %c0_i32_0 = arith.constant 0 : i32
    return %arg0, %c0_i32 : i32, i32
  }
  func.func @transform_3(%arg0: i32, %arg1: i32) -> (i32, i32) {
    %c0_i32 = arith.constant 0 : i32
    %c0_i32_0 = arith.constant 0 : i32
    %c0_i32_1 = arith.constant 0 : i32
    return %c0_i32, %c0_i32_0 : i32, i32
  }
  func.func @transform_4(%arg0: i32, %arg1: i32) -> (i32, i32) {
    %c0_i32 = arith.constant 0 : i32
    %c0_i32_0 = arith.constant 0 : i32
    %c0_i32_1 = arith.constant 0 : i32
    return %c0_i32, %c0_i32_0 : i32, i32
  }
  func.func @transform_5(%arg0: i32, %arg1: i32) -> (i32, i32) {
    %c0_i32 = arith.constant 0 : i32
    %c0_i32_0 = arith.constant 0 : i32
    %c0_i32_1 = arith.constant 0 : i32
    return %c0_i32, %c0_i32_0 : i32, i32
  }
  func.func @transform_6(%arg0: i32, %arg1: i32) -> (i32, i32) {
    %c0_i32 = arith.constant 0 : i32
    %c0_i32_0 = arith.constant 0 : i32
    %c0_i32_1 = arith.constant 0 : i32
    return %c0_i32, %c0_i32_0 : i32, i32
  }
  func.func @transform_7(%arg0: i32, %arg1: i32) -> (i32, i32) {
    %c0_i32 = arith.constant 0 : i32
    %c0_i32_0 = arith.constant 0 : i32
    %c0_i32_1 = arith.constant 0 : i32
    return %c0_i32, %c0_i32_0 : i32, i32
  }
  func.func @transform_8(%arg0: i32, %arg1: i32) -> (i32, i32) {
    %c0_i32 = arith.constant 0 : i32
    %c0_i32_0 = arith.constant 0 : i32
    %c0_i32_1 = arith.constant 0 : i32
    return %c0_i32, %c0_i32_0 : i32, i32
  }
  func.func @transform_9(%arg0: i32, %arg1: i32) -> (i32, i32) {
    %c0_i32 = arith.constant 0 : i32
    %c0_i32_0 = arith.constant 0 : i32
    %c0_i32_1 = arith.constant 0 : i32
    return %c0_i32, %c0_i32_0 : i32, i32
  }
  func.func @transform_10(%arg0: i32, %arg1: i32) -> (i32, i32) {
    %c0_i32 = arith.constant 0 : i32
    %c0_i32_0 = arith.constant 0 : i32
    %c0_i32_1 = arith.constant 0 : i32
    return %c0_i32, %c0_i32_0 : i32, i32
  }
  func.func @transform_11(%arg0: i32, %arg1: i32) -> (i32, i32, i32) {
    %c0_i32 = arith.constant 0 : i32
    %c0_i32_0 = arith.constant 0 : i32
    return %arg0, %arg1, %c0_i32 : i32, i32, i32
  }
}

</mosaic_0001>

<llo_original>
// kernel: decoder_forward.1
$region0: #{decoder_forward.1}
  #allocation0 [shape = 'u32[]', space=smem, size = 0x4, offset = 0x4, fixed_abs, tag = 'smem constant byte address 0x4 - core index']
  #allocation1 [shape = 'u32[144,128]{1,0:T(1,128)}', space=vmem, size = 0x12000, scoped, tag = 'internal scratch']
  %s0 = inlined_call_operand.vmem [shape: f32[16,128,2], index: 0, kind: input, shape index: {}]
  %s1 = inlined_call_operand.vmem [shape: f32[16,4], index: 1, kind: input, shape index: {}]
  %s2 = inlined_call_operand.vmem [shape: f32[16,8], index: 2, kind: input, shape index: {}]
  %s3 = inlined_call_operand.vmem [shape: f32[2,32], index: 3, kind: input, shape index: {}]
  %s4 = inlined_call_operand.vmem [shape: f32[4,32], index: 4, kind: input, shape index: {}]
  %s5 = inlined_call_operand.vmem [shape: f32[8,32], index: 5, kind: input, shape index: {}]
  %s6 = inlined_call_operand.vmem [shape: f32[1,32], index: 6, kind: input, shape index: {}]
  %s7 = inlined_call_operand.vmem [shape: f32[32,32], index: 7, kind: input, shape index: {}]
  %s8 = inlined_call_operand.vmem [shape: f32[1,32], index: 8, kind: input, shape index: {}]
  %s9 = inlined_call_operand.vmem [shape: f32[32,2], index: 9, kind: input, shape index: {}]
  %s10 = inlined_call_operand.vmem [shape: f32[1,2], index: 10, kind: input, shape index: {}]
  %s11 = inlined_call_operand.vmem [shape: f32[16,128,2], index: 11, kind: output, shape index: {}]
  %s12 = sld [smem:[#allocation0]]
  $region77: #{decoder_forward.1} parent=0
    _
  %s14 = ssub.s32 1, %s12
  %s15 = scalar_select 0, %s14, %s12
  loop: start=0, step=1, limit=4
  $region2: #{decoder_forward.1} parent=0 // loop_pre_header
    _
  $region3: #{decoder_forward.1} parent=0 // loop_header
    %s17 = sphi 0, %s21
    %p18 = scmp.ge.s32.totalorder %s17, 4
    %s24 = sphi 0, %s36
    %s25 = sphi 0, %s32
    %s26 = sphi 0, %s24
    %s27 = sphi 0, %s25
    %s28 = sphi 0, %s26
    %s29 = sphi 0, %s27
    %s41 = sphi 0, %s43
    %s44 = sphi 0, %s41
    %s45 = sphi 0, %s44
    %s61 = sphi 0, %s45
    %s67 = sphi 0, %s69
    %s70 = sphi 0, %s67
    %s71 = sphi 0, %s70
    %s87 = sphi 0, %s71
    %s93 = sphi 0, %s95
    %s96 = sphi 0, %s93
    %s97 = sphi 0, %s96
    %s113 = sphi 0, %s97
    %s117 = sphi 0, %s117
    %s119 = sphi 0, %s117
    %s120 = sphi 0, %s119
    %s134 = sphi 0, %s120
    %s138 = sphi 0, %s138
    %s140 = sphi 0, %s138
    %s141 = sphi 0, %s140
    %s155 = sphi 0, %s141
    %s159 = sphi 0, %s159
    %s161 = sphi 0, %s159
    %s162 = sphi 0, %s161
    %s176 = sphi 0, %s162
    %s180 = sphi 0, %s180
    %s182 = sphi 0, %s180
    %s183 = sphi 0, %s182
    %s197 = sphi 0, %s183
    %s201 = sphi 0, %s201
    %s203 = sphi 0, %s201
    %s204 = sphi 0, %s203
    %s218 = sphi 0, %s204
    %s222 = sphi 0, %s222
    %s224 = sphi 0, %s222
    %s225 = sphi 0, %s224
    %s239 = sphi 0, %s225
    %s243 = sphi 0, %s243
    %s245 = sphi 0, %s243
    %s246 = sphi 0, %s245
    %s260 = sphi 0, %s246
    %s264 = sphi 0, %s264
    %s266 = sphi 0, %s264
    %s267 = sphi 0, %s266
    %s281 = sphi 0, %s267
    %s289 = sphi 0, %s291
    %s292 = sphi 0, %s289
    %s293 = sphi 0, %s292
    %s309 = sphi 0, %s293
  $region4: #{decoder_forward.1} parent=0 // loop_header_branch
    %20 = sbr.rel (%p18) target = $region8
  $region5: #{decoder_forward.1} parent=0 // loop_body
    %s22 = ssub.s32 %s17, 1
    %s23 = ssub.s32 %s17, 2
    %s30 = sadd.s32 1, %s25
    %p31 = scmp.ge.s32.totalorder %s30, 1
    %s32 = scalar_select %p31, 0, %s30
    %s33 = sadd.s32 1, %s24
    %s34 = scalar_select %p31, %s33, %s24
    %p35 = scmp.ge.s32.totalorder %s34, 2
    %s36 = scalar_select %p35, 0, %s34
    %s37 = ssub.s32 %s24, %s36
    %s38 = ssub.s32 %s25, %s32
    %s39 = sor.u32 %s37, %s38
    %p40 = scmp.eq.s32.totalorder %s39, 0
    %s42 = sadd.s32 %s41, 1
    %s43 = scalar_select %p40, %s41, %s42
    %p46 = pneg %p40
    %p47 = scmp.eq.s32.totalorder %s17, 1
    %p48 = por %p46, %p47
    %p49 = scmp.ne.s32.totalorder %s41, %s44
    %p50 = scmp.eq.s32.totalorder %s17, 0
    %p51 = por %p49, %p50
    %p52 = scmp.ne.s32.totalorder %s41, %s44
    %p53 = scmp.eq.s32.totalorder %s22, 1
    %p54 = por %p52, %p53
    %p55 = scmp.ne.s32.totalorder %s44, %s45
    %p56 = scmp.eq.s32.totalorder %s22, 0
    %p57 = por %p55, %p56
    %p58 = scmp.ne.s32.totalorder %s44, %s45
    %p59 = scmp.eq.s32.totalorder %s23, 1
    %p60 = por %p58, %p59
    %p62 = scmp.ne.s32.totalorder %s45, %s61
    %p63 = scmp.eq.s32.totalorder %s23, 0
    %p64 = por %p62, %p63
    %s65 = ssub.s32 %s24, %s36
    %p66 = scmp.eq.s32.totalorder %s65, 0
    %s68 = sadd.s32 %s67, 1
    %s69 = scalar_select %p66, %s67, %s68
    %p72 = pneg %p66
    %p73 = scmp.eq.s32.totalorder %s17, 1
    %p74 = por %p72, %p73
    %p75 = scmp.ne.s32.totalorder %s67, %s70
    %p76 = scmp.eq.s32.totalorder %s17, 0
    %p77 = por %p75, %p76
    %p78 = scmp.ne.s32.totalorder %s67, %s70
    %p79 = scmp.eq.s32.totalorder %s22, 1
    %p80 = por %p78, %p79
    %p81 = scmp.ne.s32.totalorder %s70, %s71
    %p82 = scmp.eq.s32.totalorder %s22, 0
    %p83 = por %p81, %p82
    %p84 = scmp.ne.s32.totalorder %s70, %s71
    %p85 = scmp.eq.s32.totalorder %s23, 1
    %p86 = por %p84, %p85
    %p88 = scmp.ne.s32.totalorder %s71, %s87
    %p89 = scmp.eq.s32.totalorder %s23, 0
    %p90 = por %p88, %p89
    %s91 = ssub.s32 %s24, %s36
    %p92 = scmp.eq.s32.totalorder %s91, 0
    %s94 = sadd.s32 %s93, 1
    %s95 = scalar_select %p92, %s93, %s94
    %p98 = pneg %p92
    %p99 = scmp.eq.s32.totalorder %s17, 1
    %p100 = por %p98, %p99
    %p101 = scmp.ne.s32.totalorder %s93, %s96
    %p102 = scmp.eq.s32.totalorder %s17, 0
    %p103 = por %p101, %p102
    %p104 = scmp.ne.s32.totalorder %s93, %s96
    %p105 = scmp.eq.s32.totalorder %s22, 1
    %p106 = por %p104, %p105
    %p107 = scmp.ne.s32.totalorder %s96, %s97
    %p108 = scmp.eq.s32.totalorder %s22, 0
    %p109 = por %p107, %p108
    %p110 = scmp.ne.s32.totalorder %s96, %s97
    %p111 = scmp.eq.s32.totalorder %s23, 1
    %p112 = por %p110, %p111
    %p114 = scmp.ne.s32.totalorder %s97, %s113
    %p115 = scmp.eq.s32.totalorder %s23, 0
    %p116 = por %p114, %p115
    %s118 = sadd.s32 %s117, 1
    %p121 = scmp.eq.s32.totalorder %s17, 1
    %p122 = scmp.ne.s32.totalorder %s117, %s119
    %p123 = scmp.eq.s32.totalorder %s17, 0
    %p124 = por %p122, %p123
    %p125 = scmp.ne.s32.totalorder %s117, %s119
    %p126 = scmp.eq.s32.totalorder %s22, 1
    %p127 = por %p125, %p126
    %p128 = scmp.ne.s32.totalorder %s119, %s120
    %p129 = scmp.eq.s32.totalorder %s22, 0
    %p130 = por %p128, %p129
    %p131 = scmp.ne.s32.totalorder %s119, %s120
    %p132 = scmp.eq.s32.totalorder %s23, 1
    %p133 = por %p131, %p132
    %p135 = scmp.ne.s32.totalorder %s120, %s134
    %p136 = scmp.eq.s32.totalorder %s23, 0
    %p137 = por %p135, %p136
    %s139 = sadd.s32 %s138, 1
    %p142 = scmp.eq.s32.totalorder %s17, 1
    %p143 = scmp.ne.s32.totalorder %s138, %s140
    %p144 = scmp.eq.s32.totalorder %s17, 0
    %p145 = por %p143, %p144
    %p146 = scmp.ne.s32.totalorder %s138, %s140
    %p147 = scmp.eq.s32.totalorder %s22, 1
    %p148 = por %p146, %p147
    %p149 = scmp.ne.s32.totalorder %s140, %s141
    %p150 = scmp.eq.s32.totalorder %s22, 0
    %p151 = por %p149, %p150
    %p152 = scmp.ne.s32.totalorder %s140, %s141
    %p153 = scmp.eq.s32.totalorder %s23, 1
    %p154 = por %p152, %p153
    %p156 = scmp.ne.s32.totalorder %s141, %s155
    %p157 = scmp.eq.s32.totalorder %s23, 0
    %p158 = por %p156, %p157
    %s160 = sadd.s32 %s159, 1
    %p163 = scmp.eq.s32.totalorder %s17, 1
    %p164 = scmp.ne.s32.totalorder %s159, %s161
    %p165 = scmp.eq.s32.totalorder %s17, 0
    %p166 = por %p164, %p165
    %p167 = scmp.ne.s32.totalorder %s159, %s161
    %p168 = scmp.eq.s32.totalorder %s22, 1
    %p169 = por %p167, %p168
    %p170 = scmp.ne.s32.totalorder %s161, %s162
    %p171 = scmp.eq.s32.totalorder %s22, 0
    %p172 = por %p170, %p171
    %p173 = scmp.ne.s32.totalorder %s161, %s162
    %p174 = scmp.eq.s32.totalorder %s23, 1
    %p175 = por %p173, %p174
    %p177 = scmp.ne.s32.totalorder %s162, %s176
    %p178 = scmp.eq.s32.totalorder %s23, 0
    %p179 = por %p177, %p178
    %s181 = sadd.s32 %s180, 1
    %p184 = scmp.eq.s32.totalorder %s17, 1
    %p185 = scmp.ne.s32.totalorder %s180, %s182
    %p186 = scmp.eq.s32.totalorder %s17, 0
    %p187 = por %p185, %p186
    %p188 = scmp.ne.s32.totalorder %s180, %s182
    %p189 = scmp.eq.s32.totalorder %s22, 1
    %p190 = por %p188, %p189
    %p191 = scmp.ne.s32.totalorder %s182, %s183
    %p192 = scmp.eq.s32.totalorder %s22, 0
    %p193 = por %p191, %p192
    %p194 = scmp.ne.s32.totalorder %s182, %s183
    %p195 = scmp.eq.s32.totalorder %s23, 1
    %p196 = por %p194, %p195
    %p198 = scmp.ne.s32.totalorder %s183, %s197
    %p199 = scmp.eq.s32.totalorder %s23, 0
    %p200 = por %p198, %p199
    %s202 = sadd.s32 %s201, 1
    %p205 = scmp.eq.s32.totalorder %s17, 1
    %p206 = scmp.ne.s32.totalorder %s201, %s203
    %p207 = scmp.eq.s32.totalorder %s17, 0
    %p208 = por %p206, %p207
    %p209 = scmp.ne.s32.totalorder %s201, %s203
    %p210 = scmp.eq.s32.totalorder %s22, 1
    %p211 = por %p209, %p210
    %p212 = scmp.ne.s32.totalorder %s203, %s204
    %p213 = scmp.eq.s32.totalorder %s22, 0
    %p214 = por %p212, %p213
    %p215 = scmp.ne.s32.totalorder %s203, %s204
    %p216 = scmp.eq.s32.totalorder %s23, 1
    %p217 = por %p215, %p216
    %p219 = scmp.ne.s32.totalorder %s204, %s218
    %p220 = scmp.eq.s32.totalorder %s23, 0
    %p221 = por %p219, %p220
    %s223 = sadd.s32 %s222, 1
    %p226 = scmp.eq.s32.totalorder %s17, 1
    %p227 = scmp.ne.s32.totalorder %s222, %s224
    %p228 = scmp.eq.s32.totalorder %s17, 0
    %p229 = por %p227, %p228
    %p230 = scmp.ne.s32.totalorder %s222, %s224
    %p231 = scmp.eq.s32.totalorder %s22, 1
    %p232 = por %p230, %p231
    %p233 = scmp.ne.s32.totalorder %s224, %s225
    %p234 = scmp.eq.s32.totalorder %s22, 0
    %p235 = por %p233, %p234
    %p236 = scmp.ne.s32.totalorder %s224, %s225
    %p237 = scmp.eq.s32.totalorder %s23, 1
    %p238 = por %p236, %p237
    %p240 = scmp.ne.s32.totalorder %s225, %s239
    %p241 = scmp.eq.s32.totalorder %s23, 0
    %p242 = por %p240, %p241
    %s244 = sadd.s32 %s243, 1
    %p247 = scmp.eq.s32.totalorder %s17, 1
    %p248 = scmp.ne.s32.totalorder %s243, %s245
    %p249 = scmp.eq.s32.totalorder %s17, 0
    %p250 = por %p248, %p249
    %p251 = scmp.ne.s32.totalorder %s243, %s245
    %p252 = scmp.eq.s32.totalorder %s22, 1
    %p253 = por %p251, %p252
    %p254 = scmp.ne.s32.totalorder %s245, %s246
    %p255 = scmp.eq.s32.totalorder %s22, 0
    %p256 = por %p254, %p255
    %p257 = scmp.ne.s32.totalorder %s245, %s246
    %p258 = scmp.eq.s32.totalorder %s23, 1
    %p259 = por %p257, %p258
    %p261 = scmp.ne.s32.totalorder %s246, %s260
    %p262 = scmp.eq.s32.totalorder %s23, 0
    %p263 = por %p261, %p262
    %s265 = sadd.s32 %s264, 1
    %p268 = scmp.eq.s32.totalorder %s17, 1
    %p269 = scmp.ne.s32.totalorder %s264, %s266
    %p270 = scmp.eq.s32.totalorder %s17, 0
    %p271 = por %p269, %p270
    %p272 = scmp.ne.s32.totalorder %s264, %s266
    %p273 = scmp.eq.s32.totalorder %s22, 1
    %p274 = por %p272, %p273
    %p275 = scmp.ne.s32.totalorder %s266, %s267
    %p276 = scmp.eq.s32.totalorder %s22, 0
    %p277 = por %p275, %p276
    %p278 = scmp.ne.s32.totalorder %s266, %s267
    %p279 = scmp.eq.s32.totalorder %s23, 1
    %p280 = por %p278, %p279
    %p282 = scmp.ne.s32.totalorder %s267, %s281
    %p283 = scmp.eq.s32.totalorder %s23, 0
    %p284 = por %p282, %p283
    %s285 = ssub.s32 %s24, %s36
    %s286 = ssub.s32 %s25, %s32
    %s287 = sor.u32 %s285, %s286
    %p288 = scmp.eq.s32.totalorder %s287, 0
    %s290 = sadd.s32 %s289, 1
    %s291 = scalar_select %p288, %s289, %s290
    %p294 = pneg %p288
    %p295 = scmp.eq.s32.totalorder %s17, 1
    %p296 = por %p294, %p295
    %p297 = scmp.ne.s32.totalorder %s289, %s292
    %p298 = scmp.eq.s32.totalorder %s17, 0
    %p299 = por %p297, %p298
    %p300 = scmp.ne.s32.totalorder %s289, %s292
    %p301 = scmp.eq.s32.totalorder %s22, 1
    %p302 = por %p300, %p301
    %p303 = scmp.ne.s32.totalorder %s292, %s293
    %p304 = scmp.eq.s32.totalorder %s22, 0
    %p305 = por %p303, %p304
    %p306 = scmp.ne.s32.totalorder %s292, %s293
    %p307 = scmp.eq.s32.totalorder %s23, 1
    %p308 = por %p306, %p307
    %p310 = scmp.ne.s32.totalorder %s293, %s309
    %p311 = scmp.eq.s32.totalorder %s23, 0
    %p312 = por %p310, %p311
    %p313 = scmp.le.s32.totalorder 1, %s17
    %p314 = scmp.lt.s32.totalorder %s17, 3
    %p315 = pnand %p313, %p314
    %p316 = pneg %p315
    // Predicated region
    $region9: #{decoder_forward.1} parent=5 // pred_check
      _
    $region10: #{decoder_forward.1} parent=5 // pred_check_branch
      %318 = sbr.rel (%p315) target = $region12
    $region11: #{decoder_forward.1} parent=5 // pred_region
      %s319 = ssub.s32 %s17, 1
      // Predicated region
      $region13: #{decoder_forward.1} parent=11 // pred_check
        %p320 = pneg %p130
      $region14: #{decoder_forward.1} parent=11 // pred_check_branch
        %322 = sbr.rel (%p320) target = $region16
      $region15: #{decoder_forward.1} parent=11 // pred_region
        _
      $region16: #{decoder_forward.1} parent=11 // pred_fallthru
        _
      // Predicated region
      $region17: #{decoder_forward.1} parent=11 // pred_check
        %p323 = pneg %p151
      $region18: #{decoder_forward.1} parent=11 // pred_check_branch
        %325 = sbr.rel (%p323) target = $region20
      $region19: #{decoder_forward.1} parent=11 // pred_region
        _
      $region20: #{decoder_forward.1} parent=11 // pred_fallthru
        _
      // Predicated region
      $region21: #{decoder_forward.1} parent=11 // pred_check
        %p326 = pneg %p172
      $region22: #{decoder_forward.1} parent=11 // pred_check_branch
        %328 = sbr.rel (%p326) target = $region24
      $region23: #{decoder_forward.1} parent=11 // pred_region
        _
      $region24: #{decoder_forward.1} parent=11 // pred_fallthru
        _
      // Predicated region
      $region25: #{decoder_forward.1} parent=11 // pred_check
        %p329 = pneg %p193
      $region26: #{decoder_forward.1} parent=11 // pred_check_branch
        %331 = sbr.rel (%p329) target = $region28
      $region27: #{decoder_forward.1} parent=11 // pred_region
        _
      $region28: #{decoder_forward.1} parent=11 // pred_fallthru
        _
      // Predicated region
      $region29: #{decoder_forward.1} parent=11 // pred_check
        %p332 = pneg %p214
      $region30: #{decoder_forward.1} parent=11 // pred_check_branch
        %334 = sbr.rel (%p332) target = $region32
      $region31: #{decoder_forward.1} parent=11 // pred_region
        _
      $region32: #{decoder_forward.1} parent=11 // pred_fallthru
        _
      // Predicated region
      $region33: #{decoder_forward.1} parent=11 // pred_check
        %p335 = pneg %p235
      $region34: #{decoder_forward.1} parent=11 // pred_check_branch
        %337 = sbr.rel (%p335) target = $region36
      $region35: #{decoder_forward.1} parent=11 // pred_region
        _
      $region36: #{decoder_forward.1} parent=11 // pred_fallthru
        _
      // Predicated region
      $region37: #{decoder_forward.1} parent=11 // pred_check
        %p338 = pneg %p256
      $region38: #{decoder_forward.1} parent=11 // pred_check_branch
        %340 = sbr.rel (%p338) target = $region40
      $region39: #{decoder_forward.1} parent=11 // pred_region
        _
      $region40: #{decoder_forward.1} parent=11 // pred_fallthru
        _
      // Predicated region
      $region41: #{decoder_forward.1} parent=11 // pred_check
        %p341 = pneg %p277
      $region42: #{decoder_forward.1} parent=11 // pred_check_branch
        %343 = sbr.rel (%p341) target = $region44
      $region43: #{decoder_forward.1} parent=11 // pred_region
        _
      $region44: #{decoder_forward.1} parent=11 // pred_fallthru
        _
    $region12: #{decoder_forward.1} parent=5 // pred_fallthru
      _
    %p344 = scmp.lt.s32.totalorder %s17, 2
    // Predicated region
    $region45: #{decoder_forward.1} parent=5 // pred_check
      %p345 = pneg %p344
    $region46: #{decoder_forward.1} parent=5 // pred_check_branch
      %347 = sbr.rel (%p345) target = $region48
    $region47: #{decoder_forward.1} parent=5 // pred_region
      // Predicated region
      $region49: #{decoder_forward.1} parent=47 // pred_check
        %p348 = pneg %p51
      $region50: #{decoder_forward.1} parent=47 // pred_check_branch
        %350 = sbr.rel (%p348) target = $region52
      $region51: #{decoder_forward.1} parent=47 // pred_region
        %s351 = smul.u32 8, %s24
        %s352 = smul.u32 16, %s25
        %p353 = scmp.lt.s32.totalorder %s351, 15
        %s354 = scalar_select %p353, %s351, 15
        %p355 = scmp.lt.s32.totalorder %s352, 15
        %s356 = scalar_select %p355, %s352, 15
        %s357 = smul.addr %s354, 16
        %s358 = sadd.s32 %s356, %s357
        %s359 = smul.addr %s358, 8
        %s360 = scalar_lea.vmem %s0, %s359
        %s361 = smul.u32 8, %s24
        %s362 = smul.u32 16, %s25
      $region52: #{decoder_forward.1} parent=47 // pred_fallthru
        _
      // Predicated region
      $region53: #{decoder_forward.1} parent=47 // pred_check
        %p363 = pneg %p77
      $region54: #{decoder_forward.1} parent=47 // pred_check_branch
        %365 = sbr.rel (%p363) target = $region56
      $region55: #{decoder_forward.1} parent=47 // pred_region
        %p366 = scmp.lt.s32.totalorder %s24, 1
        %s367 = scalar_select %p366, %s24, 1
        %s368 = smul.addr %s367, 8
        %s369 = scalar_lea.vmem %s1, %s368
      $region56: #{decoder_forward.1} parent=47 // pred_fallthru
        _
      // Predicated region
      $region57: #{decoder_forward.1} parent=47 // pred_check
        %p370 = pneg %p103
      $region58: #{decoder_forward.1} parent=47 // pred_check_branch
        %372 = sbr.rel (%p370) target = $region60
      $region59: #{decoder_forward.1} parent=47 // pred_region
        %p373 = scmp.lt.s32.totalorder %s24, 1
        %s374 = scalar_select %p373, %s24, 1
        %s375 = smul.addr %s374, 8
        %s376 = scalar_lea.vmem %s2, %s375
      $region60: #{decoder_forward.1} parent=47 // pred_fallthru
        _
    $region48: #{decoder_forward.1} parent=5 // pred_fallthru
      _
    %p377 = scmp.le.s32.totalorder 1, %s17
    %p378 = scmp.lt.s32.totalorder %s17, 3
    %p379 = pnand %p377, %p378
    %p380 = pneg %p379
    // Predicated region
    $region61: #{decoder_forward.1} parent=5 // pred_check
      _
    $region62: #{decoder_forward.1} parent=5 // pred_check_branch
      %382 = sbr.rel (%p379) target = $region64
    $region63: #{decoder_forward.1} parent=5 // pred_region
      %s383 = ssub.s32 %s17, 1
      %s384 = smul.u32 8, %s26
      %s385 = smul.u32 16, %s27
      %p386 = scmp.lt.s32.totalorder %s384, 15
      %s387 = scalar_select %p386, %s384, 15
      %p388 = scmp.lt.s32.totalorder %s385, 15
      %s389 = scalar_select %p388, %s385, 15
      %s390 = smul.addr %s387, 16
      %s391 = sadd.s32 %s389, %s390
      %s392 = smul.addr %s391, 8
      %s393 = scalar_lea.vmem %s0, %s392
      %p394 = pneg %p57
      %p395 = pneg %p54
      %p396 = scmp.lt.s32.totalorder %s26, 1
      %s397 = scalar_select %p396, %s26, 1
      %s398 = smul.addr %s397, 8
      %s399 = scalar_lea.vmem %s1, %s398
      %p400 = pneg %p83
      %p401 = pneg %p80
      %p402 = scmp.lt.s32.totalorder %s26, 1
      %s403 = scalar_select %p402, %s26, 1
      %s404 = smul.addr %s403, 8
      %s405 = scalar_lea.vmem %s2, %s404
      %p406 = pneg %p109
      %p407 = pneg %p106
      %p408 = pneg %p130
      %p409 = pneg %p127
      %p410 = pneg %p151
      %p411 = pneg %p148
      %p412 = pneg %p172
      %p413 = pneg %p169
      %p414 = pneg %p193
      %p415 = pneg %p190
      %p416 = pneg %p214
      %p417 = pneg %p211
      %p418 = pneg %p235
      %p419 = pneg %p232
      %p420 = pneg %p256
      %p421 = pneg %p253
      %p422 = pneg %p277
      %p423 = pneg %p274
      %p424 = pneg %p305
      %p425 = pneg %p302
      %s426 = smul.u32 8, %s26
      %s427 = smul.u32 16, %s27
      %p428 = scmp.lt.s32.totalorder %s426, 15
      %s429 = scalar_select %p428, %s426, 15
      %p430 = scmp.lt.s32.totalorder %s427, 15
      %s431 = scalar_select %p430, %s427, 15
      %s432 = smul.addr %s429, 16
      %s433 = sadd.s32 %s431, %s432
      %s434 = smul.addr %s433, 8
      %s435 = scalar_lea.vmem %s11, %s434
      %s436 = smul.u32 8, %s26
      %s437 = smul.u32 16, %s27
      %p438 = scmp.lt.s32.totalorder %s436, 15
      %s439 = scalar_select %p438, %s436, 15
      %p440 = scmp.lt.s32.totalorder %s437, 15
      %s441 = scalar_select %p440, %s437, 15
      %s442 = smul.addr %s439, 16
      %s443 = sadd.s32 %s441, %s442
      %s444 = smul.addr %s443, 8
      %s445 = scalar_lea.vmem %s0, %s444
      %s446 = smul.u32 8, %s26
      %s447 = smul.u32 16, %s27
      %p448 = scmp.lt.s32.totalorder %s26, 1
      %s449 = scalar_select %p448, %s26, 1
      %s450 = smul.addr %s449, 8
      %s451 = scalar_lea.vmem %s1, %s450
      %p452 = scmp.lt.s32.totalorder %s26, 1
      %s453 = scalar_select %p452, %s26, 1
      %s454 = smul.addr %s453, 8
      %s455 = scalar_lea.vmem %s2, %s454
      %s456 = smul.u32 8, %s26
      %s457 = smul.u32 16, %s27
      %p458 = scmp.lt.s32.totalorder %s456, 15
      %s459 = scalar_select %p458, %s456, 15
      %p460 = scmp.lt.s32.totalorder %s457, 15
      %s461 = scalar_select %p460, %s457, 15
      %s462 = smul.addr %s459, 16
      %s463 = sadd.s32 %s461, %s462
      %s464 = smul.addr %s463, 8
      %s465 = scalar_lea.vmem %s11, %s464
      %s466 = smul.u32 8, %s26
      %s467 = smul.u32 16, %s27
      %v468 = vld [vmem:[%s451] sm:$0xff]
      %v469 = vld [vmem:[%s4] sm:$0xf]
      %v470 = vld [vmem:[%s455] sm:$0xff]
      %v471 = vld [vmem:[%s5] sm:$0xff]
      %vm472 = vcmask 64512
      %v474 = vsel %vm472, %v470, 0
      %476 = vmatprep.subr.mxu0 0.0
      %477 = vmatpush1.msra.mxu0 %v471
      %478 = vmatprep.subr.mxu0 0.0
      %479 = vmatpush1.msra.mxu0 0.0
      %480 = vmatprep.subr.mxu0 0.0
      %481 = vmatpush1.msra.mxu0 0.0
      %482 = vmatprep.subr.mxu0 0.0
      %483 = vmatpush1.msra.mxu0 0.0
      %484 = vmatprep.subr.mxu0 0.0
      %485 = vmatpush1.msra.mxu0 0.0
      %486 = vmatprep.subr.mxu0 0.0
      %487 = vmatpush1.msra.mxu0 0.0
      %488 = vmatprep.subr.mxu0 0.0
      %489 = vmatpush1.msra.mxu0 0.0
      %490 = vmatprep.subr.mxu0 0.0
      %491 = vmatpush1.msra.mxu0 0.0
      %492 = vmatprep.subr.mxu0 0.0
      %493 = vmatpush1.msra.mxu0 0.0
      %494 = vmatprep.subr.mxu0 0.0
      %495 = vmatpush1.msra.mxu0 0.0
      %496 = vmatprep.subr.mxu0 0.0
      %497 = vmatpush1.msra.mxu0 0.0
      %498 = vmatprep.subr.mxu0 0.0
      %499 = vmatpush1.msra.mxu0 0.0
      %500 = vmatprep.subr.mxu0 0.0
      %501 = vmatpush1.msra.mxu0 0.0
      %502 = vmatprep.subr.mxu0 0.0
      %503 = vmatpush1.msra.mxu0 0.0
      %504 = vmatprep.subr.mxu0 0.0
      %505 = vmatpush1.msra.mxu0 0.0
      %506 = vmatprep.subr.mxu0 0.0
      %507 = vmatpush1.msra.mxu0 0.0
      %508 = vmatprep.subr.mxu0 0.0
      %509 = vmatpush1.msra.mxu0 0.0
      %510 = vmatprep.subr.mxu0 0.0
      %511 = vmatpush1.msra.mxu0 0.0
      %512 = vmatprep.subr.mxu0 0.0
      %513 = vmatpush1.msra.mxu0 0.0
      %514 = vmatprep.subr.mxu0 0.0
      %515 = vmatpush1.msra.mxu0 0.0
      %516 = vmatprep.subr.mxu0 0.0
      %517 = vmatpush1.msra.mxu0 0.0
      %518 = vmatprep.subr.mxu0 0.0
      %519 = vmatpush1.msra.mxu0 0.0
      %520 = vmatprep.subr.mxu0 0.0
      %521 = vmatpush1.msra.mxu0 0.0
      %522 = vmatprep.subr.mxu0 0.0
      %523 = vmatpush1.msra.mxu0 0.0
      %524 = vmatprep.subr.mxu0 0.0
      %525 = vmatpush1.msra.mxu0 0.0
      %526 = vmatprep.subr.mxu0 0.0
      %527 = vmatpush1.msra.mxu0 0.0
      %528 = vmatprep.subr.mxu0 0.0
      %529 = vmatpush1.msra.mxu0 0.0
      %530 = vmatprep.subr.mxu0 0.0
      %531 = vmatpush1.msra.mxu0 0.0
      %532 = vmatprep.subr.mxu0 0.0
      %533 = vmatpush1.msra.mxu0 0.0
      %534 = vmatprep.subr.mxu0 0.0
      %535 = vmatpush1.msra.mxu0 0.0
      %536 = vmatprep.subr.mxu0 0.0
      %537 = vmatpush1.msra.mxu0 0.0
      %538 = vmatprep.subr.mxu0 0.0
      %539 = vmatpush1.msra.mxu0 0.0
      %540 = vmatprep.mubr.f32.mxu0 0.0
      %541 = vmatmul.mubr.f32.gmra.mrb[0].mxu0 %v474
      %v542 = vpop.f32.mrb[0].mxu0
      %v543 = vadd.f32 0.0, %v542
      %v544 = vpop.f32.mrb[0].mxu0
      %545 = vdwg.mxu0
      %vm546 = vcmask 31744
      %v548 = vsel %vm546, %v468, 0
      %vm550 = vcmask 1043456
      %v552 = vsel %vm550, %v469, 0
      %554 = vmatprep.subr.mxu0 0.0
      %555 = vmatpush1.msra.mxu0 %v552
      %556 = vmatprep.subr.mxu0 0.0
      %557 = vmatpush1.msra.mxu0 0.0
      %558 = vmatprep.subr.mxu0 0.0
      %559 = vmatpush1.msra.mxu0 0.0
      %560 = vmatprep.subr.mxu0 0.0
      %561 = vmatpush1.msra.mxu0 0.0
      %562 = vmatprep.subr.mxu0 0.0
      %563 = vmatpush1.msra.mxu0 0.0
      %564 = vmatprep.subr.mxu0 0.0
      %565 = vmatpush1.msra.mxu0 0.0
      %566 = vmatprep.subr.mxu0 0.0
      %567 = vmatpush1.msra.mxu0 0.0
      %568 = vmatprep.subr.mxu0 0.0
      %569 = vmatpush1.msra.mxu0 0.0
      %570 = vmatprep.subr.mxu0 0.0
      %571 = vmatpush1.msra.mxu0 0.0
      %572 = vmatprep.subr.mxu0 0.0
      %573 = vmatpush1.msra.mxu0 0.0
      %574 = vmatprep.subr.mxu0 0.0
      %575 = vmatpush1.msra.mxu0 0.0
      %576 = vmatprep.subr.mxu0 0.0
      %577 = vmatpush1.msra.mxu0 0.0
      %578 = vmatprep.subr.mxu0 0.0
      %579 = vmatpush1.msra.mxu0 0.0
      %580 = vmatprep.subr.mxu0 0.0
      %581 = vmatpush1.msra.mxu0 0.0
      %582 = vmatprep.subr.mxu0 0.0
      %583 = vmatpush1.msra.mxu0 0.0
      %584 = vmatprep.subr.mxu0 0.0
      %585 = vmatpush1.msra.mxu0 0.0
      %586 = vmatprep.subr.mxu0 0.0
      %587 = vmatpush1.msra.mxu0 0.0
      %588 = vmatprep.subr.mxu0 0.0
      %589 = vmatpush1.msra.mxu0 0.0
      %590 = vmatprep.subr.mxu0 0.0
      %591 = vmatpush1.msra.mxu0 0.0
      %592 = vmatprep.subr.mxu0 0.0
      %593 = vmatpush1.msra.mxu0 0.0
      %594 = vmatprep.subr.mxu0 0.0
      %595 = vmatpush1.msra.mxu0 0.0
      %596 = vmatprep.subr.mxu0 0.0
      %597 = vmatpush1.msra.mxu0 0.0
      %598 = vmatprep.subr.mxu0 0.0
      %599 = vmatpush1.msra.mxu0 0.0
      %600 = vmatprep.subr.mxu0 0.0
      %601 = vmatpush1.msra.mxu0 0.0
      %602 = vmatprep.subr.mxu0 0.0
      %603 = vmatpush1.msra.mxu0 0.0
      %604 = vmatprep.subr.mxu0 0.0
      %605 = vmatpush1.msra.mxu0 0.0
      %606 = vmatprep.subr.mxu0 0.0
      %607 = vmatpush1.msra.mxu0 0.0
      %608 = vmatprep.subr.mxu0 0.0
      %609 = vmatpush1.msra.mxu0 0.0
      %610 = vmatprep.subr.mxu0 0.0
      %611 = vmatpush1.msra.mxu0 0.0
      %612 = vmatprep.subr.mxu0 0.0
      %613 = vmatpush1.msra.mxu0 0.0
      %614 = vmatprep.subr.mxu0 0.0
      %615 = vmatpush1.msra.mxu0 0.0
      %616 = vmatprep.subr.mxu0 0.0
      %617 = vmatpush1.msra.mxu0 0.0
      %618 = vmatprep.mubr.f32.mxu0 0.0
      %619 = vmatmul.mubr.f32.gmra.mrb[0].mxu0 %v548
      %v620 = vpop.f32.mrb[0].mxu0
      %v621 = vadd.f32 %v543, %v620
      %v622 = vpop.f32.mrb[0].mxu0
      %623 = vdwg.mxu0
      %v624 = vld [vmem:[%s6] sm:$0x1]
      %v626 = vlaneseq
      %v627 = vshrl.u32 %v626, 7
      %v628 = vsub.s32 0, %v627
      %v629 = vrot.slane %v624, %v628
      %v631 = vadd.f32 %v621, %v629
      %v632 = vld [vmem:[%s445] sm:$0xff]
      %v633 = vld [vmem:[%s445 + $0x8] sm:$0xff]
      %v634 = vld [vmem:[%s445 + $0x10] sm:$0xff]
      %v635 = vld [vmem:[%s445 + $0x18] sm:$0xff]
      %v636 = vld [vmem:[%s445 + $0x20] sm:$0xff]
      %v637 = vld [vmem:[%s445 + $0x28] sm:$0xff]
      %v638 = vld [vmem:[%s445 + $0x30] sm:$0xff]
      %v639 = vld [vmem:[%s445 + $0x38] sm:$0xff]
      %v640 = vld [vmem:[%s445 + $0x40] sm:$0xff]
      %v641 = vld [vmem:[%s445 + $0x48] sm:$0xff]
      %v642 = vld [vmem:[%s445 + $0x50] sm:$0xff]
      %v643 = vld [vmem:[%s445 + $0x58] sm:$0xff]
      %v644 = vld [vmem:[%s445 + $0x60] sm:$0xff]
      %v645 = vld [vmem:[%s445 + $0x68] sm:$0xff]
      %v646 = vld [vmem:[%s445 + $0x70] sm:$0xff]
      %v647 = vld [vmem:[%s445 + $0x78] sm:$0xff]
      %v648 = vld [vmem:[%s445 + $0x80] sm:$0xff]
      %v649 = vld [vmem:[%s445 + $0x88] sm:$0xff]
      %v650 = vld [vmem:[%s445 + $0x90] sm:$0xff]
      %v651 = vld [vmem:[%s445 + $0x98] sm:$0xff]
      %v652 = vld [vmem:[%s445 + $0xa0] sm:$0xff]
      %v653 = vld [vmem:[%s445 + $0xa8] sm:$0xff]
      %v654 = vld [vmem:[%s445 + $0xb0] sm:$0xff]
      %v655 = vld [vmem:[%s445 + $0xb8] sm:$0xff]
      %v656 = vld [vmem:[%s445 + $0xc0] sm:$0xff]
      %v657 = vld [vmem:[%s445 + $0xc8] sm:$0xff]
      %v658 = vld [vmem:[%s445 + $0xd0] sm:$0xff]
      %v659 = vld [vmem:[%s445 + $0xd8] sm:$0xff]
      %v660 = vld [vmem:[%s445 + $0xe0] sm:$0xff]
      %v661 = vld [vmem:[%s445 + $0xe8] sm:$0xff]
      %v662 = vld [vmem:[%s445 + $0xf0] sm:$0xff]
      %v663 = vld [vmem:[%s445 + $0xf8] sm:$0xff]
      %v664 = vld [vmem:[%s445 + $0x100] sm:$0xff]
      %v665 = vld [vmem:[%s445 + $0x108] sm:$0xff]
      %v666 = vld [vmem:[%s445 + $0x110] sm:$0xff]
      %v667 = vld [vmem:[%s445 + $0x118] sm:$0xff]
      %v668 = vld [vmem:[%s445 + $0x120] sm:$0xff]
      %v669 = vld [vmem:[%s445 + $0x128] sm:$0xff]
      %v670 = vld [vmem:[%s445 + $0x130] sm:$0xff]
      %v671 = vld [vmem:[%s445 + $0x138] sm:$0xff]
      %v672 = vld [vmem:[%s445 + $0x140] sm:$0xff]
      %v673 = vld [vmem:[%s445 + $0x148] sm:$0xff]
      %v674 = vld [vmem:[%s445 + $0x150] sm:$0xff]
      %v675 = vld [vmem:[%s445 + $0x158] sm:$0xff]
      %v676 = vld [vmem:[%s445 + $0x160] sm:$0xff]
      %v677 = vld [vmem:[%s445 + $0x168] sm:$0xff]
      %v678 = vld [vmem:[%s445 + $0x170] sm:$0xff]
      %v679 = vld [vmem:[%s445 + $0x178] sm:$0xff]
      %v680 = vld [vmem:[%s445 + $0x180] sm:$0xff]
      %v681 = vld [vmem:[%s445 + $0x188] sm:$0xff]
      %v682 = vld [vmem:[%s445 + $0x190] sm:$0xff]
      %v683 = vld [vmem:[%s445 + $0x198] sm:$0xff]
      %v684 = vld [vmem:[%s445 + $0x1a0] sm:$0xff]
      %v685 = vld [vmem:[%s445 + $0x1a8] sm:$0xff]
      %v686 = vld [vmem:[%s445 + $0x1b0] sm:$0xff]
      %v687 = vld [vmem:[%s445 + $0x1b8] sm:$0xff]
      %v688 = vld [vmem:[%s445 + $0x1c0] sm:$0xff]
      %v689 = vld [vmem:[%s445 + $0x1c8] sm:$0xff]
      %v690 = vld [vmem:[%s445 + $0x1d0] sm:$0xff]
      %v691 = vld [vmem:[%s445 + $0x1d8] sm:$0xff]
      %v692 = vld [vmem:[%s445 + $0x1e0] sm:$0xff]
      %v693 = vld [vmem:[%s445 + $0x1e8] sm:$0xff]
      %v694 = vld [vmem:[%s445 + $0x1f0] sm:$0xff]
      %v695 = vld [vmem:[%s445 + $0x1f8] sm:$0xff]
      %v696 = vld [vmem:[%s445 + $0x200] sm:$0xff]
      %v697 = vld [vmem:[%s445 + $0x208] sm:$0xff]
      %v698 = vld [vmem:[%s445 + $0x210] sm:$0xff]
      %v699 = vld [vmem:[%s445 + $0x218] sm:$0xff]
      %v700 = vld [vmem:[%s445 + $0x220] sm:$0xff]
      %v701 = vld [vmem:[%s445 + $0x228] sm:$0xff]
      %v702 = vld [vmem:[%s445 + $0x230] sm:$0xff]
      %v703 = vld [vmem:[%s445 + $0x238] sm:$0xff]
      %v704 = vld [vmem:[%s445 + $0x240] sm:$0xff]
      %v705 = vld [vmem:[%s445 + $0x248] sm:$0xff]
      %v706 = vld [vmem:[%s445 + $0x250] sm:$0xff]
      %v707 = vld [vmem:[%s445 + $0x258] sm:$0xff]
      %v708 = vld [vmem:[%s445 + $0x260] sm:$0xff]
      %v709 = vld [vmem:[%s445 + $0x268] sm:$0xff]
      %v710 = vld [vmem:[%s445 + $0x270] sm:$0xff]
      %v711 = vld [vmem:[%s445 + $0x278] sm:$0xff]
      %v712 = vld [vmem:[%s445 + $0x280] sm:$0xff]
      %v713 = vld [vmem:[%s445 + $0x288] sm:$0xff]
      %v714 = vld [vmem:[%s445 + $0x290] sm:$0xff]
      %v715 = vld [vmem:[%s445 + $0x298] sm:$0xff]
      %v716 = vld [vmem:[%s445 + $0x2a0] sm:$0xff]
      %v717 = vld [vmem:[%s445 + $0x2a8] sm:$0xff]
      %v718 = vld [vmem:[%s445 + $0x2b0] sm:$0xff]
      %v719 = vld [vmem:[%s445 + $0x2b8] sm:$0xff]
      %v720 = vld [vmem:[%s445 + $0x2c0] sm:$0xff]
      %v721 = vld [vmem:[%s445 + $0x2c8] sm:$0xff]
      %v722 = vld [vmem:[%s445 + $0x2d0] sm:$0xff]
      %v723 = vld [vmem:[%s445 + $0x2d8] sm:$0xff]
      %v724 = vld [vmem:[%s445 + $0x2e0] sm:$0xff]
      %v725 = vld [vmem:[%s445 + $0x2e8] sm:$0xff]
      %v726 = vld [vmem:[%s445 + $0x2f0] sm:$0xff]
      %v727 = vld [vmem:[%s445 + $0x2f8] sm:$0xff]
      %v728 = vld [vmem:[%s445 + $0x300] sm:$0xff]
      %v729 = vld [vmem:[%s445 + $0x308] sm:$0xff]
      %v730 = vld [vmem:[%s445 + $0x310] sm:$0xff]
      %v731 = vld [vmem:[%s445 + $0x318] sm:$0xff]
      %v732 = vld [vmem:[%s445 + $0x320] sm:$0xff]
      %v733 = vld [vmem:[%s445 + $0x328] sm:$0xff]
      %v734 = vld [vmem:[%s445 + $0x330] sm:$0xff]
      %v735 = vld [vmem:[%s445 + $0x338] sm:$0xff]
      %v736 = vld [vmem:[%s445 + $0x340] sm:$0xff]
      %v737 = vld [vmem:[%s445 + $0x348] sm:$0xff]
      %v738 = vld [vmem:[%s445 + $0x350] sm:$0xff]
      %v739 = vld [vmem:[%s445 + $0x358] sm:$0xff]
      %v740 = vld [vmem:[%s445 + $0x360] sm:$0xff]
      %v741 = vld [vmem:[%s445 + $0x368] sm:$0xff]
      %v742 = vld [vmem:[%s445 + $0x370] sm:$0xff]
      %v743 = vld [vmem:[%s445 + $0x378] sm:$0xff]
      %v744 = vld [vmem:[%s445 + $0x380] sm:$0xff]
      %v745 = vld [vmem:[%s445 + $0x388] sm:$0xff]
      %v746 = vld [vmem:[%s445 + $0x390] sm:$0xff]
      %v747 = vld [vmem:[%s445 + $0x398] sm:$0xff]
      %v748 = vld [vmem:[%s445 + $0x3a0] sm:$0xff]
      %v749 = vld [vmem:[%s445 + $0x3a8] sm:$0xff]
      %v750 = vld [vmem:[%s445 + $0x3b0] sm:$0xff]
      %v751 = vld [vmem:[%s445 + $0x3b8] sm:$0xff]
      %v752 = vld [vmem:[%s445 + $0x3c0] sm:$0xff]
      %v753 = vld [vmem:[%s445 + $0x3c8] sm:$0xff]
      %v754 = vld [vmem:[%s445 + $0x3d0] sm:$0xff]
      %v755 = vld [vmem:[%s445 + $0x3d8] sm:$0xff]
      %v756 = vld [vmem:[%s445 + $0x3e0] sm:$0xff]
      %v757 = vld [vmem:[%s445 + $0x3e8] sm:$0xff]
      %v758 = vld [vmem:[%s445 + $0x3f0] sm:$0xff]
      %v759 = vld [vmem:[%s445 + $0x3f8] sm:$0xff]
      %v760 = vld [vmem:[%s3] sm:$0x3]
      %vm761 = vcmask 15360
      %v763 = vsel %vm761, %v632, 0
      %v766 = vsel %vm761, %v633, 0
      %v769 = vsel %vm761, %v634, 0
      %v772 = vsel %vm761, %v635, 0
      %v775 = vsel %vm761, %v636, 0
      %v778 = vsel %vm761, %v637, 0
      %v781 = vsel %vm761, %v638, 0
      %v784 = vsel %vm761, %v639, 0
      %v787 = vsel %vm761, %v640, 0
      %v790 = vsel %vm761, %v641, 0
      %v793 = vsel %vm761, %v642, 0
      %v796 = vsel %vm761, %v643, 0
      %v799 = vsel %vm761, %v644, 0
      %v802 = vsel %vm761, %v645, 0
      %v805 = vsel %vm761, %v646, 0
      %v808 = vsel %vm761, %v647, 0
      %v811 = vsel %vm761, %v648, 0
      %v814 = vsel %vm761, %v649, 0
      %v817 = vsel %vm761, %v650, 0
      %v820 = vsel %vm761, %v651, 0
      %v823 = vsel %vm761, %v652, 0
      %v826 = vsel %vm761, %v653, 0
      %v829 = vsel %vm761, %v654, 0
      %v832 = vsel %vm761, %v655, 0
      %v835 = vsel %vm761, %v656, 0
      %v838 = vsel %vm761, %v657, 0
      %v841 = vsel %vm761, %v658, 0
      %v844 = vsel %vm761, %v659, 0
      %v847 = vsel %vm761, %v660, 0
      %v850 = vsel %vm761, %v661, 0
      %v853 = vsel %vm761, %v662, 0
      %v856 = vsel %vm761, %v663, 0
      %v859 = vsel %vm761, %v664, 0
      %v862 = vsel %vm761, %v665, 0
      %v865 = vsel %vm761, %v666, 0
      %v868 = vsel %vm761, %v667, 0
      %v871 = vsel %vm761, %v668, 0
      %v874 = vsel %vm761, %v669, 0
      %v877 = vsel %vm761, %v670, 0
      %v880 = vsel %vm761, %v671, 0
      %v883 = vsel %vm761, %v672, 0
      %v886 = vsel %vm761, %v673, 0
      %v889 = vsel %vm761, %v674, 0
      %v892 = vsel %vm761, %v675, 0
      %v895 = vsel %vm761, %v676, 0
      %v898 = vsel %vm761, %v677, 0
      %v901 = vsel %vm761, %v678, 0
      %v904 = vsel %vm761, %v679, 0
      %v907 = vsel %vm761, %v680, 0
      %v910 = vsel %vm761, %v681, 0
      %v913 = vsel %vm761, %v682, 0
      %v916 = vsel %vm761, %v683, 0
      %v919 = vsel %vm761, %v684, 0
      %v922 = vsel %vm761, %v685, 0
      %v925 = vsel %vm761, %v686, 0
      %v928 = vsel %vm761, %v687, 0
      %v931 = vsel %vm761, %v688, 0
      %v934 = vsel %vm761, %v689, 0
      %v937 = vsel %vm761, %v690, 0
      %v940 = vsel %vm761, %v691, 0
      %v943 = vsel %vm761, %v692, 0
      %v946 = vsel %vm761, %v693, 0
      %v949 = vsel %vm761, %v694, 0
      %v952 = vsel %vm761, %v695, 0
      %v955 = vsel %vm761, %v696, 0
      %v958 = vsel %vm761, %v697, 0
      %v961 = vsel %vm761, %v698, 0
      %v964 = vsel %vm761, %v699, 0
      %v967 = vsel %vm761, %v700, 0
      %v970 = vsel %vm761, %v701, 0
      %v973 = vsel %vm761, %v702, 0
      %v976 = vsel %vm761, %v703, 0
      %v979 = vsel %vm761, %v704, 0
      %v982 = vsel %vm761, %v705, 0
      %v985 = vsel %vm761, %v706, 0
      %v988 = vsel %vm761, %v707, 0
      %v991 = vsel %vm761, %v708, 0
      %v994 = vsel %vm761, %v709, 0
      %v997 = vsel %vm761, %v710, 0
      %v1000 = vsel %vm761, %v711, 0
      %v1003 = vsel %vm761, %v712, 0
      %v1006 = vsel %vm761, %v713, 0
      %v1009 = vsel %vm761, %v714, 0
      %v1012 = vsel %vm761, %v715, 0
      %v1015 = vsel %vm761, %v716, 0
      %v1018 = vsel %vm761, %v717, 0
      %v1021 = vsel %vm761, %v718, 0
      %v1024 = vsel %vm761, %v719, 0
      %v1027 = vsel %vm761, %v720, 0
      %v1030 = vsel %vm761, %v721, 0
      %v1033 = vsel %vm761, %v722, 0
      %v1036 = vsel %vm761, %v723, 0
      %v1039 = vsel %vm761, %v724, 0
      %v1042 = vsel %vm761, %v725, 0
      %v1045 = vsel %vm761, %v726, 0
      %v1048 = vsel %vm761, %v727, 0
      %v1051 = vsel %vm761, %v728, 0
      %v1054 = vsel %vm761, %v729, 0
      %v1057 = vsel %vm761, %v730, 0
      %v1060 = vsel %vm761, %v731, 0
      %v1063 = vsel %vm761, %v732, 0
      %v1066 = vsel %vm761, %v733, 0
      %v1069 = vsel %vm761, %v734, 0
      %v1072 = vsel %vm761, %v735, 0
      %v1075 = vsel %vm761, %v736, 0
      %v1078 = vsel %vm761, %v737, 0
      %v1081 = vsel %vm761, %v738, 0
      %v1084 = vsel %vm761, %v739, 0
      %v1087 = vsel %vm761, %v740, 0
      %v1090 = vsel %vm761, %v741, 0
      %v1093 = vsel %vm761, %v742, 0
      %v1096 = vsel %vm761, %v743, 0
      %v1099 = vsel %vm761, %v744, 0
      %v1102 = vsel %vm761, %v745, 0
      %v1105 = vsel %vm761, %v746, 0
      %v1108 = vsel %vm761, %v747, 0
      %v1111 = vsel %vm761, %v748, 0
      %v1114 = vsel %vm761, %v749, 0
      %v1117 = vsel %vm761, %v750, 0
      %v1120 = vsel %vm761, %v751, 0
      %v1123 = vsel %vm761, %v752, 0
      %v1126 = vsel %vm761, %v753, 0
      %v1129 = vsel %vm761, %v754, 0
      %v1132 = vsel %vm761, %v755, 0
      %v1135 = vsel %vm761, %v756, 0
      %v1138 = vsel %vm761, %v757, 0
      %v1141 = vsel %vm761, %v758, 0
      %v1144 = vsel %vm761, %v759, 0
      %vm1146 = vcmask 1041408
      %v1148 = vsel %vm1146, %v760, 0
      %1150 = vmatprep.subr.mxu0 0.0
      %1151 = vmatpush1.msra.mxu0 %v1148
      %1152 = vmatprep.subr.mxu0 0.0
      %1153 = vmatpush1.msra.mxu0 0.0
      %1154 = vmatprep.subr.mxu0 0.0
      %1155 = vmatpush1.msra.mxu0 0.0
      %1156 = vmatprep.subr.mxu0 0.0
      %1157 = vmatpush1.msra.mxu0 0.0
      %1158 = vmatprep.subr.mxu0 0.0
      %1159 = vmatpush1.msra.mxu0 0.0
      %1160 = vmatprep.subr.mxu0 0.0
      %1161 = vmatpush1.msra.mxu0 0.0
      %1162 = vmatprep.subr.mxu0 0.0
      %1163 = vmatpush1.msra.mxu0 0.0
      %1164 = vmatprep.subr.mxu0 0.0
      %1165 = vmatpush1.msra.mxu0 0.0
      %1166 = vmatprep.subr.mxu0 0.0
      %1167 = vmatpush1.msra.mxu0 0.0
      %1168 = vmatprep.subr.mxu0 0.0
      %1169 = vmatpush1.msra.mxu0 0.0
      %1170 = vmatprep.subr.mxu0 0.0
      %1171 = vmatpush1.msra.mxu0 0.0
      %1172 = vmatprep.subr.mxu0 0.0
      %1173 = vmatpush1.msra.mxu0 0.0
      %1174 = vmatprep.subr.mxu0 0.0
      %1175 = vmatpush1.msra.mxu0 0.0
      %1176 = vmatprep.subr.mxu0 0.0
      %1177 = vmatpush1.msra.mxu0 0.0
      %1178 = vmatprep.subr.mxu0 0.0
      %1179 = vmatpush1.msra.mxu0 0.0
      %1180 = vmatprep.subr.mxu0 0.0
      %1181 = vmatpush1.msra.mxu0 0.0
      %1182 = vmatprep.subr.mxu0 0.0
      %1183 = vmatpush1.msra.mxu0 0.0
      %1184 = vmatprep.subr.mxu0 0.0
      %1185 = vmatpush1.msra.mxu0 0.0
      %1186 = vmatprep.subr.mxu0 0.0
      %1187 = vmatpush1.msra.mxu0 0.0
      %1188 = vmatprep.subr.mxu0 0.0
      %1189 = vmatpush1.msra.mxu0 0.0
      %1190 = vmatprep.subr.mxu0 0.0
      %1191 = vmatpush1.msra.mxu0 0.0
      %1192 = vmatprep.subr.mxu0 0.0
      %1193 = vmatpush1.msra.mxu0 0.0
      %1194 = vmatprep.subr.mxu0 0.0
      %1195 = vmatpush1.msra.mxu0 0.0
      %1196 = vmatprep.subr.mxu0 0.0
      %1197 = vmatpush1.msra.mxu0 0.0
      %1198 = vmatprep.subr.mxu0 0.0
      %1199 = vmatpush1.msra.mxu0 0.0
      %1200 = vmatprep.subr.mxu0 0.0
      %1201 = vmatpush1.msra.mxu0 0.0
      %1202 = vmatprep.subr.mxu0 0.0
      %1203 = vmatpush1.msra.mxu0 0.0
      %1204 = vmatprep.subr.mxu0 0.0
      %1205 = vmatpush1.msra.mxu0 0.0
      %1206 = vmatprep.subr.mxu0 0.0
      %1207 = vmatpush1.msra.mxu0 0.0
      %1208 = vmatprep.subr.mxu0 0.0
      %1209 = vmatpush1.msra.mxu0 0.0
      %1210 = vmatprep.subr.mxu0 0.0
      %1211 = vmatpush1.msra.mxu0 0.0
      %1212 = vmatprep.subr.mxu0 0.0
      %1213 = vmatpush1.msra.mxu0 0.0
      %1214 = vmatprep.mubr.f32.mxu0 0.0
      %1215 = vmatmul.mubr.f32.gmra.mrb[0].mxu0 %v763
      %v1216 = vpop.f32.mrb[0].mxu0
      %v1217 = vadd.f32 0.0, %v1216
      %v1218 = vpop.f32.mrb[0].mxu0
      %1219 = vmatprep.mubr.f32.mxu0 0.0
      %1220 = vmatmul.mubr.f32.gmra.mrb[0].mxu0 %v766
      %v1221 = vpop.f32.mrb[0].mxu0
      %v1222 = vadd.f32 0.0, %v1221
      %v1223 = vpop.f32.mrb[0].mxu0
      %1224 = vmatprep.mubr.f32.mxu0 0.0
      %1225 = vmatmul.mubr.f32.gmra.mrb[0].mxu0 %v769
      %v1226 = vpop.f32.mrb[0].mxu0
      %v1227 = vadd.f32 0.0, %v1226
      %v1228 = vpop.f32.mrb[0].mxu0
      %1229 = vmatprep.mubr.f32.mxu0 0.0
      %1230 = vmatmul.mubr.f32.gmra.mrb[0].mxu0 %v772
      %v1231 = vpop.f32.mrb[0].mxu0
      %v1232 = vadd.f32 0.0, %v1231
      %v1233 = vpop.f32.mrb[0].mxu0
      %1234 = vmatprep.mubr.f32.mxu0 0.0
      %1235 = vmatmul.mubr.f32.gmra.mrb[0].mxu0 %v775
      %v1236 = vpop.f32.mrb[0].mxu0
      %v1237 = vadd.f32 0.0, %v1236
      %v1238 = vpop.f32.mrb[0].mxu0
      %1239 = vmatprep.mubr.f32.mxu0 0.0
      %1240 = vmatmul.mubr.f32.gmra.mrb[0].mxu0 %v778
      %v1241 = vpop.f32.mrb[0].mxu0
      %v1242 = vadd.f32 0.0, %v1241
      %v1243 = vpop.f32.mrb[0].mxu0
      %1244 = vmatprep.mubr.f32.mxu0 0.0
      %1245 = vmatmul.mubr.f32.gmra.mrb[0].mxu0 %v781
      %v1246 = vpop.f32.mrb[0].mxu0
      %v1247 = vadd.f32 0.0, %v1246
      %v1248 = vpop.f32.mrb[0].mxu0
      %1249 = vmatprep.mubr.f32.mxu0 0.0
      %1250 = vmatmul.mubr.f32.gmra.mrb[0].mxu0 %v784
      %v1251 = vpop.f32.mrb[0].mxu0
      %v1252 = vadd.f32 0.0, %v1251
      %v1253 = vpop.f32.mrb[0].mxu0
      %1254 = vmatprep.mubr.f32.mxu0 0.0
      %1255 = vmatmul.mubr.f32.gmra.mrb[0].mxu0 %v787
      %v1256 = vpop.f32.mrb[0].mxu0
      %v1257 = vadd.f32 0.0, %v1256
      %v1258 = vpop.f32.mrb[0].mxu0
      %1259 = vmatprep.mubr.f32.mxu0 0.0
      %1260 = vmatmul.mubr.f32.gmra.mrb[0].mxu0 %v790
      %v1261 = vpop.f32.mrb[0].mxu0
      %v1262 = vadd.f32 0.0, %v1261
      %v1263 = vpop.f32.mrb[0].mxu0
      %1264 = vmatprep.mubr.f32.mxu0 0.0
      %1265 = vmatmul.mubr.f32.gmra.mrb[0].mxu0 %v793
      %v1266 = vpop.f32.mrb[0].mxu0
      %v1267 = vadd.f32 0.0, %v1266
      %v1268 = vpop.f32.mrb[0].mxu0
      %1269 = vmatprep.mubr.f32.mxu0 0.0
      %1270 = vmatmul.mubr.f32.gmra.mrb[0].mxu0 %v796
      %v1271 = vpop.f32.mrb[0].mxu0
      %v1272 = vadd.f32 0.0, %v1271
      %v1273 = vpop.f32.mrb[0].mxu0
      %1274 = vmatprep.mubr.f32.mxu0 0.0
      %1275 = vmatmul.mubr.f32.gmra.mrb[0].mxu0 %v799
      %v1276 = vpop.f32.mrb[0].mxu0
      %v1277 = vadd.f32 0.0, %v1276
      %v1278 = vpop.f32.mrb[0].mxu0
      %1279 = vmatprep.mubr.f32.mxu0 0.0
      %1280 = vmatmul.mubr.f32.gmra.mrb[0].mxu0 %v802
      %v1281 = vpop.f32.mrb[0].mxu0
      %v1282 = vadd.f32 0.0, %v1281
      %v1283 = vpop.f32.mrb[0].mxu0
      %1284 = vmatprep.mubr.f32.mxu0 0.0
      %1285 = vmatmul.mubr.f32.gmra.mrb[0].mxu0 %v805
      %v1286 = vpop.f32.mrb[0].mxu0
      %v1287 = vadd.f32 0.0, %v1286
      %v1288 = vpop.f32.mrb[0].mxu0
      %1289 = vmatprep.mubr.f32.mxu0 0.0
      %1290 = vmatmul.mubr.f32.gmra.mrb[0].mxu0 %v808
      %v1291 = vpop.f32.mrb[0].mxu0
      %v1292 = vadd.f32 0.0, %v1291
      %v1293 = vpop.f32.mrb[0].mxu0
      %1294 = vmatprep.mubr.f32.mxu0 0.0
      %1295 = vmatmul.mubr.f32.gmra.mrb[0].mxu0 %v811
      %v1296 = vpop.f32.mrb[0].mxu0
      %v1297 = vadd.f32 0.0, %v1296
      %v1298 = vpop.f32.mrb[0].mxu0
      %1299 = vmatprep.mubr.f32.mxu0 0.0
      %1300 = vmatmul.mubr.f32.gmra.mrb[0].mxu0 %v814
      %v1301 = vpop.f32.mrb[0].mxu0
      %v1302 = vadd.f32 0.0, %v1301
      %v1303 = vpop.f32.mrb[0].mxu0
      %1304 = vmatprep.mubr.f32.mxu0 0.0
      %1305 = vmatmul.mubr.f32.gmra.mrb[0].mxu0 %v817
      %v1306 = vpop.f32.mrb[0].mxu0
      %v1307 = vadd.f32 0.0, %v1306
      %v1308 = vpop.f32.mrb[0].mxu0
      %1309 = vmatprep.mubr.f32.mxu0 0.0
      %1310 = vmatmul.mubr.f32.gmra.mrb[0].mxu0 %v820
      %v1311 = vpop.f32.mrb[0].mxu0
      %v1312 = vadd.f32 0.0, %v1311
      %v1313 = vpop.f32.mrb[0].mxu0
      %1314 = vmatprep.mubr.f32.mxu0 0.0
      %1315 = vmatmul.mubr.f32.gmra.mrb[0].mxu0 %v823
      %v1316 = vpop.f32.mrb[0].mxu0
      %v1317 = vadd.f32 0.0, %v1316
      %v1318 = vpop.f32.mrb[0].mxu0
      %1319 = vmatprep.mubr.f32.mxu0 0.0
      %1320 = vmatmul.mubr.f32.gmra.mrb[0].mxu0 %v826
      %v1321 = vpop.f32.mrb[0].mxu0
      %v1322 = vadd.f32 0.0, %v1321
      %v1323 = vpop.f32.mrb[0].mxu0
      %1324 = vmatprep.mubr.f32.mxu0 0.0
      %1325 = vmatmul.mubr.f32.gmra.mrb[0].mxu0 %v829
      %v1326 = vpop.f32.mrb[0].mxu0
      %v1327 = vadd.f32 0.0, %v1326
      %v1328 = vpop.f32.mrb[0].mxu0
      %1329 = vmatprep.mubr.f32.mxu0 0.0
      %1330 = vmatmul.mubr.f32.gmra.mrb[0].mxu0 %v832
      %v1331 = vpop.f32.mrb[0].mxu0
      %v1332 = vadd.f32 0.0, %v1331
      %v1333 = vpop.f32.mrb[0].mxu0
      %1334 = vmatprep.mubr.f32.mxu0 0.0
      %1335 = vmatmul.mubr.f32.gmra.mrb[0].mxu0 %v835
      %v1336 = vpop.f32.mrb[0].mxu0
      %v1337 = vadd.f32 0.0, %v1336
      %v1338 = vpop.f32.mrb[0].mxu0
      %1339 = vmatprep.mubr.f32.mxu0 0.0
      %1340 = vmatmul.mubr.f32.gmra.mrb[0].mxu0 %v838
      %v1341 = vpop.f32.mrb[0].mxu0
      %v1342 = vadd.f32 0.0, %v1341
      %v1343 = vpop.f32.mrb[0].mxu0
      %1344 = vmatprep.mubr.f32.mxu0 0.0
      %1345 = vmatmul.mubr.f32.gmra.mrb[0].mxu0 %v841
      %v1346 = vpop.f32.mrb[0].mxu0
      %v1347 = vadd.f32 0.0, %v1346
      %v1348 = vpop.f32.mrb[0].mxu0
      %1349 = vmatprep.mubr.f32.mxu0 0.0
      %1350 = vmatmul.mubr.f32.gmra.mrb[0].mxu0 %v844
      %v1351 = vpop.f32.mrb[0].mxu0
      %v1352 = vadd.f32 0.0, %v1351
      %v1353 = vpop.f32.mrb[0].mxu0
      %1354 = vmatprep.mubr.f32.mxu0 0.0
      %1355 = vmatmul.mubr.f32.gmra.mrb[0].mxu0 %v847
      %v1356 = vpop.f32.mrb[0].mxu0
      %v1357 = vadd.f32 0.0, %v1356
      %v1358 = vpop.f32.mrb[0].mxu0
      %1359 = vmatprep.mubr.f32.mxu0 0.0
      %1360 = vmatmul.mubr.f32.gmra.mrb[0].mxu0 %v850
      %v1361 = vpop.f32.mrb[0].mxu0
      %v1362 = vadd.f32 0.0, %v1361
      %v1363 = vpop.f32.mrb[0].mxu0
      %1364 = vmatprep.mubr.f32.mxu0 0.0
      %1365 = vmatmul.mubr.f32.gmra.mrb[0].mxu0 %v853
      %v1366 = vpop.f32.mrb[0].mxu0
      %v1367 = vadd.f32 0.0, %v1366
      %v1368 = vpop.f32.mrb[0].mxu0
      %1369 = vmatprep.mubr.f32.mxu0 0.0
      %1370 = vmatmul.mubr.f32.gmra.mrb[0].mxu0 %v856
      %v1371 = vpop.f32.mrb[0].mxu0
      %v1372 = vadd.f32 0.0, %v1371
      %v1373 = vpop.f32.mrb[0].mxu0
      %1374 = vmatprep.mubr.f32.mxu0 0.0
      %1375 = vmatmul.mubr.f32.gmra.mrb[0].mxu0 %v859
      %v1376 = vpop.f32.mrb[0].mxu0
      %v1377 = vadd.f32 0.0, %v1376
      %v1378 = vpop.f32.mrb[0].mxu0
      %1379 = vmatprep.mubr.f32.mxu0 0.0
      %1380 = vmatmul.mubr.f32.gmra.mrb[0].mxu0 %v862
      %v1381 = vpop.f32.mrb[0].mxu0
      %v1382 = vadd.f32 0.0, %v1381
      %v1383 = vpop.f32.mrb[0].mxu0
      %1384 = vmatprep.mubr.f32.mxu0 0.0
      %1385 = vmatmul.mubr.f32.gmra.mrb[0].mxu0 %v865
      %v1386 = vpop.f32.mrb[0].mxu0
      %v1387 = vadd.f32 0.0, %v1386
      %v1388 = vpop.f32.mrb[0].mxu0
      %1389 = vmatprep.mubr.f32.mxu0 0.0
      %1390 = vmatmul.mubr.f32.gmra.mrb[0].mxu0 %v868
      %v1391 = vpop.f32.mrb[0].mxu0
      %v1392 = vadd.f32 0.0, %v1391
      %v1393 = vpop.f32.mrb[0].mxu0
      %1394 = vmatprep.mubr.f32.mxu0 0.0
      %1395 = vmatmul.mubr.f32.gmra.mrb[0].mxu0 %v871
      %v1396 = vpop.f32.mrb[0].mxu0
      %v1397 = vadd.f32 0.0, %v1396
      %v1398 = vpop.f32.mrb[0].mxu0
      %1399 = vmatprep.mubr.f32.mxu0 0.0
      %1400 = vmatmul.mubr.f32.gmra.mrb[0].mxu0 %v874
      %v1401 = vpop.f32.mrb[0].mxu0
      %v1402 = vadd.f32 0.0, %v1401
      %v1403 = vpop.f32.mrb[0].mxu0
      %1404 = vmatprep.mubr.f32.mxu0 0.0
      %1405 = vmatmul.mubr.f32.gmra.mrb[0].mxu0 %v877
      %v1406 = vpop.f32.mrb[0].mxu0
      %v1407 = vadd.f32 0.0, %v1406
      %v1408 = vpop.f32.mrb[0].mxu0
      %1409 = vmatprep.mubr.f32.mxu0 0.0
      %1410 = vmatmul.mubr.f32.gmra.mrb[0].mxu0 %v880
      %v1411 = vpop.f32.mrb[0].mxu0
      %v1412 = vadd.f32 0.0, %v1411
      %v1413 = vpop.f32.mrb[0].mxu0
      %1414 = vmatprep.mubr.f32.mxu0 0.0
      %1415 = vmatmul.mubr.f32.gmra.mrb[0].mxu0 %v883
      %v1416 = vpop.f32.mrb[0].mxu0
      %v1417 = vadd.f32 0.0, %v1416
      %v1418 = vpop.f32.mrb[0].mxu0
      %1419 = vmatprep.mubr.f32.mxu0 0.0
      %1420 = vmatmul.mubr.f32.gmra.mrb[0].mxu0 %v886
      %v1421 = vpop.f32.mrb[0].mxu0
      %v1422 = vadd.f32 0.0, %v1421
      %v1423 = vpop.f32.mrb[0].mxu0
      %1424 = vmatprep.mubr.f32.mxu0 0.0
      %1425 = vmatmul.mubr.f32.gmra.mrb[0].mxu0 %v889
      %v1426 = vpop.f32.mrb[0].mxu0
      %v1427 = vadd.f32 0.0, %v1426
      %v1428 = vpop.f32.mrb[0].mxu0
      %1429 = vmatprep.mubr.f32.mxu0 0.0
      %1430 = vmatmul.mubr.f32.gmra.mrb[0].mxu0 %v892
      %v1431 = vpop.f32.mrb[0].mxu0
      %v1432 = vadd.f32 0.0, %v1431
      %v1433 = vpop.f32.mrb[0].mxu0
      %1434 = vmatprep.mubr.f32.mxu0 0.0
      %1435 = vmatmul.mubr.f32.gmra.mrb[0].mxu0 %v895
      %v1436 = vpop.f32.mrb[0].mxu0
      %v1437 = vadd.f32 0.0, %v1436
      %v1438 = vpop.f32.mrb[0].mxu0
      %1439 = vmatprep.mubr.f32.mxu0 0.0
      %1440 = vmatmul.mubr.f32.gmra.mrb[0].mxu0 %v898
      %v1441 = vpop.f32.mrb[0].mxu0
      %v1442 = vadd.f32 0.0, %v1441
      %v1443 = vpop.f32.mrb[0].mxu0
      %1444 = vmatprep.mubr.f32.mxu0 0.0
      %1445 = vmatmul.mubr.f32.gmra.mrb[0].mxu0 %v901
      %v1446 = vpop.f32.mrb[0].mxu0
      %v1447 = vadd.f32 0.0, %v1446
      %v1448 = vpop.f32.mrb[0].mxu0
      %1449 = vmatprep.mubr.f32.mxu0 0.0
      %1450 = vmatmul.mubr.f32.gmra.mrb[0].mxu0 %v904
      %v1451 = vpop.f32.mrb[0].mxu0
      %v1452 = vadd.f32 0.0, %v1451
      %v1453 = vpop.f32.mrb[0].mxu0
      %1454 = vmatprep.mubr.f32.mxu0 0.0
      %1455 = vmatmul.mubr.f32.gmra.mrb[0].mxu0 %v907
      %v1456 = vpop.f32.mrb[0].mxu0
      %v1457 = vadd.f32 0.0, %v1456
      %v1458 = vpop.f32.mrb[0].mxu0
      %1459 = vmatprep.mubr.f32.mxu0 0.0
      %1460 = vmatmul.mubr.f32.gmra.mrb[0].mxu0 %v910
      %v1461 = vpop.f32.mrb[0].mxu0
      %v1462 = vadd.f32 0.0, %v1461
      %v1463 = vpop.f32.mrb[0].mxu0
      %1464 = vmatprep.mubr.f32.mxu0 0.0
      %1465 = vmatmul.mubr.f32.gmra.mrb[0].mxu0 %v913
      %v1466 = vpop.f32.mrb[0].mxu0
      %v1467 = vadd.f32 0.0, %v1466
      %v1468 = vpop.f32.mrb[0].mxu0
      %1469 = vmatprep.mubr.f32.mxu0 0.0
      %1470 = vmatmul.mubr.f32.gmra.mrb[0].mxu0 %v916
      %v1471 = vpop.f32.mrb[0].mxu0
      %v1472 = vadd.f32 0.0, %v1471
      %v1473 = vpop.f32.mrb[0].mxu0
      %1474 = vmatprep.mubr.f32.mxu0 0.0
      %1475 = vmatmul.mubr.f32.gmra.mrb[0].mxu0 %v919
      %v1476 = vpop.f32.mrb[0].mxu0
      %v1477 = vadd.f32 0.0, %v1476
      %v1478 = vpop.f32.mrb[0].mxu0
      %1479 = vmatprep.mubr.f32.mxu0 0.0
      %1480 = vmatmul.mubr.f32.gmra.mrb[0].mxu0 %v922
      %v1481 = vpop.f32.mrb[0].mxu0
      %v1482 = vadd.f32 0.0, %v1481
      %v1483 = vpop.f32.mrb[0].mxu0
      %1484 = vmatprep.mubr.f32.mxu0 0.0
      %1485 = vmatmul.mubr.f32.gmra.mrb[0].mxu0 %v925
      %v1486 = vpop.f32.mrb[0].mxu0
      %v1487 = vadd.f32 0.0, %v1486
      %v1488 = vpop.f32.mrb[0].mxu0
      %1489 = vmatprep.mubr.f32.mxu0 0.0
      %1490 = vmatmul.mubr.f32.gmra.mrb[0].mxu0 %v928
      %v1491 = vpop.f32.mrb[0].mxu0
      %v1492 = vadd.f32 0.0, %v1491
      %v1493 = vpop.f32.mrb[0].mxu0
      %1494 = vmatprep.mubr.f32.mxu0 0.0
      %1495 = vmatmul.mubr.f32.gmra.mrb[0].mxu0 %v931
      %v1496 = vpop.f32.mrb[0].mxu0
      %v1497 = vadd.f32 0.0, %v1496
      %v1498 = vpop.f32.mrb[0].mxu0
      %1499 = vmatprep.mubr.f32.mxu0 0.0
      %1500 = vmatmul.mubr.f32.gmra.mrb[0].mxu0 %v934
      %v1501 = vpop.f32.mrb[0].mxu0
      %v1502 = vadd.f32 0.0, %v1501
      %v1503 = vpop.f32.mrb[0].mxu0
      %1504 = vmatprep.mubr.f32.mxu0 0.0
      %1505 = vmatmul.mubr.f32.gmra.mrb[0].mxu0 %v937
      %v1506 = vpop.f32.mrb[0].mxu0
      %v1507 = vadd.f32 0.0, %v1506
      %v1508 = vpop.f32.mrb[0].mxu0
      %1509 = vmatprep.mubr.f32.mxu0 0.0
      %1510 = vmatmul.mubr.f32.gmra.mrb[0].mxu0 %v940
      %v1511 = vpop.f32.mrb[0].mxu0
      %v1512 = vadd.f32 0.0, %v1511
      %v1513 = vpop.f32.mrb[0].mxu0
      %1514 = vmatprep.mubr.f32.mxu0 0.0
      %1515 = vmatmul.mubr.f32.gmra.mrb[0].mxu0 %v943
      %v1516 = vpop.f32.mrb[0].mxu0
      %v1517 = vadd.f32 0.0, %v1516
      %v1518 = vpop.f32.mrb[0].mxu0
      %1519 = vmatprep.mubr.f32.mxu0 0.0
      %1520 = vmatmul.mubr.f32.gmra.mrb[0].mxu0 %v946
      %v1521 = vpop.f32.mrb[0].mxu0
      %v1522 = vadd.f32 0.0, %v1521
      %v1523 = vpop.f32.mrb[0].mxu0
      %1524 = vmatprep.mubr.f32.mxu0 0.0
      %1525 = vmatmul.mubr.f32.gmra.mrb[0].mxu0 %v949
      %v1526 = vpop.f32.mrb[0].mxu0
      %v1527 = vadd.f32 0.0, %v1526
      %v1528 = vpop.f32.mrb[0].mxu0
      %1529 = vmatprep.mubr.f32.mxu0 0.0
      %1530 = vmatmul.mubr.f32.gmra.mrb[0].mxu0 %v952
      %v1531 = vpop.f32.mrb[0].mxu0
      %v1532 = vadd.f32 0.0, %v1531
      %v1533 = vpop.f32.mrb[0].mxu0
      %1534 = vmatprep.mubr.f32.mxu0 0.0
      %1535 = vmatmul.mubr.f32.gmra.mrb[0].mxu0 %v955
      %v1536 = vpop.f32.mrb[0].mxu0
      %v1537 = vadd.f32 0.0, %v1536
      %v1538 = vpop.f32.mrb[0].mxu0
      %1539 = vmatprep.mubr.f32.mxu0 0.0
      %1540 = vmatmul.mubr.f32.gmra.mrb[0].mxu0 %v958
      %v1541 = vpop.f32.mrb[0].mxu0
      %v1542 = vadd.f32 0.0, %v1541
      %v1543 = vpop.f32.mrb[0].mxu0
      %1544 = vmatprep.mubr.f32.mxu0 0.0
      %1545 = vmatmul.mubr.f32.gmra.mrb[0].mxu0 %v961
      %v1546 = vpop.f32.mrb[0].mxu0
      %v1547 = vadd.f32 0.0, %v1546
      %v1548 = vpop.f32.mrb[0].mxu0
      %1549 = vmatprep.mubr.f32.mxu0 0.0
      %1550 = vmatmul.mubr.f32.gmra.mrb[0].mxu0 %v964
      %v1551 = vpop.f32.mrb[0].mxu0
      %v1552 = vadd.f32 0.0, %v1551
      %v1553 = vpop.f32.mrb[0].mxu0
      %1554 = vmatprep.mubr.f32.mxu0 0.0
      %1555 = vmatmul.mubr.f32.gmra.mrb[0].mxu0 %v967
      %v1556 = vpop.f32.mrb[0].mxu0
      %v1557 = vadd.f32 0.0, %v1556
      %v1558 = vpop.f32.mrb[0].mxu0
      %1559 = vmatprep.mubr.f32.mxu0 0.0
      %1560 = vmatmul.mubr.f32.gmra.mrb[0].mxu0 %v970
      %v1561 = vpop.f32.mrb[0].mxu0
      %v1562 = vadd.f32 0.0, %v1561
      %v1563 = vpop.f32.mrb[0].mxu0
      %1564 = vmatprep.mubr.f32.mxu0 0.0
      %1565 = vmatmul.mubr.f32.gmra.mrb[0].mxu0 %v973
      %v1566 = vpop.f32.mrb[0].mxu0
      %v1567 = vadd.f32 0.0, %v1566
      %v1568 = vpop.f32.mrb[0].mxu0
      %1569 = vmatprep.mubr.f32.mxu0 0.0
      %1570 = vmatmul.mubr.f32.gmra.mrb[0].mxu0 %v976
      %v1571 = vpop.f32.mrb[0].mxu0
      %v1572 = vadd.f32 0.0, %v1571
      %v1573 = vpop.f32.mrb[0].mxu0
      %1574 = vmatprep.mubr.f32.mxu0 0.0
      %1575 = vmatmul.mubr.f32.gmra.mrb[0].mxu0 %v979
      %v1576 = vpop.f32.mrb[0].mxu0
      %v1577 = vadd.f32 0.0, %v1576
      %v1578 = vpop.f32.mrb[0].mxu0
      %1579 = vmatprep.mubr.f32.mxu0 0.0
      %1580 = vmatmul.mubr.f32.gmra.mrb[0].mxu0 %v982
      %v1581 = vpop.f32.mrb[0].mxu0
      %v1582 = vadd.f32 0.0, %v1581
      %v1583 = vpop.f32.mrb[0].mxu0
      %1584 = vmatprep.mubr.f32.mxu0 0.0
      %1585 = vmatmul.mubr.f32.gmra.mrb[0].mxu0 %v985
      %v1586 = vpop.f32.mrb[0].mxu0
      %v1587 = vadd.f32 0.0, %v1586
      %v1588 = vpop.f32.mrb[0].mxu0
      %1589 = vmatprep.mubr.f32.mxu0 0.0
      %1590 = vmatmul.mubr.f32.gmra.mrb[0].mxu0 %v988
      %v1591 = vpop.f32.mrb[0].mxu0
      %v1592 = vadd.f32 0.0, %v1591
      %v1593 = vpop.f32.mrb[0].mxu0
      %1594 = vmatprep.mubr.f32.mxu0 0.0
      %1595 = vmatmul.mubr.f32.gmra.mrb[0].mxu0 %v991
      %v1596 = vpop.f32.mrb[0].mxu0
      %v1597 = vadd.f32 0.0, %v1596
      %v1598 = vpop.f32.mrb[0].mxu0
      %1599 = vmatprep.mubr.f32.mxu0 0.0
      %1600 = vmatmul.mubr.f32.gmra.mrb[0].mxu0 %v994
      %v1601 = vpop.f32.mrb[0].mxu0
      %v1602 = vadd.f32 0.0, %v1601
      %v1603 = vpop.f32.mrb[0].mxu0
      %1604 = vmatprep.mubr.f32.mxu0 0.0
      %1605 = vmatmul.mubr.f32.gmra.mrb[0].mxu0 %v997
      %v1606 = vpop.f32.mrb[0].mxu0
      %v1607 = vadd.f32 0.0, %v1606
      %v1608 = vpop.f32.mrb[0].mxu0
      %1609 = vmatprep.mubr.f32.mxu0 0.0
      %1610 = vmatmul.mubr.f32.gmra.mrb[0].mxu0 %v1000
      %v1611 = vpop.f32.mrb[0].mxu0
      %v1612 = vadd.f32 0.0, %v1611
      %v1613 = vpop.f32.mrb[0].mxu0
      %1614 = vmatprep.mubr.f32.mxu0 0.0
      %1615 = vmatmul.mubr.f32.gmra.mrb[0].mxu0 %v1003
      %v1616 = vpop.f32.mrb[0].mxu0
      %v1617 = vadd.f32 0.0, %v1616
      %v1618 = vpop.f32.mrb[0].mxu0
      %1619 = vmatprep.mubr.f32.mxu0 0.0
      %1620 = vmatmul.mubr.f32.gmra.mrb[0].mxu0 %v1006
      %v1621 = vpop.f32.mrb[0].mxu0
      %v1622 = vadd.f32 0.0, %v1621
      %v1623 = vpop.f32.mrb[0].mxu0
      %1624 = vmatprep.mubr.f32.mxu0 0.0
      %1625 = vmatmul.mubr.f32.gmra.mrb[0].mxu0 %v1009
      %v1626 = vpop.f32.mrb[0].mxu0
      %v1627 = vadd.f32 0.0, %v1626
      %v1628 = vpop.f32.mrb[0].mxu0
      %1629 = vmatprep.mubr.f32.mxu0 0.0
      %1630 = vmatmul.mubr.f32.gmra.mrb[0].mxu0 %v1012
      %v1631 = vpop.f32.mrb[0].mxu0
      %v1632 = vadd.f32 0.0, %v1631
      %v1633 = vpop.f32.mrb[0].mxu0
      %1634 = vmatprep.mubr.f32.mxu0 0.0
      %1635 = vmatmul.mubr.f32.gmra.mrb[0].mxu0 %v1015
      %v1636 = vpop.f32.mrb[0].mxu0
      %v1637 = vadd.f32 0.0, %v1636
      %v1638 = vpop.f32.mrb[0].mxu0
      %1639 = vmatprep.mubr.f32.mxu0 0.0
      %1640 = vmatmul.mubr.f32.gmra.mrb[0].mxu0 %v1018
      %v1641 = vpop.f32.mrb[0].mxu0
      %v1642 = vadd.f32 0.0, %v1641
      %v1643 = vpop.f32.mrb[0].mxu0
      %1644 = vmatprep.mubr.f32.mxu0 0.0
      %1645 = vmatmul.mubr.f32.gmra.mrb[0].mxu0 %v1021
      %v1646 = vpop.f32.mrb[0].mxu0
      %v1647 = vadd.f32 0.0, %v1646
      %v1648 = vpop.f32.mrb[0].mxu0
      %1649 = vmatprep.mubr.f32.mxu0 0.0
      %1650 = vmatmul.mubr.f32.gmra.mrb[0].mxu0 %v1024
      %v1651 = vpop.f32.mrb[0].mxu0
      %v1652 = vadd.f32 0.0, %v1651
      %v1653 = vpop.f32.mrb[0].mxu0
      %1654 = vmatprep.mubr.f32.mxu0 0.0
      %1655 = vmatmul.mubr.f32.gmra.mrb[0].mxu0 %v1027
      %v1656 = vpop.f32.mrb[0].mxu0
      %v1657 = vadd.f32 0.0, %v1656
      %v1658 = vpop.f32.mrb[0].mxu0
      %1659 = vmatprep.mubr.f32.mxu0 0.0
      %1660 = vmatmul.mubr.f32.gmra.mrb[0].mxu0 %v1030
      %v1661 = vpop.f32.mrb[0].mxu0
      %v1662 = vadd.f32 0.0, %v1661
      %v1663 = vpop.f32.mrb[0].mxu0
      %1664 = vmatprep.mubr.f32.mxu0 0.0
      %1665 = vmatmul.mubr.f32.gmra.mrb[0].mxu0 %v1033
      %v1666 = vpop.f32.mrb[0].mxu0
      %v1667 = vadd.f32 0.0, %v1666
      %v1668 = vpop.f32.mrb[0].mxu0
      %1669 = vmatprep.mubr.f32.mxu0 0.0
      %1670 = vmatmul.mubr.f32.gmra.mrb[0].mxu0 %v1036
      %v1671 = vpop.f32.mrb[0].mxu0
      %v1672 = vadd.f32 0.0, %v1671
      %v1673 = vpop.f32.mrb[0].mxu0
      %1674 = vmatprep.mubr.f32.mxu0 0.0
      %1675 = vmatmul.mubr.f32.gmra.mrb[0].mxu0 %v1039
      %v1676 = vpop.f32.mrb[0].mxu0
      %v1677 = vadd.f32 0.0, %v1676
      %v1678 = vpop.f32.mrb[0].mxu0
      %1679 = vmatprep.mubr.f32.mxu0 0.0
      %1680 = vmatmul.mubr.f32.gmra.mrb[0].mxu0 %v1042
      %v1681 = vpop.f32.mrb[0].mxu0
      %v1682 = vadd.f32 0.0, %v1681
      %v1683 = vpop.f32.mrb[0].mxu0
      %1684 = vmatprep.mubr.f32.mxu0 0.0
      %1685 = vmatmul.mubr.f32.gmra.mrb[0].mxu0 %v1045
      %v1686 = vpop.f32.mrb[0].mxu0
      %v1687 = vadd.f32 0.0, %v1686
      %v1688 = vpop.f32.mrb[0].mxu0
      %1689 = vmatprep.mubr.f32.mxu0 0.0
      %1690 = vmatmul.mubr.f32.gmra.mrb[0].mxu0 %v1048
      %v1691 = vpop.f32.mrb[0].mxu0
      %v1692 = vadd.f32 0.0, %v1691
      %v1693 = vpop.f32.mrb[0].mxu0
      %1694 = vmatprep.mubr.f32.mxu0 0.0
      %1695 = vmatmul.mubr.f32.gmra.mrb[0].mxu0 %v1051
      %v1696 = vpop.f32.mrb[0].mxu0
      %v1697 = vadd.f32 0.0, %v1696
      %v1698 = vpop.f32.mrb[0].mxu0
      %1699 = vmatprep.mubr.f32.mxu0 0.0
      %1700 = vmatmul.mubr.f32.gmra.mrb[0].mxu0 %v1054
      %v1701 = vpop.f32.mrb[0].mxu0
      %v1702 = vadd.f32 0.0, %v1701
      %v1703 = vpop.f32.mrb[0].mxu0
      %1704 = vmatprep.mubr.f32.mxu0 0.0
      %1705 = vmatmul.mubr.f32.gmra.mrb[0].mxu0 %v1057
      %v1706 = vpop.f32.mrb[0].mxu0
      %v1707 = vadd.f32 0.0, %v1706
      %v1708 = vpop.f32.mrb[0].mxu0
      %1709 = vmatprep.mubr.f32.mxu0 0.0
      %1710 = vmatmul.mubr.f32.gmra.mrb[0].mxu0 %v1060
      %v1711 = vpop.f32.mrb[0].mxu0
      %v1712 = vadd.f32 0.0, %v1711
      %v1713 = vpop.f32.mrb[0].mxu0
      %1714 = vmatprep.mubr.f32.mxu0 0.0
      %1715 = vmatmul.mubr.f32.gmra.mrb[0].mxu0 %v1063
      %v1716 = vpop.f32.mrb[0].mxu0
      %v1717 = vadd.f32 0.0, %v1716
      %v1718 = vpop.f32.mrb[0].mxu0
      %1719 = vmatprep.mubr.f32.mxu0 0.0
      %1720 = vmatmul.mubr.f32.gmra.mrb[0].mxu0 %v1066
      %v1721 = vpop.f32.mrb[0].mxu0
      %v1722 = vadd.f32 0.0, %v1721
      %v1723 = vpop.f32.mrb[0].mxu0
      %1724 = vmatprep.mubr.f32.mxu0 0.0
      %1725 = vmatmul.mubr.f32.gmra.mrb[0].mxu0 %v1069
      %v1726 = vpop.f32.mrb[0].mxu0
      %v1727 = vadd.f32 0.0, %v1726
      %v1728 = vpop.f32.mrb[0].mxu0
      %1729 = vmatprep.mubr.f32.mxu0 0.0
      %1730 = vmatmul.mubr.f32.gmra.mrb[0].mxu0 %v1072
      %v1731 = vpop.f32.mrb[0].mxu0
      %v1732 = vadd.f32 0.0, %v1731
      %v1733 = vpop.f32.mrb[0].mxu0
      %1734 = vmatprep.mubr.f32.mxu0 0.0
      %1735 = vmatmul.mubr.f32.gmra.mrb[0].mxu0 %v1075
      %v1736 = vpop.f32.mrb[0].mxu0
      %v1737 = vadd.f32 0.0, %v1736
      %v1738 = vpop.f32.mrb[0].mxu0
      %1739 = vmatprep.mubr.f32.mxu0 0.0
      %1740 = vmatmul.mubr.f32.gmra.mrb[0].mxu0 %v1078
      %v1741 = vpop.f32.mrb[0].mxu0
      %v1742 = vadd.f32 0.0, %v1741
      %v1743 = vpop.f32.mrb[0].mxu0
      %1744 = vmatprep.mubr.f32.mxu0 0.0
      %1745 = vmatmul.mubr.f32.gmra.mrb[0].mxu0 %v1081
      %v1746 = vpop.f32.mrb[0].mxu0
      %v1747 = vadd.f32 0.0, %v1746
      %v1748 = vpop.f32.mrb[0].mxu0
      %1749 = vmatprep.mubr.f32.mxu0 0.0
      %1750 = vmatmul.mubr.f32.gmra.mrb[0].mxu0 %v1084
      %v1751 = vpop.f32.mrb[0].mxu0
      %v1752 = vadd.f32 0.0, %v1751
      %v1753 = vpop.f32.mrb[0].mxu0
      %1754 = vmatprep.mubr.f32.mxu0 0.0
      %1755 = vmatmul.mubr.f32.gmra.mrb[0].mxu0 %v1087
      %v1756 = vpop.f32.mrb[0].mxu0
      %v1757 = vadd.f32 0.0, %v1756
      %v1758 = vpop.f32.mrb[0].mxu0
      %1759 = vmatprep.mubr.f32.mxu0 0.0
      %1760 = vmatmul.mubr.f32.gmra.mrb[0].mxu0 %v1090
      %v1761 = vpop.f32.mrb[0].mxu0
      %v1762 = vadd.f32 0.0, %v1761
      %v1763 = vpop.f32.mrb[0].mxu0
      %1764 = vmatprep.mubr.f32.mxu0 0.0
      %1765 = vmatmul.mubr.f32.gmra.mrb[0].mxu0 %v1093
      %v1766 = vpop.f32.mrb[0].mxu0
      %v1767 = vadd.f32 0.0, %v1766
      %v1768 = vpop.f32.mrb[0].mxu0
      %1769 = vmatprep.mubr.f32.mxu0 0.0
      %1770 = vmatmul.mubr.f32.gmra.mrb[0].mxu0 %v1096
      %v1771 = vpop.f32.mrb[0].mxu0
      %v1772 = vadd.f32 0.0, %v1771
      %v1773 = vpop.f32.mrb[0].mxu0
      %1774 = vmatprep.mubr.f32.mxu0 0.0
      %1775 = vmatmul.mubr.f32.gmra.mrb[0].mxu0 %v1099
      %v1776 = vpop.f32.mrb[0].mxu0
      %v1777 = vadd.f32 0.0, %v1776
      %v1778 = vpop.f32.mrb[0].mxu0
      %1779 = vmatprep.mubr.f32.mxu0 0.0
      %1780 = vmatmul.mubr.f32.gmra.mrb[0].mxu0 %v1102
      %v1781 = vpop.f32.mrb[0].mxu0
      %v1782 = vadd.f32 0.0, %v1781
      %v1783 = vpop.f32.mrb[0].mxu0
      %1784 = vmatprep.mubr.f32.mxu0 0.0
      %1785 = vmatmul.mubr.f32.gmra.mrb[0].mxu0 %v1105
      %v1786 = vpop.f32.mrb[0].mxu0
      %v1787 = vadd.f32 0.0, %v1786
      %v1788 = vpop.f32.mrb[0].mxu0
      %1789 = vmatprep.mubr.f32.mxu0 0.0
      %1790 = vmatmul.mubr.f32.gmra.mrb[0].mxu0 %v1108
      %v1791 = vpop.f32.mrb[0].mxu0
      %v1792 = vadd.f32 0.0, %v1791
      %v1793 = vpop.f32.mrb[0].mxu0
      %1794 = vmatprep.mubr.f32.mxu0 0.0
      %1795 = vmatmul.mubr.f32.gmra.mrb[0].mxu0 %v1111
      %v1796 = vpop.f32.mrb[0].mxu0
      %v1797 = vadd.f32 0.0, %v1796
      %v1798 = vpop.f32.mrb[0].mxu0
      %1799 = vmatprep.mubr.f32.mxu0 0.0
      %1800 = vmatmul.mubr.f32.gmra.mrb[0].mxu0 %v1114
      %v1801 = vpop.f32.mrb[0].mxu0
      %v1802 = vadd.f32 0.0, %v1801
      %v1803 = vpop.f32.mrb[0].mxu0
      %1804 = vmatprep.mubr.f32.mxu0 0.0
      %1805 = vmatmul.mubr.f32.gmra.mrb[0].mxu0 %v1117
      %v1806 = vpop.f32.mrb[0].mxu0
      %v1807 = vadd.f32 0.0, %v1806
      %v1808 = vpop.f32.mrb[0].mxu0
      %1809 = vmatprep.mubr.f32.mxu0 0.0
      %1810 = vmatmul.mubr.f32.gmra.mrb[0].mxu0 %v1120
      %v1811 = vpop.f32.mrb[0].mxu0
      %v1812 = vadd.f32 0.0, %v1811
      %v1813 = vpop.f32.mrb[0].mxu0
      %1814 = vmatprep.mubr.f32.mxu0 0.0
      %1815 = vmatmul.mubr.f32.gmra.mrb[0].mxu0 %v1123
      %v1816 = vpop.f32.mrb[0].mxu0
      %v1817 = vadd.f32 0.0, %v1816
      %v1818 = vpop.f32.mrb[0].mxu0
      %1819 = vmatprep.mubr.f32.mxu0 0.0
      %1820 = vmatmul.mubr.f32.gmra.mrb[0].mxu0 %v1126
      %v1821 = vpop.f32.mrb[0].mxu0
      %v1822 = vadd.f32 0.0, %v1821
      %v1823 = vpop.f32.mrb[0].mxu0
      %1824 = vmatprep.mubr.f32.mxu0 0.0
      %1825 = vmatmul.mubr.f32.gmra.mrb[0].mxu0 %v1129
      %v1826 = vpop.f32.mrb[0].mxu0
      %v1827 = vadd.f32 0.0, %v1826
      %v1828 = vpop.f32.mrb[0].mxu0
      %1829 = vmatprep.mubr.f32.mxu0 0.0
      %1830 = vmatmul.mubr.f32.gmra.mrb[0].mxu0 %v1132
      %v1831 = vpop.f32.mrb[0].mxu0
      %v1832 = vadd.f32 0.0, %v1831
      %v1833 = vpop.f32.mrb[0].mxu0
      %1834 = vmatprep.mubr.f32.mxu0 0.0
      %1835 = vmatmul.mubr.f32.gmra.mrb[0].mxu0 %v1135
      %v1836 = vpop.f32.mrb[0].mxu0
      %v1837 = vadd.f32 0.0, %v1836
      %v1838 = vpop.f32.mrb[0].mxu0
      %1839 = vmatprep.mubr.f32.mxu0 0.0
      %1840 = vmatmul.mubr.f32.gmra.mrb[0].mxu0 %v1138
      %v1841 = vpop.f32.mrb[0].mxu0
      %v1842 = vadd.f32 0.0, %v1841
      %v1843 = vpop.f32.mrb[0].mxu0
      %1844 = vmatprep.mubr.f32.mxu0 0.0
      %1845 = vmatmul.mubr.f32.gmra.mrb[0].mxu0 %v1141
      %v1846 = vpop.f32.mrb[0].mxu0
      %v1847 = vadd.f32 0.0, %v1846
      %v1848 = vpop.f32.mrb[0].mxu0
      %1849 = vmatprep.mubr.f32.mxu0 0.0
      %1850 = vmatmul.mubr.f32.gmra.mrb[0].mxu0 %v1144
      %v1851 = vpop.f32.mrb[0].mxu0
      %v1852 = vadd.f32 0.0, %v1851
      %v1853 = vpop.f32.mrb[0].mxu0
      %1854 = vdwg.mxu0
      %v1856 = vcombine.high %v631, %v631
      %v1858 = vunpack.c.l.s4 1966171168
      %v1859 = vunpack.c.0.s8 %v1858
      %v1860 = vlaneseq
      %v1861 = vshrl.u32 %v1860, 7
      %v1862 = vsub.s32 %v1859, %v1861
      %v1863 = vrot.slane %v631, %v1862
      %v1865 = vunpack.c.l.s4 1966171168
      %v1866 = vunpack.c.0.s8 %v1865
      %v1867 = vlaneseq
      %v1868 = vshrl.u32 %v1867, 7
      %v1869 = vsub.s32 %v1866, %v1868
      %v1870 = vrot.slane %v1856, %v1869
      %v1871 = vcombine.high %v1863, %v1863
      %v1872 = vcombine.high %v1870, %v1870
      %v1874 = vunpack.c.l.s4 1966171168
      %v1875 = vunpack.c.0.s8 %v1874
      %v1876 = vlaneseq
      %v1877 = vshrl.u32 %v1876, 7
      %v1878 = vsub.s32 %v1875, %v1877
      %v1879 = vrot.slane %v1863, %v1878
      %v1881 = vunpack.c.l.s4 1966171168
      %v1882 = vunpack.c.0.s8 %v1881
      %v1883 = vlaneseq
      %v1884 = vshrl.u32 %v1883, 7
      %v1885 = vsub.s32 %v1882, %v1884
      %v1886 = vrot.slane %v1870, %v1885
      %v1888 = vunpack.c.l.s4 1966171168
      %v1889 = vunpack.c.0.s8 %v1888
      %v1890 = vlaneseq
      %v1891 = vshrl.u32 %v1890, 7
      %v1892 = vsub.s32 %v1889, %v1891
      %v1893 = vrot.slane %v1871, %v1892
      %v1895 = vunpack.c.l.s4 1966171168
      %v1896 = vunpack.c.0.s8 %v1895
      %v1897 = vlaneseq
      %v1898 = vshrl.u32 %v1897, 7
      %v1899 = vsub.s32 %v1896, %v1898
      %v1900 = vrot.slane %v1872, %v1899
      %v1901 = vcombine.high %v1879, %v1879
      %v1902 = vcombine.high %v1886, %v1886
      %v1903 = vcombine.high %v1893, %v1893
      %v1904 = vcombine.high %v1900, %v1900
      %v1905 = vlaneseq
      %v1906 = vshrl.u32 %v1905, 7
      %v1907 = vsub.s32 0, %v1906
      %v1908 = vrot.slane %v1879, %v1907
      %v1909 = vlaneseq
      %v1910 = vshrl.u32 %v1909, 7
      %v1911 = vsub.s32 0, %v1910
      %v1912 = vrot.slane %v1893, %v1911
      %v1913 = vlaneseq
      %v1914 = vshrl.u32 %v1913, 7
      %v1915 = vsub.s32 0, %v1914
      %v1916 = vrot.slane %v1901, %v1915
      %v1917 = vlaneseq
      %v1918 = vshrl.u32 %v1917, 7
      %v1919 = vsub.s32 0, %v1918
      %v1920 = vrot.slane %v1903, %v1919
      %v1921 = vlaneseq
      %v1922 = vshrl.u32 %v1921, 7
      %v1923 = vsub.s32 0, %v1922
      %v1924 = vrot.slane %v1886, %v1923
      %v1925 = vlaneseq
      %v1926 = vshrl.u32 %v1925, 7
      %v1927 = vsub.s32 0, %v1926
      %v1928 = vrot.slane %v1900, %v1927
      %v1929 = vlaneseq
      %v1930 = vshrl.u32 %v1929, 7
      %v1931 = vsub.s32 0, %v1930
      %v1932 = vrot.slane %v1902, %v1931
      %v1933 = vlaneseq
      %v1934 = vshrl.u32 %v1933, 7
      %v1935 = vsub.s32 0, %v1934
      %v1936 = vrot.slane %v1904, %v1935
      %v1945 = vadd.f32 %v1217, %v1908
      %v1946 = vadd.f32 %v1222, %v1908
      %v1947 = vadd.f32 %v1227, %v1908
      %v1948 = vadd.f32 %v1232, %v1908
      %v1949 = vadd.f32 %v1237, %v1908
      %v1950 = vadd.f32 %v1242, %v1908
      %v1951 = vadd.f32 %v1247, %v1908
      %v1952 = vadd.f32 %v1252, %v1908
      %v1953 = vadd.f32 %v1257, %v1908
      %v1954 = vadd.f32 %v1262, %v1908
      %v1955 = vadd.f32 %v1267, %v1908
      %v1956 = vadd.f32 %v1272, %v1908
      %v1957 = vadd.f32 %v1277, %v1908
      %v1958 = vadd.f32 %v1282, %v1908
      %v1959 = vadd.f32 %v1287, %v1908
      %v1960 = vadd.f32 %v1292, %v1908
      %v1961 = vadd.f32 %v1297, %v1912
      %v1962 = vadd.f32 %v1302, %v1912
      %v1963 = vadd.f32 %v1307, %v1912
      %v1964 = vadd.f32 %v1312, %v1912
      %v1965 = vadd.f32 %v1317, %v1912
      %v1966 = vadd.f32 %v1322, %v1912
      %v1967 = vadd.f32 %v1327, %v1912
      %v1968 = vadd.f32 %v1332, %v1912
      %v1969 = vadd.f32 %v1337, %v1912
      %v1970 = vadd.f32 %v1342, %v1912
      %v1971 = vadd.f32 %v1347, %v1912
      %v1972 = vadd.f32 %v1352, %v1912
      %v1973 = vadd.f32 %v1357, %v1912
      %v1974 = vadd.f32 %v1362, %v1912
      %v1975 = vadd.f32 %v1367, %v1912
      %v1976 = vadd.f32 %v1372, %v1912
      %v1977 = vadd.f32 %v1377, %v1916
      %v1978 = vadd.f32 %v1382, %v1916
      %v1979 = vadd.f32 %v1387, %v1916
      %v1980 = vadd.f32 %v1392, %v1916
      %v1981 = vadd.f32 %v1397, %v1916
      %v1982 = vadd.f32 %v1402, %v1916
      %v1983 = vadd.f32 %v1407, %v1916
      %v1984 = vadd.f32 %v1412, %v1916
      %v1985 = vadd.f32 %v1417, %v1916
      %v1986 = vadd.f32 %v1422, %v1916
      %v1987 = vadd.f32 %v1427, %v1916
      %v1988 = vadd.f32 %v1432, %v1916
      %v1989 = vadd.f32 %v1437, %v1916
      %v1990 = vadd.f32 %v1442, %v1916
      %v1991 = vadd.f32 %v1447, %v1916
      %v1992 = vadd.f32 %v1452, %v1916
      %v1993 = vadd.f32 %v1457, %v1920
      %v1994 = vadd.f32 %v1462, %v1920
      %v1995 = vadd.f32 %v1467, %v1920
      %v1996 = vadd.f32 %v1472, %v1920
      %v1997 = vadd.f32 %v1477, %v1920
      %v1998 = vadd.f32 %v1482, %v1920
      %v1999 = vadd.f32 %v1487, %v1920
      %v2000 = vadd.f32 %v1492, %v1920
      %v2001 = vadd.f32 %v1497, %v1920
      %v2002 = vadd.f32 %v1502, %v1920
      %v2003 = vadd.f32 %v1507, %v1920
      %v2004 = vadd.f32 %v1512, %v1920
      %v2005 = vadd.f32 %v1517, %v1920
      %v2006 = vadd.f32 %v1522, %v1920
      %v2007 = vadd.f32 %v1527, %v1920
      %v2008 = vadd.f32 %v1532, %v1920
      %v2009 = vadd.f32 %v1537, %v1924
      %v2010 = vadd.f32 %v1542, %v1924
      %v2011 = vadd.f32 %v1547, %v1924
      %v2012 = vadd.f32 %v1552, %v1924
      %v2013 = vadd.f32 %v1557, %v1924
      %v2014 = vadd.f32 %v1562, %v1924
      %v2015 = vadd.f32 %v1567, %v1924
      %v2016 = vadd.f32 %v1572, %v1924
      %v2017 = vadd.f32 %v1577, %v1924
      %v2018 = vadd.f32 %v1582, %v1924
      %v2019 = vadd.f32 %v1587, %v1924
      %v2020 = vadd.f32 %v1592, %v1924
      %v2021 = vadd.f32 %v1597, %v1924
      %v2022 = vadd.f32 %v1602, %v1924
      %v2023 = vadd.f32 %v1607, %v1924
      %v2024 = vadd.f32 %v1612, %v1924
      %v2025 = vadd.f32 %v1617, %v1928
      %v2026 = vadd.f32 %v1622, %v1928
      %v2027 = vadd.f32 %v1627, %v1928
      %v2028 = vadd.f32 %v1632, %v1928
      %v2029 = vadd.f32 %v1637, %v1928
      %v2030 = vadd.f32 %v1642, %v1928
      %v2031 = vadd.f32 %v1647, %v1928
      %v2032 = vadd.f32 %v1652, %v1928
      %v2033 = vadd.f32 %v1657, %v1928
      %v2034 = vadd.f32 %v1662, %v1928
      %v2035 = vadd.f32 %v1667, %v1928
      %v2036 = vadd.f32 %v1672, %v1928
      %v2037 = vadd.f32 %v1677, %v1928
      %v2038 = vadd.f32 %v1682, %v1928
      %v2039 = vadd.f32 %v1687, %v1928
      %v2040 = vadd.f32 %v1692, %v1928
      %v2041 = vadd.f32 %v1697, %v1932
      %v2042 = vadd.f32 %v1702, %v1932
      %v2043 = vadd.f32 %v1707, %v1932
      %v2044 = vadd.f32 %v1712, %v1932
      %v2045 = vadd.f32 %v1717, %v1932
      %v2046 = vadd.f32 %v1722, %v1932
      %v2047 = vadd.f32 %v1727, %v1932
      %v2048 = vadd.f32 %v1732, %v1932
      %v2049 = vadd.f32 %v1737, %v1932
      %v2050 = vadd.f32 %v1742, %v1932
      %v2051 = vadd.f32 %v1747, %v1932
      %v2052 = vadd.f32 %v1752, %v1932
      %v2053 = vadd.f32 %v1757, %v1932
      %v2054 = vadd.f32 %v1762, %v1932
      %v2055 = vadd.f32 %v1767, %v1932
      %v2056 = vadd.f32 %v1772, %v1932
      %v2057 = vadd.f32 %v1777, %v1936
      %v2058 = vadd.f32 %v1782, %v1936
      %v2059 = vadd.f32 %v1787, %v1936
      %v2060 = vadd.f32 %v1792, %v1936
      %v2061 = vadd.f32 %v1797, %v1936
      %v2062 = vadd.f32 %v1802, %v1936
      %v2063 = vadd.f32 %v1807, %v1936
      %v2064 = vadd.f32 %v1812, %v1936
      %v2065 = vadd.f32 %v1817, %v1936
      %v2066 = vadd.f32 %v1822, %v1936
      %v2067 = vadd.f32 %v1827, %v1936
      %v2068 = vadd.f32 %v1832, %v1936
      %v2069 = vadd.f32 %v1837, %v1936
      %v2070 = vadd.f32 %v1842, %v1936
      %v2071 = vadd.f32 %v1847, %v1936
      %v2072 = vadd.f32 %v1852, %v1936
      %v2073 = vmax.f32 %v1945, 0.0
      %v2074 = vmax.f32 %v1946, 0.0
      %v2075 = vmax.f32 %v1947, 0.0
      %v2076 = vmax.f32 %v1948, 0.0
      %v2077 = vmax.f32 %v1949, 0.0
      %v2078 = vmax.f32 %v1950, 0.0
      %v2079 = vmax.f32 %v1951, 0.0
      %v2080 = vmax.f32 %v1952, 0.0
      %v2081 = vmax.f32 %v1953, 0.0
      %v2082 = vmax.f32 %v1954, 0.0
      %v2083 = vmax.f32 %v1955, 0.0
      %v2084 = vmax.f32 %v1956, 0.0
      %v2085 = vmax.f32 %v1957, 0.0
      %v2086 = vmax.f32 %v1958, 0.0
      %v2087 = vmax.f32 %v1959, 0.0
      %v2088 = vmax.f32 %v1960, 0.0
      %v2089 = vmax.f32 %v1961, 0.0
      %v2090 = vmax.f32 %v1962, 0.0
      %v2091 = vmax.f32 %v1963, 0.0
      %v2092 = vmax.f32 %v1964, 0.0
      %v2093 = vmax.f32 %v1965, 0.0
      %v2094 = vmax.f32 %v1966, 0.0
      %v2095 = vmax.f32 %v1967, 0.0
      %v2096 = vmax.f32 %v1968, 0.0
      %v2097 = vmax.f32 %v1969, 0.0
      %v2098 = vmax.f32 %v1970, 0.0
      %v2099 = vmax.f32 %v1971, 0.0
      %v2100 = vmax.f32 %v1972, 0.0
      %v2101 = vmax.f32 %v1973, 0.0
      %v2102 = vmax.f32 %v1974, 0.0
      %v2103 = vmax.f32 %v1975, 0.0
      %v2104 = vmax.f32 %v1976, 0.0
      %v2105 = vmax.f32 %v1977, 0.0
      %v2106 = vmax.f32 %v1978, 0.0
      %v2107 = vmax.f32 %v1979, 0.0
      %v2108 = vmax.f32 %v1980, 0.0
      %v2109 = vmax.f32 %v1981, 0.0
      %v2110 = vmax.f32 %v1982, 0.0
      %v2111 = vmax.f32 %v1983, 0.0
      %v2112 = vmax.f32 %v1984, 0.0
      %v2113 = vmax.f32 %v1985, 0.0
      %v2114 = vmax.f32 %v1986, 0.0
      %v2115 = vmax.f32 %v1987, 0.0
      %v2116 = vmax.f32 %v1988, 0.0
      %v2117 = vmax.f32 %v1989, 0.0
      %v2118 = vmax.f32 %v1990, 0.0
      %v2119 = vmax.f32 %v1991, 0.0
      %v2120 = vmax.f32 %v1992, 0.0
      %v2121 = vmax.f32 %v1993, 0.0
      %v2122 = vmax.f32 %v1994, 0.0
      %v2123 = vmax.f32 %v1995, 0.0
      %v2124 = vmax.f32 %v1996, 0.0
      %v2125 = vmax.f32 %v1997, 0.0
      %v2126 = vmax.f32 %v1998, 0.0
      %v2127 = vmax.f32 %v1999, 0.0
      %v2128 = vmax.f32 %v2000, 0.0
      %v2129 = vmax.f32 %v2001, 0.0
      %v2130 = vmax.f32 %v2002, 0.0
      %v2131 = vmax.f32 %v2003, 0.0
      %v2132 = vmax.f32 %v2004, 0.0
      %v2133 = vmax.f32 %v2005, 0.0
      %v2134 = vmax.f32 %v2006, 0.0
      %v2135 = vmax.f32 %v2007, 0.0
      %v2136 = vmax.f32 %v2008, 0.0
      %v2137 = vmax.f32 %v2009, 0.0
      %v2138 = vmax.f32 %v2010, 0.0
      %v2139 = vmax.f32 %v2011, 0.0
      %v2140 = vmax.f32 %v2012, 0.0
      %v2141 = vmax.f32 %v2013, 0.0
      %v2142 = vmax.f32 %v2014, 0.0
      %v2143 = vmax.f32 %v2015, 0.0
      %v2144 = vmax.f32 %v2016, 0.0
      %v2145 = vmax.f32 %v2017, 0.0
      %v2146 = vmax.f32 %v2018, 0.0
      %v2147 = vmax.f32 %v2019, 0.0
      %v2148 = vmax.f32 %v2020, 0.0
      %v2149 = vmax.f32 %v2021, 0.0
      %v2150 = vmax.f32 %v2022, 0.0
      %v2151 = vmax.f32 %v2023, 0.0
      %v2152 = vmax.f32 %v2024, 0.0
      %v2153 = vmax.f32 %v2025, 0.0
      %v2154 = vmax.f32 %v2026, 0.0
      %v2155 = vmax.f32 %v2027, 0.0
      %v2156 = vmax.f32 %v2028, 0.0
      %v2157 = vmax.f32 %v2029, 0.0
      %v2158 = vmax.f32 %v2030, 0.0
      %v2159 = vmax.f32 %v2031, 0.0
      %v2160 = vmax.f32 %v2032, 0.0
      %v2161 = vmax.f32 %v2033, 0.0
      %v2162 = vmax.f32 %v2034, 0.0
      %v2163 = vmax.f32 %v2035, 0.0
      %v2164 = vmax.f32 %v2036, 0.0
      %v2165 = vmax.f32 %v2037, 0.0
      %v2166 = vmax.f32 %v2038, 0.0
      %v2167 = vmax.f32 %v2039, 0.0
      %v2168 = vmax.f32 %v2040, 0.0
      %v2169 = vmax.f32 %v2041, 0.0
      %v2170 = vmax.f32 %v2042, 0.0
      %v2171 = vmax.f32 %v2043, 0.0
      %v2172 = vmax.f32 %v2044, 0.0
      %v2173 = vmax.f32 %v2045, 0.0
      %v2174 = vmax.f32 %v2046, 0.0
      %v2175 = vmax.f32 %v2047, 0.0
      %v2176 = vmax.f32 %v2048, 0.0
      %v2177 = vmax.f32 %v2049, 0.0
      %v2178 = vmax.f32 %v2050, 0.0
      %v2179 = vmax.f32 %v2051, 0.0
      %v2180 = vmax.f32 %v2052, 0.0
      %v2181 = vmax.f32 %v2053, 0.0
      %v2182 = vmax.f32 %v2054, 0.0
      %v2183 = vmax.f32 %v2055, 0.0
      %v2184 = vmax.f32 %v2056, 0.0
      %v2185 = vmax.f32 %v2057, 0.0
      %v2186 = vmax.f32 %v2058, 0.0
      %v2187 = vmax.f32 %v2059, 0.0
      %v2188 = vmax.f32 %v2060, 0.0
      %v2189 = vmax.f32 %v2061, 0.0
      %v2190 = vmax.f32 %v2062, 0.0
      %v2191 = vmax.f32 %v2063, 0.0
      %v2192 = vmax.f32 %v2064, 0.0
      %v2193 = vmax.f32 %v2065, 0.0
      %v2194 = vmax.f32 %v2066, 0.0
      %v2195 = vmax.f32 %v2067, 0.0
      %v2196 = vmax.f32 %v2068, 0.0
      %v2197 = vmax.f32 %v2069, 0.0
      %v2198 = vmax.f32 %v2070, 0.0
      %v2199 = vmax.f32 %v2071, 0.0
      %v2200 = vmax.f32 %v2072, 0.0
      %v2201 = vld [vmem:[%s7] sm:$0xff]
      %v2202 = vld [vmem:[%s7 + $0x8] sm:$0xff]
      %v2203 = vld [vmem:[%s7 + $0x10] sm:$0xff]
      %v2204 = vld [vmem:[%s7 + $0x18] sm:$0xff]
      %v2205 = vld [vmem:[%s8] sm:$0x1]
      %v2207 = vlaneseq
      %v2208 = vshrl.u32 %v2207, 7
      %v2209 = vsub.s32 0, %v2208
      %v2210 = vrot.slane %v2205, %v2209
      %vm2212 = vcmask 261120
      %v2214 = vsel %vm2212, %v2073, 0
      %v2217 = vsel %vm2212, %v2074, 0
      %v2220 = vsel %vm2212, %v2075, 0
      %v2223 = vsel %vm2212, %v2076, 0
      %v2226 = vsel %vm2212, %v2077, 0
      %v2229 = vsel %vm2212, %v2078, 0
      %v2232 = vsel %vm2212, %v2079, 0
      %v2235 = vsel %vm2212, %v2080, 0
      %v2238 = vsel %vm2212, %v2081, 0
      %v2241 = vsel %vm2212, %v2082, 0
      %v2244 = vsel %vm2212, %v2083, 0
      %v2247 = vsel %vm2212, %v2084, 0
      %v2250 = vsel %vm2212, %v2085, 0
      %v2253 = vsel %vm2212, %v2086, 0
      %v2256 = vsel %vm2212, %v2087, 0
      %v2259 = vsel %vm2212, %v2088, 0
      %v2262 = vsel %vm2212, %v2089, 0
      %v2265 = vsel %vm2212, %v2090, 0
      %v2268 = vsel %vm2212, %v2091, 0
      %v2271 = vsel %vm2212, %v2092, 0
      %v2274 = vsel %vm2212, %v2093, 0
      %v2277 = vsel %vm2212, %v2094, 0
      %v2280 = vsel %vm2212, %v2095, 0
      %v2283 = vsel %vm2212, %v2096, 0
      %v2286 = vsel %vm2212, %v2097, 0
      %v2289 = vsel %vm2212, %v2098, 0
      %v2292 = vsel %vm2212, %v2099, 0
      %v2295 = vsel %vm2212, %v2100, 0
      %v2298 = vsel %vm2212, %v2101, 0
      %v2301 = vsel %vm2212, %v2102, 0
      %v2304 = vsel %vm2212, %v2103, 0
      %v2307 = vsel %vm2212, %v2104, 0
      %v2310 = vsel %vm2212, %v2105, 0
      %v2313 = vsel %vm2212, %v2106, 0
      %v2316 = vsel %vm2212, %v2107, 0
      %v2319 = vsel %vm2212, %v2108, 0
      %v2322 = vsel %vm2212, %v2109, 0
      %v2325 = vsel %vm2212, %v2110, 0
      %v2328 = vsel %vm2212, %v2111, 0
      %v2331 = vsel %vm2212, %v2112, 0
      %v2334 = vsel %vm2212, %v2113, 0
      %v2337 = vsel %vm2212, %v2114, 0
      %v2340 = vsel %vm2212, %v2115, 0
      %v2343 = vsel %vm2212, %v2116, 0
      %v2346 = vsel %vm2212, %v2117, 0
      %v2349 = vsel %vm2212, %v2118, 0
      %v2352 = vsel %vm2212, %v2119, 0
      %v2355 = vsel %vm2212, %v2120, 0
      %v2358 = vsel %vm2212, %v2121, 0
      %v2361 = vsel %vm2212, %v2122, 0
      %v2364 = vsel %vm2212, %v2123, 0
      %v2367 = vsel %vm2212, %v2124, 0
      %v2370 = vsel %vm2212, %v2125, 0
      %v2373 = vsel %vm2212, %v2126, 0
      %v2376 = vsel %vm2212, %v2127, 0
      %v2379 = vsel %vm2212, %v2128, 0
      %v2382 = vsel %vm2212, %v2129, 0
      %v2385 = vsel %vm2212, %v2130, 0
      %v2388 = vsel %vm2212, %v2131, 0
      %v2391 = vsel %vm2212, %v2132, 0
      %v2394 = vsel %vm2212, %v2133, 0
      %v2397 = vsel %vm2212, %v2134, 0
      %v2400 = vsel %vm2212, %v2135, 0
      %v2403 = vsel %vm2212, %v2136, 0
      %v2406 = vsel %vm2212, %v2137, 0
      %v2409 = vsel %vm2212, %v2138, 0
      %v2412 = vsel %vm2212, %v2139, 0
      %v2415 = vsel %vm2212, %v2140, 0
      %v2418 = vsel %vm2212, %v2141, 0
      %v2421 = vsel %vm2212, %v2142, 0
      %v2424 = vsel %vm2212, %v2143, 0
      %v2427 = vsel %vm2212, %v2144, 0
      %v2430 = vsel %vm2212, %v2145, 0
      %v2433 = vsel %vm2212, %v2146, 0
      %v2436 = vsel %vm2212, %v2147, 0
      %v2439 = vsel %vm2212, %v2148, 0
      %v2442 = vsel %vm2212, %v2149, 0
      %v2445 = vsel %vm2212, %v2150, 0
      %v2448 = vsel %vm2212, %v2151, 0
      %v2451 = vsel %vm2212, %v2152, 0
      %v2454 = vsel %vm2212, %v2153, 0
      %v2457 = vsel %vm2212, %v2154, 0
      %v2460 = vsel %vm2212, %v2155, 0
      %v2463 = vsel %vm2212, %v2156, 0
      %v2466 = vsel %vm2212, %v2157, 0
      %v2469 = vsel %vm2212, %v2158, 0
      %v2472 = vsel %vm2212, %v2159, 0
      %v2475 = vsel %vm2212, %v2160, 0
      %v2478 = vsel %vm2212, %v2161, 0
      %v2481 = vsel %vm2212, %v2162, 0
      %v2484 = vsel %vm2212, %v2163, 0
      %v2487 = vsel %vm2212, %v2164, 0
      %v2490 = vsel %vm2212, %v2165, 0
      %v2493 = vsel %vm2212, %v2166, 0
      %v2496 = vsel %vm2212, %v2167, 0
      %v2499 = vsel %vm2212, %v2168, 0
      %v2502 = vsel %vm2212, %v2169, 0
      %v2505 = vsel %vm2212, %v2170, 0
      %v2508 = vsel %vm2212, %v2171, 0
      %v2511 = vsel %vm2212, %v2172, 0
      %v2514 = vsel %vm2212, %v2173, 0
      %v2517 = vsel %vm2212, %v2174, 0
      %v2520 = vsel %vm2212, %v2175, 0
      %v2523 = vsel %vm2212, %v2176, 0
      %v2526 = vsel %vm2212, %v2177, 0
      %v2529 = vsel %vm2212, %v2178, 0
      %v2532 = vsel %vm2212, %v2179, 0
      %v2535 = vsel %vm2212, %v2180, 0
      %v2538 = vsel %vm2212, %v2181, 0
      %v2541 = vsel %vm2212, %v2182, 0
      %v2544 = vsel %vm2212, %v2183, 0
      %v2547 = vsel %vm2212, %v2184, 0
      %v2550 = vsel %vm2212, %v2185, 0
      %v2553 = vsel %vm2212, %v2186, 0
      %v2556 = vsel %vm2212, %v2187, 0
      %v2559 = vsel %vm2212, %v2188, 0
      %v2562 = vsel %vm2212, %v2189, 0
      %v2565 = vsel %vm2212, %v2190, 0
      %v2568 = vsel %vm2212, %v2191, 0
      %v2571 = vsel %vm2212, %v2192, 0
      %v2574 = vsel %vm2212, %v2193, 0
      %v2577 = vsel %vm2212, %v2194, 0
      %v2580 = vsel %vm2212, %v2195, 0
      %v2583 = vsel %vm2212, %v2196, 0
      %v2586 = vsel %vm2212, %v2197, 0
      %v2589 = vsel %vm2212, %v2198, 0
      %v2592 = vsel %vm2212, %v2199, 0
      %v2595 = vsel %vm2212, %v2200, 0
      %2597 = vmatprep.subr.mxu0 0.0
      %2598 = vmatpush1.msra.mxu0 %v2201
      %2599 = vmatprep.subr.mxu0 0.0
      %2600 = vmatpush1.msra.mxu0 %v2202
      %2601 = vmatprep.subr.mxu0 0.0
      %2602 = vmatpush1.msra.mxu0 %v2203
      %2603 = vmatprep.subr.mxu0 0.0
      %2604 = vmatpush1.msra.mxu0 %v2204
      %2605 = vmatprep.subr.mxu0 0.0
      %2606 = vmatpush1.msra.mxu0 0.0
      %2607 = vmatprep.subr.mxu0 0.0
      %2608 = vmatpush1.msra.mxu0 0.0
      %2609 = vmatprep.subr.mxu0 0.0
      %2610 = vmatpush1.msra.mxu0 0.0
      %2611 = vmatprep.subr.mxu0 0.0
      %2612 = vmatpush1.msra.mxu0 0.0
      %2613 = vmatprep.subr.mxu0 0.0
      %2614 = vmatpush1.msra.mxu0 0.0
      %2615 = vmatprep.subr.mxu0 0.0
      %2616 = vmatpush1.msra.mxu0 0.0
      %2617 = vmatprep.subr.mxu0 0.0
      %2618 = vmatpush1.msra.mxu0 0.0
      %2619 = vmatprep.subr.mxu0 0.0
      %2620 = vmatpush1.msra.mxu0 0.0
      %2621 = vmatprep.subr.mxu0 0.0
      %2622 = vmatpush1.msra.mxu0 0.0
      %2623 = vmatprep.subr.mxu0 0.0
      %2624 = vmatpush1.msra.mxu0 0.0
      %2625 = vmatprep.subr.mxu0 0.0
      %2626 = vmatpush1.msra.mxu0 0.0
      %2627 = vmatprep.subr.mxu0 0.0
      %2628 = vmatpush1.msra.mxu0 0.0
      %2629 = vmatprep.subr.mxu0 0.0
      %2630 = vmatpush1.msra.mxu0 0.0
      %2631 = vmatprep.subr.mxu0 0.0
      %2632 = vmatpush1.msra.mxu0 0.0
      %2633 = vmatprep.subr.mxu0 0.0
      %2634 = vmatpush1.msra.mxu0 0.0
      %2635 = vmatprep.subr.mxu0 0.0
      %2636 = vmatpush1.msra.mxu0 0.0
      %2637 = vmatprep.subr.mxu0 0.0
      %2638 = vmatpush1.msra.mxu0 0.0
      %2639 = vmatprep.subr.mxu0 0.0
      %2640 = vmatpush1.msra.mxu0 0.0
      %2641 = vmatprep.subr.mxu0 0.0
      %2642 = vmatpush1.msra.mxu0 0.0
      %2643 = vmatprep.subr.mxu0 0.0
      %2644 = vmatpush1.msra.mxu0 0.0
      %2645 = vmatprep.subr.mxu0 0.0
      %2646 = vmatpush1.msra.mxu0 0.0
      %2647 = vmatprep.subr.mxu0 0.0
      %2648 = vmatpush1.msra.mxu0 0.0
      %2649 = vmatprep.subr.mxu0 0.0
      %2650 = vmatpush1.msra.mxu0 0.0
      %2651 = vmatprep.subr.mxu0 0.0
      %2652 = vmatpush1.msra.mxu0 0.0
      %2653 = vmatprep.subr.mxu0 0.0
      %2654 = vmatpush1.msra.mxu0 0.0
      %2655 = vmatprep.subr.mxu0 0.0
      %2656 = vmatpush1.msra.mxu0 0.0
      %2657 = vmatprep.subr.mxu0 0.0
      %2658 = vmatpush1.msra.mxu0 0.0
      %2659 = vmatprep.subr.mxu0 0.0
      %2660 = vmatpush1.msra.mxu0 0.0
      %2661 = vmatprep.mubr.f32.mxu0 0.0
      %2662 = vmatmul.mubr.f32.gmra.mrb[0].mxu0 %v2214
      %v2663 = vpop.f32.mrb[0].mxu0
      %v2664 = vadd.f32 %v2210, %v2663
      %v2665 = vpop.f32.mrb[0].mxu0
      %2666 = vmatprep.mubr.f32.mxu0 0.0
      %2667 = vmatmul.mubr.f32.gmra.mrb[0].mxu0 %v2217
      %v2668 = vpop.f32.mrb[0].mxu0
      %v2669 = vadd.f32 %v2210, %v2668
      %v2670 = vpop.f32.mrb[0].mxu0
      %2671 = vmatprep.mubr.f32.mxu0 0.0
      %2672 = vmatmul.mubr.f32.gmra.mrb[0].mxu0 %v2220
      %v2673 = vpop.f32.mrb[0].mxu0
      %v2674 = vadd.f32 %v2210, %v2673
      %v2675 = vpop.f32.mrb[0].mxu0
      %2676 = vmatprep.mubr.f32.mxu0 0.0
      %2677 = vmatmul.mubr.f32.gmra.mrb[0].mxu0 %v2223
      %v2678 = vpop.f32.mrb[0].mxu0
      %v2679 = vadd.f32 %v2210, %v2678
      %v2680 = vpop.f32.mrb[0].mxu0
      %2681 = vmatprep.mubr.f32.mxu0 0.0
      %2682 = vmatmul.mubr.f32.gmra.mrb[0].mxu0 %v2226
      %v2683 = vpop.f32.mrb[0].mxu0
      %v2684 = vadd.f32 %v2210, %v2683
      %v2685 = vpop.f32.mrb[0].mxu0
      %2686 = vmatprep.mubr.f32.mxu0 0.0
      %2687 = vmatmul.mubr.f32.gmra.mrb[0].mxu0 %v2229
      %v2688 = vpop.f32.mrb[0].mxu0
      %v2689 = vadd.f32 %v2210, %v2688
      %v2690 = vpop.f32.mrb[0].mxu0
      %2691 = vmatprep.mubr.f32.mxu0 0.0
      %2692 = vmatmul.mubr.f32.gmra.mrb[0].mxu0 %v2232
      %v2693 = vpop.f32.mrb[0].mxu0
      %v2694 = vadd.f32 %v2210, %v2693
      %v2695 = vpop.f32.mrb[0].mxu0
      %2696 = vmatprep.mubr.f32.mxu0 0.0
      %2697 = vmatmul.mubr.f32.gmra.mrb[0].mxu0 %v2235
      %v2698 = vpop.f32.mrb[0].mxu0
      %v2699 = vadd.f32 %v2210, %v2698
      %v2700 = vpop.f32.mrb[0].mxu0
      %2701 = vmatprep.mubr.f32.mxu0 0.0
      %2702 = vmatmul.mubr.f32.gmra.mrb[0].mxu0 %v2238
      %v2703 = vpop.f32.mrb[0].mxu0
      %v2704 = vadd.f32 %v2210, %v2703
      %v2705 = vpop.f32.mrb[0].mxu0
      %2706 = vmatprep.mubr.f32.mxu0 0.0
      %2707 = vmatmul.mubr.f32.gmra.mrb[0].mxu0 %v2241
      %v2708 = vpop.f32.mrb[0].mxu0
      %v2709 = vadd.f32 %v2210, %v2708
      %v2710 = vpop.f32.mrb[0].mxu0
      %2711 = vmatprep.mubr.f32.mxu0 0.0
      %2712 = vmatmul.mubr.f32.gmra.mrb[0].mxu0 %v2244
      %v2713 = vpop.f32.mrb[0].mxu0
      %v2714 = vadd.f32 %v2210, %v2713
      %v2715 = vpop.f32.mrb[0].mxu0
      %2716 = vmatprep.mubr.f32.mxu0 0.0
      %2717 = vmatmul.mubr.f32.gmra.mrb[0].mxu0 %v2247
      %v2718 = vpop.f32.mrb[0].mxu0
      %v2719 = vadd.f32 %v2210, %v2718
      %v2720 = vpop.f32.mrb[0].mxu0
      %2721 = vmatprep.mubr.f32.mxu0 0.0
      %2722 = vmatmul.mubr.f32.gmra.mrb[0].mxu0 %v2250
      %v2723 = vpop.f32.mrb[0].mxu0
      %v2724 = vadd.f32 %v2210, %v2723
      %v2725 = vpop.f32.mrb[0].mxu0
      %2726 = vmatprep.mubr.f32.mxu0 0.0
      %2727 = vmatmul.mubr.f32.gmra.mrb[0].mxu0 %v2253
      %v2728 = vpop.f32.mrb[0].mxu0
      %v2729 = vadd.f32 %v2210, %v2728
      %v2730 = vpop.f32.mrb[0].mxu0
      %2731 = vmatprep.mubr.f32.mxu0 0.0
      %2732 = vmatmul.mubr.f32.gmra.mrb[0].mxu0 %v2256
      %v2733 = vpop.f32.mrb[0].mxu0
      %v2734 = vadd.f32 %v2210, %v2733
      %v2735 = vpop.f32.mrb[0].mxu0
      %2736 = vmatprep.mubr.f32.mxu0 0.0
      %2737 = vmatmul.mubr.f32.gmra.mrb[0].mxu0 %v2259
      %v2738 = vpop.f32.mrb[0].mxu0
      %v2739 = vadd.f32 %v2210, %v2738
      %v2740 = vpop.f32.mrb[0].mxu0
      %2741 = vmatprep.mubr.f32.mxu0 0.0
      %2742 = vmatmul.mubr.f32.gmra.mrb[0].mxu0 %v2262
      %v2743 = vpop.f32.mrb[0].mxu0
      %v2744 = vadd.f32 %v2210, %v2743
      %v2745 = vpop.f32.mrb[0].mxu0
      %2746 = vmatprep.mubr.f32.mxu0 0.0
      %2747 = vmatmul.mubr.f32.gmra.mrb[0].mxu0 %v2265
      %v2748 = vpop.f32.mrb[0].mxu0
      %v2749 = vadd.f32 %v2210, %v2748
      %v2750 = vpop.f32.mrb[0].mxu0
      %2751 = vmatprep.mubr.f32.mxu0 0.0
      %2752 = vmatmul.mubr.f32.gmra.mrb[0].mxu0 %v2268
      %v2753 = vpop.f32.mrb[0].mxu0
      %v2754 = vadd.f32 %v2210, %v2753
      %v2755 = vpop.f32.mrb[0].mxu0
      %2756 = vmatprep.mubr.f32.mxu0 0.0
      %2757 = vmatmul.mubr.f32.gmra.mrb[0].mxu0 %v2271
      %v2758 = vpop.f32.mrb[0].mxu0
      %v2759 = vadd.f32 %v2210, %v2758
      %v2760 = vpop.f32.mrb[0].mxu0
      %2761 = vmatprep.mubr.f32.mxu0 0.0
      %2762 = vmatmul.mubr.f32.gmra.mrb[0].mxu0 %v2274
      %v2763 = vpop.f32.mrb[0].mxu0
      %v2764 = vadd.f32 %v2210, %v2763
      %v2765 = vpop.f32.mrb[0].mxu0
      %2766 = vmatprep.mubr.f32.mxu0 0.0
      %2767 = vmatmul.mubr.f32.gmra.mrb[0].mxu0 %v2277
      %v2768 = vpop.f32.mrb[0].mxu0
      %v2769 = vadd.f32 %v2210, %v2768
      %v2770 = vpop.f32.mrb[0].mxu0
      %2771 = vmatprep.mubr.f32.mxu0 0.0
      %2772 = vmatmul.mubr.f32.gmra.mrb[0].mxu0 %v2280
      %v2773 = vpop.f32.mrb[0].mxu0
      %v2774 = vadd.f32 %v2210, %v2773
      %v2775 = vpop.f32.mrb[0].mxu0
      %2776 = vmatprep.mubr.f32.mxu0 0.0
      %2777 = vmatmul.mubr.f32.gmra.mrb[0].mxu0 %v2283
      %v2778 = vpop.f32.mrb[0].mxu0
      %v2779 = vadd.f32 %v2210, %v2778
      %v2780 = vpop.f32.mrb[0].mxu0
      %2781 = vmatprep.mubr.f32.mxu0 0.0
      %2782 = vmatmul.mubr.f32.gmra.mrb[0].mxu0 %v2286
      %v2783 = vpop.f32.mrb[0].mxu0
      %v2784 = vadd.f32 %v2210, %v2783
      %v2785 = vpop.f32.mrb[0].mxu0
      %2786 = vmatprep.mubr.f32.mxu0 0.0
      %2787 = vmatmul.mubr.f32.gmra.mrb[0].mxu0 %v2289
      %v2788 = vpop.f32.mrb[0].mxu0
      %v2789 = vadd.f32 %v2210, %v2788
      %v2790 = vpop.f32.mrb[0].mxu0
      %2791 = vmatprep.mubr.f32.mxu0 0.0
      %2792 = vmatmul.mubr.f32.gmra.mrb[0].mxu0 %v2292
      %v2793 = vpop.f32.mrb[0].mxu0
      %v2794 = vadd.f32 %v2210, %v2793
      %v2795 = vpop.f32.mrb[0].mxu0
      %2796 = vmatprep.mubr.f32.mxu0 0.0
      %2797 = vmatmul.mubr.f32.gmra.mrb[0].mxu0 %v2295
      %v2798 = vpop.f32.mrb[0].mxu0
      %v2799 = vadd.f32 %v2210, %v2798
      %v2800 = vpop.f32.mrb[0].mxu0
      %2801 = vmatprep.mubr.f32.mxu0 0.0
      %2802 = vmatmul.mubr.f32.gmra.mrb[0].mxu0 %v2298
      %v2803 = vpop.f32.mrb[0].mxu0
      %v2804 = vadd.f32 %v2210, %v2803
      %v2805 = vpop.f32.mrb[0].mxu0
      %2806 = vmatprep.mubr.f32.mxu0 0.0
      %2807 = vmatmul.mubr.f32.gmra.mrb[0].mxu0 %v2301
      %v2808 = vpop.f32.mrb[0].mxu0
      %v2809 = vadd.f32 %v2210, %v2808
      %v2810 = vpop.f32.mrb[0].mxu0
      %2811 = vmatprep.mubr.f32.mxu0 0.0
      %2812 = vmatmul.mubr.f32.gmra.mrb[0].mxu0 %v2304
      %v2813 = vpop.f32.mrb[0].mxu0
      %v2814 = vadd.f32 %v2210, %v2813
      %v2815 = vpop.f32.mrb[0].mxu0
      %2816 = vmatprep.mubr.f32.mxu0 0.0
      %2817 = vmatmul.mubr.f32.gmra.mrb[0].mxu0 %v2307
      %v2818 = vpop.f32.mrb[0].mxu0
      %v2819 = vadd.f32 %v2210, %v2818
      %v2820 = vpop.f32.mrb[0].mxu0
      %2821 = vmatprep.mubr.f32.mxu0 0.0
      %2822 = vmatmul.mubr.f32.gmra.mrb[0].mxu0 %v2310
      %v2823 = vpop.f32.mrb[0].mxu0
      %v2824 = vadd.f32 %v2210, %v2823
      %v2825 = vpop.f32.mrb[0].mxu0
      %2826 = vmatprep.mubr.f32.mxu0 0.0
      %2827 = vmatmul.mubr.f32.gmra.mrb[0].mxu0 %v2313
      %v2828 = vpop.f32.mrb[0].mxu0
      %v2829 = vadd.f32 %v2210, %v2828
      %v2830 = vpop.f32.mrb[0].mxu0
      %2831 = vmatprep.mubr.f32.mxu0 0.0
      %2832 = vmatmul.mubr.f32.gmra.mrb[0].mxu0 %v2316
      %v2833 = vpop.f32.mrb[0].mxu0
      %v2834 = vadd.f32 %v2210, %v2833
      %v2835 = vpop.f32.mrb[0].mxu0
      %2836 = vmatprep.mubr.f32.mxu0 0.0
      %2837 = vmatmul.mubr.f32.gmra.mrb[0].mxu0 %v2319
      %v2838 = vpop.f32.mrb[0].mxu0
      %v2839 = vadd.f32 %v2210, %v2838
      %v2840 = vpop.f32.mrb[0].mxu0
      %2841 = vmatprep.mubr.f32.mxu0 0.0
      %2842 = vmatmul.mubr.f32.gmra.mrb[0].mxu0 %v2322
      %v2843 = vpop.f32.mrb[0].mxu0
      %v2844 = vadd.f32 %v2210, %v2843
      %v2845 = vpop.f32.mrb[0].mxu0
      %2846 = vmatprep.mubr.f32.mxu0 0.0
      %2847 = vmatmul.mubr.f32.gmra.mrb[0].mxu0 %v2325
      %v2848 = vpop.f32.mrb[0].mxu0
      %v2849 = vadd.f32 %v2210, %v2848
      %v2850 = vpop.f32.mrb[0].mxu0
      %2851 = vmatprep.mubr.f32.mxu0 0.0
      %2852 = vmatmul.mubr.f32.gmra.mrb[0].mxu0 %v2328
      %v2853 = vpop.f32.mrb[0].mxu0
      %v2854 = vadd.f32 %v2210, %v2853
      %v2855 = vpop.f32.mrb[0].mxu0
      %2856 = vmatprep.mubr.f32.mxu0 0.0
      %2857 = vmatmul.mubr.f32.gmra.mrb[0].mxu0 %v2331
      %v2858 = vpop.f32.mrb[0].mxu0
      %v2859 = vadd.f32 %v2210, %v2858
      %v2860 = vpop.f32.mrb[0].mxu0
      %2861 = vmatprep.mubr.f32.mxu0 0.0
      %2862 = vmatmul.mubr.f32.gmra.mrb[0].mxu0 %v2334
      %v2863 = vpop.f32.mrb[0].mxu0
      %v2864 = vadd.f32 %v2210, %v2863
      %v2865 = vpop.f32.mrb[0].mxu0
      %2866 = vmatprep.mubr.f32.mxu0 0.0
      %2867 = vmatmul.mubr.f32.gmra.mrb[0].mxu0 %v2337
      %v2868 = vpop.f32.mrb[0].mxu0
      %v2869 = vadd.f32 %v2210, %v2868
      %v2870 = vpop.f32.mrb[0].mxu0
      %2871 = vmatprep.mubr.f32.mxu0 0.0
      %2872 = vmatmul.mubr.f32.gmra.mrb[0].mxu0 %v2340
      %v2873 = vpop.f32.mrb[0].mxu0
      %v2874 = vadd.f32 %v2210, %v2873
      %v2875 = vpop.f32.mrb[0].mxu0
      %2876 = vmatprep.mubr.f32.mxu0 0.0
      %2877 = vmatmul.mubr.f32.gmra.mrb[0].mxu0 %v2343
      %v2878 = vpop.f32.mrb[0].mxu0
      %v2879 = vadd.f32 %v2210, %v2878
      %v2880 = vpop.f32.mrb[0].mxu0
      %2881 = vmatprep.mubr.f32.mxu0 0.0
      %2882 = vmatmul.mubr.f32.gmra.mrb[0].mxu0 %v2346
      %v2883 = vpop.f32.mrb[0].mxu0
      %v2884 = vadd.f32 %v2210, %v2883
      %v2885 = vpop.f32.mrb[0].mxu0
      %2886 = vmatprep.mubr.f32.mxu0 0.0
      %2887 = vmatmul.mubr.f32.gmra.mrb[0].mxu0 %v2349
      %v2888 = vpop.f32.mrb[0].mxu0
      %v2889 = vadd.f32 %v2210, %v2888
      %v2890 = vpop.f32.mrb[0].mxu0
      %2891 = vmatprep.mubr.f32.mxu0 0.0
      %2892 = vmatmul.mubr.f32.gmra.mrb[0].mxu0 %v2352
      %v2893 = vpop.f32.mrb[0].mxu0
      %v2894 = vadd.f32 %v2210, %v2893
      %v2895 = vpop.f32.mrb[0].mxu0
      %2896 = vmatprep.mubr.f32.mxu0 0.0
      %2897 = vmatmul.mubr.f32.gmra.mrb[0].mxu0 %v2355
      %v2898 = vpop.f32.mrb[0].mxu0
      %v2899 = vadd.f32 %v2210, %v2898
      %v2900 = vpop.f32.mrb[0].mxu0
      %2901 = vmatprep.mubr.f32.mxu0 0.0
      %2902 = vmatmul.mubr.f32.gmra.mrb[0].mxu0 %v2358
      %v2903 = vpop.f32.mrb[0].mxu0
      %v2904 = vadd.f32 %v2210, %v2903
      %v2905 = vpop.f32.mrb[0].mxu0
      %2906 = vmatprep.mubr.f32.mxu0 0.0
      %2907 = vmatmul.mubr.f32.gmra.mrb[0].mxu0 %v2361
      %v2908 = vpop.f32.mrb[0].mxu0
      %v2909 = vadd.f32 %v2210, %v2908
      %v2910 = vpop.f32.mrb[0].mxu0
      %2911 = vmatprep.mubr.f32.mxu0 0.0
      %2912 = vmatmul.mubr.f32.gmra.mrb[0].mxu0 %v2364
      %v2913 = vpop.f32.mrb[0].mxu0
      %v2914 = vadd.f32 %v2210, %v2913
      %v2915 = vpop.f32.mrb[0].mxu0
      %2916 = vmatprep.mubr.f32.mxu0 0.0
      %2917 = vmatmul.mubr.f32.gmra.mrb[0].mxu0 %v2367
      %v2918 = vpop.f32.mrb[0].mxu0
      %v2919 = vadd.f32 %v2210, %v2918
      %v2920 = vpop.f32.mrb[0].mxu0
      %2921 = vmatprep.mubr.f32.mxu0 0.0
      %2922 = vmatmul.mubr.f32.gmra.mrb[0].mxu0 %v2370
      %v2923 = vpop.f32.mrb[0].mxu0
      %v2924 = vadd.f32 %v2210, %v2923
      %v2925 = vpop.f32.mrb[0].mxu0
      %2926 = vmatprep.mubr.f32.mxu0 0.0
      %2927 = vmatmul.mubr.f32.gmra.mrb[0].mxu0 %v2373
      %v2928 = vpop.f32.mrb[0].mxu0
      %v2929 = vadd.f32 %v2210, %v2928
      %v2930 = vpop.f32.mrb[0].mxu0
      %2931 = vmatprep.mubr.f32.mxu0 0.0
      %2932 = vmatmul.mubr.f32.gmra.mrb[0].mxu0 %v2376
      %v2933 = vpop.f32.mrb[0].mxu0
      %v2934 = vadd.f32 %v2210, %v2933
      %v2935 = vpop.f32.mrb[0].mxu0
      %2936 = vmatprep.mubr.f32.mxu0 0.0
      %2937 = vmatmul.mubr.f32.gmra.mrb[0].mxu0 %v2379
      %v2938 = vpop.f32.mrb[0].mxu0
      %v2939 = vadd.f32 %v2210, %v2938
      %v2940 = vpop.f32.mrb[0].mxu0
      %2941 = vmatprep.mubr.f32.mxu0 0.0
      %2942 = vmatmul.mubr.f32.gmra.mrb[0].mxu0 %v2382
      %v2943 = vpop.f32.mrb[0].mxu0
      %v2944 = vadd.f32 %v2210, %v2943
      %v2945 = vpop.f32.mrb[0].mxu0
      %2946 = vmatprep.mubr.f32.mxu0 0.0
      %2947 = vmatmul.mubr.f32.gmra.mrb[0].mxu0 %v2385
      %v2948 = vpop.f32.mrb[0].mxu0
      %v2949 = vadd.f32 %v2210, %v2948
      %v2950 = vpop.f32.mrb[0].mxu0
      %2951 = vmatprep.mubr.f32.mxu0 0.0
      %2952 = vmatmul.mubr.f32.gmra.mrb[0].mxu0 %v2388
      %v2953 = vpop.f32.mrb[0].mxu0
      %v2954 = vadd.f32 %v2210, %v2953
      %v2955 = vpop.f32.mrb[0].mxu0
      %2956 = vmatprep.mubr.f32.mxu0 0.0
      %2957 = vmatmul.mubr.f32.gmra.mrb[0].mxu0 %v2391
      %v2958 = vpop.f32.mrb[0].mxu0
      %v2959 = vadd.f32 %v2210, %v2958
      %v2960 = vpop.f32.mrb[0].mxu0
      %2961 = vmatprep.mubr.f32.mxu0 0.0
      %2962 = vmatmul.mubr.f32.gmra.mrb[0].mxu0 %v2394
      %v2963 = vpop.f32.mrb[0].mxu0
      %v2964 = vadd.f32 %v2210, %v2963
      %v2965 = vpop.f32.mrb[0].mxu0
      %2966 = vmatprep.mubr.f32.mxu0 0.0
      %2967 = vmatmul.mubr.f32.gmra.mrb[0].mxu0 %v2397
      %v2968 = vpop.f32.mrb[0].mxu0
      %v2969 = vadd.f32 %v2210, %v2968
      %v2970 = vpop.f32.mrb[0].mxu0
      %2971 = vmatprep.mubr.f32.mxu0 0.0
      %2972 = vmatmul.mubr.f32.gmra.mrb[0].mxu0 %v2400
      %v2973 = vpop.f32.mrb[0].mxu0
      %v2974 = vadd.f32 %v2210, %v2973
      %v2975 = vpop.f32.mrb[0].mxu0
      %2976 = vmatprep.mubr.f32.mxu0 0.0
      %2977 = vmatmul.mubr.f32.gmra.mrb[0].mxu0 %v2403
      %v2978 = vpop.f32.mrb[0].mxu0
      %v2979 = vadd.f32 %v2210, %v2978
      %v2980 = vpop.f32.mrb[0].mxu0
      %2981 = vmatprep.mubr.f32.mxu0 0.0
      %2982 = vmatmul.mubr.f32.gmra.mrb[0].mxu0 %v2406
      %v2983 = vpop.f32.mrb[0].mxu0
      %v2984 = vadd.f32 %v2210, %v2983
      %v2985 = vpop.f32.mrb[0].mxu0
      %2986 = vmatprep.mubr.f32.mxu0 0.0
      %2987 = vmatmul.mubr.f32.gmra.mrb[0].mxu0 %v2409
      %v2988 = vpop.f32.mrb[0].mxu0
      %v2989 = vadd.f32 %v2210, %v2988
      %v2990 = vpop.f32.mrb[0].mxu0
      %2991 = vmatprep.mubr.f32.mxu0 0.0
      %2992 = vmatmul.mubr.f32.gmra.mrb[0].mxu0 %v2412
      %v2993 = vpop.f32.mrb[0].mxu0
      %v2994 = vadd.f32 %v2210, %v2993
      %v2995 = vpop.f32.mrb[0].mxu0
      %2996 = vmatprep.mubr.f32.mxu0 0.0
      %2997 = vmatmul.mubr.f32.gmra.mrb[0].mxu0 %v2415
      %v2998 = vpop.f32.mrb[0].mxu0
      %v2999 = vadd.f32 %v2210, %v2998
      %v3000 = vpop.f32.mrb[0].mxu0
      %3001 = vmatprep.mubr.f32.mxu0 0.0
      %3002 = vmatmul.mubr.f32.gmra.mrb[0].mxu0 %v2418
      %v3003 = vpop.f32.mrb[0].mxu0
      %v3004 = vadd.f32 %v2210, %v3003
      %v3005 = vpop.f32.mrb[0].mxu0
      %3006 = vmatprep.mubr.f32.mxu0 0.0
      %3007 = vmatmul.mubr.f32.gmra.mrb[0].mxu0 %v2421
      %v3008 = vpop.f32.mrb[0].mxu0
      %v3009 = vadd.f32 %v2210, %v3008
      %v3010 = vpop.f32.mrb[0].mxu0
      %3011 = vmatprep.mubr.f32.mxu0 0.0
      %3012 = vmatmul.mubr.f32.gmra.mrb[0].mxu0 %v2424
      %v3013 = vpop.f32.mrb[0].mxu0
      %v3014 = vadd.f32 %v2210, %v3013
      %v3015 = vpop.f32.mrb[0].mxu0
      %3016 = vmatprep.mubr.f32.mxu0 0.0
      %3017 = vmatmul.mubr.f32.gmra.mrb[0].mxu0 %v2427
      %v3018 = vpop.f32.mrb[0].mxu0
      %v3019 = vadd.f32 %v2210, %v3018
      %v3020 = vpop.f32.mrb[0].mxu0
      %3021 = vmatprep.mubr.f32.mxu0 0.0
      %3022 = vmatmul.mubr.f32.gmra.mrb[0].mxu0 %v2430
      %v3023 = vpop.f32.mrb[0].mxu0
      %v3024 = vadd.f32 %v2210, %v3023
      %v3025 = vpop.f32.mrb[0].mxu0
      %3026 = vmatprep.mubr.f32.mxu0 0.0
      %3027 = vmatmul.mubr.f32.gmra.mrb[0].mxu0 %v2433
      %v3028 = vpop.f32.mrb[0].mxu0
      %v3029 = vadd.f32 %v2210, %v3028
      %v3030 = vpop.f32.mrb[0].mxu0
      %3031 = vmatprep.mubr.f32.mxu0 0.0
      %3032 = vmatmul.mubr.f32.gmra.mrb[0].mxu0 %v2436
      %v3033 = vpop.f32.mrb[0].mxu0
      %v3034 = vadd.f32 %v2210, %v3033
      %v3035 = vpop.f32.mrb[0].mxu0
      %3036 = vmatprep.mubr.f32.mxu0 0.0
      %3037 = vmatmul.mubr.f32.gmra.mrb[0].mxu0 %v2439
      %v3038 = vpop.f32.mrb[0].mxu0
      %v3039 = vadd.f32 %v2210, %v3038
      %v3040 = vpop.f32.mrb[0].mxu0
      %3041 = vmatprep.mubr.f32.mxu0 0.0
      %3042 = vmatmul.mubr.f32.gmra.mrb[0].mxu0 %v2442
      %v3043 = vpop.f32.mrb[0].mxu0
      %v3044 = vadd.f32 %v2210, %v3043
      %v3045 = vpop.f32.mrb[0].mxu0
      %3046 = vmatprep.mubr.f32.mxu0 0.0
      %3047 = vmatmul.mubr.f32.gmra.mrb[0].mxu0 %v2445
      %v3048 = vpop.f32.mrb[0].mxu0
      %v3049 = vadd.f32 %v2210, %v3048
      %v3050 = vpop.f32.mrb[0].mxu0
      %3051 = vmatprep.mubr.f32.mxu0 0.0
      %3052 = vmatmul.mubr.f32.gmra.mrb[0].mxu0 %v2448
      %v3053 = vpop.f32.mrb[0].mxu0
      %v3054 = vadd.f32 %v2210, %v3053
      %v3055 = vpop.f32.mrb[0].mxu0
      %3056 = vmatprep.mubr.f32.mxu0 0.0
      %3057 = vmatmul.mubr.f32.gmra.mrb[0].mxu0 %v2451
      %v3058 = vpop.f32.mrb[0].mxu0
      %v3059 = vadd.f32 %v2210, %v3058
      %v3060 = vpop.f32.mrb[0].mxu0
      %3061 = vmatprep.mubr.f32.mxu0 0.0
      %3062 = vmatmul.mubr.f32.gmra.mrb[0].mxu0 %v2454
      %v3063 = vpop.f32.mrb[0].mxu0
      %v3064 = vadd.f32 %v2210, %v3063
      %v3065 = vpop.f32.mrb[0].mxu0
      %3066 = vmatprep.mubr.f32.mxu0 0.0
      %3067 = vmatmul.mubr.f32.gmra.mrb[0].mxu0 %v2457
      %v3068 = vpop.f32.mrb[0].mxu0
      %v3069 = vadd.f32 %v2210, %v3068
      %v3070 = vpop.f32.mrb[0].mxu0
      %3071 = vmatprep.mubr.f32.mxu0 0.0
      %3072 = vmatmul.mubr.f32.gmra.mrb[0].mxu0 %v2460
      %v3073 = vpop.f32.mrb[0].mxu0
      %v3074 = vadd.f32 %v2210, %v3073
      %v3075 = vpop.f32.mrb[0].mxu0
      %3076 = vmatprep.mubr.f32.mxu0 0.0
      %3077 = vmatmul.mubr.f32.gmra.mrb[0].mxu0 %v2463
      %v3078 = vpop.f32.mrb[0].mxu0
      %v3079 = vadd.f32 %v2210, %v3078
      %v3080 = vpop.f32.mrb[0].mxu0
      %3081 = vmatprep.mubr.f32.mxu0 0.0
      %3082 = vmatmul.mubr.f32.gmra.mrb[0].mxu0 %v2466
      %v3083 = vpop.f32.mrb[0].mxu0
      %v3084 = vadd.f32 %v2210, %v3083
      %v3085 = vpop.f32.mrb[0].mxu0
      %3086 = vmatprep.mubr.f32.mxu0 0.0
      %3087 = vmatmul.mubr.f32.gmra.mrb[0].mxu0 %v2469
      %v3088 = vpop.f32.mrb[0].mxu0
      %v3089 = vadd.f32 %v2210, %v3088
      %v3090 = vpop.f32.mrb[0].mxu0
      %3091 = vmatprep.mubr.f32.mxu0 0.0
      %3092 = vmatmul.mubr.f32.gmra.mrb[0].mxu0 %v2472
      %v3093 = vpop.f32.mrb[0].mxu0
      %v3094 = vadd.f32 %v2210, %v3093
      %v3095 = vpop.f32.mrb[0].mxu0
      %3096 = vmatprep.mubr.f32.mxu0 0.0
      %3097 = vmatmul.mubr.f32.gmra.mrb[0].mxu0 %v2475
      %v3098 = vpop.f32.mrb[0].mxu0
      %v3099 = vadd.f32 %v2210, %v3098
      %v3100 = vpop.f32.mrb[0].mxu0
      %3101 = vmatprep.mubr.f32.mxu0 0.0
      %3102 = vmatmul.mubr.f32.gmra.mrb[0].mxu0 %v2478
      %v3103 = vpop.f32.mrb[0].mxu0
      %v3104 = vadd.f32 %v2210, %v3103
      %v3105 = vpop.f32.mrb[0].mxu0
      %3106 = vmatprep.mubr.f32.mxu0 0.0
      %3107 = vmatmul.mubr.f32.gmra.mrb[0].mxu0 %v2481
      %v3108 = vpop.f32.mrb[0].mxu0
      %v3109 = vadd.f32 %v2210, %v3108
      %v3110 = vpop.f32.mrb[0].mxu0
      %3111 = vmatprep.mubr.f32.mxu0 0.0
      %3112 = vmatmul.mubr.f32.gmra.mrb[0].mxu0 %v2484
      %v3113 = vpop.f32.mrb[0].mxu0
      %v3114 = vadd.f32 %v2210, %v3113
      %v3115 = vpop.f32.mrb[0].mxu0
      %3116 = vmatprep.mubr.f32.mxu0 0.0
      %3117 = vmatmul.mubr.f32.gmra.mrb[0].mxu0 %v2487
      %v3118 = vpop.f32.mrb[0].mxu0
      %v3119 = vadd.f32 %v2210, %v3118
      %v3120 = vpop.f32.mrb[0].mxu0
      %3121 = vmatprep.mubr.f32.mxu0 0.0
      %3122 = vmatmul.mubr.f32.gmra.mrb[0].mxu0 %v2490
      %v3123 = vpop.f32.mrb[0].mxu0
      %v3124 = vadd.f32 %v2210, %v3123
      %v3125 = vpop.f32.mrb[0].mxu0
      %3126 = vmatprep.mubr.f32.mxu0 0.0
      %3127 = vmatmul.mubr.f32.gmra.mrb[0].mxu0 %v2493
      %v3128 = vpop.f32.mrb[0].mxu0
      %v3129 = vadd.f32 %v2210, %v3128
      %v3130 = vpop.f32.mrb[0].mxu0
      %3131 = vmatprep.mubr.f32.mxu0 0.0
      %3132 = vmatmul.mubr.f32.gmra.mrb[0].mxu0 %v2496
      %v3133 = vpop.f32.mrb[0].mxu0
      %v3134 = vadd.f32 %v2210, %v3133
      %v3135 = vpop.f32.mrb[0].mxu0
      %3136 = vmatprep.mubr.f32.mxu0 0.0
      %3137 = vmatmul.mubr.f32.gmra.mrb[0].mxu0 %v2499
      %v3138 = vpop.f32.mrb[0].mxu0
      %v3139 = vadd.f32 %v2210, %v3138
      %v3140 = vpop.f32.mrb[0].mxu0
      %3141 = vmatprep.mubr.f32.mxu0 0.0
      %3142 = vmatmul.mubr.f32.gmra.mrb[0].mxu0 %v2502
      %v3143 = vpop.f32.mrb[0].mxu0
      %v3144 = vadd.f32 %v2210, %v3143
      %v3145 = vpop.f32.mrb[0].mxu0
      %3146 = vmatprep.mubr.f32.mxu0 0.0
      %3147 = vmatmul.mubr.f32.gmra.mrb[0].mxu0 %v2505
      %v3148 = vpop.f32.mrb[0].mxu0
      %v3149 = vadd.f32 %v2210, %v3148
      %v3150 = vpop.f32.mrb[0].mxu0
      %3151 = vmatprep.mubr.f32.mxu0 0.0
      %3152 = vmatmul.mubr.f32.gmra.mrb[0].mxu0 %v2508
      %v3153 = vpop.f32.mrb[0].mxu0
      %v3154 = vadd.f32 %v2210, %v3153
      %v3155 = vpop.f32.mrb[0].mxu0
      %3156 = vmatprep.mubr.f32.mxu0 0.0
      %3157 = vmatmul.mubr.f32.gmra.mrb[0].mxu0 %v2511
      %v3158 = vpop.f32.mrb[0].mxu0
      %v3159 = vadd.f32 %v2210, %v3158
      %v3160 = vpop.f32.mrb[0].mxu0
      %3161 = vmatprep.mubr.f32.mxu0 0.0
      %3162 = vmatmul.mubr.f32.gmra.mrb[0].mxu0 %v2514
      %v3163 = vpop.f32.mrb[0].mxu0
      %v3164 = vadd.f32 %v2210, %v3163
      %v3165 = vpop.f32.mrb[0].mxu0
      %3166 = vmatprep.mubr.f32.mxu0 0.0
      %3167 = vmatmul.mubr.f32.gmra.mrb[0].mxu0 %v2517
      %v3168 = vpop.f32.mrb[0].mxu0
      %v3169 = vadd.f32 %v2210, %v3168
      %v3170 = vpop.f32.mrb[0].mxu0
      %3171 = vmatprep.mubr.f32.mxu0 0.0
      %3172 = vmatmul.mubr.f32.gmra.mrb[0].mxu0 %v2520
      %v3173 = vpop.f32.mrb[0].mxu0
      %v3174 = vadd.f32 %v2210, %v3173
      %v3175 = vpop.f32.mrb[0].mxu0
      %3176 = vmatprep.mubr.f32.mxu0 0.0
      %3177 = vmatmul.mubr.f32.gmra.mrb[0].mxu0 %v2523
      %v3178 = vpop.f32.mrb[0].mxu0
      %v3179 = vadd.f32 %v2210, %v3178
      %v3180 = vpop.f32.mrb[0].mxu0
      %3181 = vmatprep.mubr.f32.mxu0 0.0
      %3182 = vmatmul.mubr.f32.gmra.mrb[0].mxu0 %v2526
      %v3183 = vpop.f32.mrb[0].mxu0
      %v3184 = vadd.f32 %v2210, %v3183
      %v3185 = vpop.f32.mrb[0].mxu0
      %3186 = vmatprep.mubr.f32.mxu0 0.0
      %3187 = vmatmul.mubr.f32.gmra.mrb[0].mxu0 %v2529
      %v3188 = vpop.f32.mrb[0].mxu0
      %v3189 = vadd.f32 %v2210, %v3188
      %v3190 = vpop.f32.mrb[0].mxu0
      %3191 = vmatprep.mubr.f32.mxu0 0.0
      %3192 = vmatmul.mubr.f32.gmra.mrb[0].mxu0 %v2532
      %v3193 = vpop.f32.mrb[0].mxu0
      %v3194 = vadd.f32 %v2210, %v3193
      %v3195 = vpop.f32.mrb[0].mxu0
      %3196 = vmatprep.mubr.f32.mxu0 0.0
      %3197 = vmatmul.mubr.f32.gmra.mrb[0].mxu0 %v2535
      %v3198 = vpop.f32.mrb[0].mxu0
      %v3199 = vadd.f32 %v2210, %v3198
      %v3200 = vpop.f32.mrb[0].mxu0
      %3201 = vmatprep.mubr.f32.mxu0 0.0
      %3202 = vmatmul.mubr.f32.gmra.mrb[0].mxu0 %v2538
      %v3203 = vpop.f32.mrb[0].mxu0
      %v3204 = vadd.f32 %v2210, %v3203
      %v3205 = vpop.f32.mrb[0].mxu0
      %3206 = vmatprep.mubr.f32.mxu0 0.0
      %3207 = vmatmul.mubr.f32.gmra.mrb[0].mxu0 %v2541
      %v3208 = vpop.f32.mrb[0].mxu0
      %v3209 = vadd.f32 %v2210, %v3208
      %v3210 = vpop.f32.mrb[0].mxu0
      %3211 = vmatprep.mubr.f32.mxu0 0.0
      %3212 = vmatmul.mubr.f32.gmra.mrb[0].mxu0 %v2544
      %v3213 = vpop.f32.mrb[0].mxu0
      %v3214 = vadd.f32 %v2210, %v3213
      %v3215 = vpop.f32.mrb[0].mxu0
      %3216 = vmatprep.mubr.f32.mxu0 0.0
      %3217 = vmatmul.mubr.f32.gmra.mrb[0].mxu0 %v2547
      %v3218 = vpop.f32.mrb[0].mxu0
      %v3219 = vadd.f32 %v2210, %v3218
      %v3220 = vpop.f32.mrb[0].mxu0
      %3221 = vmatprep.mubr.f32.mxu0 0.0
      %3222 = vmatmul.mubr.f32.gmra.mrb[0].mxu0 %v2550
      %v3223 = vpop.f32.mrb[0].mxu0
      %v3224 = vadd.f32 %v2210, %v3223
      %v3225 = vpop.f32.mrb[0].mxu0
      %3226 = vmatprep.mubr.f32.mxu0 0.0
      %3227 = vmatmul.mubr.f32.gmra.mrb[0].mxu0 %v2553
      %v3228 = vpop.f32.mrb[0].mxu0
      %v3229 = vadd.f32 %v2210, %v3228
      %v3230 = vpop.f32.mrb[0].mxu0
      %3231 = vmatprep.mubr.f32.mxu0 0.0
      %3232 = vmatmul.mubr.f32.gmra.mrb[0].mxu0 %v2556
      %v3233 = vpop.f32.mrb[0].mxu0
      %v3234 = vadd.f32 %v2210, %v3233
      %v3235 = vpop.f32.mrb[0].mxu0
      %3236 = vmatprep.mubr.f32.mxu0 0.0
      %3237 = vmatmul.mubr.f32.gmra.mrb[0].mxu0 %v2559
      %v3238 = vpop.f32.mrb[0].mxu0
      %v3239 = vadd.f32 %v2210, %v3238
      %v3240 = vpop.f32.mrb[0].mxu0
      %3241 = vmatprep.mubr.f32.mxu0 0.0
      %3242 = vmatmul.mubr.f32.gmra.mrb[0].mxu0 %v2562
      %v3243 = vpop.f32.mrb[0].mxu0
      %v3244 = vadd.f32 %v2210, %v3243
      %v3245 = vpop.f32.mrb[0].mxu0
      %3246 = vmatprep.mubr.f32.mxu0 0.0
      %3247 = vmatmul.mubr.f32.gmra.mrb[0].mxu0 %v2565
      %v3248 = vpop.f32.mrb[0].mxu0
      %v3249 = vadd.f32 %v2210, %v3248
      %v3250 = vpop.f32.mrb[0].mxu0
      %3251 = vmatprep.mubr.f32.mxu0 0.0
      %3252 = vmatmul.mubr.f32.gmra.mrb[0].mxu0 %v2568
      %v3253 = vpop.f32.mrb[0].mxu0
      %v3254 = vadd.f32 %v2210, %v3253
      %v3255 = vpop.f32.mrb[0].mxu0
      %3256 = vmatprep.mubr.f32.mxu0 0.0
      %3257 = vmatmul.mubr.f32.gmra.mrb[0].mxu0 %v2571
      %v3258 = vpop.f32.mrb[0].mxu0
      %v3259 = vadd.f32 %v2210, %v3258
      %v3260 = vpop.f32.mrb[0].mxu0
      %3261 = vmatprep.mubr.f32.mxu0 0.0
      %3262 = vmatmul.mubr.f32.gmra.mrb[0].mxu0 %v2574
      %v3263 = vpop.f32.mrb[0].mxu0
      %v3264 = vadd.f32 %v2210, %v3263
      %v3265 = vpop.f32.mrb[0].mxu0
      %3266 = vmatprep.mubr.f32.mxu0 0.0
      %3267 = vmatmul.mubr.f32.gmra.mrb[0].mxu0 %v2577
      %v3268 = vpop.f32.mrb[0].mxu0
      %v3269 = vadd.f32 %v2210, %v3268
      %v3270 = vpop.f32.mrb[0].mxu0
      %3271 = vmatprep.mubr.f32.mxu0 0.0
      %3272 = vmatmul.mubr.f32.gmra.mrb[0].mxu0 %v2580
      %v3273 = vpop.f32.mrb[0].mxu0
      %v3274 = vadd.f32 %v2210, %v3273
      %v3275 = vpop.f32.mrb[0].mxu0
      %3276 = vmatprep.mubr.f32.mxu0 0.0
      %3277 = vmatmul.mubr.f32.gmra.mrb[0].mxu0 %v2583
      %v3278 = vpop.f32.mrb[0].mxu0
      %v3279 = vadd.f32 %v2210, %v3278
      %v3280 = vpop.f32.mrb[0].mxu0
      %3281 = vmatprep.mubr.f32.mxu0 0.0
      %3282 = vmatmul.mubr.f32.gmra.mrb[0].mxu0 %v2586
      %v3283 = vpop.f32.mrb[0].mxu0
      %v3284 = vadd.f32 %v2210, %v3283
      %v3285 = vpop.f32.mrb[0].mxu0
      %3286 = vmatprep.mubr.f32.mxu0 0.0
      %3287 = vmatmul.mubr.f32.gmra.mrb[0].mxu0 %v2589
      %v3288 = vpop.f32.mrb[0].mxu0
      %v3289 = vadd.f32 %v2210, %v3288
      %v3290 = vpop.f32.mrb[0].mxu0
      %3291 = vmatprep.mubr.f32.mxu0 0.0
      %3292 = vmatmul.mubr.f32.gmra.mrb[0].mxu0 %v2592
      %v3293 = vpop.f32.mrb[0].mxu0
      %v3294 = vadd.f32 %v2210, %v3293
      %v3295 = vpop.f32.mrb[0].mxu0
      %3296 = vmatprep.mubr.f32.mxu0 0.0
      %3297 = vmatmul.mubr.f32.gmra.mrb[0].mxu0 %v2595
      %v3298 = vpop.f32.mrb[0].mxu0
      %v3299 = vadd.f32 %v2210, %v3298
      %v3300 = vpop.f32.mrb[0].mxu0
      %3301 = vdwg.mxu0
      %v3302 = vmax.f32 %v2664, 0.0
      %v3303 = vmax.f32 %v2669, 0.0
      %v3304 = vmax.f32 %v2674, 0.0
      %v3305 = vmax.f32 %v2679, 0.0
      %v3306 = vmax.f32 %v2684, 0.0
      %v3307 = vmax.f32 %v2689, 0.0
      %v3308 = vmax.f32 %v2694, 0.0
      %v3309 = vmax.f32 %v2699, 0.0
      %v3310 = vmax.f32 %v2704, 0.0
      %v3311 = vmax.f32 %v2709, 0.0
      %v3312 = vmax.f32 %v2714, 0.0
      %v3313 = vmax.f32 %v2719, 0.0
      %v3314 = vmax.f32 %v2724, 0.0
      %v3315 = vmax.f32 %v2729, 0.0
      %v3316 = vmax.f32 %v2734, 0.0
      %v3317 = vmax.f32 %v2739, 0.0
      %v3318 = vmax.f32 %v2744, 0.0
      %v3319 = vmax.f32 %v2749, 0.0
      %v3320 = vmax.f32 %v2754, 0.0
      %v3321 = vmax.f32 %v2759, 0.0
      %v3322 = vmax.f32 %v2764, 0.0
      %v3323 = vmax.f32 %v2769, 0.0
      %v3324 = vmax.f32 %v2774, 0.0
      %v3325 = vmax.f32 %v2779, 0.0
      %v3326 = vmax.f32 %v2784, 0.0
      %v3327 = vmax.f32 %v2789, 0.0
      %v3328 = vmax.f32 %v2794, 0.0
      %v3329 = vmax.f32 %v2799, 0.0
      %v3330 = vmax.f32 %v2804, 0.0
      %v3331 = vmax.f32 %v2809, 0.0
      %v3332 = vmax.f32 %v2814, 0.0
      %v3333 = vmax.f32 %v2819, 0.0
      %v3334 = vmax.f32 %v2824, 0.0
      %v3335 = vmax.f32 %v2829, 0.0
      %v3336 = vmax.f32 %v2834, 0.0
      %v3337 = vmax.f32 %v2839, 0.0
      %v3338 = vmax.f32 %v2844, 0.0
      %v3339 = vmax.f32 %v2849, 0.0
      %v3340 = vmax.f32 %v2854, 0.0
      %v3341 = vmax.f32 %v2859, 0.0
      %v3342 = vmax.f32 %v2864, 0.0
      %v3343 = vmax.f32 %v2869, 0.0
      %v3344 = vmax.f32 %v2874, 0.0
      %v3345 = vmax.f32 %v2879, 0.0
      %v3346 = vmax.f32 %v2884, 0.0
      %v3347 = vmax.f32 %v2889, 0.0
      %v3348 = vmax.f32 %v2894, 0.0
      %v3349 = vmax.f32 %v2899, 0.0
      %v3350 = vmax.f32 %v2904, 0.0
      %v3351 = vmax.f32 %v2909, 0.0
      %v3352 = vmax.f32 %v2914, 0.0
      %v3353 = vmax.f32 %v2919, 0.0
      %v3354 = vmax.f32 %v2924, 0.0
      %v3355 = vmax.f32 %v2929, 0.0
      %v3356 = vmax.f32 %v2934, 0.0
      %v3357 = vmax.f32 %v2939, 0.0
      %v3358 = vmax.f32 %v2944, 0.0
      %v3359 = vmax.f32 %v2949, 0.0
      %v3360 = vmax.f32 %v2954, 0.0
      %v3361 = vmax.f32 %v2959, 0.0
      %v3362 = vmax.f32 %v2964, 0.0
      %v3363 = vmax.f32 %v2969, 0.0
      %v3364 = vmax.f32 %v2974, 0.0
      %v3365 = vmax.f32 %v2979, 0.0
      %v3366 = vmax.f32 %v2984, 0.0
      %v3367 = vmax.f32 %v2989, 0.0
      %v3368 = vmax.f32 %v2994, 0.0
      %v3369 = vmax.f32 %v2999, 0.0
      %v3370 = vmax.f32 %v3004, 0.0
      %v3371 = vmax.f32 %v3009, 0.0
      %v3372 = vmax.f32 %v3014, 0.0
      %v3373 = vmax.f32 %v3019, 0.0
      %v3374 = vmax.f32 %v3024, 0.0
      %v3375 = vmax.f32 %v3029, 0.0
      %v3376 = vmax.f32 %v3034, 0.0
      %v3377 = vmax.f32 %v3039, 0.0
      %v3378 = vmax.f32 %v3044, 0.0
      %v3379 = vmax.f32 %v3049, 0.0
      %v3380 = vmax.f32 %v3054, 0.0
      %v3381 = vmax.f32 %v3059, 0.0
      %v3382 = vmax.f32 %v3064, 0.0
      %v3383 = vmax.f32 %v3069, 0.0
      %v3384 = vmax.f32 %v3074, 0.0
      %v3385 = vmax.f32 %v3079, 0.0
      %v3386 = vmax.f32 %v3084, 0.0
      %v3387 = vmax.f32 %v3089, 0.0
      %v3388 = vmax.f32 %v3094, 0.0
      %v3389 = vmax.f32 %v3099, 0.0
      %v3390 = vmax.f32 %v3104, 0.0
      %v3391 = vmax.f32 %v3109, 0.0
      %v3392 = vmax.f32 %v3114, 0.0
      %v3393 = vmax.f32 %v3119, 0.0
      %v3394 = vmax.f32 %v3124, 0.0
      %v3395 = vmax.f32 %v3129, 0.0
      %v3396 = vmax.f32 %v3134, 0.0
      %v3397 = vmax.f32 %v3139, 0.0
      %v3398 = vmax.f32 %v3144, 0.0
      %v3399 = vmax.f32 %v3149, 0.0
      %v3400 = vmax.f32 %v3154, 0.0
      %v3401 = vmax.f32 %v3159, 0.0
      %v3402 = vmax.f32 %v3164, 0.0
      %v3403 = vmax.f32 %v3169, 0.0
      %v3404 = vmax.f32 %v3174, 0.0
      %v3405 = vmax.f32 %v3179, 0.0
      %v3406 = vmax.f32 %v3184, 0.0
      %v3407 = vmax.f32 %v3189, 0.0
      %v3408 = vmax.f32 %v3194, 0.0
      %v3409 = vmax.f32 %v3199, 0.0
      %v3410 = vmax.f32 %v3204, 0.0
      %v3411 = vmax.f32 %v3209, 0.0
      %v3412 = vmax.f32 %v3214, 0.0
      %v3413 = vmax.f32 %v3219, 0.0
      %v3414 = vmax.f32 %v3224, 0.0
      %v3415 = vmax.f32 %v3229, 0.0
      %v3416 = vmax.f32 %v3234, 0.0
      %v3417 = vmax.f32 %v3239, 0.0
      %v3418 = vmax.f32 %v3244, 0.0
      %v3419 = vmax.f32 %v3249, 0.0
      %v3420 = vmax.f32 %v3254, 0.0
      %v3421 = vmax.f32 %v3259, 0.0
      %v3422 = vmax.f32 %v3264, 0.0
      %v3423 = vmax.f32 %v3269, 0.0
      %v3424 = vmax.f32 %v3274, 0.0
      %v3425 = vmax.f32 %v3279, 0.0
      %v3426 = vmax.f32 %v3284, 0.0
      %v3427 = vmax.f32 %v3289, 0.0
      %v3428 = vmax.f32 %v3294, 0.0
      %v3429 = vmax.f32 %v3299, 0.0
      %v3430 = vld [vmem:[%s9] sm:$0xff]
      %v3431 = vld [vmem:[%s9 + $0x8] sm:$0xff]
      %v3432 = vld [vmem:[%s9 + $0x10] sm:$0xff]
      %v3433 = vld [vmem:[%s9 + $0x18] sm:$0xff]
      %v3434 = vld [vmem:[%s10] sm:$0x1]
      %v3436 = vlaneseq
      %v3437 = vshrl.u32 %v3436, 7
      %v3438 = vsub.s32 0, %v3437
      %v3439 = vrot.slane %v3434, %v3438
      %v3442 = vsel %vm2212, %v3302, 0
      %v3445 = vsel %vm2212, %v3303, 0
      %v3448 = vsel %vm2212, %v3304, 0
      %v3451 = vsel %vm2212, %v3305, 0
      %v3454 = vsel %vm2212, %v3306, 0
      %v3457 = vsel %vm2212, %v3307, 0
      %v3460 = vsel %vm2212, %v3308, 0
      %v3463 = vsel %vm2212, %v3309, 0
      %v3466 = vsel %vm2212, %v3310, 0
      %v3469 = vsel %vm2212, %v3311, 0
      %v3472 = vsel %vm2212, %v3312, 0
      %v3475 = vsel %vm2212, %v3313, 0
      %v3478 = vsel %vm2212, %v3314, 0
      %v3481 = vsel %vm2212, %v3315, 0
      %v3484 = vsel %vm2212, %v3316, 0
      %v3487 = vsel %vm2212, %v3317, 0
      %v3490 = vsel %vm2212, %v3318, 0
      %v3493 = vsel %vm2212, %v3319, 0
      %v3496 = vsel %vm2212, %v3320, 0
      %v3499 = vsel %vm2212, %v3321, 0
      %v3502 = vsel %vm2212, %v3322, 0
      %v3505 = vsel %vm2212, %v3323, 0
      %v3508 = vsel %vm2212, %v3324, 0
      %v3511 = vsel %vm2212, %v3325, 0
      %v3514 = vsel %vm2212, %v3326, 0
      %v3517 = vsel %vm2212, %v3327, 0
      %v3520 = vsel %vm2212, %v3328, 0
      %v3523 = vsel %vm2212, %v3329, 0
      %v3526 = vsel %vm2212, %v3330, 0
      %v3529 = vsel %vm2212, %v3331, 0
      %v3532 = vsel %vm2212, %v3332, 0
      %v3535 = vsel %vm2212, %v3333, 0
      %v3538 = vsel %vm2212, %v3334, 0
      %v3541 = vsel %vm2212, %v3335, 0
      %v3544 = vsel %vm2212, %v3336, 0
      %v3547 = vsel %vm2212, %v3337, 0
      %v3550 = vsel %vm2212, %v3338, 0
      %v3553 = vsel %vm2212, %v3339, 0
      %v3556 = vsel %vm2212, %v3340, 0
      %v3559 = vsel %vm2212, %v3341, 0
      %v3562 = vsel %vm2212, %v3342, 0
      %v3565 = vsel %vm2212, %v3343, 0
      %v3568 = vsel %vm2212, %v3344, 0
      %v3571 = vsel %vm2212, %v3345, 0
      %v3574 = vsel %vm2212, %v3346, 0
      %v3577 = vsel %vm2212, %v3347, 0
      %v3580 = vsel %vm2212, %v3348, 0
      %v3583 = vsel %vm2212, %v3349, 0
      %v3586 = vsel %vm2212, %v3350, 0
      %v3589 = vsel %vm2212, %v3351, 0
      %v3592 = vsel %vm2212, %v3352, 0
      %v3595 = vsel %vm2212, %v3353, 0
      %v3598 = vsel %vm2212, %v3354, 0
      %v3601 = vsel %vm2212, %v3355, 0
      %v3604 = vsel %vm2212, %v3356, 0
      %v3607 = vsel %vm2212, %v3357, 0
      %v3610 = vsel %vm2212, %v3358, 0
      %v3613 = vsel %vm2212, %v3359, 0
      %v3616 = vsel %vm2212, %v3360, 0
      %v3619 = vsel %vm2212, %v3361, 0
      %v3622 = vsel %vm2212, %v3362, 0
      %v3625 = vsel %vm2212, %v3363, 0
      %v3628 = vsel %vm2212, %v3364, 0
      %v3631 = vsel %vm2212, %v3365, 0
      %v3634 = vsel %vm2212, %v3366, 0
      %v3637 = vsel %vm2212, %v3367, 0
      %v3640 = vsel %vm2212, %v3368, 0
      %v3643 = vsel %vm2212, %v3369, 0
      %v3646 = vsel %vm2212, %v3370, 0
      %v3649 = vsel %vm2212, %v3371, 0
      %v3652 = vsel %vm2212, %v3372, 0
      %v3655 = vsel %vm2212, %v3373, 0
      %v3658 = vsel %vm2212, %v3374, 0
      %v3661 = vsel %vm2212, %v3375, 0
      %v3664 = vsel %vm2212, %v3376, 0
      %v3667 = vsel %vm2212, %v3377, 0
      %v3670 = vsel %vm2212, %v3378, 0
      %v3673 = vsel %vm2212, %v3379, 0
      %v3676 = vsel %vm2212, %v3380, 0
      %v3679 = vsel %vm2212, %v3381, 0
      %v3682 = vsel %vm2212, %v3382, 0
      %v3685 = vsel %vm2212, %v3383, 0
      %v3688 = vsel %vm2212, %v3384, 0
      %v3691 = vsel %vm2212, %v3385, 0
      %v3694 = vsel %vm2212, %v3386, 0
      %v3697 = vsel %vm2212, %v3387, 0
      %v3700 = vsel %vm2212, %v3388, 0
      %v3703 = vsel %vm2212, %v3389, 0
      %v3706 = vsel %vm2212, %v3390, 0
      %v3709 = vsel %vm2212, %v3391, 0
      %v3712 = vsel %vm2212, %v3392, 0
      %v3715 = vsel %vm2212, %v3393, 0
      %v3718 = vsel %vm2212, %v3394, 0
      %v3721 = vsel %vm2212, %v3395, 0
      %v3724 = vsel %vm2212, %v3396, 0
      %v3727 = vsel %vm2212, %v3397, 0
      %v3730 = vsel %vm2212, %v3398, 0
      %v3733 = vsel %vm2212, %v3399, 0
      %v3736 = vsel %vm2212, %v3400, 0
      %v3739 = vsel %vm2212, %v3401, 0
      %v3742 = vsel %vm2212, %v3402, 0
      %v3745 = vsel %vm2212, %v3403, 0
      %v3748 = vsel %vm2212, %v3404, 0
      %v3751 = vsel %vm2212, %v3405, 0
      %v3754 = vsel %vm2212, %v3406, 0
      %v3757 = vsel %vm2212, %v3407, 0
      %v3760 = vsel %vm2212, %v3408, 0
      %v3763 = vsel %vm2212, %v3409, 0
      %v3766 = vsel %vm2212, %v3410, 0
      %v3769 = vsel %vm2212, %v3411, 0
      %v3772 = vsel %vm2212, %v3412, 0
      %v3775 = vsel %vm2212, %v3413, 0
      %v3778 = vsel %vm2212, %v3414, 0
      %v3781 = vsel %vm2212, %v3415, 0
      %v3784 = vsel %vm2212, %v3416, 0
      %v3787 = vsel %vm2212, %v3417, 0
      %v3790 = vsel %vm2212, %v3418, 0
      %v3793 = vsel %vm2212, %v3419, 0
      %v3796 = vsel %vm2212, %v3420, 0
      %v3799 = vsel %vm2212, %v3421, 0
      %v3802 = vsel %vm2212, %v3422, 0
      %v3805 = vsel %vm2212, %v3423, 0
      %v3808 = vsel %vm2212, %v3424, 0
      %v3811 = vsel %vm2212, %v3425, 0
      %v3814 = vsel %vm2212, %v3426, 0
      %v3817 = vsel %vm2212, %v3427, 0
      %v3820 = vsel %vm2212, %v3428, 0
      %v3823 = vsel %vm2212, %v3429, 0
      %3825 = vmatprep.subr.mxu0 0.0
      %3826 = vmatpush1.msra.mxu0 %v3430
      %3827 = vmatprep.subr.mxu0 0.0
      %3828 = vmatpush1.msra.mxu0 %v3431
      %3829 = vmatprep.subr.mxu0 0.0
      %3830 = vmatpush1.msra.mxu0 %v3432
      %3831 = vmatprep.subr.mxu0 0.0
      %3832 = vmatpush1.msra.mxu0 %v3433
      %3833 = vmatprep.subr.mxu0 0.0
      %3834 = vmatpush1.msra.mxu0 0.0
      %3835 = vmatprep.subr.mxu0 0.0
      %3836 = vmatpush1.msra.mxu0 0.0
      %3837 = vmatprep.subr.mxu0 0.0
      %3838 = vmatpush1.msra.mxu0 0.0
      %3839 = vmatprep.subr.mxu0 0.0
      %3840 = vmatpush1.msra.mxu0 0.0
      %3841 = vmatprep.subr.mxu0 0.0
      %3842 = vmatpush1.msra.mxu0 0.0
      %3843 = vmatprep.subr.mxu0 0.0
      %3844 = vmatpush1.msra.mxu0 0.0
      %3845 = vmatprep.subr.mxu0 0.0
      %3846 = vmatpush1.msra.mxu0 0.0
      %3847 = vmatprep.subr.mxu0 0.0
      %3848 = vmatpush1.msra.mxu0 0.0
      %3849 = vmatprep.subr.mxu0 0.0
      %3850 = vmatpush1.msra.mxu0 0.0
      %3851 = vmatprep.subr.mxu0 0.0
      %3852 = vmatpush1.msra.mxu0 0.0
      %3853 = vmatprep.subr.mxu0 0.0
      %3854 = vmatpush1.msra.mxu0 0.0
      %3855 = vmatprep.subr.mxu0 0.0
      %3856 = vmatpush1.msra.mxu0 0.0
      %3857 = vmatprep.subr.mxu0 0.0
      %3858 = vmatpush1.msra.mxu0 0.0
      %3859 = vmatprep.subr.mxu0 0.0
      %3860 = vmatpush1.msra.mxu0 0.0
      %3861 = vmatprep.subr.mxu0 0.0
      %3862 = vmatpush1.msra.mxu0 0.0
      %3863 = vmatprep.subr.mxu0 0.0
      %3864 = vmatpush1.msra.mxu0 0.0
      %3865 = vmatprep.subr.mxu0 0.0
      %3866 = vmatpush1.msra.mxu0 0.0
      %3867 = vmatprep.subr.mxu0 0.0
      %3868 = vmatpush1.msra.mxu0 0.0
      %3869 = vmatprep.subr.mxu0 0.0
      %3870 = vmatpush1.msra.mxu0 0.0
      %3871 = vmatprep.subr.mxu0 0.0
      %3872 = vmatpush1.msra.mxu0 0.0
      %3873 = vmatprep.subr.mxu0 0.0
      %3874 = vmatpush1.msra.mxu0 0.0
      %3875 = vmatprep.subr.mxu0 0.0
      %3876 = vmatpush1.msra.mxu0 0.0
      %3877 = vmatprep.subr.mxu0 0.0
      %3878 = vmatpush1.msra.mxu0 0.0
      %3879 = vmatprep.subr.mxu0 0.0
      %3880 = vmatpush1.msra.mxu0 0.0
      %3881 = vmatprep.subr.mxu0 0.0
      %3882 = vmatpush1.msra.mxu0 0.0
      %3883 = vmatprep.subr.mxu0 0.0
      %3884 = vmatpush1.msra.mxu0 0.0
      %3885 = vmatprep.subr.mxu0 0.0
      %3886 = vmatpush1.msra.mxu0 0.0
      %3887 = vmatprep.subr.mxu0 0.0
      %3888 = vmatpush1.msra.mxu0 0.0
      %3889 = vmatprep.mubr.f32.mxu0 0.0
      %3890 = vmatmul.mubr.f32.gmra.mrb[0].mxu0 %v3442
      %v3891 = vpop.f32.mrb[0].mxu0
      %v3892 = vadd.f32 %v3439, %v3891
      %v3893 = vpop.f32.mrb[0].mxu0
      %3894 = vmatprep.mubr.f32.mxu0 0.0
      %3895 = vmatmul.mubr.f32.gmra.mrb[0].mxu0 %v3445
      %v3896 = vpop.f32.mrb[0].mxu0
      %v3897 = vadd.f32 %v3439, %v3896
      %v3898 = vpop.f32.mrb[0].mxu0
      %3899 = vmatprep.mubr.f32.mxu0 0.0
      %3900 = vmatmul.mubr.f32.gmra.mrb[0].mxu0 %v3448
      %v3901 = vpop.f32.mrb[0].mxu0
      %v3902 = vadd.f32 %v3439, %v3901
      %v3903 = vpop.f32.mrb[0].mxu0
      %3904 = vmatprep.mubr.f32.mxu0 0.0
      %3905 = vmatmul.mubr.f32.gmra.mrb[0].mxu0 %v3451
      %v3906 = vpop.f32.mrb[0].mxu0
      %v3907 = vadd.f32 %v3439, %v3906
      %v3908 = vpop.f32.mrb[0].mxu0
      %3909 = vmatprep.mubr.f32.mxu0 0.0
      %3910 = vmatmul.mubr.f32.gmra.mrb[0].mxu0 %v3454
      %v3911 = vpop.f32.mrb[0].mxu0
      %v3912 = vadd.f32 %v3439, %v3911
      %v3913 = vpop.f32.mrb[0].mxu0
      %3914 = vmatprep.mubr.f32.mxu0 0.0
      %3915 = vmatmul.mubr.f32.gmra.mrb[0].mxu0 %v3457
      %v3916 = vpop.f32.mrb[0].mxu0
      %v3917 = vadd.f32 %v3439, %v3916
      %v3918 = vpop.f32.mrb[0].mxu0
      %3919 = vmatprep.mubr.f32.mxu0 0.0
      %3920 = vmatmul.mubr.f32.gmra.mrb[0].mxu0 %v3460
      %v3921 = vpop.f32.mrb[0].mxu0
      %v3922 = vadd.f32 %v3439, %v3921
      %v3923 = vpop.f32.mrb[0].mxu0
      %3924 = vmatprep.mubr.f32.mxu0 0.0
      %3925 = vmatmul.mubr.f32.gmra.mrb[0].mxu0 %v3463
      %v3926 = vpop.f32.mrb[0].mxu0
      %v3927 = vadd.f32 %v3439, %v3926
      %v3928 = vpop.f32.mrb[0].mxu0
      %3929 = vmatprep.mubr.f32.mxu0 0.0
      %3930 = vmatmul.mubr.f32.gmra.mrb[0].mxu0 %v3466
      %v3931 = vpop.f32.mrb[0].mxu0
      %v3932 = vadd.f32 %v3439, %v3931
      %v3933 = vpop.f32.mrb[0].mxu0
      %3934 = vmatprep.mubr.f32.mxu0 0.0
      %3935 = vmatmul.mubr.f32.gmra.mrb[0].mxu0 %v3469
      %v3936 = vpop.f32.mrb[0].mxu0
      %v3937 = vadd.f32 %v3439, %v3936
      %v3938 = vpop.f32.mrb[0].mxu0
      %3939 = vmatprep.mubr.f32.mxu0 0.0
      %3940 = vmatmul.mubr.f32.gmra.mrb[0].mxu0 %v3472
      %v3941 = vpop.f32.mrb[0].mxu0
      %v3942 = vadd.f32 %v3439, %v3941
      %v3943 = vpop.f32.mrb[0].mxu0
      %3944 = vmatprep.mubr.f32.mxu0 0.0
      %3945 = vmatmul.mubr.f32.gmra.mrb[0].mxu0 %v3475
      %v3946 = vpop.f32.mrb[0].mxu0
      %v3947 = vadd.f32 %v3439, %v3946
      %v3948 = vpop.f32.mrb[0].mxu0
      %3949 = vmatprep.mubr.f32.mxu0 0.0
      %3950 = vmatmul.mubr.f32.gmra.mrb[0].mxu0 %v3478
      %v3951 = vpop.f32.mrb[0].mxu0
      %v3952 = vadd.f32 %v3439, %v3951
      %v3953 = vpop.f32.mrb[0].mxu0
      %3954 = vmatprep.mubr.f32.mxu0 0.0
      %3955 = vmatmul.mubr.f32.gmra.mrb[0].mxu0 %v3481
      %v3956 = vpop.f32.mrb[0].mxu0
      %v3957 = vadd.f32 %v3439, %v3956
      %v3958 = vpop.f32.mrb[0].mxu0
      %3959 = vmatprep.mubr.f32.mxu0 0.0
      %3960 = vmatmul.mubr.f32.gmra.mrb[0].mxu0 %v3484
      %v3961 = vpop.f32.mrb[0].mxu0
      %v3962 = vadd.f32 %v3439, %v3961
      %v3963 = vpop.f32.mrb[0].mxu0
      %3964 = vmatprep.mubr.f32.mxu0 0.0
      %3965 = vmatmul.mubr.f32.gmra.mrb[0].mxu0 %v3487
      %v3966 = vpop.f32.mrb[0].mxu0
      %v3967 = vadd.f32 %v3439, %v3966
      %v3968 = vpop.f32.mrb[0].mxu0
      %3969 = vmatprep.mubr.f32.mxu0 0.0
      %3970 = vmatmul.mubr.f32.gmra.mrb[0].mxu0 %v3490
      %v3971 = vpop.f32.mrb[0].mxu0
      %v3972 = vadd.f32 %v3439, %v3971
      %v3973 = vpop.f32.mrb[0].mxu0
      %3974 = vmatprep.mubr.f32.mxu0 0.0
      %3975 = vmatmul.mubr.f32.gmra.mrb[0].mxu0 %v3493
      %v3976 = vpop.f32.mrb[0].mxu0
      %v3977 = vadd.f32 %v3439, %v3976
      %v3978 = vpop.f32.mrb[0].mxu0
      %3979 = vmatprep.mubr.f32.mxu0 0.0
      %3980 = vmatmul.mubr.f32.gmra.mrb[0].mxu0 %v3496
      %v3981 = vpop.f32.mrb[0].mxu0
      %v3982 = vadd.f32 %v3439, %v3981
      %v3983 = vpop.f32.mrb[0].mxu0
      %3984 = vmatprep.mubr.f32.mxu0 0.0
      %3985 = vmatmul.mubr.f32.gmra.mrb[0].mxu0 %v3499
      %v3986 = vpop.f32.mrb[0].mxu0
      %v3987 = vadd.f32 %v3439, %v3986
      %v3988 = vpop.f32.mrb[0].mxu0
      %3989 = vmatprep.mubr.f32.mxu0 0.0
      %3990 = vmatmul.mubr.f32.gmra.mrb[0].mxu0 %v3502
      %v3991 = vpop.f32.mrb[0].mxu0
      %v3992 = vadd.f32 %v3439, %v3991
      %v3993 = vpop.f32.mrb[0].mxu0
      %3994 = vmatprep.mubr.f32.mxu0 0.0
      %3995 = vmatmul.mubr.f32.gmra.mrb[0].mxu0 %v3505
      %v3996 = vpop.f32.mrb[0].mxu0
      %v3997 = vadd.f32 %v3439, %v3996
      %v3998 = vpop.f32.mrb[0].mxu0
      %3999 = vmatprep.mubr.f32.mxu0 0.0
      %4000 = vmatmul.mubr.f32.gmra.mrb[0].mxu0 %v3508
      %v4001 = vpop.f32.mrb[0].mxu0
      %v4002 = vadd.f32 %v3439, %v4001
      %v4003 = vpop.f32.mrb[0].mxu0
      %4004 = vmatprep.mubr.f32.mxu0 0.0
      %4005 = vmatmul.mubr.f32.gmra.mrb[0].mxu0 %v3511
      %v4006 = vpop.f32.mrb[0].mxu0
      %v4007 = vadd.f32 %v3439, %v4006
      %v4008 = vpop.f32.mrb[0].mxu0
      %4009 = vmatprep.mubr.f32.mxu0 0.0
      %4010 = vmatmul.mubr.f32.gmra.mrb[0].mxu0 %v3514
      %v4011 = vpop.f32.mrb[0].mxu0
      %v4012 = vadd.f32 %v3439, %v4011
      %v4013 = vpop.f32.mrb[0].mxu0
      %4014 = vmatprep.mubr.f32.mxu0 0.0
      %4015 = vmatmul.mubr.f32.gmra.mrb[0].mxu0 %v3517
      %v4016 = vpop.f32.mrb[0].mxu0
      %v4017 = vadd.f32 %v3439, %v4016
      %v4018 = vpop.f32.mrb[0].mxu0
      %4019 = vmatprep.mubr.f32.mxu0 0.0
      %4020 = vmatmul.mubr.f32.gmra.mrb[0].mxu0 %v3520
      %v4021 = vpop.f32.mrb[0].mxu0
      %v4022 = vadd.f32 %v3439, %v4021
      %v4023 = vpop.f32.mrb[0].mxu0
      %4024 = vmatprep.mubr.f32.mxu0 0.0
      %4025 = vmatmul.mubr.f32.gmra.mrb[0].mxu0 %v3523
      %v4026 = vpop.f32.mrb[0].mxu0
      %v4027 = vadd.f32 %v3439, %v4026
      %v4028 = vpop.f32.mrb[0].mxu0
      %4029 = vmatprep.mubr.f32.mxu0 0.0
      %4030 = vmatmul.mubr.f32.gmra.mrb[0].mxu0 %v3526
      %v4031 = vpop.f32.mrb[0].mxu0
      %v4032 = vadd.f32 %v3439, %v4031
      %v4033 = vpop.f32.mrb[0].mxu0
      %4034 = vmatprep.mubr.f32.mxu0 0.0
      %4035 = vmatmul.mubr.f32.gmra.mrb[0].mxu0 %v3529
      %v4036 = vpop.f32.mrb[0].mxu0
      %v4037 = vadd.f32 %v3439, %v4036
      %v4038 = vpop.f32.mrb[0].mxu0
      %4039 = vmatprep.mubr.f32.mxu0 0.0
      %4040 = vmatmul.mubr.f32.gmra.mrb[0].mxu0 %v3532
      %v4041 = vpop.f32.mrb[0].mxu0
      %v4042 = vadd.f32 %v3439, %v4041
      %v4043 = vpop.f32.mrb[0].mxu0
      %4044 = vmatprep.mubr.f32.mxu0 0.0
      %4045 = vmatmul.mubr.f32.gmra.mrb[0].mxu0 %v3535
      %v4046 = vpop.f32.mrb[0].mxu0
      %v4047 = vadd.f32 %v3439, %v4046
      %v4048 = vpop.f32.mrb[0].mxu0
      %4049 = vmatprep.mubr.f32.mxu0 0.0
      %4050 = vmatmul.mubr.f32.gmra.mrb[0].mxu0 %v3538
      %v4051 = vpop.f32.mrb[0].mxu0
      %v4052 = vadd.f32 %v3439, %v4051
      %v4053 = vpop.f32.mrb[0].mxu0
      %4054 = vmatprep.mubr.f32.mxu0 0.0
      %4055 = vmatmul.mubr.f32.gmra.mrb[0].mxu0 %v3541
      %v4056 = vpop.f32.mrb[0].mxu0
      %v4057 = vadd.f32 %v3439, %v4056
      %v4058 = vpop.f32.mrb[0].mxu0
      %4059 = vmatprep.mubr.f32.mxu0 0.0
      %4060 = vmatmul.mubr.f32.gmra.mrb[0].mxu0 %v3544
      %v4061 = vpop.f32.mrb[0].mxu0
      %v4062 = vadd.f32 %v3439, %v4061
      %v4063 = vpop.f32.mrb[0].mxu0
      %4064 = vmatprep.mubr.f32.mxu0 0.0
      %4065 = vmatmul.mubr.f32.gmra.mrb[0].mxu0 %v3547
      %v4066 = vpop.f32.mrb[0].mxu0
      %v4067 = vadd.f32 %v3439, %v4066
      %v4068 = vpop.f32.mrb[0].mxu0
      %4069 = vmatprep.mubr.f32.mxu0 0.0
      %4070 = vmatmul.mubr.f32.gmra.mrb[0].mxu0 %v3550
      %v4071 = vpop.f32.mrb[0].mxu0
      %v4072 = vadd.f32 %v3439, %v4071
      %v4073 = vpop.f32.mrb[0].mxu0
      %4074 = vmatprep.mubr.f32.mxu0 0.0
      %4075 = vmatmul.mubr.f32.gmra.mrb[0].mxu0 %v3553
      %v4076 = vpop.f32.mrb[0].mxu0
      %v4077 = vadd.f32 %v3439, %v4076
      %v4078 = vpop.f32.mrb[0].mxu0
      %4079 = vmatprep.mubr.f32.mxu0 0.0
      %4080 = vmatmul.mubr.f32.gmra.mrb[0].mxu0 %v3556
      %v4081 = vpop.f32.mrb[0].mxu0
      %v4082 = vadd.f32 %v3439, %v4081
      %v4083 = vpop.f32.mrb[0].mxu0
      %4084 = vmatprep.mubr.f32.mxu0 0.0
      %4085 = vmatmul.mubr.f32.gmra.mrb[0].mxu0 %v3559
      %v4086 = vpop.f32.mrb[0].mxu0
      %v4087 = vadd.f32 %v3439, %v4086
      %v4088 = vpop.f32.mrb[0].mxu0
      %4089 = vmatprep.mubr.f32.mxu0 0.0
      %4090 = vmatmul.mubr.f32.gmra.mrb[0].mxu0 %v3562
      %v4091 = vpop.f32.mrb[0].mxu0
      %v4092 = vadd.f32 %v3439, %v4091
      %v4093 = vpop.f32.mrb[0].mxu0
      %4094 = vmatprep.mubr.f32.mxu0 0.0
      %4095 = vmatmul.mubr.f32.gmra.mrb[0].mxu0 %v3565
      %v4096 = vpop.f32.mrb[0].mxu0
      %v4097 = vadd.f32 %v3439, %v4096
      %v4098 = vpop.f32.mrb[0].mxu0
      %4099 = vmatprep.mubr.f32.mxu0 0.0
      %4100 = vmatmul.mubr.f32.gmra.mrb[0].mxu0 %v3568
      %v4101 = vpop.f32.mrb[0].mxu0
      %v4102 = vadd.f32 %v3439, %v4101
      %v4103 = vpop.f32.mrb[0].mxu0
      %4104 = vmatprep.mubr.f32.mxu0 0.0
      %4105 = vmatmul.mubr.f32.gmra.mrb[0].mxu0 %v3571
      %v4106 = vpop.f32.mrb[0].mxu0
      %v4107 = vadd.f32 %v3439, %v4106
      %v4108 = vpop.f32.mrb[0].mxu0
      %4109 = vmatprep.mubr.f32.mxu0 0.0
      %4110 = vmatmul.mubr.f32.gmra.mrb[0].mxu0 %v3574
      %v4111 = vpop.f32.mrb[0].mxu0
      %v4112 = vadd.f32 %v3439, %v4111
      %v4113 = vpop.f32.mrb[0].mxu0
      %4114 = vmatprep.mubr.f32.mxu0 0.0
      %4115 = vmatmul.mubr.f32.gmra.mrb[0].mxu0 %v3577
      %v4116 = vpop.f32.mrb[0].mxu0
      %v4117 = vadd.f32 %v3439, %v4116
      %v4118 = vpop.f32.mrb[0].mxu0
      %4119 = vmatprep.mubr.f32.mxu0 0.0
      %4120 = vmatmul.mubr.f32.gmra.mrb[0].mxu0 %v3580
      %v4121 = vpop.f32.mrb[0].mxu0
      %v4122 = vadd.f32 %v3439, %v4121
      %v4123 = vpop.f32.mrb[0].mxu0
      %4124 = vmatprep.mubr.f32.mxu0 0.0
      %4125 = vmatmul.mubr.f32.gmra.mrb[0].mxu0 %v3583
      %v4126 = vpop.f32.mrb[0].mxu0
      %v4127 = vadd.f32 %v3439, %v4126
      %v4128 = vpop.f32.mrb[0].mxu0
      %4129 = vmatprep.mubr.f32.mxu0 0.0
      %4130 = vmatmul.mubr.f32.gmra.mrb[0].mxu0 %v3586
      %v4131 = vpop.f32.mrb[0].mxu0
      %v4132 = vadd.f32 %v3439, %v4131
      %v4133 = vpop.f32.mrb[0].mxu0
      %4134 = vmatprep.mubr.f32.mxu0 0.0
      %4135 = vmatmul.mubr.f32.gmra.mrb[0].mxu0 %v3589
      %v4136 = vpop.f32.mrb[0].mxu0
      %v4137 = vadd.f32 %v3439, %v4136
      %v4138 = vpop.f32.mrb[0].mxu0
      %4139 = vmatprep.mubr.f32.mxu0 0.0
      %4140 = vmatmul.mubr.f32.gmra.mrb[0].mxu0 %v3592
      %v4141 = vpop.f32.mrb[0].mxu0
      %v4142 = vadd.f32 %v3439, %v4141
      %v4143 = vpop.f32.mrb[0].mxu0
      %4144 = vmatprep.mubr.f32.mxu0 0.0
      %4145 = vmatmul.mubr.f32.gmra.mrb[0].mxu0 %v3595
      %v4146 = vpop.f32.mrb[0].mxu0
      %v4147 = vadd.f32 %v3439, %v4146
      %v4148 = vpop.f32.mrb[0].mxu0
      %4149 = vmatprep.mubr.f32.mxu0 0.0
      %4150 = vmatmul.mubr.f32.gmra.mrb[0].mxu0 %v3598
      %v4151 = vpop.f32.mrb[0].mxu0
      %v4152 = vadd.f32 %v3439, %v4151
      %v4153 = vpop.f32.mrb[0].mxu0
      %4154 = vmatprep.mubr.f32.mxu0 0.0
      %4155 = vmatmul.mubr.f32.gmra.mrb[0].mxu0 %v3601
      %v4156 = vpop.f32.mrb[0].mxu0
      %v4157 = vadd.f32 %v3439, %v4156
      %v4158 = vpop.f32.mrb[0].mxu0
      %4159 = vmatprep.mubr.f32.mxu0 0.0
      %4160 = vmatmul.mubr.f32.gmra.mrb[0].mxu0 %v3604
      %v4161 = vpop.f32.mrb[0].mxu0
      %v4162 = vadd.f32 %v3439, %v4161
      %v4163 = vpop.f32.mrb[0].mxu0
      %4164 = vmatprep.mubr.f32.mxu0 0.0
      %4165 = vmatmul.mubr.f32.gmra.mrb[0].mxu0 %v3607
      %v4166 = vpop.f32.mrb[0].mxu0
      %v4167 = vadd.f32 %v3439, %v4166
      %v4168 = vpop.f32.mrb[0].mxu0
      %4169 = vmatprep.mubr.f32.mxu0 0.0
      %4170 = vmatmul.mubr.f32.gmra.mrb[0].mxu0 %v3610
      %v4171 = vpop.f32.mrb[0].mxu0
      %v4172 = vadd.f32 %v3439, %v4171
      %v4173 = vpop.f32.mrb[0].mxu0
      %4174 = vmatprep.mubr.f32.mxu0 0.0
      %4175 = vmatmul.mubr.f32.gmra.mrb[0].mxu0 %v3613
      %v4176 = vpop.f32.mrb[0].mxu0
      %v4177 = vadd.f32 %v3439, %v4176
      %v4178 = vpop.f32.mrb[0].mxu0
      %4179 = vmatprep.mubr.f32.mxu0 0.0
      %4180 = vmatmul.mubr.f32.gmra.mrb[0].mxu0 %v3616
      %v4181 = vpop.f32.mrb[0].mxu0
      %v4182 = vadd.f32 %v3439, %v4181
      %v4183 = vpop.f32.mrb[0].mxu0
      %4184 = vmatprep.mubr.f32.mxu0 0.0
      %4185 = vmatmul.mubr.f32.gmra.mrb[0].mxu0 %v3619
      %v4186 = vpop.f32.mrb[0].mxu0
      %v4187 = vadd.f32 %v3439, %v4186
      %v4188 = vpop.f32.mrb[0].mxu0
      %4189 = vmatprep.mubr.f32.mxu0 0.0
      %4190 = vmatmul.mubr.f32.gmra.mrb[0].mxu0 %v3622
      %v4191 = vpop.f32.mrb[0].mxu0
      %v4192 = vadd.f32 %v3439, %v4191
      %v4193 = vpop.f32.mrb[0].mxu0
      %4194 = vmatprep.mubr.f32.mxu0 0.0
      %4195 = vmatmul.mubr.f32.gmra.mrb[0].mxu0 %v3625
      %v4196 = vpop.f32.mrb[0].mxu0
      %v4197 = vadd.f32 %v3439, %v4196
      %v4198 = vpop.f32.mrb[0].mxu0
      %4199 = vmatprep.mubr.f32.mxu0 0.0
      %4200 = vmatmul.mubr.f32.gmra.mrb[0].mxu0 %v3628
      %v4201 = vpop.f32.mrb[0].mxu0
      %v4202 = vadd.f32 %v3439, %v4201
      %v4203 = vpop.f32.mrb[0].mxu0
      %4204 = vmatprep.mubr.f32.mxu0 0.0
      %4205 = vmatmul.mubr.f32.gmra.mrb[0].mxu0 %v3631
      %v4206 = vpop.f32.mrb[0].mxu0
      %v4207 = vadd.f32 %v3439, %v4206
      %v4208 = vpop.f32.mrb[0].mxu0
      %4209 = vmatprep.mubr.f32.mxu0 0.0
      %4210 = vmatmul.mubr.f32.gmra.mrb[0].mxu0 %v3634
      %v4211 = vpop.f32.mrb[0].mxu0
      %v4212 = vadd.f32 %v3439, %v4211
      %v4213 = vpop.f32.mrb[0].mxu0
      %4214 = vmatprep.mubr.f32.mxu0 0.0
      %4215 = vmatmul.mubr.f32.gmra.mrb[0].mxu0 %v3637
      %v4216 = vpop.f32.mrb[0].mxu0
      %v4217 = vadd.f32 %v3439, %v4216
      %v4218 = vpop.f32.mrb[0].mxu0
      %4219 = vmatprep.mubr.f32.mxu0 0.0
      %4220 = vmatmul.mubr.f32.gmra.mrb[0].mxu0 %v3640
      %v4221 = vpop.f32.mrb[0].mxu0
      %v4222 = vadd.f32 %v3439, %v4221
      %v4223 = vpop.f32.mrb[0].mxu0
      %4224 = vmatprep.mubr.f32.mxu0 0.0
      %4225 = vmatmul.mubr.f32.gmra.mrb[0].mxu0 %v3643
      %v4226 = vpop.f32.mrb[0].mxu0
      %v4227 = vadd.f32 %v3439, %v4226
      %v4228 = vpop.f32.mrb[0].mxu0
      %4229 = vmatprep.mubr.f32.mxu0 0.0
      %4230 = vmatmul.mubr.f32.gmra.mrb[0].mxu0 %v3646
      %v4231 = vpop.f32.mrb[0].mxu0
      %v4232 = vadd.f32 %v3439, %v4231
      %v4233 = vpop.f32.mrb[0].mxu0
      %4234 = vmatprep.mubr.f32.mxu0 0.0
      %4235 = vmatmul.mubr.f32.gmra.mrb[0].mxu0 %v3649
      %v4236 = vpop.f32.mrb[0].mxu0
      %v4237 = vadd.f32 %v3439, %v4236
      %v4238 = vpop.f32.mrb[0].mxu0
      %4239 = vmatprep.mubr.f32.mxu0 0.0
      %4240 = vmatmul.mubr.f32.gmra.mrb[0].mxu0 %v3652
      %v4241 = vpop.f32.mrb[0].mxu0
      %v4242 = vadd.f32 %v3439, %v4241
      %v4243 = vpop.f32.mrb[0].mxu0
      %4244 = vmatprep.mubr.f32.mxu0 0.0
      %4245 = vmatmul.mubr.f32.gmra.mrb[0].mxu0 %v3655
      %v4246 = vpop.f32.mrb[0].mxu0
      %v4247 = vadd.f32 %v3439, %v4246
      %v4248 = vpop.f32.mrb[0].mxu0
      %4249 = vmatprep.mubr.f32.mxu0 0.0
      %4250 = vmatmul.mubr.f32.gmra.mrb[0].mxu0 %v3658
      %v4251 = vpop.f32.mrb[0].mxu0
      %v4252 = vadd.f32 %v3439, %v4251
      %v4253 = vpop.f32.mrb[0].mxu0
      %4254 = vmatprep.mubr.f32.mxu0 0.0
      %4255 = vmatmul.mubr.f32.gmra.mrb[0].mxu0 %v3661
      %v4256 = vpop.f32.mrb[0].mxu0
      %v4257 = vadd.f32 %v3439, %v4256
      %v4258 = vpop.f32.mrb[0].mxu0
      %4259 = vmatprep.mubr.f32.mxu0 0.0
      %4260 = vmatmul.mubr.f32.gmra.mrb[0].mxu0 %v3664
      %v4261 = vpop.f32.mrb[0].mxu0
      %v4262 = vadd.f32 %v3439, %v4261
      %v4263 = vpop.f32.mrb[0].mxu0
      %4264 = vmatprep.mubr.f32.mxu0 0.0
      %4265 = vmatmul.mubr.f32.gmra.mrb[0].mxu0 %v3667
      %v4266 = vpop.f32.mrb[0].mxu0
      %v4267 = vadd.f32 %v3439, %v4266
      %v4268 = vpop.f32.mrb[0].mxu0
      %4269 = vmatprep.mubr.f32.mxu0 0.0
      %4270 = vmatmul.mubr.f32.gmra.mrb[0].mxu0 %v3670
      %v4271 = vpop.f32.mrb[0].mxu0
      %v4272 = vadd.f32 %v3439, %v4271
      %v4273 = vpop.f32.mrb[0].mxu0
      %4274 = vmatprep.mubr.f32.mxu0 0.0
      %4275 = vmatmul.mubr.f32.gmra.mrb[0].mxu0 %v3673
      %v4276 = vpop.f32.mrb[0].mxu0
      %v4277 = vadd.f32 %v3439, %v4276
      %v4278 = vpop.f32.mrb[0].mxu0
      %4279 = vmatprep.mubr.f32.mxu0 0.0
      %4280 = vmatmul.mubr.f32.gmra.mrb[0].mxu0 %v3676
      %v4281 = vpop.f32.mrb[0].mxu0
      %v4282 = vadd.f32 %v3439, %v4281
      %v4283 = vpop.f32.mrb[0].mxu0
      %4284 = vmatprep.mubr.f32.mxu0 0.0
      %4285 = vmatmul.mubr.f32.gmra.mrb[0].mxu0 %v3679
      %v4286 = vpop.f32.mrb[0].mxu0
      %v4287 = vadd.f32 %v3439, %v4286
      %v4288 = vpop.f32.mrb[0].mxu0
      %4289 = vmatprep.mubr.f32.mxu0 0.0
      %4290 = vmatmul.mubr.f32.gmra.mrb[0].mxu0 %v3682
      %v4291 = vpop.f32.mrb[0].mxu0
      %v4292 = vadd.f32 %v3439, %v4291
      %v4293 = vpop.f32.mrb[0].mxu0
      %4294 = vmatprep.mubr.f32.mxu0 0.0
      %4295 = vmatmul.mubr.f32.gmra.mrb[0].mxu0 %v3685
      %v4296 = vpop.f32.mrb[0].mxu0
      %v4297 = vadd.f32 %v3439, %v4296
      %v4298 = vpop.f32.mrb[0].mxu0
      %4299 = vmatprep.mubr.f32.mxu0 0.0
      %4300 = vmatmul.mubr.f32.gmra.mrb[0].mxu0 %v3688
      %v4301 = vpop.f32.mrb[0].mxu0
      %v4302 = vadd.f32 %v3439, %v4301
      %v4303 = vpop.f32.mrb[0].mxu0
      %4304 = vmatprep.mubr.f32.mxu0 0.0
      %4305 = vmatmul.mubr.f32.gmra.mrb[0].mxu0 %v3691
      %v4306 = vpop.f32.mrb[0].mxu0
      %v4307 = vadd.f32 %v3439, %v4306
      %v4308 = vpop.f32.mrb[0].mxu0
      %4309 = vmatprep.mubr.f32.mxu0 0.0
      %4310 = vmatmul.mubr.f32.gmra.mrb[0].mxu0 %v3694
      %v4311 = vpop.f32.mrb[0].mxu0
      %v4312 = vadd.f32 %v3439, %v4311
      %v4313 = vpop.f32.mrb[0].mxu0
      %4314 = vmatprep.mubr.f32.mxu0 0.0
      %4315 = vmatmul.mubr.f32.gmra.mrb[0].mxu0 %v3697
      %v4316 = vpop.f32.mrb[0].mxu0
      %v4317 = vadd.f32 %v3439, %v4316
      %v4318 = vpop.f32.mrb[0].mxu0
      %4319 = vmatprep.mubr.f32.mxu0 0.0
      %4320 = vmatmul.mubr.f32.gmra.mrb[0].mxu0 %v3700
      %v4321 = vpop.f32.mrb[0].mxu0
      %v4322 = vadd.f32 %v3439, %v4321
      %v4323 = vpop.f32.mrb[0].mxu0
      %4324 = vmatprep.mubr.f32.mxu0 0.0
      %4325 = vmatmul.mubr.f32.gmra.mrb[0].mxu0 %v3703
      %v4326 = vpop.f32.mrb[0].mxu0
      %v4327 = vadd.f32 %v3439, %v4326
      %v4328 = vpop.f32.mrb[0].mxu0
      %4329 = vmatprep.mubr.f32.mxu0 0.0
      %4330 = vmatmul.mubr.f32.gmra.mrb[0].mxu0 %v3706
      %v4331 = vpop.f32.mrb[0].mxu0
      %v4332 = vadd.f32 %v3439, %v4331
      %v4333 = vpop.f32.mrb[0].mxu0
      %4334 = vmatprep.mubr.f32.mxu0 0.0
      %4335 = vmatmul.mubr.f32.gmra.mrb[0].mxu0 %v3709
      %v4336 = vpop.f32.mrb[0].mxu0
      %v4337 = vadd.f32 %v3439, %v4336
      %v4338 = vpop.f32.mrb[0].mxu0
      %4339 = vmatprep.mubr.f32.mxu0 0.0
      %4340 = vmatmul.mubr.f32.gmra.mrb[0].mxu0 %v3712
      %v4341 = vpop.f32.mrb[0].mxu0
      %v4342 = vadd.f32 %v3439, %v4341
      %v4343 = vpop.f32.mrb[0].mxu0
      %4344 = vmatprep.mubr.f32.mxu0 0.0
      %4345 = vmatmul.mubr.f32.gmra.mrb[0].mxu0 %v3715
      %v4346 = vpop.f32.mrb[0].mxu0
      %v4347 = vadd.f32 %v3439, %v4346
      %v4348 = vpop.f32.mrb[0].mxu0
      %4349 = vmatprep.mubr.f32.mxu0 0.0
      %4350 = vmatmul.mubr.f32.gmra.mrb[0].mxu0 %v3718
      %v4351 = vpop.f32.mrb[0].mxu0
      %v4352 = vadd.f32 %v3439, %v4351
      %v4353 = vpop.f32.mrb[0].mxu0
      %4354 = vmatprep.mubr.f32.mxu0 0.0
      %4355 = vmatmul.mubr.f32.gmra.mrb[0].mxu0 %v3721
      %v4356 = vpop.f32.mrb[0].mxu0
      %v4357 = vadd.f32 %v3439, %v4356
      %v4358 = vpop.f32.mrb[0].mxu0
      %4359 = vmatprep.mubr.f32.mxu0 0.0
      %4360 = vmatmul.mubr.f32.gmra.mrb[0].mxu0 %v3724
      %v4361 = vpop.f32.mrb[0].mxu0
      %v4362 = vadd.f32 %v3439, %v4361
      %v4363 = vpop.f32.mrb[0].mxu0
      %4364 = vmatprep.mubr.f32.mxu0 0.0
      %4365 = vmatmul.mubr.f32.gmra.mrb[0].mxu0 %v3727
      %v4366 = vpop.f32.mrb[0].mxu0
      %v4367 = vadd.f32 %v3439, %v4366
      %v4368 = vpop.f32.mrb[0].mxu0
      %4369 = vmatprep.mubr.f32.mxu0 0.0
      %4370 = vmatmul.mubr.f32.gmra.mrb[0].mxu0 %v3730
      %v4371 = vpop.f32.mrb[0].mxu0
      %v4372 = vadd.f32 %v3439, %v4371
      %v4373 = vpop.f32.mrb[0].mxu0
      %4374 = vmatprep.mubr.f32.mxu0 0.0
      %4375 = vmatmul.mubr.f32.gmra.mrb[0].mxu0 %v3733
      %v4376 = vpop.f32.mrb[0].mxu0
      %v4377 = vadd.f32 %v3439, %v4376
      %v4378 = vpop.f32.mrb[0].mxu0
      %4379 = vmatprep.mubr.f32.mxu0 0.0
      %4380 = vmatmul.mubr.f32.gmra.mrb[0].mxu0 %v3736
      %v4381 = vpop.f32.mrb[0].mxu0
      %v4382 = vadd.f32 %v3439, %v4381
      %v4383 = vpop.f32.mrb[0].mxu0
      %4384 = vmatprep.mubr.f32.mxu0 0.0
      %4385 = vmatmul.mubr.f32.gmra.mrb[0].mxu0 %v3739
      %v4386 = vpop.f32.mrb[0].mxu0
      %v4387 = vadd.f32 %v3439, %v4386
      %v4388 = vpop.f32.mrb[0].mxu0
      %4389 = vmatprep.mubr.f32.mxu0 0.0
      %4390 = vmatmul.mubr.f32.gmra.mrb[0].mxu0 %v3742
      %v4391 = vpop.f32.mrb[0].mxu0
      %v4392 = vadd.f32 %v3439, %v4391
      %v4393 = vpop.f32.mrb[0].mxu0
      %4394 = vmatprep.mubr.f32.mxu0 0.0
      %4395 = vmatmul.mubr.f32.gmra.mrb[0].mxu0 %v3745
      %v4396 = vpop.f32.mrb[0].mxu0
      %v4397 = vadd.f32 %v3439, %v4396
      %v4398 = vpop.f32.mrb[0].mxu0
      %4399 = vmatprep.mubr.f32.mxu0 0.0
      %4400 = vmatmul.mubr.f32.gmra.mrb[0].mxu0 %v3748
      %v4401 = vpop.f32.mrb[0].mxu0
      %v4402 = vadd.f32 %v3439, %v4401
      %v4403 = vpop.f32.mrb[0].mxu0
      %4404 = vmatprep.mubr.f32.mxu0 0.0
      %4405 = vmatmul.mubr.f32.gmra.mrb[0].mxu0 %v3751
      %v4406 = vpop.f32.mrb[0].mxu0
      %v4407 = vadd.f32 %v3439, %v4406
      %v4408 = vpop.f32.mrb[0].mxu0
      %4409 = vmatprep.mubr.f32.mxu0 0.0
      %4410 = vmatmul.mubr.f32.gmra.mrb[0].mxu0 %v3754
      %v4411 = vpop.f32.mrb[0].mxu0
      %v4412 = vadd.f32 %v3439, %v4411
      %v4413 = vpop.f32.mrb[0].mxu0
      %4414 = vmatprep.mubr.f32.mxu0 0.0
      %4415 = vmatmul.mubr.f32.gmra.mrb[0].mxu0 %v3757
      %v4416 = vpop.f32.mrb[0].mxu0
      %v4417 = vadd.f32 %v3439, %v4416
      %v4418 = vpop.f32.mrb[0].mxu0
      %4419 = vmatprep.mubr.f32.mxu0 0.0
      %4420 = vmatmul.mubr.f32.gmra.mrb[0].mxu0 %v3760
      %v4421 = vpop.f32.mrb[0].mxu0
      %v4422 = vadd.f32 %v3439, %v4421
      %v4423 = vpop.f32.mrb[0].mxu0
      %4424 = vmatprep.mubr.f32.mxu0 0.0
      %4425 = vmatmul.mubr.f32.gmra.mrb[0].mxu0 %v3763
      %v4426 = vpop.f32.mrb[0].mxu0
      %v4427 = vadd.f32 %v3439, %v4426
      %v4428 = vpop.f32.mrb[0].mxu0
      %4429 = vmatprep.mubr.f32.mxu0 0.0
      %4430 = vmatmul.mubr.f32.gmra.mrb[0].mxu0 %v3766
      %v4431 = vpop.f32.mrb[0].mxu0
      %v4432 = vadd.f32 %v3439, %v4431
      %v4433 = vpop.f32.mrb[0].mxu0
      %4434 = vmatprep.mubr.f32.mxu0 0.0
      %4435 = vmatmul.mubr.f32.gmra.mrb[0].mxu0 %v3769
      %v4436 = vpop.f32.mrb[0].mxu0
      %v4437 = vadd.f32 %v3439, %v4436
      %v4438 = vpop.f32.mrb[0].mxu0
      %4439 = vmatprep.mubr.f32.mxu0 0.0
      %4440 = vmatmul.mubr.f32.gmra.mrb[0].mxu0 %v3772
      %v4441 = vpop.f32.mrb[0].mxu0
      %v4442 = vadd.f32 %v3439, %v4441
      %v4443 = vpop.f32.mrb[0].mxu0
      %4444 = vmatprep.mubr.f32.mxu0 0.0
      %4445 = vmatmul.mubr.f32.gmra.mrb[0].mxu0 %v3775
      %v4446 = vpop.f32.mrb[0].mxu0
      %v4447 = vadd.f32 %v3439, %v4446
      %v4448 = vpop.f32.mrb[0].mxu0
      %4449 = vmatprep.mubr.f32.mxu0 0.0
      %4450 = vmatmul.mubr.f32.gmra.mrb[0].mxu0 %v3778
      %v4451 = vpop.f32.mrb[0].mxu0
      %v4452 = vadd.f32 %v3439, %v4451
      %v4453 = vpop.f32.mrb[0].mxu0
      %4454 = vmatprep.mubr.f32.mxu0 0.0
      %4455 = vmatmul.mubr.f32.gmra.mrb[0].mxu0 %v3781
      %v4456 = vpop.f32.mrb[0].mxu0
      %v4457 = vadd.f32 %v3439, %v4456
      %v4458 = vpop.f32.mrb[0].mxu0
      %4459 = vmatprep.mubr.f32.mxu0 0.0
      %4460 = vmatmul.mubr.f32.gmra.mrb[0].mxu0 %v3784
      %v4461 = vpop.f32.mrb[0].mxu0
      %v4462 = vadd.f32 %v3439, %v4461
      %v4463 = vpop.f32.mrb[0].mxu0
      %4464 = vmatprep.mubr.f32.mxu0 0.0
      %4465 = vmatmul.mubr.f32.gmra.mrb[0].mxu0 %v3787
      %v4466 = vpop.f32.mrb[0].mxu0
      %v4467 = vadd.f32 %v3439, %v4466
      %v4468 = vpop.f32.mrb[0].mxu0
      %4469 = vmatprep.mubr.f32.mxu0 0.0
      %4470 = vmatmul.mubr.f32.gmra.mrb[0].mxu0 %v3790
      %v4471 = vpop.f32.mrb[0].mxu0
      %v4472 = vadd.f32 %v3439, %v4471
      %v4473 = vpop.f32.mrb[0].mxu0
      %4474 = vmatprep.mubr.f32.mxu0 0.0
      %4475 = vmatmul.mubr.f32.gmra.mrb[0].mxu0 %v3793
      %v4476 = vpop.f32.mrb[0].mxu0
      %v4477 = vadd.f32 %v3439, %v4476
      %v4478 = vpop.f32.mrb[0].mxu0
      %4479 = vmatprep.mubr.f32.mxu0 0.0
      %4480 = vmatmul.mubr.f32.gmra.mrb[0].mxu0 %v3796
      %v4481 = vpop.f32.mrb[0].mxu0
      %v4482 = vadd.f32 %v3439, %v4481
      %v4483 = vpop.f32.mrb[0].mxu0
      %4484 = vmatprep.mubr.f32.mxu0 0.0
      %4485 = vmatmul.mubr.f32.gmra.mrb[0].mxu0 %v3799
      %v4486 = vpop.f32.mrb[0].mxu0
      %v4487 = vadd.f32 %v3439, %v4486
      %v4488 = vpop.f32.mrb[0].mxu0
      %4489 = vmatprep.mubr.f32.mxu0 0.0
      %4490 = vmatmul.mubr.f32.gmra.mrb[0].mxu0 %v3802
      %v4491 = vpop.f32.mrb[0].mxu0
      %v4492 = vadd.f32 %v3439, %v4491
      %v4493 = vpop.f32.mrb[0].mxu0
      %4494 = vmatprep.mubr.f32.mxu0 0.0
      %4495 = vmatmul.mubr.f32.gmra.mrb[0].mxu0 %v3805
      %v4496 = vpop.f32.mrb[0].mxu0
      %v4497 = vadd.f32 %v3439, %v4496
      %v4498 = vpop.f32.mrb[0].mxu0
      %4499 = vmatprep.mubr.f32.mxu0 0.0
      %4500 = vmatmul.mubr.f32.gmra.mrb[0].mxu0 %v3808
      %v4501 = vpop.f32.mrb[0].mxu0
      %v4502 = vadd.f32 %v3439, %v4501
      %v4503 = vpop.f32.mrb[0].mxu0
      %4504 = vmatprep.mubr.f32.mxu0 0.0
      %4505 = vmatmul.mubr.f32.gmra.mrb[0].mxu0 %v3811
      %v4506 = vpop.f32.mrb[0].mxu0
      %v4507 = vadd.f32 %v3439, %v4506
      %v4508 = vpop.f32.mrb[0].mxu0
      %4509 = vmatprep.mubr.f32.mxu0 0.0
      %4510 = vmatmul.mubr.f32.gmra.mrb[0].mxu0 %v3814
      %v4511 = vpop.f32.mrb[0].mxu0
      %v4512 = vadd.f32 %v3439, %v4511
      %v4513 = vpop.f32.mrb[0].mxu0
      %4514 = vmatprep.mubr.f32.mxu0 0.0
      %4515 = vmatmul.mubr.f32.gmra.mrb[0].mxu0 %v3817
      %v4516 = vpop.f32.mrb[0].mxu0
      %v4517 = vadd.f32 %v3439, %v4516
      %v4518 = vpop.f32.mrb[0].mxu0
      %4519 = vmatprep.mubr.f32.mxu0 0.0
      %4520 = vmatmul.mubr.f32.gmra.mrb[0].mxu0 %v3820
      %v4521 = vpop.f32.mrb[0].mxu0
      %v4522 = vadd.f32 %v3439, %v4521
      %v4523 = vpop.f32.mrb[0].mxu0
      %4524 = vmatprep.mubr.f32.mxu0 0.0
      %4525 = vmatmul.mubr.f32.gmra.mrb[0].mxu0 %v3823
      %v4526 = vpop.f32.mrb[0].mxu0
      %v4527 = vadd.f32 %v3439, %v4526
      %v4528 = vpop.f32.mrb[0].mxu0
      %4529 = vdwg.mxu0
      %v4530 = vlaneseq
      %v4531 = vand.u32 %v4530, 127
      %v4532 = vmax.f32 %v3892, 0.0
      %v4533 = vmax.f32 %v3897, 0.0
      %v4534 = vmax.f32 %v3902, 0.0
      %v4535 = vmax.f32 %v3907, 0.0
      %v4536 = vmax.f32 %v3912, 0.0
      %v4537 = vmax.f32 %v3917, 0.0
      %v4538 = vmax.f32 %v3922, 0.0
      %v4539 = vmax.f32 %v3927, 0.0
      %v4540 = vmax.f32 %v3932, 0.0
      %v4541 = vmax.f32 %v3937, 0.0
      %v4542 = vmax.f32 %v3942, 0.0
      %v4543 = vmax.f32 %v3947, 0.0
      %v4544 = vmax.f32 %v3952, 0.0
      %v4545 = vmax.f32 %v3957, 0.0
      %v4546 = vmax.f32 %v3962, 0.0
      %v4547 = vmax.f32 %v3967, 0.0
      %v4548 = vmax.f32 %v3972, 0.0
      %v4549 = vmax.f32 %v3977, 0.0
      %v4550 = vmax.f32 %v3982, 0.0
      %v4551 = vmax.f32 %v3987, 0.0
      %v4552 = vmax.f32 %v3992, 0.0
      %v4553 = vmax.f32 %v3997, 0.0
      %v4554 = vmax.f32 %v4002, 0.0
      %v4555 = vmax.f32 %v4007, 0.0
      %v4556 = vmax.f32 %v4012, 0.0
      %v4557 = vmax.f32 %v4017, 0.0
      %v4558 = vmax.f32 %v4022, 0.0
      %v4559 = vmax.f32 %v4027, 0.0
      %v4560 = vmax.f32 %v4032, 0.0
      %v4561 = vmax.f32 %v4037, 0.0
      %v4562 = vmax.f32 %v4042, 0.0
      %v4563 = vmax.f32 %v4047, 0.0
      %v4564 = vmax.f32 %v4052, 0.0
      %v4565 = vmax.f32 %v4057, 0.0
      %v4566 = vmax.f32 %v4062, 0.0
      %v4567 = vmax.f32 %v4067, 0.0
      %v4568 = vmax.f32 %v4072, 0.0
      %v4569 = vmax.f32 %v4077, 0.0
      %v4570 = vmax.f32 %v4082, 0.0
      %v4571 = vmax.f32 %v4087, 0.0
      %v4572 = vmax.f32 %v4092, 0.0
      %v4573 = vmax.f32 %v4097, 0.0
      %v4574 = vmax.f32 %v4102, 0.0
      %v4575 = vmax.f32 %v4107, 0.0
      %v4576 = vmax.f32 %v4112, 0.0
      %v4577 = vmax.f32 %v4117, 0.0
      %v4578 = vmax.f32 %v4122, 0.0
      %v4579 = vmax.f32 %v4127, 0.0
      %v4580 = vmax.f32 %v4132, 0.0
      %v4581 = vmax.f32 %v4137, 0.0
      %v4582 = vmax.f32 %v4142, 0.0
      %v4583 = vmax.f32 %v4147, 0.0
      %v4584 = vmax.f32 %v4152, 0.0
      %v4585 = vmax.f32 %v4157, 0.0
      %v4586 = vmax.f32 %v4162, 0.0
      %v4587 = vmax.f32 %v4167, 0.0
      %v4588 = vmax.f32 %v4172, 0.0
      %v4589 = vmax.f32 %v4177, 0.0
      %v4590 = vmax.f32 %v4182, 0.0
      %v4591 = vmax.f32 %v4187, 0.0
      %v4592 = vmax.f32 %v4192, 0.0
      %v4593 = vmax.f32 %v4197, 0.0
      %v4594 = vmax.f32 %v4202, 0.0
      %v4595 = vmax.f32 %v4207, 0.0
      %v4596 = vmax.f32 %v4212, 0.0
      %v4597 = vmax.f32 %v4217, 0.0
      %v4598 = vmax.f32 %v4222, 0.0
      %v4599 = vmax.f32 %v4227, 0.0
      %v4600 = vmax.f32 %v4232, 0.0
      %v4601 = vmax.f32 %v4237, 0.0
      %v4602 = vmax.f32 %v4242, 0.0
      %v4603 = vmax.f32 %v4247, 0.0
      %v4604 = vmax.f32 %v4252, 0.0
      %v4605 = vmax.f32 %v4257, 0.0
      %v4606 = vmax.f32 %v4262, 0.0
      %v4607 = vmax.f32 %v4267, 0.0
      %v4608 = vmax.f32 %v4272, 0.0
      %v4609 = vmax.f32 %v4277, 0.0
      %v4610 = vmax.f32 %v4282, 0.0
      %v4611 = vmax.f32 %v4287, 0.0
      %v4612 = vmax.f32 %v4292, 0.0
      %v4613 = vmax.f32 %v4297, 0.0
      %v4614 = vmax.f32 %v4302, 0.0
      %v4615 = vmax.f32 %v4307, 0.0
      %v4616 = vmax.f32 %v4312, 0.0
      %v4617 = vmax.f32 %v4317, 0.0
      %v4618 = vmax.f32 %v4322, 0.0
      %v4619 = vmax.f32 %v4327, 0.0
      %v4620 = vmax.f32 %v4332, 0.0
      %v4621 = vmax.f32 %v4337, 0.0
      %v4622 = vmax.f32 %v4342, 0.0
      %v4623 = vmax.f32 %v4347, 0.0
      %v4624 = vmax.f32 %v4352, 0.0
      %v4625 = vmax.f32 %v4357, 0.0
      %v4626 = vmax.f32 %v4362, 0.0
      %v4627 = vmax.f32 %v4367, 0.0
      %v4628 = vmax.f32 %v4372, 0.0
      %v4629 = vmax.f32 %v4377, 0.0
      %v4630 = vmax.f32 %v4382, 0.0
      %v4631 = vmax.f32 %v4387, 0.0
      %v4632 = vmax.f32 %v4392, 0.0
      %v4633 = vmax.f32 %v4397, 0.0
      %v4634 = vmax.f32 %v4402, 0.0
      %v4635 = vmax.f32 %v4407, 0.0
      %v4636 = vmax.f32 %v4412, 0.0
      %v4637 = vmax.f32 %v4417, 0.0
      %v4638 = vmax.f32 %v4422, 0.0
      %v4639 = vmax.f32 %v4427, 0.0
      %v4640 = vmax.f32 %v4432, 0.0
      %v4641 = vmax.f32 %v4437, 0.0
      %v4642 = vmax.f32 %v4442, 0.0
      %v4643 = vmax.f32 %v4447, 0.0
      %v4644 = vmax.f32 %v4452, 0.0
      %v4645 = vmax.f32 %v4457, 0.0
      %v4646 = vmax.f32 %v4462, 0.0
      %v4647 = vmax.f32 %v4467, 0.0
      %v4648 = vmax.f32 %v4472, 0.0
      %v4649 = vmax.f32 %v4477, 0.0
      %v4650 = vmax.f32 %v4482, 0.0
      %v4651 = vmax.f32 %v4487, 0.0
      %v4652 = vmax.f32 %v4492, 0.0
      %v4653 = vmax.f32 %v4497, 0.0
      %v4654 = vmax.f32 %v4502, 0.0
      %v4655 = vmax.f32 %v4507, 0.0
      %v4656 = vmax.f32 %v4512, 0.0
      %v4657 = vmax.f32 %v4517, 0.0
      %v4658 = vmax.f32 %v4522, 0.0
      %v4659 = vmax.f32 %v4527, 0.0
      %v4660 = vand.u32 2147483647, %v3892
      %v4661 = vand.u32 2147483647, %v3897
      %v4662 = vand.u32 2147483647, %v3902
      %v4663 = vand.u32 2147483647, %v3907
      %v4664 = vand.u32 2147483647, %v3912
      %v4665 = vand.u32 2147483647, %v3917
      %v4666 = vand.u32 2147483647, %v3922
      %v4667 = vand.u32 2147483647, %v3927
      %v4668 = vand.u32 2147483647, %v3932
      %v4669 = vand.u32 2147483647, %v3937
      %v4670 = vand.u32 2147483647, %v3942
      %v4671 = vand.u32 2147483647, %v3947
      %v4672 = vand.u32 2147483647, %v3952
      %v4673 = vand.u32 2147483647, %v3957
      %v4674 = vand.u32 2147483647, %v3962
      %v4675 = vand.u32 2147483647, %v3967
      %v4676 = vand.u32 2147483647, %v3972
      %v4677 = vand.u32 2147483647, %v3977
      %v4678 = vand.u32 2147483647, %v3982
      %v4679 = vand.u32 2147483647, %v3987
      %v4680 = vand.u32 2147483647, %v3992
      %v4681 = vand.u32 2147483647, %v3997
      %v4682 = vand.u32 2147483647, %v4002
      %v4683 = vand.u32 2147483647, %v4007
      %v4684 = vand.u32 2147483647, %v4012
      %v4685 = vand.u32 2147483647, %v4017
      %v4686 = vand.u32 2147483647, %v4022
      %v4687 = vand.u32 2147483647, %v4027
      %v4688 = vand.u32 2147483647, %v4032
      %v4689 = vand.u32 2147483647, %v4037
      %v4690 = vand.u32 2147483647, %v4042
      %v4691 = vand.u32 2147483647, %v4047
      %v4692 = vand.u32 2147483647, %v4052
      %v4693 = vand.u32 2147483647, %v4057
      %v4694 = vand.u32 2147483647, %v4062
      %v4695 = vand.u32 2147483647, %v4067
      %v4696 = vand.u32 2147483647, %v4072
      %v4697 = vand.u32 2147483647, %v4077
      %v4698 = vand.u32 2147483647, %v4082
      %v4699 = vand.u32 2147483647, %v4087
      %v4700 = vand.u32 2147483647, %v4092
      %v4701 = vand.u32 2147483647, %v4097
      %v4702 = vand.u32 2147483647, %v4102
      %v4703 = vand.u32 2147483647, %v4107
      %v4704 = vand.u32 2147483647, %v4112
      %v4705 = vand.u32 2147483647, %v4117
      %v4706 = vand.u32 2147483647, %v4122
      %v4707 = vand.u32 2147483647, %v4127
      %v4708 = vand.u32 2147483647, %v4132
      %v4709 = vand.u32 2147483647, %v4137
      %v4710 = vand.u32 2147483647, %v4142
      %v4711 = vand.u32 2147483647, %v4147
      %v4712 = vand.u32 2147483647, %v4152
      %v4713 = vand.u32 2147483647, %v4157
      %v4714 = vand.u32 2147483647, %v4162
      %v4715 = vand.u32 2147483647, %v4167
      %v4716 = vand.u32 2147483647, %v4172
      %v4717 = vand.u32 2147483647, %v4177
      %v4718 = vand.u32 2147483647, %v4182
      %v4719 = vand.u32 2147483647, %v4187
      %v4720 = vand.u32 2147483647, %v4192
      %v4721 = vand.u32 2147483647, %v4197
      %v4722 = vand.u32 2147483647, %v4202
      %v4723 = vand.u32 2147483647, %v4207
      %v4724 = vand.u32 2147483647, %v4212
      %v4725 = vand.u32 2147483647, %v4217
      %v4726 = vand.u32 2147483647, %v4222
      %v4727 = vand.u32 2147483647, %v4227
      %v4728 = vand.u32 2147483647, %v4232
      %v4729 = vand.u32 2147483647, %v4237
      %v4730 = vand.u32 2147483647, %v4242
      %v4731 = vand.u32 2147483647, %v4247
      %v4732 = vand.u32 2147483647, %v4252
      %v4733 = vand.u32 2147483647, %v4257
      %v4734 = vand.u32 2147483647, %v4262
      %v4735 = vand.u32 2147483647, %v4267
      %v4736 = vand.u32 2147483647, %v4272
      %v4737 = vand.u32 2147483647, %v4277
      %v4738 = vand.u32 2147483647, %v4282
      %v4739 = vand.u32 2147483647, %v4287
      %v4740 = vand.u32 2147483647, %v4292
      %v4741 = vand.u32 2147483647, %v4297
      %v4742 = vand.u32 2147483647, %v4302
      %v4743 = vand.u32 2147483647, %v4307
      %v4744 = vand.u32 2147483647, %v4312
      %v4745 = vand.u32 2147483647, %v4317
      %v4746 = vand.u32 2147483647, %v4322
      %v4747 = vand.u32 2147483647, %v4327
      %v4748 = vand.u32 2147483647, %v4332
      %v4749 = vand.u32 2147483647, %v4337
      %v4750 = vand.u32 2147483647, %v4342
      %v4751 = vand.u32 2147483647, %v4347
      %v4752 = vand.u32 2147483647, %v4352
      %v4753 = vand.u32 2147483647, %v4357
      %v4754 = vand.u32 2147483647, %v4362
      %v4755 = vand.u32 2147483647, %v4367
      %v4756 = vand.u32 2147483647, %v4372
      %v4757 = vand.u32 2147483647, %v4377
      %v4758 = vand.u32 2147483647, %v4382
      %v4759 = vand.u32 2147483647, %v4387
      %v4760 = vand.u32 2147483647, %v4392
      %v4761 = vand.u32 2147483647, %v4397
      %v4762 = vand.u32 2147483647, %v4402
      %v4763 = vand.u32 2147483647, %v4407
      %v4764 = vand.u32 2147483647, %v4412
      %v4765 = vand.u32 2147483647, %v4417
      %v4766 = vand.u32 2147483647, %v4422
      %v4767 = vand.u32 2147483647, %v4427
      %v4768 = vand.u32 2147483647, %v4432
      %v4769 = vand.u32 2147483647, %v4437
      %v4770 = vand.u32 2147483647, %v4442
      %v4771 = vand.u32 2147483647, %v4447
      %v4772 = vand.u32 2147483647, %v4452
      %v4773 = vand.u32 2147483647, %v4457
      %v4774 = vand.u32 2147483647, %v4462
      %v4775 = vand.u32 2147483647, %v4467
      %v4776 = vand.u32 2147483647, %v4472
      %v4777 = vand.u32 2147483647, %v4477
      %v4778 = vand.u32 2147483647, %v4482
      %v4779 = vand.u32 2147483647, %v4487
      %v4780 = vand.u32 2147483647, %v4492
      %v4781 = vand.u32 2147483647, %v4497
      %v4782 = vand.u32 2147483647, %v4502
      %v4783 = vand.u32 2147483647, %v4507
      %v4784 = vand.u32 2147483647, %v4512
      %v4785 = vand.u32 2147483647, %v4517
      %v4786 = vand.u32 2147483647, %v4522
      %v4787 = vand.u32 2147483647, %v4527
      %v4788 = vsub.f32 0.0, %v4660
      %v4789 = vsub.f32 0.0, %v4661
      %v4790 = vsub.f32 0.0, %v4662
      %v4791 = vsub.f32 0.0, %v4663
      %v4792 = vsub.f32 0.0, %v4664
      %v4793 = vsub.f32 0.0, %v4665
      %v4794 = vsub.f32 0.0, %v4666
      %v4795 = vsub.f32 0.0, %v4667
      %v4796 = vsub.f32 0.0, %v4668
      %v4797 = vsub.f32 0.0, %v4669
      %v4798 = vsub.f32 0.0, %v4670
      %v4799 = vsub.f32 0.0, %v4671
      %v4800 = vsub.f32 0.0, %v4672
      %v4801 = vsub.f32 0.0, %v4673
      %v4802 = vsub.f32 0.0, %v4674
      %v4803 = vsub.f32 0.0, %v4675
      %v4804 = vsub.f32 0.0, %v4676
      %v4805 = vsub.f32 0.0, %v4677
      %v4806 = vsub.f32 0.0, %v4678
      %v4807 = vsub.f32 0.0, %v4679
      %v4808 = vsub.f32 0.0, %v4680
      %v4809 = vsub.f32 0.0, %v4681
      %v4810 = vsub.f32 0.0, %v4682
      %v4811 = vsub.f32 0.0, %v4683
      %v4812 = vsub.f32 0.0, %v4684
      %v4813 = vsub.f32 0.0, %v4685
      %v4814 = vsub.f32 0.0, %v4686
      %v4815 = vsub.f32 0.0, %v4687
      %v4816 = vsub.f32 0.0, %v4688
      %v4817 = vsub.f32 0.0, %v4689
      %v4818 = vsub.f32 0.0, %v4690
      %v4819 = vsub.f32 0.0, %v4691
      %v4820 = vsub.f32 0.0, %v4692
      %v4821 = vsub.f32 0.0, %v4693
      %v4822 = vsub.f32 0.0, %v4694
      %v4823 = vsub.f32 0.0, %v4695
      %v4824 = vsub.f32 0.0, %v4696
      %v4825 = vsub.f32 0.0, %v4697
      %v4826 = vsub.f32 0.0, %v4698
      %v4827 = vsub.f32 0.0, %v4699
      %v4828 = vsub.f32 0.0, %v4700
      %v4829 = vsub.f32 0.0, %v4701
      %v4830 = vsub.f32 0.0, %v4702
      %v4831 = vsub.f32 0.0, %v4703
      %v4832 = vsub.f32 0.0, %v4704
      %v4833 = vsub.f32 0.0, %v4705
      %v4834 = vsub.f32 0.0, %v4706
      %v4835 = vsub.f32 0.0, %v4707
      %v4836 = vsub.f32 0.0, %v4708
      %v4837 = vsub.f32 0.0, %v4709
      %v4838 = vsub.f32 0.0, %v4710
      %v4839 = vsub.f32 0.0, %v4711
      %v4840 = vsub.f32 0.0, %v4712
      %v4841 = vsub.f32 0.0, %v4713
      %v4842 = vsub.f32 0.0, %v4714
      %v4843 = vsub.f32 0.0, %v4715
      %v4844 = vsub.f32 0.0, %v4716
      %v4845 = vsub.f32 0.0, %v4717
      %v4846 = vsub.f32 0.0, %v4718
      %v4847 = vsub.f32 0.0, %v4719
      %v4848 = vsub.f32 0.0, %v4720
      %v4849 = vsub.f32 0.0, %v4721
      %v4850 = vsub.f32 0.0, %v4722
      %v4851 = vsub.f32 0.0, %v4723
      %v4852 = vsub.f32 0.0, %v4724
      %v4853 = vsub.f32 0.0, %v4725
      %v4854 = vsub.f32 0.0, %v4726
      %v4855 = vsub.f32 0.0, %v4727
      %v4856 = vsub.f32 0.0, %v4728
      %v4857 = vsub.f32 0.0, %v4729
      %v4858 = vsub.f32 0.0, %v4730
      %v4859 = vsub.f32 0.0, %v4731
      %v4860 = vsub.f32 0.0, %v4732
      %v4861 = vsub.f32 0.0, %v4733
      %v4862 = vsub.f32 0.0, %v4734
      %v4863 = vsub.f32 0.0, %v4735
      %v4864 = vsub.f32 0.0, %v4736
      %v4865 = vsub.f32 0.0, %v4737
      %v4866 = vsub.f32 0.0, %v4738
      %v4867 = vsub.f32 0.0, %v4739
      %v4868 = vsub.f32 0.0, %v4740
      %v4869 = vsub.f32 0.0, %v4741
      %v4870 = vsub.f32 0.0, %v4742
      %v4871 = vsub.f32 0.0, %v4743
      %v4872 = vsub.f32 0.0, %v4744
      %v4873 = vsub.f32 0.0, %v4745
      %v4874 = vsub.f32 0.0, %v4746
      %v4875 = vsub.f32 0.0, %v4747
      %v4876 = vsub.f32 0.0, %v4748
      %v4877 = vsub.f32 0.0, %v4749
      %v4878 = vsub.f32 0.0, %v4750
      %v4879 = vsub.f32 0.0, %v4751
      %v4880 = vsub.f32 0.0, %v4752
      %v4881 = vsub.f32 0.0, %v4753
      %v4882 = vsub.f32 0.0, %v4754
      %v4883 = vsub.f32 0.0, %v4755
      %v4884 = vsub.f32 0.0, %v4756
      %v4885 = vsub.f32 0.0, %v4757
      %v4886 = vsub.f32 0.0, %v4758
      %v4887 = vsub.f32 0.0, %v4759
      %v4888 = vsub.f32 0.0, %v4760
      %v4889 = vsub.f32 0.0, %v4761
      %v4890 = vsub.f32 0.0, %v4762
      %v4891 = vsub.f32 0.0, %v4763
      %v4892 = vsub.f32 0.0, %v4764
      %v4893 = vsub.f32 0.0, %v4765
      %v4894 = vsub.f32 0.0, %v4766
      %v4895 = vsub.f32 0.0, %v4767
      %v4896 = vsub.f32 0.0, %v4768
      %v4897 = vsub.f32 0.0, %v4769
      %v4898 = vsub.f32 0.0, %v4770
      %v4899 = vsub.f32 0.0, %v4771
      %v4900 = vsub.f32 0.0, %v4772
      %v4901 = vsub.f32 0.0, %v4773
      %v4902 = vsub.f32 0.0, %v4774
      %v4903 = vsub.f32 0.0, %v4775
      %v4904 = vsub.f32 0.0, %v4776
      %v4905 = vsub.f32 0.0, %v4777
      %v4906 = vsub.f32 0.0, %v4778
      %v4907 = vsub.f32 0.0, %v4779
      %v4908 = vsub.f32 0.0, %v4780
      %v4909 = vsub.f32 0.0, %v4781
      %v4910 = vsub.f32 0.0, %v4782
      %v4911 = vsub.f32 0.0, %v4783
      %v4912 = vsub.f32 0.0, %v4784
      %v4913 = vsub.f32 0.0, %v4785
      %v4914 = vsub.f32 0.0, %v4786
      %v4915 = vsub.f32 0.0, %v4787
      %v4916 = vmul.f32 %v4788, 1.442695
      %v4917 = vpow.pop %v4916
      %v4918 = vmul.f32 %v4789, 1.442695
      %v4919 = vpow.pop %v4918
      %v4920 = vmul.f32 %v4790, 1.442695
      %v4921 = vpow.pop %v4920
      %v4922 = vmul.f32 %v4791, 1.442695
      %v4923 = vpow.pop %v4922
      %v4924 = vmul.f32 %v4792, 1.442695
      %v4925 = vpow.pop %v4924
      %v4926 = vmul.f32 %v4793, 1.442695
      %v4927 = vpow.pop %v4926
      %v4928 = vmul.f32 %v4794, 1.442695
      %v4929 = vpow.pop %v4928
      %v4930 = vmul.f32 %v4795, 1.442695
      %v4931 = vpow.pop %v4930
      %v4932 = vmul.f32 %v4796, 1.442695
      %v4933 = vpow.pop %v4932
      %v4934 = vmul.f32 %v4797, 1.442695
      %v4935 = vpow.pop %v4934
      %v4936 = vmul.f32 %v4798, 1.442695
      %v4937 = vpow.pop %v4936
      %v4938 = vmul.f32 %v4799, 1.442695
      %v4939 = vpow.pop %v4938
      %v4940 = vmul.f32 %v4800, 1.442695
      %v4941 = vpow.pop %v4940
      %v4942 = vmul.f32 %v4801, 1.442695
      %v4943 = vpow.pop %v4942
      %v4944 = vmul.f32 %v4802, 1.442695
      %v4945 = vpow.pop %v4944
      %v4946 = vmul.f32 %v4803, 1.442695
      %v4947 = vpow.pop %v4946
      %v4948 = vmul.f32 %v4804, 1.442695
      %v4949 = vpow.pop %v4948
      %v4950 = vmul.f32 %v4805, 1.442695
      %v4951 = vpow.pop %v4950
      %v4952 = vmul.f32 %v4806, 1.442695
      %v4953 = vpow.pop %v4952
      %v4954 = vmul.f32 %v4807, 1.442695
      %v4955 = vpow.pop %v4954
      %v4956 = vmul.f32 %v4808, 1.442695
      %v4957 = vpow.pop %v4956
      %v4958 = vmul.f32 %v4809, 1.442695
      %v4959 = vpow.pop %v4958
      %v4960 = vmul.f32 %v4810, 1.442695
      %v4961 = vpow.pop %v4960
      %v4962 = vmul.f32 %v4811, 1.442695
      %v4963 = vpow.pop %v4962
      %v4964 = vmul.f32 %v4812, 1.442695
      %v4965 = vpow.pop %v4964
      %v4966 = vmul.f32 %v4813, 1.442695
      %v4967 = vpow.pop %v4966
      %v4968 = vmul.f32 %v4814, 1.442695
      %v4969 = vpow.pop %v4968
      %v4970 = vmul.f32 %v4815, 1.442695
      %v4971 = vpow.pop %v4970
      %v4972 = vmul.f32 %v4816, 1.442695
      %v4973 = vpow.pop %v4972
      %v4974 = vmul.f32 %v4817, 1.442695
      %v4975 = vpow.pop %v4974
      %v4976 = vmul.f32 %v4818, 1.442695
      %v4977 = vpow.pop %v4976
      %v4978 = vmul.f32 %v4819, 1.442695
      %v4979 = vpow.pop %v4978
      %v4980 = vmul.f32 %v4820, 1.442695
      %v4981 = vpow.pop %v4980
      %v4982 = vmul.f32 %v4821, 1.442695
      %v4983 = vpow.pop %v4982
      %v4984 = vmul.f32 %v4822, 1.442695
      %v4985 = vpow.pop %v4984
      %v4986 = vmul.f32 %v4823, 1.442695
      %v4987 = vpow.pop %v4986
      %v4988 = vmul.f32 %v4824, 1.442695
      %v4989 = vpow.pop %v4988
      %v4990 = vmul.f32 %v4825, 1.442695
      %v4991 = vpow.pop %v4990
      %v4992 = vmul.f32 %v4826, 1.442695
      %v4993 = vpow.pop %v4992
      %v4994 = vmul.f32 %v4827, 1.442695
      %v4995 = vpow.pop %v4994
      %v4996 = vmul.f32 %v4828, 1.442695
      %v4997 = vpow.pop %v4996
      %v4998 = vmul.f32 %v4829, 1.442695
      %v4999 = vpow.pop %v4998
      %v5000 = vmul.f32 %v4830, 1.442695
      %v5001 = vpow.pop %v5000
      %v5002 = vmul.f32 %v4831, 1.442695
      %v5003 = vpow.pop %v5002
      %v5004 = vmul.f32 %v4832, 1.442695
      %v5005 = vpow.pop %v5004
      %v5006 = vmul.f32 %v4833, 1.442695
      %v5007 = vpow.pop %v5006
      %v5008 = vmul.f32 %v4834, 1.442695
      %v5009 = vpow.pop %v5008
      %v5010 = vmul.f32 %v4835, 1.442695
      %v5011 = vpow.pop %v5010
      %v5012 = vmul.f32 %v4836, 1.442695
      %v5013 = vpow.pop %v5012
      %v5014 = vmul.f32 %v4837, 1.442695
      %v5015 = vpow.pop %v5014
      %v5016 = vmul.f32 %v4838, 1.442695
      %v5017 = vpow.pop %v5016
      %v5018 = vmul.f32 %v4839, 1.442695
      %v5019 = vpow.pop %v5018
      %v5020 = vmul.f32 %v4840, 1.442695
      %v5021 = vpow.pop %v5020
      %v5022 = vmul.f32 %v4841, 1.442695
      %v5023 = vpow.pop %v5022
      %v5024 = vmul.f32 %v4842, 1.442695
      %v5025 = vpow.pop %v5024
      %v5026 = vmul.f32 %v4843, 1.442695
      %v5027 = vpow.pop %v5026
      %v5028 = vmul.f32 %v4844, 1.442695
      %v5029 = vpow.pop %v5028
      %v5030 = vmul.f32 %v4845, 1.442695
      %v5031 = vpow.pop %v5030
      %v5032 = vmul.f32 %v4846, 1.442695
      %v5033 = vpow.pop %v5032
      %v5034 = vmul.f32 %v4847, 1.442695
      %v5035 = vpow.pop %v5034
      %v5036 = vmul.f32 %v4848, 1.442695
      %v5037 = vpow.pop %v5036
      %v5038 = vmul.f32 %v4849, 1.442695
      %v5039 = vpow.pop %v5038
      %v5040 = vmul.f32 %v4850, 1.442695
      %v5041 = vpow.pop %v5040
      %v5042 = vmul.f32 %v4851, 1.442695
      %v5043 = vpow.pop %v5042
      %v5044 = vmul.f32 %v4852, 1.442695
      %v5045 = vpow.pop %v5044
      %v5046 = vmul.f32 %v4853, 1.442695
      %v5047 = vpow.pop %v5046
      %v5048 = vmul.f32 %v4854, 1.442695
      %v5049 = vpow.pop %v5048
      %v5050 = vmul.f32 %v4855, 1.442695
      %v5051 = vpow.pop %v5050
      %v5052 = vmul.f32 %v4856, 1.442695
      %v5053 = vpow.pop %v5052
      %v5054 = vmul.f32 %v4857, 1.442695
      %v5055 = vpow.pop %v5054
      %v5056 = vmul.f32 %v4858, 1.442695
      %v5057 = vpow.pop %v5056
      %v5058 = vmul.f32 %v4859, 1.442695
      %v5059 = vpow.pop %v5058
      %v5060 = vmul.f32 %v4860, 1.442695
      %v5061 = vpow.pop %v5060
      %v5062 = vmul.f32 %v4861, 1.442695
      %v5063 = vpow.pop %v5062
      %v5064 = vmul.f32 %v4862, 1.442695
      %v5065 = vpow.pop %v5064
      %v5066 = vmul.f32 %v4863, 1.442695
      %v5067 = vpow.pop %v5066
      %v5068 = vmul.f32 %v4864, 1.442695
      %v5069 = vpow.pop %v5068
      %v5070 = vmul.f32 %v4865, 1.442695
      %v5071 = vpow.pop %v5070
      %v5072 = vmul.f32 %v4866, 1.442695
      %v5073 = vpow.pop %v5072
      %v5074 = vmul.f32 %v4867, 1.442695
      %v5075 = vpow.pop %v5074
      %v5076 = vmul.f32 %v4868, 1.442695
      %v5077 = vpow.pop %v5076
      %v5078 = vmul.f32 %v4869, 1.442695
      %v5079 = vpow.pop %v5078
      %v5080 = vmul.f32 %v4870, 1.442695
      %v5081 = vpow.pop %v5080
      %v5082 = vmul.f32 %v4871, 1.442695
      %v5083 = vpow.pop %v5082
      %v5084 = vmul.f32 %v4872, 1.442695
      %v5085 = vpow.pop %v5084
      %v5086 = vmul.f32 %v4873, 1.442695
      %v5087 = vpow.pop %v5086
      %v5088 = vmul.f32 %v4874, 1.442695
      %v5089 = vpow.pop %v5088
      %v5090 = vmul.f32 %v4875, 1.442695
      %v5091 = vpow.pop %v5090
      %v5092 = vmul.f32 %v4876, 1.442695
      %v5093 = vpow.pop %v5092
      %v5094 = vmul.f32 %v4877, 1.442695
      %v5095 = vpow.pop %v5094
      %v5096 = vmul.f32 %v4878, 1.442695
      %v5097 = vpow.pop %v5096
      %v5098 = vmul.f32 %v4879, 1.442695
      %v5099 = vpow.pop %v5098
      %v5100 = vmul.f32 %v4880, 1.442695
      %v5101 = vpow.pop %v5100
      %v5102 = vmul.f32 %v4881, 1.442695
      %v5103 = vpow.pop %v5102
      %v5104 = vmul.f32 %v4882, 1.442695
      %v5105 = vpow.pop %v5104
      %v5106 = vmul.f32 %v4883, 1.442695
      %v5107 = vpow.pop %v5106
      %v5108 = vmul.f32 %v4884, 1.442695
      %v5109 = vpow.pop %v5108
      %v5110 = vmul.f32 %v4885, 1.442695
      %v5111 = vpow.pop %v5110
      %v5112 = vmul.f32 %v4886, 1.442695
      %v5113 = vpow.pop %v5112
      %v5114 = vmul.f32 %v4887, 1.442695
      %v5115 = vpow.pop %v5114
      %v5116 = vmul.f32 %v4888, 1.442695
      %v5117 = vpow.pop %v5116
      %v5118 = vmul.f32 %v4889, 1.442695
      %v5119 = vpow.pop %v5118
      %v5120 = vmul.f32 %v4890, 1.442695
      %v5121 = vpow.pop %v5120
      %v5122 = vmul.f32 %v4891, 1.442695
      %v5123 = vpow.pop %v5122
      %v5124 = vmul.f32 %v4892, 1.442695
      %v5125 = vpow.pop %v5124
      %v5126 = vmul.f32 %v4893, 1.442695
      %v5127 = vpow.pop %v5126
      %v5128 = vmul.f32 %v4894, 1.442695
      %v5129 = vpow.pop %v5128
      %v5130 = vmul.f32 %v4895, 1.442695
      %v5131 = vpow.pop %v5130
      %v5132 = vmul.f32 %v4896, 1.442695
      %v5133 = vpow.pop %v5132
      %v5134 = vmul.f32 %v4897, 1.442695
      %v5135 = vpow.pop %v5134
      %v5136 = vmul.f32 %v4898, 1.442695
      %v5137 = vpow.pop %v5136
      %v5138 = vmul.f32 %v4899, 1.442695
      %v5139 = vpow.pop %v5138
      %v5140 = vmul.f32 %v4900, 1.442695
      %v5141 = vpow.pop %v5140
      %v5142 = vmul.f32 %v4901, 1.442695
      %v5143 = vpow.pop %v5142
      %v5144 = vmul.f32 %v4902, 1.442695
      %v5145 = vpow.pop %v5144
      %v5146 = vmul.f32 %v4903, 1.442695
      %v5147 = vpow.pop %v5146
      %v5148 = vmul.f32 %v4904, 1.442695
      %v5149 = vpow.pop %v5148
      %v5150 = vmul.f32 %v4905, 1.442695
      %v5151 = vpow.pop %v5150
      %v5152 = vmul.f32 %v4906, 1.442695
      %v5153 = vpow.pop %v5152
      %v5154 = vmul.f32 %v4907, 1.442695
      %v5155 = vpow.pop %v5154
      %v5156 = vmul.f32 %v4908, 1.442695
      %v5157 = vpow.pop %v5156
      %v5158 = vmul.f32 %v4909, 1.442695
      %v5159 = vpow.pop %v5158
      %v5160 = vmul.f32 %v4910, 1.442695
      %v5161 = vpow.pop %v5160
      %v5162 = vmul.f32 %v4911, 1.442695
      %v5163 = vpow.pop %v5162
      %v5164 = vmul.f32 %v4912, 1.442695
      %v5165 = vpow.pop %v5164
      %v5166 = vmul.f32 %v4913, 1.442695
      %v5167 = vpow.pop %v5166
      %v5168 = vmul.f32 %v4914, 1.442695
      %v5169 = vpow.pop %v5168
      %v5170 = vmul.f32 %v4915, 1.442695
      %v5171 = vpow.pop %v5170
      %v5172 = vadd.f32 %v4917, 1.0
      %v5173 = vlog2.pop %v5172
      %v5174 = vmul.f32 %v5173, 0.6931472
      %v5175 = vmul.f32 -0.5, %v4917
      %v5176 = vadd.f32 %v5175, 1.0
      %v5177 = vmul.f32 %v5176, %v4917
      %v5178 = vand.u32 2147483647, %v4917
      %vm5179 = vcmp.lt.f32.partialorder %v5178, 0.0004427343
      %v5180 = vsel %vm5179, %v5177, %v5174
      %v5181 = vadd.f32 %v4919, 1.0
      %v5182 = vlog2.pop %v5181
      %v5183 = vmul.f32 %v5182, 0.6931472
      %v5184 = vmul.f32 -0.5, %v4919
      %v5185 = vadd.f32 %v5184, 1.0
      %v5186 = vmul.f32 %v5185, %v4919
      %v5187 = vand.u32 2147483647, %v4919
      %vm5188 = vcmp.lt.f32.partialorder %v5187, 0.0004427343
      %v5189 = vsel %vm5188, %v5186, %v5183
      %v5190 = vadd.f32 %v4921, 1.0
      %v5191 = vlog2.pop %v5190
      %v5192 = vmul.f32 %v5191, 0.6931472
      %v5193 = vmul.f32 -0.5, %v4921
      %v5194 = vadd.f32 %v5193, 1.0
      %v5195 = vmul.f32 %v5194, %v4921
      %v5196 = vand.u32 2147483647, %v4921
      %vm5197 = vcmp.lt.f32.partialorder %v5196, 0.0004427343
      %v5198 = vsel %vm5197, %v5195, %v5192
      %v5199 = vadd.f32 %v4923, 1.0
      %v5200 = vlog2.pop %v5199
      %v5201 = vmul.f32 %v5200, 0.6931472
      %v5202 = vmul.f32 -0.5, %v4923
      %v5203 = vadd.f32 %v5202, 1.0
      %v5204 = vmul.f32 %v5203, %v4923
      %v5205 = vand.u32 2147483647, %v4923
      %vm5206 = vcmp.lt.f32.partialorder %v5205, 0.0004427343
      %v5207 = vsel %vm5206, %v5204, %v5201
      %v5208 = vadd.f32 %v4925, 1.0
      %v5209 = vlog2.pop %v5208
      %v5210 = vmul.f32 %v5209, 0.6931472
      %v5211 = vmul.f32 -0.5, %v4925
      %v5212 = vadd.f32 %v5211, 1.0
      %v5213 = vmul.f32 %v5212, %v4925
      %v5214 = vand.u32 2147483647, %v4925
      %vm5215 = vcmp.lt.f32.partialorder %v5214, 0.0004427343
      %v5216 = vsel %vm5215, %v5213, %v5210
      %v5217 = vadd.f32 %v4927, 1.0
      %v5218 = vlog2.pop %v5217
      %v5219 = vmul.f32 %v5218, 0.6931472
      %v5220 = vmul.f32 -0.5, %v4927
      %v5221 = vadd.f32 %v5220, 1.0
      %v5222 = vmul.f32 %v5221, %v4927
      %v5223 = vand.u32 2147483647, %v4927
      %vm5224 = vcmp.lt.f32.partialorder %v5223, 0.0004427343
      %v5225 = vsel %vm5224, %v5222, %v5219
      %v5226 = vadd.f32 %v4929, 1.0
      %v5227 = vlog2.pop %v5226
      %v5228 = vmul.f32 %v5227, 0.6931472
      %v5229 = vmul.f32 -0.5, %v4929
      %v5230 = vadd.f32 %v5229, 1.0
      %v5231 = vmul.f32 %v5230, %v4929
      %v5232 = vand.u32 2147483647, %v4929
      %vm5233 = vcmp.lt.f32.partialorder %v5232, 0.0004427343
      %v5234 = vsel %vm5233, %v5231, %v5228
      %v5235 = vadd.f32 %v4931, 1.0
      %v5236 = vlog2.pop %v5235
      %v5237 = vmul.f32 %v5236, 0.6931472
      %v5238 = vmul.f32 -0.5, %v4931
      %v5239 = vadd.f32 %v5238, 1.0
      %v5240 = vmul.f32 %v5239, %v4931
      %v5241 = vand.u32 2147483647, %v4931
      %vm5242 = vcmp.lt.f32.partialorder %v5241, 0.0004427343
      %v5243 = vsel %vm5242, %v5240, %v5237
      %v5244 = vadd.f32 %v4933, 1.0
      %v5245 = vlog2.pop %v5244
      %v5246 = vmul.f32 %v5245, 0.6931472
      %v5247 = vmul.f32 -0.5, %v4933
      %v5248 = vadd.f32 %v5247, 1.0
      %v5249 = vmul.f32 %v5248, %v4933
      %v5250 = vand.u32 2147483647, %v4933
      %vm5251 = vcmp.lt.f32.partialorder %v5250, 0.0004427343
      %v5252 = vsel %vm5251, %v5249, %v5246
      %v5253 = vadd.f32 %v4935, 1.0
      %v5254 = vlog2.pop %v5253
      %v5255 = vmul.f32 %v5254, 0.6931472
      %v5256 = vmul.f32 -0.5, %v4935
      %v5257 = vadd.f32 %v5256, 1.0
      %v5258 = vmul.f32 %v5257, %v4935
      %v5259 = vand.u32 2147483647, %v4935
      %vm5260 = vcmp.lt.f32.partialorder %v5259, 0.0004427343
      %v5261 = vsel %vm5260, %v5258, %v5255
      %v5262 = vadd.f32 %v4937, 1.0
      %v5263 = vlog2.pop %v5262
      %v5264 = vmul.f32 %v5263, 0.6931472
      %v5265 = vmul.f32 -0.5, %v4937
      %v5266 = vadd.f32 %v5265, 1.0
      %v5267 = vmul.f32 %v5266, %v4937
      %v5268 = vand.u32 2147483647, %v4937
      %vm5269 = vcmp.lt.f32.partialorder %v5268, 0.0004427343
      %v5270 = vsel %vm5269, %v5267, %v5264
      %v5271 = vadd.f32 %v4939, 1.0
      %v5272 = vlog2.pop %v5271
      %v5273 = vmul.f32 %v5272, 0.6931472
      %v5274 = vmul.f32 -0.5, %v4939
      %v5275 = vadd.f32 %v5274, 1.0
      %v5276 = vmul.f32 %v5275, %v4939
      %v5277 = vand.u32 2147483647, %v4939
      %vm5278 = vcmp.lt.f32.partialorder %v5277, 0.0004427343
      %v5279 = vsel %vm5278, %v5276, %v5273
      %v5280 = vadd.f32 %v4941, 1.0
      %v5281 = vlog2.pop %v5280
      %v5282 = vmul.f32 %v5281, 0.6931472
      %v5283 = vmul.f32 -0.5, %v4941
      %v5284 = vadd.f32 %v5283, 1.0
      %v5285 = vmul.f32 %v5284, %v4941
      %v5286 = vand.u32 2147483647, %v4941
      %vm5287 = vcmp.lt.f32.partialorder %v5286, 0.0004427343
      %v5288 = vsel %vm5287, %v5285, %v5282
      %v5289 = vadd.f32 %v4943, 1.0
      %v5290 = vlog2.pop %v5289
      %v5291 = vmul.f32 %v5290, 0.6931472
      %v5292 = vmul.f32 -0.5, %v4943
      %v5293 = vadd.f32 %v5292, 1.0
      %v5294 = vmul.f32 %v5293, %v4943
      %v5295 = vand.u32 2147483647, %v4943
      %vm5296 = vcmp.lt.f32.partialorder %v5295, 0.0004427343
      %v5297 = vsel %vm5296, %v5294, %v5291
      %v5298 = vadd.f32 %v4945, 1.0
      %v5299 = vlog2.pop %v5298
      %v5300 = vmul.f32 %v5299, 0.6931472
      %v5301 = vmul.f32 -0.5, %v4945
      %v5302 = vadd.f32 %v5301, 1.0
      %v5303 = vmul.f32 %v5302, %v4945
      %v5304 = vand.u32 2147483647, %v4945
      %vm5305 = vcmp.lt.f32.partialorder %v5304, 0.0004427343
      %v5306 = vsel %vm5305, %v5303, %v5300
      %v5307 = vadd.f32 %v4947, 1.0
      %v5308 = vlog2.pop %v5307
      %v5309 = vmul.f32 %v5308, 0.6931472
      %v5310 = vmul.f32 -0.5, %v4947
      %v5311 = vadd.f32 %v5310, 1.0
      %v5312 = vmul.f32 %v5311, %v4947
      %v5313 = vand.u32 2147483647, %v4947
      %vm5314 = vcmp.lt.f32.partialorder %v5313, 0.0004427343
      %v5315 = vsel %vm5314, %v5312, %v5309
      %v5316 = vadd.f32 %v4949, 1.0
      %v5317 = vlog2.pop %v5316
      %v5318 = vmul.f32 %v5317, 0.6931472
      %v5319 = vmul.f32 -0.5, %v4949
      %v5320 = vadd.f32 %v5319, 1.0
      %v5321 = vmul.f32 %v5320, %v4949
      %v5322 = vand.u32 2147483647, %v4949
      %vm5323 = vcmp.lt.f32.partialorder %v5322, 0.0004427343
      %v5324 = vsel %vm5323, %v5321, %v5318
      %v5325 = vadd.f32 %v4951, 1.0
      %v5326 = vlog2.pop %v5325
      %v5327 = vmul.f32 %v5326, 0.6931472
      %v5328 = vmul.f32 -0.5, %v4951
      %v5329 = vadd.f32 %v5328, 1.0
      %v5330 = vmul.f32 %v5329, %v4951
      %v5331 = vand.u32 2147483647, %v4951
      %vm5332 = vcmp.lt.f32.partialorder %v5331, 0.0004427343
      %v5333 = vsel %vm5332, %v5330, %v5327
      %v5334 = vadd.f32 %v4953, 1.0
      %v5335 = vlog2.pop %v5334
      %v5336 = vmul.f32 %v5335, 0.6931472
      %v5337 = vmul.f32 -0.5, %v4953
      %v5338 = vadd.f32 %v5337, 1.0
      %v5339 = vmul.f32 %v5338, %v4953
      %v5340 = vand.u32 2147483647, %v4953
      %vm5341 = vcmp.lt.f32.partialorder %v5340, 0.0004427343
      %v5342 = vsel %vm5341, %v5339, %v5336
      %v5343 = vadd.f32 %v4955, 1.0
      %v5344 = vlog2.pop %v5343
      %v5345 = vmul.f32 %v5344, 0.6931472
      %v5346 = vmul.f32 -0.5, %v4955
      %v5347 = vadd.f32 %v5346, 1.0
      %v5348 = vmul.f32 %v5347, %v4955
      %v5349 = vand.u32 2147483647, %v4955
      %vm5350 = vcmp.lt.f32.partialorder %v5349, 0.0004427343
      %v5351 = vsel %vm5350, %v5348, %v5345
      %v5352 = vadd.f32 %v4957, 1.0
      %v5353 = vlog2.pop %v5352
      %v5354 = vmul.f32 %v5353, 0.6931472
      %v5355 = vmul.f32 -0.5, %v4957
      %v5356 = vadd.f32 %v5355, 1.0
      %v5357 = vmul.f32 %v5356, %v4957
      %v5358 = vand.u32 2147483647, %v4957
      %vm5359 = vcmp.lt.f32.partialorder %v5358, 0.0004427343
      %v5360 = vsel %vm5359, %v5357, %v5354
      %v5361 = vadd.f32 %v4959, 1.0
      %v5362 = vlog2.pop %v5361
      %v5363 = vmul.f32 %v5362, 0.6931472
      %v5364 = vmul.f32 -0.5, %v4959
      %v5365 = vadd.f32 %v5364, 1.0
      %v5366 = vmul.f32 %v5365, %v4959
      %v5367 = vand.u32 2147483647, %v4959
      %vm5368 = vcmp.lt.f32.partialorder %v5367, 0.0004427343
      %v5369 = vsel %vm5368, %v5366, %v5363
      %v5370 = vadd.f32 %v4961, 1.0
      %v5371 = vlog2.pop %v5370
      %v5372 = vmul.f32 %v5371, 0.6931472
      %v5373 = vmul.f32 -0.5, %v4961
      %v5374 = vadd.f32 %v5373, 1.0
      %v5375 = vmul.f32 %v5374, %v4961
      %v5376 = vand.u32 2147483647, %v4961
      %vm5377 = vcmp.lt.f32.partialorder %v5376, 0.0004427343
      %v5378 = vsel %vm5377, %v5375, %v5372
      %v5379 = vadd.f32 %v4963, 1.0
      %v5380 = vlog2.pop %v5379
      %v5381 = vmul.f32 %v5380, 0.6931472
      %v5382 = vmul.f32 -0.5, %v4963
      %v5383 = vadd.f32 %v5382, 1.0
      %v5384 = vmul.f32 %v5383, %v4963
      %v5385 = vand.u32 2147483647, %v4963
      %vm5386 = vcmp.lt.f32.partialorder %v5385, 0.0004427343
      %v5387 = vsel %vm5386, %v5384, %v5381
      %v5388 = vadd.f32 %v4965, 1.0
      %v5389 = vlog2.pop %v5388
      %v5390 = vmul.f32 %v5389, 0.6931472
      %v5391 = vmul.f32 -0.5, %v4965
      %v5392 = vadd.f32 %v5391, 1.0
      %v5393 = vmul.f32 %v5392, %v4965
      %v5394 = vand.u32 2147483647, %v4965
      %vm5395 = vcmp.lt.f32.partialorder %v5394, 0.0004427343
      %v5396 = vsel %vm5395, %v5393, %v5390
      %v5397 = vadd.f32 %v4967, 1.0
      %v5398 = vlog2.pop %v5397
      %v5399 = vmul.f32 %v5398, 0.6931472
      %v5400 = vmul.f32 -0.5, %v4967
      %v5401 = vadd.f32 %v5400, 1.0
      %v5402 = vmul.f32 %v5401, %v4967
      %v5403 = vand.u32 2147483647, %v4967
      %vm5404 = vcmp.lt.f32.partialorder %v5403, 0.0004427343
      %v5405 = vsel %vm5404, %v5402, %v5399
      %v5406 = vadd.f32 %v4969, 1.0
      %v5407 = vlog2.pop %v5406
      %v5408 = vmul.f32 %v5407, 0.6931472
      %v5409 = vmul.f32 -0.5, %v4969
      %v5410 = vadd.f32 %v5409, 1.0
      %v5411 = vmul.f32 %v5410, %v4969
      %v5412 = vand.u32 2147483647, %v4969
      %vm5413 = vcmp.lt.f32.partialorder %v5412, 0.0004427343
      %v5414 = vsel %vm5413, %v5411, %v5408
      %v5415 = vadd.f32 %v4971, 1.0
      %v5416 = vlog2.pop %v5415
      %v5417 = vmul.f32 %v5416, 0.6931472
      %v5418 = vmul.f32 -0.5, %v4971
      %v5419 = vadd.f32 %v5418, 1.0
      %v5420 = vmul.f32 %v5419, %v4971
      %v5421 = vand.u32 2147483647, %v4971
      %vm5422 = vcmp.lt.f32.partialorder %v5421, 0.0004427343
      %v5423 = vsel %vm5422, %v5420, %v5417
      %v5424 = vadd.f32 %v4973, 1.0
      %v5425 = vlog2.pop %v5424
      %v5426 = vmul.f32 %v5425, 0.6931472
      %v5427 = vmul.f32 -0.5, %v4973
      %v5428 = vadd.f32 %v5427, 1.0
      %v5429 = vmul.f32 %v5428, %v4973
      %v5430 = vand.u32 2147483647, %v4973
      %vm5431 = vcmp.lt.f32.partialorder %v5430, 0.0004427343
      %v5432 = vsel %vm5431, %v5429, %v5426
      %v5433 = vadd.f32 %v4975, 1.0
      %v5434 = vlog2.pop %v5433
      %v5435 = vmul.f32 %v5434, 0.6931472
      %v5436 = vmul.f32 -0.5, %v4975
      %v5437 = vadd.f32 %v5436, 1.0
      %v5438 = vmul.f32 %v5437, %v4975
      %v5439 = vand.u32 2147483647, %v4975
      %vm5440 = vcmp.lt.f32.partialorder %v5439, 0.0004427343
      %v5441 = vsel %vm5440, %v5438, %v5435
      %v5442 = vadd.f32 %v4977, 1.0
      %v5443 = vlog2.pop %v5442
      %v5444 = vmul.f32 %v5443, 0.6931472
      %v5445 = vmul.f32 -0.5, %v4977
      %v5446 = vadd.f32 %v5445, 1.0
      %v5447 = vmul.f32 %v5446, %v4977
      %v5448 = vand.u32 2147483647, %v4977
      %vm5449 = vcmp.lt.f32.partialorder %v5448, 0.0004427343
      %v5450 = vsel %vm5449, %v5447, %v5444
      %v5451 = vadd.f32 %v4979, 1.0
      %v5452 = vlog2.pop %v5451
      %v5453 = vmul.f32 %v5452, 0.6931472
      %v5454 = vmul.f32 -0.5, %v4979
      %v5455 = vadd.f32 %v5454, 1.0
      %v5456 = vmul.f32 %v5455, %v4979
      %v5457 = vand.u32 2147483647, %v4979
      %vm5458 = vcmp.lt.f32.partialorder %v5457, 0.0004427343
      %v5459 = vsel %vm5458, %v5456, %v5453
      %v5460 = vadd.f32 %v4981, 1.0
      %v5461 = vlog2.pop %v5460
      %v5462 = vmul.f32 %v5461, 0.6931472
      %v5463 = vmul.f32 -0.5, %v4981
      %v5464 = vadd.f32 %v5463, 1.0
      %v5465 = vmul.f32 %v5464, %v4981
      %v5466 = vand.u32 2147483647, %v4981
      %vm5467 = vcmp.lt.f32.partialorder %v5466, 0.0004427343
      %v5468 = vsel %vm5467, %v5465, %v5462
      %v5469 = vadd.f32 %v4983, 1.0
      %v5470 = vlog2.pop %v5469
      %v5471 = vmul.f32 %v5470, 0.6931472
      %v5472 = vmul.f32 -0.5, %v4983
      %v5473 = vadd.f32 %v5472, 1.0
      %v5474 = vmul.f32 %v5473, %v4983
      %v5475 = vand.u32 2147483647, %v4983
      %vm5476 = vcmp.lt.f32.partialorder %v5475, 0.0004427343
      %v5477 = vsel %vm5476, %v5474, %v5471
      %v5478 = vadd.f32 %v4985, 1.0
      %v5479 = vlog2.pop %v5478
      %v5480 = vmul.f32 %v5479, 0.6931472
      %v5481 = vmul.f32 -0.5, %v4985
      %v5482 = vadd.f32 %v5481, 1.0
      %v5483 = vmul.f32 %v5482, %v4985
      %v5484 = vand.u32 2147483647, %v4985
      %vm5485 = vcmp.lt.f32.partialorder %v5484, 0.0004427343
      %v5486 = vsel %vm5485, %v5483, %v5480
      %v5487 = vadd.f32 %v4987, 1.0
      %v5488 = vlog2.pop %v5487
      %v5489 = vmul.f32 %v5488, 0.6931472
      %v5490 = vmul.f32 -0.5, %v4987
      %v5491 = vadd.f32 %v5490, 1.0
      %v5492 = vmul.f32 %v5491, %v4987
      %v5493 = vand.u32 2147483647, %v4987
      %vm5494 = vcmp.lt.f32.partialorder %v5493, 0.0004427343
      %v5495 = vsel %vm5494, %v5492, %v5489
      %v5496 = vadd.f32 %v4989, 1.0
      %v5497 = vlog2.pop %v5496
      %v5498 = vmul.f32 %v5497, 0.6931472
      %v5499 = vmul.f32 -0.5, %v4989
      %v5500 = vadd.f32 %v5499, 1.0
      %v5501 = vmul.f32 %v5500, %v4989
      %v5502 = vand.u32 2147483647, %v4989
      %vm5503 = vcmp.lt.f32.partialorder %v5502, 0.0004427343
      %v5504 = vsel %vm5503, %v5501, %v5498
      %v5505 = vadd.f32 %v4991, 1.0
      %v5506 = vlog2.pop %v5505
      %v5507 = vmul.f32 %v5506, 0.6931472
      %v5508 = vmul.f32 -0.5, %v4991
      %v5509 = vadd.f32 %v5508, 1.0
      %v5510 = vmul.f32 %v5509, %v4991
      %v5511 = vand.u32 2147483647, %v4991
      %vm5512 = vcmp.lt.f32.partialorder %v5511, 0.0004427343
      %v5513 = vsel %vm5512, %v5510, %v5507
      %v5514 = vadd.f32 %v4993, 1.0
      %v5515 = vlog2.pop %v5514
      %v5516 = vmul.f32 %v5515, 0.6931472
      %v5517 = vmul.f32 -0.5, %v4993
      %v5518 = vadd.f32 %v5517, 1.0
      %v5519 = vmul.f32 %v5518, %v4993
      %v5520 = vand.u32 2147483647, %v4993
      %vm5521 = vcmp.lt.f32.partialorder %v5520, 0.0004427343
      %v5522 = vsel %vm5521, %v5519, %v5516
      %v5523 = vadd.f32 %v4995, 1.0
      %v5524 = vlog2.pop %v5523
      %v5525 = vmul.f32 %v5524, 0.6931472
      %v5526 = vmul.f32 -0.5, %v4995
      %v5527 = vadd.f32 %v5526, 1.0
      %v5528 = vmul.f32 %v5527, %v4995
      %v5529 = vand.u32 2147483647, %v4995
      %vm5530 = vcmp.lt.f32.partialorder %v5529, 0.0004427343
      %v5531 = vsel %vm5530, %v5528, %v5525
      %v5532 = vadd.f32 %v4997, 1.0
      %v5533 = vlog2.pop %v5532
      %v5534 = vmul.f32 %v5533, 0.6931472
      %v5535 = vmul.f32 -0.5, %v4997
      %v5536 = vadd.f32 %v5535, 1.0
      %v5537 = vmul.f32 %v5536, %v4997
      %v5538 = vand.u32 2147483647, %v4997
      %vm5539 = vcmp.lt.f32.partialorder %v5538, 0.0004427343
      %v5540 = vsel %vm5539, %v5537, %v5534
      %v5541 = vadd.f32 %v4999, 1.0
      %v5542 = vlog2.pop %v5541
      %v5543 = vmul.f32 %v5542, 0.6931472
      %v5544 = vmul.f32 -0.5, %v4999
      %v5545 = vadd.f32 %v5544, 1.0
      %v5546 = vmul.f32 %v5545, %v4999
      %v5547 = vand.u32 2147483647, %v4999
      %vm5548 = vcmp.lt.f32.partialorder %v5547, 0.0004427343
      %v5549 = vsel %vm5548, %v5546, %v5543
      %v5550 = vadd.f32 %v5001, 1.0
      %v5551 = vlog2.pop %v5550
      %v5552 = vmul.f32 %v5551, 0.6931472
      %v5553 = vmul.f32 -0.5, %v5001
      %v5554 = vadd.f32 %v5553, 1.0
      %v5555 = vmul.f32 %v5554, %v5001
      %v5556 = vand.u32 2147483647, %v5001
      %vm5557 = vcmp.lt.f32.partialorder %v5556, 0.0004427343
      %v5558 = vsel %vm5557, %v5555, %v5552
      %v5559 = vadd.f32 %v5003, 1.0
      %v5560 = vlog2.pop %v5559
      %v5561 = vmul.f32 %v5560, 0.6931472
      %v5562 = vmul.f32 -0.5, %v5003
      %v5563 = vadd.f32 %v5562, 1.0
      %v5564 = vmul.f32 %v5563, %v5003
      %v5565 = vand.u32 2147483647, %v5003
      %vm5566 = vcmp.lt.f32.partialorder %v5565, 0.0004427343
      %v5567 = vsel %vm5566, %v5564, %v5561
      %v5568 = vadd.f32 %v5005, 1.0
      %v5569 = vlog2.pop %v5568
      %v5570 = vmul.f32 %v5569, 0.6931472
      %v5571 = vmul.f32 -0.5, %v5005
      %v5572 = vadd.f32 %v5571, 1.0
      %v5573 = vmul.f32 %v5572, %v5005
      %v5574 = vand.u32 2147483647, %v5005
      %vm5575 = vcmp.lt.f32.partialorder %v5574, 0.0004427343
      %v5576 = vsel %vm5575, %v5573, %v5570
      %v5577 = vadd.f32 %v5007, 1.0
      %v5578 = vlog2.pop %v5577
      %v5579 = vmul.f32 %v5578, 0.6931472
      %v5580 = vmul.f32 -0.5, %v5007
      %v5581 = vadd.f32 %v5580, 1.0
      %v5582 = vmul.f32 %v5581, %v5007
      %v5583 = vand.u32 2147483647, %v5007
      %vm5584 = vcmp.lt.f32.partialorder %v5583, 0.0004427343
      %v5585 = vsel %vm5584, %v5582, %v5579
      %v5586 = vadd.f32 %v5009, 1.0
      %v5587 = vlog2.pop %v5586
      %v5588 = vmul.f32 %v5587, 0.6931472
      %v5589 = vmul.f32 -0.5, %v5009
      %v5590 = vadd.f32 %v5589, 1.0
      %v5591 = vmul.f32 %v5590, %v5009
      %v5592 = vand.u32 2147483647, %v5009
      %vm5593 = vcmp.lt.f32.partialorder %v5592, 0.0004427343
      %v5594 = vsel %vm5593, %v5591, %v5588
      %v5595 = vadd.f32 %v5011, 1.0
      %v5596 = vlog2.pop %v5595
      %v5597 = vmul.f32 %v5596, 0.6931472
      %v5598 = vmul.f32 -0.5, %v5011
      %v5599 = vadd.f32 %v5598, 1.0
      %v5600 = vmul.f32 %v5599, %v5011
      %v5601 = vand.u32 2147483647, %v5011
      %vm5602 = vcmp.lt.f32.partialorder %v5601, 0.0004427343
      %v5603 = vsel %vm5602, %v5600, %v5597
      %v5604 = vadd.f32 %v5013, 1.0
      %v5605 = vlog2.pop %v5604
      %v5606 = vmul.f32 %v5605, 0.6931472
      %v5607 = vmul.f32 -0.5, %v5013
      %v5608 = vadd.f32 %v5607, 1.0
      %v5609 = vmul.f32 %v5608, %v5013
      %v5610 = vand.u32 2147483647, %v5013
      %vm5611 = vcmp.lt.f32.partialorder %v5610, 0.0004427343
      %v5612 = vsel %vm5611, %v5609, %v5606
      %v5613 = vadd.f32 %v5015, 1.0
      %v5614 = vlog2.pop %v5613
      %v5615 = vmul.f32 %v5614, 0.6931472
      %v5616 = vmul.f32 -0.5, %v5015
      %v5617 = vadd.f32 %v5616, 1.0
      %v5618 = vmul.f32 %v5617, %v5015
      %v5619 = vand.u32 2147483647, %v5015
      %vm5620 = vcmp.lt.f32.partialorder %v5619, 0.0004427343
      %v5621 = vsel %vm5620, %v5618, %v5615
      %v5622 = vadd.f32 %v5017, 1.0
      %v5623 = vlog2.pop %v5622
      %v5624 = vmul.f32 %v5623, 0.6931472
      %v5625 = vmul.f32 -0.5, %v5017
      %v5626 = vadd.f32 %v5625, 1.0
      %v5627 = vmul.f32 %v5626, %v5017
      %v5628 = vand.u32 2147483647, %v5017
      %vm5629 = vcmp.lt.f32.partialorder %v5628, 0.0004427343
      %v5630 = vsel %vm5629, %v5627, %v5624
      %v5631 = vadd.f32 %v5019, 1.0
      %v5632 = vlog2.pop %v5631
      %v5633 = vmul.f32 %v5632, 0.6931472
      %v5634 = vmul.f32 -0.5, %v5019
      %v5635 = vadd.f32 %v5634, 1.0
      %v5636 = vmul.f32 %v5635, %v5019
      %v5637 = vand.u32 2147483647, %v5019
      %vm5638 = vcmp.lt.f32.partialorder %v5637, 0.0004427343
      %v5639 = vsel %vm5638, %v5636, %v5633
      %v5640 = vadd.f32 %v5021, 1.0
      %v5641 = vlog2.pop %v5640
      %v5642 = vmul.f32 %v5641, 0.6931472
      %v5643 = vmul.f32 -0.5, %v5021
      %v5644 = vadd.f32 %v5643, 1.0
      %v5645 = vmul.f32 %v5644, %v5021
      %v5646 = vand.u32 2147483647, %v5021
      %vm5647 = vcmp.lt.f32.partialorder %v5646, 0.0004427343
      %v5648 = vsel %vm5647, %v5645, %v5642
      %v5649 = vadd.f32 %v5023, 1.0
      %v5650 = vlog2.pop %v5649
      %v5651 = vmul.f32 %v5650, 0.6931472
      %v5652 = vmul.f32 -0.5, %v5023
      %v5653 = vadd.f32 %v5652, 1.0
      %v5654 = vmul.f32 %v5653, %v5023
      %v5655 = vand.u32 2147483647, %v5023
      %vm5656 = vcmp.lt.f32.partialorder %v5655, 0.0004427343
      %v5657 = vsel %vm5656, %v5654, %v5651
      %v5658 = vadd.f32 %v5025, 1.0
      %v5659 = vlog2.pop %v5658
      %v5660 = vmul.f32 %v5659, 0.6931472
      %v5661 = vmul.f32 -0.5, %v5025
      %v5662 = vadd.f32 %v5661, 1.0
      %v5663 = vmul.f32 %v5662, %v5025
      %v5664 = vand.u32 2147483647, %v5025
      %vm5665 = vcmp.lt.f32.partialorder %v5664, 0.0004427343
      %v5666 = vsel %vm5665, %v5663, %v5660
      %v5667 = vadd.f32 %v5027, 1.0
      %v5668 = vlog2.pop %v5667
      %v5669 = vmul.f32 %v5668, 0.6931472
      %v5670 = vmul.f32 -0.5, %v5027
      %v5671 = vadd.f32 %v5670, 1.0
      %v5672 = vmul.f32 %v5671, %v5027
      %v5673 = vand.u32 2147483647, %v5027
      %vm5674 = vcmp.lt.f32.partialorder %v5673, 0.0004427343
      %v5675 = vsel %vm5674, %v5672, %v5669
      %v5676 = vadd.f32 %v5029, 1.0
      %v5677 = vlog2.pop %v5676
      %v5678 = vmul.f32 %v5677, 0.6931472
      %v5679 = vmul.f32 -0.5, %v5029
      %v5680 = vadd.f32 %v5679, 1.0
      %v5681 = vmul.f32 %v5680, %v5029
      %v5682 = vand.u32 2147483647, %v5029
      %vm5683 = vcmp.lt.f32.partialorder %v5682, 0.0004427343
      %v5684 = vsel %vm5683, %v5681, %v5678
      %v5685 = vadd.f32 %v5031, 1.0
      %v5686 = vlog2.pop %v5685
      %v5687 = vmul.f32 %v5686, 0.6931472
      %v5688 = vmul.f32 -0.5, %v5031
      %v5689 = vadd.f32 %v5688, 1.0
      %v5690 = vmul.f32 %v5689, %v5031
      %v5691 = vand.u32 2147483647, %v5031
      %vm5692 = vcmp.lt.f32.partialorder %v5691, 0.0004427343
      %v5693 = vsel %vm5692, %v5690, %v5687
      %v5694 = vadd.f32 %v5033, 1.0
      %v5695 = vlog2.pop %v5694
      %v5696 = vmul.f32 %v5695, 0.6931472
      %v5697 = vmul.f32 -0.5, %v5033
      %v5698 = vadd.f32 %v5697, 1.0
      %v5699 = vmul.f32 %v5698, %v5033
      %v5700 = vand.u32 2147483647, %v5033
      %vm5701 = vcmp.lt.f32.partialorder %v5700, 0.0004427343
      %v5702 = vsel %vm5701, %v5699, %v5696
      %v5703 = vadd.f32 %v5035, 1.0
      %v5704 = vlog2.pop %v5703
      %v5705 = vmul.f32 %v5704, 0.6931472
      %v5706 = vmul.f32 -0.5, %v5035
      %v5707 = vadd.f32 %v5706, 1.0
      %v5708 = vmul.f32 %v5707, %v5035
      %v5709 = vand.u32 2147483647, %v5035
      %vm5710 = vcmp.lt.f32.partialorder %v5709, 0.0004427343
      %v5711 = vsel %vm5710, %v5708, %v5705
      %v5712 = vadd.f32 %v5037, 1.0
      %v5713 = vlog2.pop %v5712
      %v5714 = vmul.f32 %v5713, 0.6931472
      %v5715 = vmul.f32 -0.5, %v5037
      %v5716 = vadd.f32 %v5715, 1.0
      %v5717 = vmul.f32 %v5716, %v5037
      %v5718 = vand.u32 2147483647, %v5037
      %vm5719 = vcmp.lt.f32.partialorder %v5718, 0.0004427343
      %v5720 = vsel %vm5719, %v5717, %v5714
      %v5721 = vadd.f32 %v5039, 1.0
      %v5722 = vlog2.pop %v5721
      %v5723 = vmul.f32 %v5722, 0.6931472
      %v5724 = vmul.f32 -0.5, %v5039
      %v5725 = vadd.f32 %v5724, 1.0
      %v5726 = vmul.f32 %v5725, %v5039
      %v5727 = vand.u32 2147483647, %v5039
      %vm5728 = vcmp.lt.f32.partialorder %v5727, 0.0004427343
      %v5729 = vsel %vm5728, %v5726, %v5723
      %v5730 = vadd.f32 %v5041, 1.0
      %v5731 = vlog2.pop %v5730
      %v5732 = vmul.f32 %v5731, 0.6931472
      %v5733 = vmul.f32 -0.5, %v5041
      %v5734 = vadd.f32 %v5733, 1.0
      %v5735 = vmul.f32 %v5734, %v5041
      %v5736 = vand.u32 2147483647, %v5041
      %vm5737 = vcmp.lt.f32.partialorder %v5736, 0.0004427343
      %v5738 = vsel %vm5737, %v5735, %v5732
      %v5739 = vadd.f32 %v5043, 1.0
      %v5740 = vlog2.pop %v5739
      %v5741 = vmul.f32 %v5740, 0.6931472
      %v5742 = vmul.f32 -0.5, %v5043
      %v5743 = vadd.f32 %v5742, 1.0
      %v5744 = vmul.f32 %v5743, %v5043
      %v5745 = vand.u32 2147483647, %v5043
      %vm5746 = vcmp.lt.f32.partialorder %v5745, 0.0004427343
      %v5747 = vsel %vm5746, %v5744, %v5741
      %v5748 = vadd.f32 %v5045, 1.0
      %v5749 = vlog2.pop %v5748
      %v5750 = vmul.f32 %v5749, 0.6931472
      %v5751 = vmul.f32 -0.5, %v5045
      %v5752 = vadd.f32 %v5751, 1.0
      %v5753 = vmul.f32 %v5752, %v5045
      %v5754 = vand.u32 2147483647, %v5045
      %vm5755 = vcmp.lt.f32.partialorder %v5754, 0.0004427343
      %v5756 = vsel %vm5755, %v5753, %v5750
      %v5757 = vadd.f32 %v5047, 1.0
      %v5758 = vlog2.pop %v5757
      %v5759 = vmul.f32 %v5758, 0.6931472
      %v5760 = vmul.f32 -0.5, %v5047
      %v5761 = vadd.f32 %v5760, 1.0
      %v5762 = vmul.f32 %v5761, %v5047
      %v5763 = vand.u32 2147483647, %v5047
      %vm5764 = vcmp.lt.f32.partialorder %v5763, 0.0004427343
      %v5765 = vsel %vm5764, %v5762, %v5759
      %v5766 = vadd.f32 %v5049, 1.0
      %v5767 = vlog2.pop %v5766
      %v5768 = vmul.f32 %v5767, 0.6931472
      %v5769 = vmul.f32 -0.5, %v5049
      %v5770 = vadd.f32 %v5769, 1.0
      %v5771 = vmul.f32 %v5770, %v5049
      %v5772 = vand.u32 2147483647, %v5049
      %vm5773 = vcmp.lt.f32.partialorder %v5772, 0.0004427343
      %v5774 = vsel %vm5773, %v5771, %v5768
      %v5775 = vadd.f32 %v5051, 1.0
      %v5776 = vlog2.pop %v5775
      %v5777 = vmul.f32 %v5776, 0.6931472
      %v5778 = vmul.f32 -0.5, %v5051
      %v5779 = vadd.f32 %v5778, 1.0
      %v5780 = vmul.f32 %v5779, %v5051
      %v5781 = vand.u32 2147483647, %v5051
      %vm5782 = vcmp.lt.f32.partialorder %v5781, 0.0004427343
      %v5783 = vsel %vm5782, %v5780, %v5777
      %v5784 = vadd.f32 %v5053, 1.0
      %v5785 = vlog2.pop %v5784
      %v5786 = vmul.f32 %v5785, 0.6931472
      %v5787 = vmul.f32 -0.5, %v5053
      %v5788 = vadd.f32 %v5787, 1.0
      %v5789 = vmul.f32 %v5788, %v5053
      %v5790 = vand.u32 2147483647, %v5053
      %vm5791 = vcmp.lt.f32.partialorder %v5790, 0.0004427343
      %v5792 = vsel %vm5791, %v5789, %v5786
      %v5793 = vadd.f32 %v5055, 1.0
      %v5794 = vlog2.pop %v5793
      %v5795 = vmul.f32 %v5794, 0.6931472
      %v5796 = vmul.f32 -0.5, %v5055
      %v5797 = vadd.f32 %v5796, 1.0
      %v5798 = vmul.f32 %v5797, %v5055
      %v5799 = vand.u32 2147483647, %v5055
      %vm5800 = vcmp.lt.f32.partialorder %v5799, 0.0004427343
      %v5801 = vsel %vm5800, %v5798, %v5795
      %v5802 = vadd.f32 %v5057, 1.0
      %v5803 = vlog2.pop %v5802
      %v5804 = vmul.f32 %v5803, 0.6931472
      %v5805 = vmul.f32 -0.5, %v5057
      %v5806 = vadd.f32 %v5805, 1.0
      %v5807 = vmul.f32 %v5806, %v5057
      %v5808 = vand.u32 2147483647, %v5057
      %vm5809 = vcmp.lt.f32.partialorder %v5808, 0.0004427343
      %v5810 = vsel %vm5809, %v5807, %v5804
      %v5811 = vadd.f32 %v5059, 1.0
      %v5812 = vlog2.pop %v5811
      %v5813 = vmul.f32 %v5812, 0.6931472
      %v5814 = vmul.f32 -0.5, %v5059
      %v5815 = vadd.f32 %v5814, 1.0
      %v5816 = vmul.f32 %v5815, %v5059
      %v5817 = vand.u32 2147483647, %v5059
      %vm5818 = vcmp.lt.f32.partialorder %v5817, 0.0004427343
      %v5819 = vsel %vm5818, %v5816, %v5813
      %v5820 = vadd.f32 %v5061, 1.0
      %v5821 = vlog2.pop %v5820
      %v5822 = vmul.f32 %v5821, 0.6931472
      %v5823 = vmul.f32 -0.5, %v5061
      %v5824 = vadd.f32 %v5823, 1.0
      %v5825 = vmul.f32 %v5824, %v5061
      %v5826 = vand.u32 2147483647, %v5061
      %vm5827 = vcmp.lt.f32.partialorder %v5826, 0.0004427343
      %v5828 = vsel %vm5827, %v5825, %v5822
      %v5829 = vadd.f32 %v5063, 1.0
      %v5830 = vlog2.pop %v5829
      %v5831 = vmul.f32 %v5830, 0.6931472
      %v5832 = vmul.f32 -0.5, %v5063
      %v5833 = vadd.f32 %v5832, 1.0
      %v5834 = vmul.f32 %v5833, %v5063
      %v5835 = vand.u32 2147483647, %v5063
      %vm5836 = vcmp.lt.f32.partialorder %v5835, 0.0004427343
      %v5837 = vsel %vm5836, %v5834, %v5831
      %v5838 = vadd.f32 %v5065, 1.0
      %v5839 = vlog2.pop %v5838
      %v5840 = vmul.f32 %v5839, 0.6931472
      %v5841 = vmul.f32 -0.5, %v5065
      %v5842 = vadd.f32 %v5841, 1.0
      %v5843 = vmul.f32 %v5842, %v5065
      %v5844 = vand.u32 2147483647, %v5065
      %vm5845 = vcmp.lt.f32.partialorder %v5844, 0.0004427343
      %v5846 = vsel %vm5845, %v5843, %v5840
      %v5847 = vadd.f32 %v5067, 1.0
      %v5848 = vlog2.pop %v5847
      %v5849 = vmul.f32 %v5848, 0.6931472
      %v5850 = vmul.f32 -0.5, %v5067
      %v5851 = vadd.f32 %v5850, 1.0
      %v5852 = vmul.f32 %v5851, %v5067
      %v5853 = vand.u32 2147483647, %v5067
      %vm5854 = vcmp.lt.f32.partialorder %v5853, 0.0004427343
      %v5855 = vsel %vm5854, %v5852, %v5849
      %v5856 = vadd.f32 %v5069, 1.0
      %v5857 = vlog2.pop %v5856
      %v5858 = vmul.f32 %v5857, 0.6931472
      %v5859 = vmul.f32 -0.5, %v5069
      %v5860 = vadd.f32 %v5859, 1.0
      %v5861 = vmul.f32 %v5860, %v5069
      %v5862 = vand.u32 2147483647, %v5069
      %vm5863 = vcmp.lt.f32.partialorder %v5862, 0.0004427343
      %v5864 = vsel %vm5863, %v5861, %v5858
      %v5865 = vadd.f32 %v5071, 1.0
      %v5866 = vlog2.pop %v5865
      %v5867 = vmul.f32 %v5866, 0.6931472
      %v5868 = vmul.f32 -0.5, %v5071
      %v5869 = vadd.f32 %v5868, 1.0
      %v5870 = vmul.f32 %v5869, %v5071
      %v5871 = vand.u32 2147483647, %v5071
      %vm5872 = vcmp.lt.f32.partialorder %v5871, 0.0004427343
      %v5873 = vsel %vm5872, %v5870, %v5867
      %v5874 = vadd.f32 %v5073, 1.0
      %v5875 = vlog2.pop %v5874
      %v5876 = vmul.f32 %v5875, 0.6931472
      %v5877 = vmul.f32 -0.5, %v5073
      %v5878 = vadd.f32 %v5877, 1.0
      %v5879 = vmul.f32 %v5878, %v5073
      %v5880 = vand.u32 2147483647, %v5073
      %vm5881 = vcmp.lt.f32.partialorder %v5880, 0.0004427343
      %v5882 = vsel %vm5881, %v5879, %v5876
      %v5883 = vadd.f32 %v5075, 1.0
      %v5884 = vlog2.pop %v5883
      %v5885 = vmul.f32 %v5884, 0.6931472
      %v5886 = vmul.f32 -0.5, %v5075
      %v5887 = vadd.f32 %v5886, 1.0
      %v5888 = vmul.f32 %v5887, %v5075
      %v5889 = vand.u32 2147483647, %v5075
      %vm5890 = vcmp.lt.f32.partialorder %v5889, 0.0004427343
      %v5891 = vsel %vm5890, %v5888, %v5885
      %v5892 = vadd.f32 %v5077, 1.0
      %v5893 = vlog2.pop %v5892
      %v5894 = vmul.f32 %v5893, 0.6931472
      %v5895 = vmul.f32 -0.5, %v5077
      %v5896 = vadd.f32 %v5895, 1.0
      %v5897 = vmul.f32 %v5896, %v5077
      %v5898 = vand.u32 2147483647, %v5077
      %vm5899 = vcmp.lt.f32.partialorder %v5898, 0.0004427343
      %v5900 = vsel %vm5899, %v5897, %v5894
      %v5901 = vadd.f32 %v5079, 1.0
      %v5902 = vlog2.pop %v5901
      %v5903 = vmul.f32 %v5902, 0.6931472
      %v5904 = vmul.f32 -0.5, %v5079
      %v5905 = vadd.f32 %v5904, 1.0
      %v5906 = vmul.f32 %v5905, %v5079
      %v5907 = vand.u32 2147483647, %v5079
      %vm5908 = vcmp.lt.f32.partialorder %v5907, 0.0004427343
      %v5909 = vsel %vm5908, %v5906, %v5903
      %v5910 = vadd.f32 %v5081, 1.0
      %v5911 = vlog2.pop %v5910
      %v5912 = vmul.f32 %v5911, 0.6931472
      %v5913 = vmul.f32 -0.5, %v5081
      %v5914 = vadd.f32 %v5913, 1.0
      %v5915 = vmul.f32 %v5914, %v5081
      %v5916 = vand.u32 2147483647, %v5081
      %vm5917 = vcmp.lt.f32.partialorder %v5916, 0.0004427343
      %v5918 = vsel %vm5917, %v5915, %v5912
      %v5919 = vadd.f32 %v5083, 1.0
      %v5920 = vlog2.pop %v5919
      %v5921 = vmul.f32 %v5920, 0.6931472
      %v5922 = vmul.f32 -0.5, %v5083
      %v5923 = vadd.f32 %v5922, 1.0
      %v5924 = vmul.f32 %v5923, %v5083
      %v5925 = vand.u32 2147483647, %v5083
      %vm5926 = vcmp.lt.f32.partialorder %v5925, 0.0004427343
      %v5927 = vsel %vm5926, %v5924, %v5921
      %v5928 = vadd.f32 %v5085, 1.0
      %v5929 = vlog2.pop %v5928
      %v5930 = vmul.f32 %v5929, 0.6931472
      %v5931 = vmul.f32 -0.5, %v5085
      %v5932 = vadd.f32 %v5931, 1.0
      %v5933 = vmul.f32 %v5932, %v5085
      %v5934 = vand.u32 2147483647, %v5085
      %vm5935 = vcmp.lt.f32.partialorder %v5934, 0.0004427343
      %v5936 = vsel %vm5935, %v5933, %v5930
      %v5937 = vadd.f32 %v5087, 1.0
      %v5938 = vlog2.pop %v5937
      %v5939 = vmul.f32 %v5938, 0.6931472
      %v5940 = vmul.f32 -0.5, %v5087
      %v5941 = vadd.f32 %v5940, 1.0
      %v5942 = vmul.f32 %v5941, %v5087
      %v5943 = vand.u32 2147483647, %v5087
      %vm5944 = vcmp.lt.f32.partialorder %v5943, 0.0004427343
      %v5945 = vsel %vm5944, %v5942, %v5939
      %v5946 = vadd.f32 %v5089, 1.0
      %v5947 = vlog2.pop %v5946
      %v5948 = vmul.f32 %v5947, 0.6931472
      %v5949 = vmul.f32 -0.5, %v5089
      %v5950 = vadd.f32 %v5949, 1.0
      %v5951 = vmul.f32 %v5950, %v5089
      %v5952 = vand.u32 2147483647, %v5089
      %vm5953 = vcmp.lt.f32.partialorder %v5952, 0.0004427343
      %v5954 = vsel %vm5953, %v5951, %v5948
      %v5955 = vadd.f32 %v5091, 1.0
      %v5956 = vlog2.pop %v5955
      %v5957 = vmul.f32 %v5956, 0.6931472
      %v5958 = vmul.f32 -0.5, %v5091
      %v5959 = vadd.f32 %v5958, 1.0
      %v5960 = vmul.f32 %v5959, %v5091
      %v5961 = vand.u32 2147483647, %v5091
      %vm5962 = vcmp.lt.f32.partialorder %v5961, 0.0004427343
      %v5963 = vsel %vm5962, %v5960, %v5957
      %v5964 = vadd.f32 %v5093, 1.0
      %v5965 = vlog2.pop %v5964
      %v5966 = vmul.f32 %v5965, 0.6931472
      %v5967 = vmul.f32 -0.5, %v5093
      %v5968 = vadd.f32 %v5967, 1.0
      %v5969 = vmul.f32 %v5968, %v5093
      %v5970 = vand.u32 2147483647, %v5093
      %vm5971 = vcmp.lt.f32.partialorder %v5970, 0.0004427343
      %v5972 = vsel %vm5971, %v5969, %v5966
      %v5973 = vadd.f32 %v5095, 1.0
      %v5974 = vlog2.pop %v5973
      %v5975 = vmul.f32 %v5974, 0.6931472
      %v5976 = vmul.f32 -0.5, %v5095
      %v5977 = vadd.f32 %v5976, 1.0
      %v5978 = vmul.f32 %v5977, %v5095
      %v5979 = vand.u32 2147483647, %v5095
      %vm5980 = vcmp.lt.f32.partialorder %v5979, 0.0004427343
      %v5981 = vsel %vm5980, %v5978, %v5975
      %v5982 = vadd.f32 %v5097, 1.0
      %v5983 = vlog2.pop %v5982
      %v5984 = vmul.f32 %v5983, 0.6931472
      %v5985 = vmul.f32 -0.5, %v5097
      %v5986 = vadd.f32 %v5985, 1.0
      %v5987 = vmul.f32 %v5986, %v5097
      %v5988 = vand.u32 2147483647, %v5097
      %vm5989 = vcmp.lt.f32.partialorder %v5988, 0.0004427343
      %v5990 = vsel %vm5989, %v5987, %v5984
      %v5991 = vadd.f32 %v5099, 1.0
      %v5992 = vlog2.pop %v5991
      %v5993 = vmul.f32 %v5992, 0.6931472
      %v5994 = vmul.f32 -0.5, %v5099
      %v5995 = vadd.f32 %v5994, 1.0
      %v5996 = vmul.f32 %v5995, %v5099
      %v5997 = vand.u32 2147483647, %v5099
      %vm5998 = vcmp.lt.f32.partialorder %v5997, 0.0004427343
      %v5999 = vsel %vm5998, %v5996, %v5993
      %v6000 = vadd.f32 %v5101, 1.0
      %v6001 = vlog2.pop %v6000
      %v6002 = vmul.f32 %v6001, 0.6931472
      %v6003 = vmul.f32 -0.5, %v5101
      %v6004 = vadd.f32 %v6003, 1.0
      %v6005 = vmul.f32 %v6004, %v5101
      %v6006 = vand.u32 2147483647, %v5101
      %vm6007 = vcmp.lt.f32.partialorder %v6006, 0.0004427343
      %v6008 = vsel %vm6007, %v6005, %v6002
      %v6009 = vadd.f32 %v5103, 1.0
      %v6010 = vlog2.pop %v6009
      %v6011 = vmul.f32 %v6010, 0.6931472
      %v6012 = vmul.f32 -0.5, %v5103
      %v6013 = vadd.f32 %v6012, 1.0
      %v6014 = vmul.f32 %v6013, %v5103
      %v6015 = vand.u32 2147483647, %v5103
      %vm6016 = vcmp.lt.f32.partialorder %v6015, 0.0004427343
      %v6017 = vsel %vm6016, %v6014, %v6011
      %v6018 = vadd.f32 %v5105, 1.0
      %v6019 = vlog2.pop %v6018
      %v6020 = vmul.f32 %v6019, 0.6931472
      %v6021 = vmul.f32 -0.5, %v5105
      %v6022 = vadd.f32 %v6021, 1.0
      %v6023 = vmul.f32 %v6022, %v5105
      %v6024 = vand.u32 2147483647, %v5105
      %vm6025 = vcmp.lt.f32.partialorder %v6024, 0.0004427343
      %v6026 = vsel %vm6025, %v6023, %v6020
      %v6027 = vadd.f32 %v5107, 1.0
      %v6028 = vlog2.pop %v6027
      %v6029 = vmul.f32 %v6028, 0.6931472
      %v6030 = vmul.f32 -0.5, %v5107
      %v6031 = vadd.f32 %v6030, 1.0
      %v6032 = vmul.f32 %v6031, %v5107
      %v6033 = vand.u32 2147483647, %v5107
      %vm6034 = vcmp.lt.f32.partialorder %v6033, 0.0004427343
      %v6035 = vsel %vm6034, %v6032, %v6029
      %v6036 = vadd.f32 %v5109, 1.0
      %v6037 = vlog2.pop %v6036
      %v6038 = vmul.f32 %v6037, 0.6931472
      %v6039 = vmul.f32 -0.5, %v5109
      %v6040 = vadd.f32 %v6039, 1.0
      %v6041 = vmul.f32 %v6040, %v5109
      %v6042 = vand.u32 2147483647, %v5109
      %vm6043 = vcmp.lt.f32.partialorder %v6042, 0.0004427343
      %v6044 = vsel %vm6043, %v6041, %v6038
      %v6045 = vadd.f32 %v5111, 1.0
      %v6046 = vlog2.pop %v6045
      %v6047 = vmul.f32 %v6046, 0.6931472
      %v6048 = vmul.f32 -0.5, %v5111
      %v6049 = vadd.f32 %v6048, 1.0
      %v6050 = vmul.f32 %v6049, %v5111
      %v6051 = vand.u32 2147483647, %v5111
      %vm6052 = vcmp.lt.f32.partialorder %v6051, 0.0004427343
      %v6053 = vsel %vm6052, %v6050, %v6047
      %v6054 = vadd.f32 %v5113, 1.0
      %v6055 = vlog2.pop %v6054
      %v6056 = vmul.f32 %v6055, 0.6931472
      %v6057 = vmul.f32 -0.5, %v5113
      %v6058 = vadd.f32 %v6057, 1.0
      %v6059 = vmul.f32 %v6058, %v5113
      %v6060 = vand.u32 2147483647, %v5113
      %vm6061 = vcmp.lt.f32.partialorder %v6060, 0.0004427343
      %v6062 = vsel %vm6061, %v6059, %v6056
      %v6063 = vadd.f32 %v5115, 1.0
      %v6064 = vlog2.pop %v6063
      %v6065 = vmul.f32 %v6064, 0.6931472
      %v6066 = vmul.f32 -0.5, %v5115
      %v6067 = vadd.f32 %v6066, 1.0
      %v6068 = vmul.f32 %v6067, %v5115
      %v6069 = vand.u32 2147483647, %v5115
      %vm6070 = vcmp.lt.f32.partialorder %v6069, 0.0004427343
      %v6071 = vsel %vm6070, %v6068, %v6065
      %v6072 = vadd.f32 %v5117, 1.0
      %v6073 = vlog2.pop %v6072
      %v6074 = vmul.f32 %v6073, 0.6931472
      %v6075 = vmul.f32 -0.5, %v5117
      %v6076 = vadd.f32 %v6075, 1.0
      %v6077 = vmul.f32 %v6076, %v5117
      %v6078 = vand.u32 2147483647, %v5117
      %vm6079 = vcmp.lt.f32.partialorder %v6078, 0.0004427343
      %v6080 = vsel %vm6079, %v6077, %v6074
      %v6081 = vadd.f32 %v5119, 1.0
      %v6082 = vlog2.pop %v6081
      %v6083 = vmul.f32 %v6082, 0.6931472
      %v6084 = vmul.f32 -0.5, %v5119
      %v6085 = vadd.f32 %v6084, 1.0
      %v6086 = vmul.f32 %v6085, %v5119
      %v6087 = vand.u32 2147483647, %v5119
      %vm6088 = vcmp.lt.f32.partialorder %v6087, 0.0004427343
      %v6089 = vsel %vm6088, %v6086, %v6083
      %v6090 = vadd.f32 %v5121, 1.0
      %v6091 = vlog2.pop %v6090
      %v6092 = vmul.f32 %v6091, 0.6931472
      %v6093 = vmul.f32 -0.5, %v5121
      %v6094 = vadd.f32 %v6093, 1.0
      %v6095 = vmul.f32 %v6094, %v5121
      %v6096 = vand.u32 2147483647, %v5121
      %vm6097 = vcmp.lt.f32.partialorder %v6096, 0.0004427343
      %v6098 = vsel %vm6097, %v6095, %v6092
      %v6099 = vadd.f32 %v5123, 1.0
      %v6100 = vlog2.pop %v6099
      %v6101 = vmul.f32 %v6100, 0.6931472
      %v6102 = vmul.f32 -0.5, %v5123
      %v6103 = vadd.f32 %v6102, 1.0
      %v6104 = vmul.f32 %v6103, %v5123
      %v6105 = vand.u32 2147483647, %v5123
      %vm6106 = vcmp.lt.f32.partialorder %v6105, 0.0004427343
      %v6107 = vsel %vm6106, %v6104, %v6101
      %v6108 = vadd.f32 %v5125, 1.0
      %v6109 = vlog2.pop %v6108
      %v6110 = vmul.f32 %v6109, 0.6931472
      %v6111 = vmul.f32 -0.5, %v5125
      %v6112 = vadd.f32 %v6111, 1.0
      %v6113 = vmul.f32 %v6112, %v5125
      %v6114 = vand.u32 2147483647, %v5125
      %vm6115 = vcmp.lt.f32.partialorder %v6114, 0.0004427343
      %v6116 = vsel %vm6115, %v6113, %v6110
      %v6117 = vadd.f32 %v5127, 1.0
      %v6118 = vlog2.pop %v6117
      %v6119 = vmul.f32 %v6118, 0.6931472
      %v6120 = vmul.f32 -0.5, %v5127
      %v6121 = vadd.f32 %v6120, 1.0
      %v6122 = vmul.f32 %v6121, %v5127
      %v6123 = vand.u32 2147483647, %v5127
      %vm6124 = vcmp.lt.f32.partialorder %v6123, 0.0004427343
      %v6125 = vsel %vm6124, %v6122, %v6119
      %v6126 = vadd.f32 %v5129, 1.0
      %v6127 = vlog2.pop %v6126
      %v6128 = vmul.f32 %v6127, 0.6931472
      %v6129 = vmul.f32 -0.5, %v5129
      %v6130 = vadd.f32 %v6129, 1.0
      %v6131 = vmul.f32 %v6130, %v5129
      %v6132 = vand.u32 2147483647, %v5129
      %vm6133 = vcmp.lt.f32.partialorder %v6132, 0.0004427343
      %v6134 = vsel %vm6133, %v6131, %v6128
      %v6135 = vadd.f32 %v5131, 1.0
      %v6136 = vlog2.pop %v6135
      %v6137 = vmul.f32 %v6136, 0.6931472
      %v6138 = vmul.f32 -0.5, %v5131
      %v6139 = vadd.f32 %v6138, 1.0
      %v6140 = vmul.f32 %v6139, %v5131
      %v6141 = vand.u32 2147483647, %v5131
      %vm6142 = vcmp.lt.f32.partialorder %v6141, 0.0004427343
      %v6143 = vsel %vm6142, %v6140, %v6137
      %v6144 = vadd.f32 %v5133, 1.0
      %v6145 = vlog2.pop %v6144
      %v6146 = vmul.f32 %v6145, 0.6931472
      %v6147 = vmul.f32 -0.5, %v5133
      %v6148 = vadd.f32 %v6147, 1.0
      %v6149 = vmul.f32 %v6148, %v5133
      %v6150 = vand.u32 2147483647, %v5133
      %vm6151 = vcmp.lt.f32.partialorder %v6150, 0.0004427343
      %v6152 = vsel %vm6151, %v6149, %v6146
      %v6153 = vadd.f32 %v5135, 1.0
      %v6154 = vlog2.pop %v6153
      %v6155 = vmul.f32 %v6154, 0.6931472
      %v6156 = vmul.f32 -0.5, %v5135
      %v6157 = vadd.f32 %v6156, 1.0
      %v6158 = vmul.f32 %v6157, %v5135
      %v6159 = vand.u32 2147483647, %v5135
      %vm6160 = vcmp.lt.f32.partialorder %v6159, 0.0004427343
      %v6161 = vsel %vm6160, %v6158, %v6155
      %v6162 = vadd.f32 %v5137, 1.0
      %v6163 = vlog2.pop %v6162
      %v6164 = vmul.f32 %v6163, 0.6931472
      %v6165 = vmul.f32 -0.5, %v5137
      %v6166 = vadd.f32 %v6165, 1.0
      %v6167 = vmul.f32 %v6166, %v5137
      %v6168 = vand.u32 2147483647, %v5137
      %vm6169 = vcmp.lt.f32.partialorder %v6168, 0.0004427343
      %v6170 = vsel %vm6169, %v6167, %v6164
      %v6171 = vadd.f32 %v5139, 1.0
      %v6172 = vlog2.pop %v6171
      %v6173 = vmul.f32 %v6172, 0.6931472
      %v6174 = vmul.f32 -0.5, %v5139
      %v6175 = vadd.f32 %v6174, 1.0
      %v6176 = vmul.f32 %v6175, %v5139
      %v6177 = vand.u32 2147483647, %v5139
      %vm6178 = vcmp.lt.f32.partialorder %v6177, 0.0004427343
      %v6179 = vsel %vm6178, %v6176, %v6173
      %v6180 = vadd.f32 %v5141, 1.0
      %v6181 = vlog2.pop %v6180
      %v6182 = vmul.f32 %v6181, 0.6931472
      %v6183 = vmul.f32 -0.5, %v5141
      %v6184 = vadd.f32 %v6183, 1.0
      %v6185 = vmul.f32 %v6184, %v5141
      %v6186 = vand.u32 2147483647, %v5141
      %vm6187 = vcmp.lt.f32.partialorder %v6186, 0.0004427343
      %v6188 = vsel %vm6187, %v6185, %v6182
      %v6189 = vadd.f32 %v5143, 1.0
      %v6190 = vlog2.pop %v6189
      %v6191 = vmul.f32 %v6190, 0.6931472
      %v6192 = vmul.f32 -0.5, %v5143
      %v6193 = vadd.f32 %v6192, 1.0
      %v6194 = vmul.f32 %v6193, %v5143
      %v6195 = vand.u32 2147483647, %v5143
      %vm6196 = vcmp.lt.f32.partialorder %v6195, 0.0004427343
      %v6197 = vsel %vm6196, %v6194, %v6191
      %v6198 = vadd.f32 %v5145, 1.0
      %v6199 = vlog2.pop %v6198
      %v6200 = vmul.f32 %v6199, 0.6931472
      %v6201 = vmul.f32 -0.5, %v5145
      %v6202 = vadd.f32 %v6201, 1.0
      %v6203 = vmul.f32 %v6202, %v5145
      %v6204 = vand.u32 2147483647, %v5145
      %vm6205 = vcmp.lt.f32.partialorder %v6204, 0.0004427343
      %v6206 = vsel %vm6205, %v6203, %v6200
      %v6207 = vadd.f32 %v5147, 1.0
      %v6208 = vlog2.pop %v6207
      %v6209 = vmul.f32 %v6208, 0.6931472
      %v6210 = vmul.f32 -0.5, %v5147
      %v6211 = vadd.f32 %v6210, 1.0
      %v6212 = vmul.f32 %v6211, %v5147
      %v6213 = vand.u32 2147483647, %v5147
      %vm6214 = vcmp.lt.f32.partialorder %v6213, 0.0004427343
      %v6215 = vsel %vm6214, %v6212, %v6209
      %v6216 = vadd.f32 %v5149, 1.0
      %v6217 = vlog2.pop %v6216
      %v6218 = vmul.f32 %v6217, 0.6931472
      %v6219 = vmul.f32 -0.5, %v5149
      %v6220 = vadd.f32 %v6219, 1.0
      %v6221 = vmul.f32 %v6220, %v5149
      %v6222 = vand.u32 2147483647, %v5149
      %vm6223 = vcmp.lt.f32.partialorder %v6222, 0.0004427343
      %v6224 = vsel %vm6223, %v6221, %v6218
      %v6225 = vadd.f32 %v5151, 1.0
      %v6226 = vlog2.pop %v6225
      %v6227 = vmul.f32 %v6226, 0.6931472
      %v6228 = vmul.f32 -0.5, %v5151
      %v6229 = vadd.f32 %v6228, 1.0
      %v6230 = vmul.f32 %v6229, %v5151
      %v6231 = vand.u32 2147483647, %v5151
      %vm6232 = vcmp.lt.f32.partialorder %v6231, 0.0004427343
      %v6233 = vsel %vm6232, %v6230, %v6227
      %v6234 = vadd.f32 %v5153, 1.0
      %v6235 = vlog2.pop %v6234
      %v6236 = vmul.f32 %v6235, 0.6931472
      %v6237 = vmul.f32 -0.5, %v5153
      %v6238 = vadd.f32 %v6237, 1.0
      %v6239 = vmul.f32 %v6238, %v5153
      %v6240 = vand.u32 2147483647, %v5153
      %vm6241 = vcmp.lt.f32.partialorder %v6240, 0.0004427343
      %v6242 = vsel %vm6241, %v6239, %v6236
      %v6243 = vadd.f32 %v5155, 1.0
      %v6244 = vlog2.pop %v6243
      %v6245 = vmul.f32 %v6244, 0.6931472
      %v6246 = vmul.f32 -0.5, %v5155
      %v6247 = vadd.f32 %v6246, 1.0
      %v6248 = vmul.f32 %v6247, %v5155
      %v6249 = vand.u32 2147483647, %v5155
      %vm6250 = vcmp.lt.f32.partialorder %v6249, 0.0004427343
      %v6251 = vsel %vm6250, %v6248, %v6245
      %v6252 = vadd.f32 %v5157, 1.0
      %v6253 = vlog2.pop %v6252
      %v6254 = vmul.f32 %v6253, 0.6931472
      %v6255 = vmul.f32 -0.5, %v5157
      %v6256 = vadd.f32 %v6255, 1.0
      %v6257 = vmul.f32 %v6256, %v5157
      %v6258 = vand.u32 2147483647, %v5157
      %vm6259 = vcmp.lt.f32.partialorder %v6258, 0.0004427343
      %v6260 = vsel %vm6259, %v6257, %v6254
      %v6261 = vadd.f32 %v5159, 1.0
      %v6262 = vlog2.pop %v6261
      %v6263 = vmul.f32 %v6262, 0.6931472
      %v6264 = vmul.f32 -0.5, %v5159
      %v6265 = vadd.f32 %v6264, 1.0
      %v6266 = vmul.f32 %v6265, %v5159
      %v6267 = vand.u32 2147483647, %v5159
      %vm6268 = vcmp.lt.f32.partialorder %v6267, 0.0004427343
      %v6269 = vsel %vm6268, %v6266, %v6263
      %v6270 = vadd.f32 %v5161, 1.0
      %v6271 = vlog2.pop %v6270
      %v6272 = vmul.f32 %v6271, 0.6931472
      %v6273 = vmul.f32 -0.5, %v5161
      %v6274 = vadd.f32 %v6273, 1.0
      %v6275 = vmul.f32 %v6274, %v5161
      %v6276 = vand.u32 2147483647, %v5161
      %vm6277 = vcmp.lt.f32.partialorder %v6276, 0.0004427343
      %v6278 = vsel %vm6277, %v6275, %v6272
      %v6279 = vadd.f32 %v5163, 1.0
      %v6280 = vlog2.pop %v6279
      %v6281 = vmul.f32 %v6280, 0.6931472
      %v6282 = vmul.f32 -0.5, %v5163
      %v6283 = vadd.f32 %v6282, 1.0
      %v6284 = vmul.f32 %v6283, %v5163
      %v6285 = vand.u32 2147483647, %v5163
      %vm6286 = vcmp.lt.f32.partialorder %v6285, 0.0004427343
      %v6287 = vsel %vm6286, %v6284, %v6281
      %v6288 = vadd.f32 %v5165, 1.0
      %v6289 = vlog2.pop %v6288
      %v6290 = vmul.f32 %v6289, 0.6931472
      %v6291 = vmul.f32 -0.5, %v5165
      %v6292 = vadd.f32 %v6291, 1.0
      %v6293 = vmul.f32 %v6292, %v5165
      %v6294 = vand.u32 2147483647, %v5165
      %vm6295 = vcmp.lt.f32.partialorder %v6294, 0.0004427343
      %v6296 = vsel %vm6295, %v6293, %v6290
      %v6297 = vadd.f32 %v5167, 1.0
      %v6298 = vlog2.pop %v6297
      %v6299 = vmul.f32 %v6298, 0.6931472
      %v6300 = vmul.f32 -0.5, %v5167
      %v6301 = vadd.f32 %v6300, 1.0
      %v6302 = vmul.f32 %v6301, %v5167
      %v6303 = vand.u32 2147483647, %v5167
      %vm6304 = vcmp.lt.f32.partialorder %v6303, 0.0004427343
      %v6305 = vsel %vm6304, %v6302, %v6299
      %v6306 = vadd.f32 %v5169, 1.0
      %v6307 = vlog2.pop %v6306
      %v6308 = vmul.f32 %v6307, 0.6931472
      %v6309 = vmul.f32 -0.5, %v5169
      %v6310 = vadd.f32 %v6309, 1.0
      %v6311 = vmul.f32 %v6310, %v5169
      %v6312 = vand.u32 2147483647, %v5169
      %vm6313 = vcmp.lt.f32.partialorder %v6312, 0.0004427343
      %v6314 = vsel %vm6313, %v6311, %v6308
      %v6315 = vadd.f32 %v5171, 1.0
      %v6316 = vlog2.pop %v6315
      %v6317 = vmul.f32 %v6316, 0.6931472
      %v6318 = vmul.f32 -0.5, %v5171
      %v6319 = vadd.f32 %v6318, 1.0
      %v6320 = vmul.f32 %v6319, %v5171
      %v6321 = vand.u32 2147483647, %v5171
      %vm6322 = vcmp.lt.f32.partialorder %v6321, 0.0004427343
      %v6323 = vsel %vm6322, %v6320, %v6317
      %v6324 = vadd.f32 %v4532, %v5180
      %v6325 = vadd.f32 %v4533, %v5189
      %v6326 = vadd.f32 %v4534, %v5198
      %v6327 = vadd.f32 %v4535, %v5207
      %v6328 = vadd.f32 %v4536, %v5216
      %v6329 = vadd.f32 %v4537, %v5225
      %v6330 = vadd.f32 %v4538, %v5234
      %v6331 = vadd.f32 %v4539, %v5243
      %v6332 = vadd.f32 %v4540, %v5252
      %v6333 = vadd.f32 %v4541, %v5261
      %v6334 = vadd.f32 %v4542, %v5270
      %v6335 = vadd.f32 %v4543, %v5279
      %v6336 = vadd.f32 %v4544, %v5288
      %v6337 = vadd.f32 %v4545, %v5297
      %v6338 = vadd.f32 %v4546, %v5306
      %v6339 = vadd.f32 %v4547, %v5315
      %v6340 = vadd.f32 %v4548, %v5324
      %v6341 = vadd.f32 %v4549, %v5333
      %v6342 = vadd.f32 %v4550, %v5342
      %v6343 = vadd.f32 %v4551, %v5351
      %v6344 = vadd.f32 %v4552, %v5360
      %v6345 = vadd.f32 %v4553, %v5369
      %v6346 = vadd.f32 %v4554, %v5378
      %v6347 = vadd.f32 %v4555, %v5387
      %v6348 = vadd.f32 %v4556, %v5396
      %v6349 = vadd.f32 %v4557, %v5405
      %v6350 = vadd.f32 %v4558, %v5414
      %v6351 = vadd.f32 %v4559, %v5423
      %v6352 = vadd.f32 %v4560, %v5432
      %v6353 = vadd.f32 %v4561, %v5441
      %v6354 = vadd.f32 %v4562, %v5450
      %v6355 = vadd.f32 %v4563, %v5459
      %v6356 = vadd.f32 %v4564, %v5468
      %v6357 = vadd.f32 %v4565, %v5477
      %v6358 = vadd.f32 %v4566, %v5486
      %v6359 = vadd.f32 %v4567, %v5495
      %v6360 = vadd.f32 %v4568, %v5504
      %v6361 = vadd.f32 %v4569, %v5513
      %v6362 = vadd.f32 %v4570, %v5522
      %v6363 = vadd.f32 %v4571, %v5531
      %v6364 = vadd.f32 %v4572, %v5540
      %v6365 = vadd.f32 %v4573, %v5549
      %v6366 = vadd.f32 %v4574, %v5558
      %v6367 = vadd.f32 %v4575, %v5567
      %v6368 = vadd.f32 %v4576, %v5576
      %v6369 = vadd.f32 %v4577, %v5585
      %v6370 = vadd.f32 %v4578, %v5594
      %v6371 = vadd.f32 %v4579, %v5603
      %v6372 = vadd.f32 %v4580, %v5612
      %v6373 = vadd.f32 %v4581, %v5621
      %v6374 = vadd.f32 %v4582, %v5630
      %v6375 = vadd.f32 %v4583, %v5639
      %v6376 = vadd.f32 %v4584, %v5648
      %v6377 = vadd.f32 %v4585, %v5657
      %v6378 = vadd.f32 %v4586, %v5666
      %v6379 = vadd.f32 %v4587, %v5675
      %v6380 = vadd.f32 %v4588, %v5684
      %v6381 = vadd.f32 %v4589, %v5693
      %v6382 = vadd.f32 %v4590, %v5702
      %v6383 = vadd.f32 %v4591, %v5711
      %v6384 = vadd.f32 %v4592, %v5720
      %v6385 = vadd.f32 %v4593, %v5729
      %v6386 = vadd.f32 %v4594, %v5738
      %v6387 = vadd.f32 %v4595, %v5747
      %v6388 = vadd.f32 %v4596, %v5756
      %v6389 = vadd.f32 %v4597, %v5765
      %v6390 = vadd.f32 %v4598, %v5774
      %v6391 = vadd.f32 %v4599, %v5783
      %v6392 = vadd.f32 %v4600, %v5792
      %v6393 = vadd.f32 %v4601, %v5801
      %v6394 = vadd.f32 %v4602, %v5810
      %v6395 = vadd.f32 %v4603, %v5819
      %v6396 = vadd.f32 %v4604, %v5828
      %v6397 = vadd.f32 %v4605, %v5837
      %v6398 = vadd.f32 %v4606, %v5846
      %v6399 = vadd.f32 %v4607, %v5855
      %v6400 = vadd.f32 %v4608, %v5864
      %v6401 = vadd.f32 %v4609, %v5873
      %v6402 = vadd.f32 %v4610, %v5882
      %v6403 = vadd.f32 %v4611, %v5891
      %v6404 = vadd.f32 %v4612, %v5900
      %v6405 = vadd.f32 %v4613, %v5909
      %v6406 = vadd.f32 %v4614, %v5918
      %v6407 = vadd.f32 %v4615, %v5927
      %v6408 = vadd.f32 %v4616, %v5936
      %v6409 = vadd.f32 %v4617, %v5945
      %v6410 = vadd.f32 %v4618, %v5954
      %v6411 = vadd.f32 %v4619, %v5963
      %v6412 = vadd.f32 %v4620, %v5972
      %v6413 = vadd.f32 %v4621, %v5981
      %v6414 = vadd.f32 %v4622, %v5990
      %v6415 = vadd.f32 %v4623, %v5999
      %v6416 = vadd.f32 %v4624, %v6008
      %v6417 = vadd.f32 %v4625, %v6017
      %v6418 = vadd.f32 %v4626, %v6026
      %v6419 = vadd.f32 %v4627, %v6035
      %v6420 = vadd.f32 %v4628, %v6044
      %v6421 = vadd.f32 %v4629, %v6053
      %v6422 = vadd.f32 %v4630, %v6062
      %v6423 = vadd.f32 %v4631, %v6071
      %v6424 = vadd.f32 %v4632, %v6080
      %v6425 = vadd.f32 %v4633, %v6089
      %v6426 = vadd.f32 %v4634, %v6098
      %v6427 = vadd.f32 %v4635, %v6107
      %v6428 = vadd.f32 %v4636, %v6116
      %v6429 = vadd.f32 %v4637, %v6125
      %v6430 = vadd.f32 %v4638, %v6134
      %v6431 = vadd.f32 %v4639, %v6143
      %v6432 = vadd.f32 %v4640, %v6152
      %v6433 = vadd.f32 %v4641, %v6161
      %v6434 = vadd.f32 %v4642, %v6170
      %v6435 = vadd.f32 %v4643, %v6179
      %v6436 = vadd.f32 %v4644, %v6188
      %v6437 = vadd.f32 %v4645, %v6197
      %v6438 = vadd.f32 %v4646, %v6206
      %v6439 = vadd.f32 %v4647, %v6215
      %v6440 = vadd.f32 %v4648, %v6224
      %v6441 = vadd.f32 %v4649, %v6233
      %v6442 = vadd.f32 %v4650, %v6242
      %v6443 = vadd.f32 %v4651, %v6251
      %v6444 = vadd.f32 %v4652, %v6260
      %v6445 = vadd.f32 %v4653, %v6269
      %v6446 = vadd.f32 %v4654, %v6278
      %v6447 = vadd.f32 %v4655, %v6287
      %v6448 = vadd.f32 %v4656, %v6296
      %v6449 = vadd.f32 %v4657, %v6305
      %v6450 = vadd.f32 %v4658, %v6314
      %v6451 = vadd.f32 %v4659, %v6323
      %vm6452 = vcmp.lt.s32.totalorder %v4531, 1
      %v6453 = vmul.f32 %v6324, 0.99
      %v6454 = vmul.f32 %v6325, 0.99
      %v6455 = vmul.f32 %v6326, 0.99
      %v6456 = vmul.f32 %v6327, 0.99
      %v6457 = vmul.f32 %v6328, 0.99
      %v6458 = vmul.f32 %v6329, 0.99
      %v6459 = vmul.f32 %v6330, 0.99
      %v6460 = vmul.f32 %v6331, 0.99
      %v6461 = vmul.f32 %v6332, 0.99
      %v6462 = vmul.f32 %v6333, 0.99
      %v6463 = vmul.f32 %v6334, 0.99
      %v6464 = vmul.f32 %v6335, 0.99
      %v6465 = vmul.f32 %v6336, 0.99
      %v6466 = vmul.f32 %v6337, 0.99
      %v6467 = vmul.f32 %v6338, 0.99
      %v6468 = vmul.f32 %v6339, 0.99
      %v6469 = vmul.f32 %v6340, 0.99
      %v6470 = vmul.f32 %v6341, 0.99
      %v6471 = vmul.f32 %v6342, 0.99
      %v6472 = vmul.f32 %v6343, 0.99
      %v6473 = vmul.f32 %v6344, 0.99
      %v6474 = vmul.f32 %v6345, 0.99
      %v6475 = vmul.f32 %v6346, 0.99
      %v6476 = vmul.f32 %v6347, 0.99
      %v6477 = vmul.f32 %v6348, 0.99
      %v6478 = vmul.f32 %v6349, 0.99
      %v6479 = vmul.f32 %v6350, 0.99
      %v6480 = vmul.f32 %v6351, 0.99
      %v6481 = vmul.f32 %v6352, 0.99
      %v6482 = vmul.f32 %v6353, 0.99
      %v6483 = vmul.f32 %v6354, 0.99
      %v6484 = vmul.f32 %v6355, 0.99
      %v6485 = vmul.f32 %v6356, 0.99
      %v6486 = vmul.f32 %v6357, 0.99
      %v6487 = vmul.f32 %v6358, 0.99
      %v6488 = vmul.f32 %v6359, 0.99
      %v6489 = vmul.f32 %v6360, 0.99
      %v6490 = vmul.f32 %v6361, 0.99
      %v6491 = vmul.f32 %v6362, 0.99
      %v6492 = vmul.f32 %v6363, 0.99
      %v6493 = vmul.f32 %v6364, 0.99
      %v6494 = vmul.f32 %v6365, 0.99
      %v6495 = vmul.f32 %v6366, 0.99
      %v6496 = vmul.f32 %v6367, 0.99
      %v6497 = vmul.f32 %v6368, 0.99
      %v6498 = vmul.f32 %v6369, 0.99
      %v6499 = vmul.f32 %v6370, 0.99
      %v6500 = vmul.f32 %v6371, 0.99
      %v6501 = vmul.f32 %v6372, 0.99
      %v6502 = vmul.f32 %v6373, 0.99
      %v6503 = vmul.f32 %v6374, 0.99
      %v6504 = vmul.f32 %v6375, 0.99
      %v6505 = vmul.f32 %v6376, 0.99
      %v6506 = vmul.f32 %v6377, 0.99
      %v6507 = vmul.f32 %v6378, 0.99
      %v6508 = vmul.f32 %v6379, 0.99
      %v6509 = vmul.f32 %v6380, 0.99
      %v6510 = vmul.f32 %v6381, 0.99
      %v6511 = vmul.f32 %v6382, 0.99
      %v6512 = vmul.f32 %v6383, 0.99
      %v6513 = vmul.f32 %v6384, 0.99
      %v6514 = vmul.f32 %v6385, 0.99
      %v6515 = vmul.f32 %v6386, 0.99
      %v6516 = vmul.f32 %v6387, 0.99
      %v6517 = vmul.f32 %v6388, 0.99
      %v6518 = vmul.f32 %v6389, 0.99
      %v6519 = vmul.f32 %v6390, 0.99
      %v6520 = vmul.f32 %v6391, 0.99
      %v6521 = vmul.f32 %v6392, 0.99
      %v6522 = vmul.f32 %v6393, 0.99
      %v6523 = vmul.f32 %v6394, 0.99
      %v6524 = vmul.f32 %v6395, 0.99
      %v6525 = vmul.f32 %v6396, 0.99
      %v6526 = vmul.f32 %v6397, 0.99
      %v6527 = vmul.f32 %v6398, 0.99
      %v6528 = vmul.f32 %v6399, 0.99
      %v6529 = vmul.f32 %v6400, 0.99
      %v6530 = vmul.f32 %v6401, 0.99
      %v6531 = vmul.f32 %v6402, 0.99
      %v6532 = vmul.f32 %v6403, 0.99
      %v6533 = vmul.f32 %v6404, 0.99
      %v6534 = vmul.f32 %v6405, 0.99
      %v6535 = vmul.f32 %v6406, 0.99
      %v6536 = vmul.f32 %v6407, 0.99
      %v6537 = vmul.f32 %v6408, 0.99
      %v6538 = vmul.f32 %v6409, 0.99
      %v6539 = vmul.f32 %v6410, 0.99
      %v6540 = vmul.f32 %v6411, 0.99
      %v6541 = vmul.f32 %v6412, 0.99
      %v6542 = vmul.f32 %v6413, 0.99
      %v6543 = vmul.f32 %v6414, 0.99
      %v6544 = vmul.f32 %v6415, 0.99
      %v6545 = vmul.f32 %v6416, 0.99
      %v6546 = vmul.f32 %v6417, 0.99
      %v6547 = vmul.f32 %v6418, 0.99
      %v6548 = vmul.f32 %v6419, 0.99
      %v6549 = vmul.f32 %v6420, 0.99
      %v6550 = vmul.f32 %v6421, 0.99
      %v6551 = vmul.f32 %v6422, 0.99
      %v6552 = vmul.f32 %v6423, 0.99
      %v6553 = vmul.f32 %v6424, 0.99
      %v6554 = vmul.f32 %v6425, 0.99
      %v6555 = vmul.f32 %v6426, 0.99
      %v6556 = vmul.f32 %v6427, 0.99
      %v6557 = vmul.f32 %v6428, 0.99
      %v6558 = vmul.f32 %v6429, 0.99
      %v6559 = vmul.f32 %v6430, 0.99
      %v6560 = vmul.f32 %v6431, 0.99
      %v6561 = vmul.f32 %v6432, 0.99
      %v6562 = vmul.f32 %v6433, 0.99
      %v6563 = vmul.f32 %v6434, 0.99
      %v6564 = vmul.f32 %v6435, 0.99
      %v6565 = vmul.f32 %v6436, 0.99
      %v6566 = vmul.f32 %v6437, 0.99
      %v6567 = vmul.f32 %v6438, 0.99
      %v6568 = vmul.f32 %v6439, 0.99
      %v6569 = vmul.f32 %v6440, 0.99
      %v6570 = vmul.f32 %v6441, 0.99
      %v6571 = vmul.f32 %v6442, 0.99
      %v6572 = vmul.f32 %v6443, 0.99
      %v6573 = vmul.f32 %v6444, 0.99
      %v6574 = vmul.f32 %v6445, 0.99
      %v6575 = vmul.f32 %v6446, 0.99
      %v6576 = vmul.f32 %v6447, 0.99
      %v6577 = vmul.f32 %v6448, 0.99
      %v6578 = vmul.f32 %v6449, 0.99
      %v6579 = vmul.f32 %v6450, 0.99
      %v6580 = vmul.f32 %v6451, 0.99
      %v6581 = vadd.f32 %v6453, 0.01
      %v6582 = vadd.f32 %v6454, 0.01
      %v6583 = vadd.f32 %v6455, 0.01
      %v6584 = vadd.f32 %v6456, 0.01
      %v6585 = vadd.f32 %v6457, 0.01
      %v6586 = vadd.f32 %v6458, 0.01
      %v6587 = vadd.f32 %v6459, 0.01
      %v6588 = vadd.f32 %v6460, 0.01
      %v6589 = vadd.f32 %v6461, 0.01
      %v6590 = vadd.f32 %v6462, 0.01
      %v6591 = vadd.f32 %v6463, 0.01
      %v6592 = vadd.f32 %v6464, 0.01
      %v6593 = vadd.f32 %v6465, 0.01
      %v6594 = vadd.f32 %v6466, 0.01
      %v6595 = vadd.f32 %v6467, 0.01
      %v6596 = vadd.f32 %v6468, 0.01
      %v6597 = vadd.f32 %v6469, 0.01
      %v6598 = vadd.f32 %v6470, 0.01
      %v6599 = vadd.f32 %v6471, 0.01
      %v6600 = vadd.f32 %v6472, 0.01
      %v6601 = vadd.f32 %v6473, 0.01
      %v6602 = vadd.f32 %v6474, 0.01
      %v6603 = vadd.f32 %v6475, 0.01
      %v6604 = vadd.f32 %v6476, 0.01
      %v6605 = vadd.f32 %v6477, 0.01
      %v6606 = vadd.f32 %v6478, 0.01
      %v6607 = vadd.f32 %v6479, 0.01
      %v6608 = vadd.f32 %v6480, 0.01
      %v6609 = vadd.f32 %v6481, 0.01
      %v6610 = vadd.f32 %v6482, 0.01
      %v6611 = vadd.f32 %v6483, 0.01
      %v6612 = vadd.f32 %v6484, 0.01
      %v6613 = vadd.f32 %v6485, 0.01
      %v6614 = vadd.f32 %v6486, 0.01
      %v6615 = vadd.f32 %v6487, 0.01
      %v6616 = vadd.f32 %v6488, 0.01
      %v6617 = vadd.f32 %v6489, 0.01
      %v6618 = vadd.f32 %v6490, 0.01
      %v6619 = vadd.f32 %v6491, 0.01
      %v6620 = vadd.f32 %v6492, 0.01
      %v6621 = vadd.f32 %v6493, 0.01
      %v6622 = vadd.f32 %v6494, 0.01
      %v6623 = vadd.f32 %v6495, 0.01
      %v6624 = vadd.f32 %v6496, 0.01
      %v6625 = vadd.f32 %v6497, 0.01
      %v6626 = vadd.f32 %v6498, 0.01
      %v6627 = vadd.f32 %v6499, 0.01
      %v6628 = vadd.f32 %v6500, 0.01
      %v6629 = vadd.f32 %v6501, 0.01
      %v6630 = vadd.f32 %v6502, 0.01
      %v6631 = vadd.f32 %v6503, 0.01
      %v6632 = vadd.f32 %v6504, 0.01
      %v6633 = vadd.f32 %v6505, 0.01
      %v6634 = vadd.f32 %v6506, 0.01
      %v6635 = vadd.f32 %v6507, 0.01
      %v6636 = vadd.f32 %v6508, 0.01
      %v6637 = vadd.f32 %v6509, 0.01
      %v6638 = vadd.f32 %v6510, 0.01
      %v6639 = vadd.f32 %v6511, 0.01
      %v6640 = vadd.f32 %v6512, 0.01
      %v6641 = vadd.f32 %v6513, 0.01
      %v6642 = vadd.f32 %v6514, 0.01
      %v6643 = vadd.f32 %v6515, 0.01
      %v6644 = vadd.f32 %v6516, 0.01
      %v6645 = vadd.f32 %v6517, 0.01
      %v6646 = vadd.f32 %v6518, 0.01
      %v6647 = vadd.f32 %v6519, 0.01
      %v6648 = vadd.f32 %v6520, 0.01
      %v6649 = vadd.f32 %v6521, 0.01
      %v6650 = vadd.f32 %v6522, 0.01
      %v6651 = vadd.f32 %v6523, 0.01
      %v6652 = vadd.f32 %v6524, 0.01
      %v6653 = vadd.f32 %v6525, 0.01
      %v6654 = vadd.f32 %v6526, 0.01
      %v6655 = vadd.f32 %v6527, 0.01
      %v6656 = vadd.f32 %v6528, 0.01
      %v6657 = vadd.f32 %v6529, 0.01
      %v6658 = vadd.f32 %v6530, 0.01
      %v6659 = vadd.f32 %v6531, 0.01
      %v6660 = vadd.f32 %v6532, 0.01
      %v6661 = vadd.f32 %v6533, 0.01
      %v6662 = vadd.f32 %v6534, 0.01
      %v6663 = vadd.f32 %v6535, 0.01
      %v6664 = vadd.f32 %v6536, 0.01
      %v6665 = vadd.f32 %v6537, 0.01
      %v6666 = vadd.f32 %v6538, 0.01
      %v6667 = vadd.f32 %v6539, 0.01
      %v6668 = vadd.f32 %v6540, 0.01
      %v6669 = vadd.f32 %v6541, 0.01
      %v6670 = vadd.f32 %v6542, 0.01
      %v6671 = vadd.f32 %v6543, 0.01
      %v6672 = vadd.f32 %v6544, 0.01
      %v6673 = vadd.f32 %v6545, 0.01
      %v6674 = vadd.f32 %v6546, 0.01
      %v6675 = vadd.f32 %v6547, 0.01
      %v6676 = vadd.f32 %v6548, 0.01
      %v6677 = vadd.f32 %v6549, 0.01
      %v6678 = vadd.f32 %v6550, 0.01
      %v6679 = vadd.f32 %v6551, 0.01
      %v6680 = vadd.f32 %v6552, 0.01
      %v6681 = vadd.f32 %v6553, 0.01
      %v6682 = vadd.f32 %v6554, 0.01
      %v6683 = vadd.f32 %v6555, 0.01
      %v6684 = vadd.f32 %v6556, 0.01
      %v6685 = vadd.f32 %v6557, 0.01
      %v6686 = vadd.f32 %v6558, 0.01
      %v6687 = vadd.f32 %v6559, 0.01
      %v6688 = vadd.f32 %v6560, 0.01
      %v6689 = vadd.f32 %v6561, 0.01
      %v6690 = vadd.f32 %v6562, 0.01
      %v6691 = vadd.f32 %v6563, 0.01
      %v6692 = vadd.f32 %v6564, 0.01
      %v6693 = vadd.f32 %v6565, 0.01
      %v6694 = vadd.f32 %v6566, 0.01
      %v6695 = vadd.f32 %v6567, 0.01
      %v6696 = vadd.f32 %v6568, 0.01
      %v6697 = vadd.f32 %v6569, 0.01
      %v6698 = vadd.f32 %v6570, 0.01
      %v6699 = vadd.f32 %v6571, 0.01
      %v6700 = vadd.f32 %v6572, 0.01
      %v6701 = vadd.f32 %v6573, 0.01
      %v6702 = vadd.f32 %v6574, 0.01
      %v6703 = vadd.f32 %v6575, 0.01
      %v6704 = vadd.f32 %v6576, 0.01
      %v6705 = vadd.f32 %v6577, 0.01
      %v6706 = vadd.f32 %v6578, 0.01
      %v6707 = vadd.f32 %v6579, 0.01
      %v6708 = vadd.f32 %v6580, 0.01
      %v6709 = vsel %vm6452, %v3892, %v6581
      %v6710 = vsel %vm6452, %v3897, %v6582
      %v6711 = vsel %vm6452, %v3902, %v6583
      %v6712 = vsel %vm6452, %v3907, %v6584
      %v6713 = vsel %vm6452, %v3912, %v6585
      %v6714 = vsel %vm6452, %v3917, %v6586
      %v6715 = vsel %vm6452, %v3922, %v6587
      %v6716 = vsel %vm6452, %v3927, %v6588
      %v6717 = vsel %vm6452, %v3932, %v6589
      %v6718 = vsel %vm6452, %v3937, %v6590
      %v6719 = vsel %vm6452, %v3942, %v6591
      %v6720 = vsel %vm6452, %v3947, %v6592
      %v6721 = vsel %vm6452, %v3952, %v6593
      %v6722 = vsel %vm6452, %v3957, %v6594
      %v6723 = vsel %vm6452, %v3962, %v6595
      %v6724 = vsel %vm6452, %v3967, %v6596
      %v6725 = vsel %vm6452, %v3972, %v6597
      %v6726 = vsel %vm6452, %v3977, %v6598
      %v6727 = vsel %vm6452, %v3982, %v6599
      %v6728 = vsel %vm6452, %v3987, %v6600
      %v6729 = vsel %vm6452, %v3992, %v6601
      %v6730 = vsel %vm6452, %v3997, %v6602
      %v6731 = vsel %vm6452, %v4002, %v6603
      %v6732 = vsel %vm6452, %v4007, %v6604
      %v6733 = vsel %vm6452, %v4012, %v6605
      %v6734 = vsel %vm6452, %v4017, %v6606
      %v6735 = vsel %vm6452, %v4022, %v6607
      %v6736 = vsel %vm6452, %v4027, %v6608
      %v6737 = vsel %vm6452, %v4032, %v6609
      %v6738 = vsel %vm6452, %v4037, %v6610
      %v6739 = vsel %vm6452, %v4042, %v6611
      %v6740 = vsel %vm6452, %v4047, %v6612
      %v6741 = vsel %vm6452, %v4052, %v6613
      %v6742 = vsel %vm6452, %v4057, %v6614
      %v6743 = vsel %vm6452, %v4062, %v6615
      %v6744 = vsel %vm6452, %v4067, %v6616
      %v6745 = vsel %vm6452, %v4072, %v6617
      %v6746 = vsel %vm6452, %v4077, %v6618
      %v6747 = vsel %vm6452, %v4082, %v6619
      %v6748 = vsel %vm6452, %v4087, %v6620
      %v6749 = vsel %vm6452, %v4092, %v6621
      %v6750 = vsel %vm6452, %v4097, %v6622
      %v6751 = vsel %vm6452, %v4102, %v6623
      %v6752 = vsel %vm6452, %v4107, %v6624
      %v6753 = vsel %vm6452, %v4112, %v6625
      %v6754 = vsel %vm6452, %v4117, %v6626
      %v6755 = vsel %vm6452, %v4122, %v6627
      %v6756 = vsel %vm6452, %v4127, %v6628
      %v6757 = vsel %vm6452, %v4132, %v6629
      %v6758 = vsel %vm6452, %v4137, %v6630
      %v6759 = vsel %vm6452, %v4142, %v6631
      %v6760 = vsel %vm6452, %v4147, %v6632
      %v6761 = vsel %vm6452, %v4152, %v6633
      %v6762 = vsel %vm6452, %v4157, %v6634
      %v6763 = vsel %vm6452, %v4162, %v6635
      %v6764 = vsel %vm6452, %v4167, %v6636
      %v6765 = vsel %vm6452, %v4172, %v6637
      %v6766 = vsel %vm6452, %v4177, %v6638
      %v6767 = vsel %vm6452, %v4182, %v6639
      %v6768 = vsel %vm6452, %v4187, %v6640
      %v6769 = vsel %vm6452, %v4192, %v6641
      %v6770 = vsel %vm6452, %v4197, %v6642
      %v6771 = vsel %vm6452, %v4202, %v6643
      %v6772 = vsel %vm6452, %v4207, %v6644
      %v6773 = vsel %vm6452, %v4212, %v6645
      %v6774 = vsel %vm6452, %v4217, %v6646
      %v6775 = vsel %vm6452, %v4222, %v6647
      %v6776 = vsel %vm6452, %v4227, %v6648
      %v6777 = vsel %vm6452, %v4232, %v6649
      %v6778 = vsel %vm6452, %v4237, %v6650
      %v6779 = vsel %vm6452, %v4242, %v6651
      %v6780 = vsel %vm6452, %v4247, %v6652
      %v6781 = vsel %vm6452, %v4252, %v6653
      %v6782 = vsel %vm6452, %v4257, %v6654
      %v6783 = vsel %vm6452, %v4262, %v6655
      %v6784 = vsel %vm6452, %v4267, %v6656
      %v6785 = vsel %vm6452, %v4272, %v6657
      %v6786 = vsel %vm6452, %v4277, %v6658
      %v6787 = vsel %vm6452, %v4282, %v6659
      %v6788 = vsel %vm6452, %v4287, %v6660
      %v6789 = vsel %vm6452, %v4292, %v6661
      %v6790 = vsel %vm6452, %v4297, %v6662
      %v6791 = vsel %vm6452, %v4302, %v6663
      %v6792 = vsel %vm6452, %v4307, %v6664
      %v6793 = vsel %vm6452, %v4312, %v6665
      %v6794 = vsel %vm6452, %v4317, %v6666
      %v6795 = vsel %vm6452, %v4322, %v6667
      %v6796 = vsel %vm6452, %v4327, %v6668
      %v6797 = vsel %vm6452, %v4332, %v6669
      %v6798 = vsel %vm6452, %v4337, %v6670
      %v6799 = vsel %vm6452, %v4342, %v6671
      %v6800 = vsel %vm6452, %v4347, %v6672
      %v6801 = vsel %vm6452, %v4352, %v6673
      %v6802 = vsel %vm6452, %v4357, %v6674
      %v6803 = vsel %vm6452, %v4362, %v6675
      %v6804 = vsel %vm6452, %v4367, %v6676
      %v6805 = vsel %vm6452, %v4372, %v6677
      %v6806 = vsel %vm6452, %v4377, %v6678
      %v6807 = vsel %vm6452, %v4382, %v6679
      %v6808 = vsel %vm6452, %v4387, %v6680
      %v6809 = vsel %vm6452, %v4392, %v6681
      %v6810 = vsel %vm6452, %v4397, %v6682
      %v6811 = vsel %vm6452, %v4402, %v6683
      %v6812 = vsel %vm6452, %v4407, %v6684
      %v6813 = vsel %vm6452, %v4412, %v6685
      %v6814 = vsel %vm6452, %v4417, %v6686
      %v6815 = vsel %vm6452, %v4422, %v6687
      %v6816 = vsel %vm6452, %v4427, %v6688
      %v6817 = vsel %vm6452, %v4432, %v6689
      %v6818 = vsel %vm6452, %v4437, %v6690
      %v6819 = vsel %vm6452, %v4442, %v6691
      %v6820 = vsel %vm6452, %v4447, %v6692
      %v6821 = vsel %vm6452, %v4452, %v6693
      %v6822 = vsel %vm6452, %v4457, %v6694
      %v6823 = vsel %vm6452, %v4462, %v6695
      %v6824 = vsel %vm6452, %v4467, %v6696
      %v6825 = vsel %vm6452, %v4472, %v6697
      %v6826 = vsel %vm6452, %v4477, %v6698
      %v6827 = vsel %vm6452, %v4482, %v6699
      %v6828 = vsel %vm6452, %v4487, %v6700
      %v6829 = vsel %vm6452, %v4492, %v6701
      %v6830 = vsel %vm6452, %v4497, %v6702
      %v6831 = vsel %vm6452, %v4502, %v6703
      %v6832 = vsel %vm6452, %v4507, %v6704
      %v6833 = vsel %vm6452, %v4512, %v6705
      %v6834 = vsel %vm6452, %v4517, %v6706
      %v6835 = vsel %vm6452, %v4522, %v6707
      %v6836 = vsel %vm6452, %v4527, %v6708
      %6837 = vst.msk [vmem:[%s465] sm:$0xff] %vm761, %v6709
      %6838 = vst.msk [vmem:[%s465 + $0x8] sm:$0xff] %vm761, %v6710
      %6839 = vst.msk [vmem:[%s465 + $0x10] sm:$0xff] %vm761, %v6711
      %6840 = vst.msk [vmem:[%s465 + $0x18] sm:$0xff] %vm761, %v6712
      %6841 = vst.msk [vmem:[%s465 + $0x20] sm:$0xff] %vm761, %v6713
      %6842 = vst.msk [vmem:[%s465 + $0x28] sm:$0xff] %vm761, %v6714
      %6843 = vst.msk [vmem:[%s465 + $0x30] sm:$0xff] %vm761, %v6715
      %6844 = vst.msk [vmem:[%s465 + $0x38] sm:$0xff] %vm761, %v6716
      %6845 = vst.msk [vmem:[%s465 + $0x40] sm:$0xff] %vm761, %v6717
      %6846 = vst.msk [vmem:[%s465 + $0x48] sm:$0xff] %vm761, %v6718
      %6847 = vst.msk [vmem:[%s465 + $0x50] sm:$0xff] %vm761, %v6719
      %6848 = vst.msk [vmem:[%s465 + $0x58] sm:$0xff] %vm761, %v6720
      %6849 = vst.msk [vmem:[%s465 + $0x60] sm:$0xff] %vm761, %v6721
      %6850 = vst.msk [vmem:[%s465 + $0x68] sm:$0xff] %vm761, %v6722
      %6851 = vst.msk [vmem:[%s465 + $0x70] sm:$0xff] %vm761, %v6723
      %6852 = vst.msk [vmem:[%s465 + $0x78] sm:$0xff] %vm761, %v6724
      %6853 = vst.msk [vmem:[%s465 + $0x80] sm:$0xff] %vm761, %v6725
      %6854 = vst.msk [vmem:[%s465 + $0x88] sm:$0xff] %vm761, %v6726
      %6855 = vst.msk [vmem:[%s465 + $0x90] sm:$0xff] %vm761, %v6727
      %6856 = vst.msk [vmem:[%s465 + $0x98] sm:$0xff] %vm761, %v6728
      %6857 = vst.msk [vmem:[%s465 + $0xa0] sm:$0xff] %vm761, %v6729
      %6858 = vst.msk [vmem:[%s465 + $0xa8] sm:$0xff] %vm761, %v6730
      %6859 = vst.msk [vmem:[%s465 + $0xb0] sm:$0xff] %vm761, %v6731
      %6860 = vst.msk [vmem:[%s465 + $0xb8] sm:$0xff] %vm761, %v6732
      %6861 = vst.msk [vmem:[%s465 + $0xc0] sm:$0xff] %vm761, %v6733
      %6862 = vst.msk [vmem:[%s465 + $0xc8] sm:$0xff] %vm761, %v6734
      %6863 = vst.msk [vmem:[%s465 + $0xd0] sm:$0xff] %vm761, %v6735
      %6864 = vst.msk [vmem:[%s465 + $0xd8] sm:$0xff] %vm761, %v6736
      %6865 = vst.msk [vmem:[%s465 + $0xe0] sm:$0xff] %vm761, %v6737
      %6866 = vst.msk [vmem:[%s465 + $0xe8] sm:$0xff] %vm761, %v6738
      %6867 = vst.msk [vmem:[%s465 + $0xf0] sm:$0xff] %vm761, %v6739
      %6868 = vst.msk [vmem:[%s465 + $0xf8] sm:$0xff] %vm761, %v6740
      %6869 = vst.msk [vmem:[%s465 + $0x100] sm:$0xff] %vm761, %v6741
      %6870 = vst.msk [vmem:[%s465 + $0x108] sm:$0xff] %vm761, %v6742
      %6871 = vst.msk [vmem:[%s465 + $0x110] sm:$0xff] %vm761, %v6743
      %6872 = vst.msk [vmem:[%s465 + $0x118] sm:$0xff] %vm761, %v6744
      %6873 = vst.msk [vmem:[%s465 + $0x120] sm:$0xff] %vm761, %v6745
      %6874 = vst.msk [vmem:[%s465 + $0x128] sm:$0xff] %vm761, %v6746
      %6875 = vst.msk [vmem:[%s465 + $0x130] sm:$0xff] %vm761, %v6747
      %6876 = vst.msk [vmem:[%s465 + $0x138] sm:$0xff] %vm761, %v6748
      %6877 = vst.msk [vmem:[%s465 + $0x140] sm:$0xff] %vm761, %v6749
      %6878 = vst.msk [vmem:[%s465 + $0x148] sm:$0xff] %vm761, %v6750
      %6879 = vst.msk [vmem:[%s465 + $0x150] sm:$0xff] %vm761, %v6751
      %6880 = vst.msk [vmem:[%s465 + $0x158] sm:$0xff] %vm761, %v6752
      %6881 = vst.msk [vmem:[%s465 + $0x160] sm:$0xff] %vm761, %v6753
      %6882 = vst.msk [vmem:[%s465 + $0x168] sm:$0xff] %vm761, %v6754
      %6883 = vst.msk [vmem:[%s465 + $0x170] sm:$0xff] %vm761, %v6755
      %6884 = vst.msk [vmem:[%s465 + $0x178] sm:$0xff] %vm761, %v6756
      %6885 = vst.msk [vmem:[%s465 + $0x180] sm:$0xff] %vm761, %v6757
      %6886 = vst.msk [vmem:[%s465 + $0x188] sm:$0xff] %vm761, %v6758
      %6887 = vst.msk [vmem:[%s465 + $0x190] sm:$0xff] %vm761, %v6759
      %6888 = vst.msk [vmem:[%s465 + $0x198] sm:$0xff] %vm761, %v6760
      %6889 = vst.msk [vmem:[%s465 + $0x1a0] sm:$0xff] %vm761, %v6761
      %6890 = vst.msk [vmem:[%s465 + $0x1a8] sm:$0xff] %vm761, %v6762
      %6891 = vst.msk [vmem:[%s465 + $0x1b0] sm:$0xff] %vm761, %v6763
      %6892 = vst.msk [vmem:[%s465 + $0x1b8] sm:$0xff] %vm761, %v6764
      %6893 = vst.msk [vmem:[%s465 + $0x1c0] sm:$0xff] %vm761, %v6765
      %6894 = vst.msk [vmem:[%s465 + $0x1c8] sm:$0xff] %vm761, %v6766
      %6895 = vst.msk [vmem:[%s465 + $0x1d0] sm:$0xff] %vm761, %v6767
      %6896 = vst.msk [vmem:[%s465 + $0x1d8] sm:$0xff] %vm761, %v6768
      %6897 = vst.msk [vmem:[%s465 + $0x1e0] sm:$0xff] %vm761, %v6769
      %6898 = vst.msk [vmem:[%s465 + $0x1e8] sm:$0xff] %vm761, %v6770
      %6899 = vst.msk [vmem:[%s465 + $0x1f0] sm:$0xff] %vm761, %v6771
      %6900 = vst.msk [vmem:[%s465 + $0x1f8] sm:$0xff] %vm761, %v6772
      %6901 = vst.msk [vmem:[%s465 + $0x200] sm:$0xff] %vm761, %v6773
      %6902 = vst.msk [vmem:[%s465 + $0x208] sm:$0xff] %vm761, %v6774
      %6903 = vst.msk [vmem:[%s465 + $0x210] sm:$0xff] %vm761, %v6775
      %6904 = vst.msk [vmem:[%s465 + $0x218] sm:$0xff] %vm761, %v6776
      %6905 = vst.msk [vmem:[%s465 + $0x220] sm:$0xff] %vm761, %v6777
      %6906 = vst.msk [vmem:[%s465 + $0x228] sm:$0xff] %vm761, %v6778
      %6907 = vst.msk [vmem:[%s465 + $0x230] sm:$0xff] %vm761, %v6779
      %6908 = vst.msk [vmem:[%s465 + $0x238] sm:$0xff] %vm761, %v6780
      %6909 = vst.msk [vmem:[%s465 + $0x240] sm:$0xff] %vm761, %v6781
      %6910 = vst.msk [vmem:[%s465 + $0x248] sm:$0xff] %vm761, %v6782
      %6911 = vst.msk [vmem:[%s465 + $0x250] sm:$0xff] %vm761, %v6783
      %6912 = vst.msk [vmem:[%s465 + $0x258] sm:$0xff] %vm761, %v6784
      %6913 = vst.msk [vmem:[%s465 + $0x260] sm:$0xff] %vm761, %v6785
      %6914 = vst.msk [vmem:[%s465 + $0x268] sm:$0xff] %vm761, %v6786
      %6915 = vst.msk [vmem:[%s465 + $0x270] sm:$0xff] %vm761, %v6787
      %6916 = vst.msk [vmem:[%s465 + $0x278] sm:$0xff] %vm761, %v6788
      %6917 = vst.msk [vmem:[%s465 + $0x280] sm:$0xff] %vm761, %v6789
      %6918 = vst.msk [vmem:[%s465 + $0x288] sm:$0xff] %vm761, %v6790
      %6919 = vst.msk [vmem:[%s465 + $0x290] sm:$0xff] %vm761, %v6791
      %6920 = vst.msk [vmem:[%s465 + $0x298] sm:$0xff] %vm761, %v6792
      %6921 = vst.msk [vmem:[%s465 + $0x2a0] sm:$0xff] %vm761, %v6793
      %6922 = vst.msk [vmem:[%s465 + $0x2a8] sm:$0xff] %vm761, %v6794
      %6923 = vst.msk [vmem:[%s465 + $0x2b0] sm:$0xff] %vm761, %v6795
      %6924 = vst.msk [vmem:[%s465 + $0x2b8] sm:$0xff] %vm761, %v6796
      %6925 = vst.msk [vmem:[%s465 + $0x2c0] sm:$0xff] %vm761, %v6797
      %6926 = vst.msk [vmem:[%s465 + $0x2c8] sm:$0xff] %vm761, %v6798
      %6927 = vst.msk [vmem:[%s465 + $0x2d0] sm:$0xff] %vm761, %v6799
      %6928 = vst.msk [vmem:[%s465 + $0x2d8] sm:$0xff] %vm761, %v6800
      %6929 = vst.msk [vmem:[%s465 + $0x2e0] sm:$0xff] %vm761, %v6801
      %6930 = vst.msk [vmem:[%s465 + $0x2e8] sm:$0xff] %vm761, %v6802
      %6931 = vst.msk [vmem:[%s465 + $0x2f0] sm:$0xff] %vm761, %v6803
      %6932 = vst.msk [vmem:[%s465 + $0x2f8] sm:$0xff] %vm761, %v6804
      %6933 = vst.msk [vmem:[%s465 + $0x300] sm:$0xff] %vm761, %v6805
      %6934 = vst.msk [vmem:[%s465 + $0x308] sm:$0xff] %vm761, %v6806
      %6935 = vst.msk [vmem:[%s465 + $0x310] sm:$0xff] %vm761, %v6807
      %6936 = vst.msk [vmem:[%s465 + $0x318] sm:$0xff] %vm761, %v6808
      %6937 = vst.msk [vmem:[%s465 + $0x320] sm:$0xff] %vm761, %v6809
      %6938 = vst.msk [vmem:[%s465 + $0x328] sm:$0xff] %vm761, %v6810
      %6939 = vst.msk [vmem:[%s465 + $0x330] sm:$0xff] %vm761, %v6811
      %6940 = vst.msk [vmem:[%s465 + $0x338] sm:$0xff] %vm761, %v6812
      %6941 = vst.msk [vmem:[%s465 + $0x340] sm:$0xff] %vm761, %v6813
      %6942 = vst.msk [vmem:[%s465 + $0x348] sm:$0xff] %vm761, %v6814
      %6943 = vst.msk [vmem:[%s465 + $0x350] sm:$0xff] %vm761, %v6815
      %6944 = vst.msk [vmem:[%s465 + $0x358] sm:$0xff] %vm761, %v6816
      %6945 = vst.msk [vmem:[%s465 + $0x360] sm:$0xff] %vm761, %v6817
      %6946 = vst.msk [vmem:[%s465 + $0x368] sm:$0xff] %vm761, %v6818
      %6947 = vst.msk [vmem:[%s465 + $0x370] sm:$0xff] %vm761, %v6819
      %6948 = vst.msk [vmem:[%s465 + $0x378] sm:$0xff] %vm761, %v6820
      %6949 = vst.msk [vmem:[%s465 + $0x380] sm:$0xff] %vm761, %v6821
      %6950 = vst.msk [vmem:[%s465 + $0x388] sm:$0xff] %vm761, %v6822
      %6951 = vst.msk [vmem:[%s465 + $0x390] sm:$0xff] %vm761, %v6823
      %6952 = vst.msk [vmem:[%s465 + $0x398] sm:$0xff] %vm761, %v6824
      %6953 = vst.msk [vmem:[%s465 + $0x3a0] sm:$0xff] %vm761, %v6825
      %6954 = vst.msk [vmem:[%s465 + $0x3a8] sm:$0xff] %vm761, %v6826
      %6955 = vst.msk [vmem:[%s465 + $0x3b0] sm:$0xff] %vm761, %v6827
      %6956 = vst.msk [vmem:[%s465 + $0x3b8] sm:$0xff] %vm761, %v6828
      %6957 = vst.msk [vmem:[%s465 + $0x3c0] sm:$0xff] %vm761, %v6829
      %6958 = vst.msk [vmem:[%s465 + $0x3c8] sm:$0xff] %vm761, %v6830
      %6959 = vst.msk [vmem:[%s465 + $0x3d0] sm:$0xff] %vm761, %v6831
      %6960 = vst.msk [vmem:[%s465 + $0x3d8] sm:$0xff] %vm761, %v6832
      %6961 = vst.msk [vmem:[%s465 + $0x3e0] sm:$0xff] %vm761, %v6833
      %6962 = vst.msk [vmem:[%s465 + $0x3e8] sm:$0xff] %vm761, %v6834
      %6963 = vst.msk [vmem:[%s465 + $0x3f0] sm:$0xff] %vm761, %v6835
      %6964 = vst.msk [vmem:[%s465 + $0x3f8] sm:$0xff] %vm761, %v6836
      %s6965 = smul.u32 8, %s26
      %s6966 = smul.u32 16, %s27
      %p6967 = scmp.lt.s32.totalorder %s6965, 15
      %s6968 = scalar_select %p6967, %s6965, 15
      %p6969 = scmp.lt.s32.totalorder %s6966, 15
      %s6970 = scalar_select %p6969, %s6966, 15
      %s6971 = smul.addr %s6968, 16
      %s6972 = sadd.s32 %s6970, %s6971
      %s6973 = smul.addr %s6972, 8
      %s6974 = scalar_lea.vmem %s11, %s6973
      // Predicated region
      $region65: #{decoder_forward.1} parent=63 // pred_check
        %p6975 = pneg %p302
      $region66: #{decoder_forward.1} parent=63 // pred_check_branch
        %6977 = sbr.rel (%p6975) target = $region68
      $region67: #{decoder_forward.1} parent=63 // pred_region
        %s6978 = smul.u32 8, %s26
        %s6979 = smul.u32 16, %s27
      $region68: #{decoder_forward.1} parent=63 // pred_fallthru
        _
    $region64: #{decoder_forward.1} parent=5 // pred_fallthru
      _
    %p6980 = scmp.le.s32.totalorder 2, %s17
    // Predicated region
    $region69: #{decoder_forward.1} parent=5 // pred_check
      %p6981 = pneg %p6980
    $region70: #{decoder_forward.1} parent=5 // pred_check_branch
      %6983 = sbr.rel (%p6981) target = $region72
    $region71: #{decoder_forward.1} parent=5 // pred_region
      %s6984 = ssub.s32 %s17, 2
      // Predicated region
      $region73: #{decoder_forward.1} parent=71 // pred_check
        %p6985 = pneg %p308
      $region74: #{decoder_forward.1} parent=71 // pred_check_branch
        %6987 = sbr.rel (%p6985) target = $region76
      $region75: #{decoder_forward.1} parent=71 // pred_region
        %s6988 = smul.u32 8, %s28
        %s6989 = smul.u32 16, %s29
        %p6990 = scmp.lt.s32.totalorder %s6988, 15
        %s6991 = scalar_select %p6990, %s6988, 15
        %p6992 = scmp.lt.s32.totalorder %s6989, 15
        %s6993 = scalar_select %p6992, %s6989, 15
        %s6994 = smul.addr %s6991, 16
        %s6995 = sadd.s32 %s6993, %s6994
        %s6996 = smul.addr %s6995, 8
        %s6997 = scalar_lea.vmem %s11, %s6996
      $region76: #{decoder_forward.1} parent=71 // pred_fallthru
        _
    $region72: #{decoder_forward.1} parent=5 // pred_fallthru
      _
  $region6: #{decoder_forward.1} parent=0 // loop_footer
    %s21 = sadd.s32 1, %s17
  $region7: #{decoder_forward.1} parent=0 // loop_footer_branch
    %16 = sbr.rel target = $region3
  $region8: #{decoder_forward.1} parent=0 // loop_exit
    _

</llo_original>
